<compile_context>
chip_gen: v5e
topology: v5e:2x2
jax: 0.10.0
libtpu: 0.0.40
codegen_flags: <defaults>
</compile_context>

<pallas_src>
import functools
import math

import jax
import jax.numpy as jnp
from jax.experimental import pallas as pl
from jax.experimental.pallas import tpu as pltpu

_LANE = 128
# Sized with large headroom over the biggest live working set (~2 MiB at
# tile=128, ~7 MiB at tile=512); safe on v5e/v6e (128 MiB) and v7x (64 MiB).
_VMEM_LIMIT = 32 * 1024 * 1024


def _round_up(x, m):
    return ((x + m - 1) // m) * m


def _pad2d(a, rows, cols):
    r, c = a.shape
    return jnp.pad(a, ((0, rows - r), (0, cols - c)))


def _cp(dim_sem):
    return pltpu.CompilerParams(dimension_semantics=dim_sem,
                                vmem_limit_bytes=_VMEM_LIMIT)


# ----------------------------------------------------------------------------
# Kernel 1: fused graph_gen MLP
#   emb = l2norm_rows(relu(feat @ W1 + b1) @ W2 + b2), output zero-padded to
#   a multiple of 128 lanes (padding is exact: zero columns keep the row norm
#   and the later inner products unchanged).  Stored bf16 (MXU operand).
# ----------------------------------------------------------------------------
def _mlp_kernel(f_ref, w1_ref, b1_ref, w2_ref, b2_ref, o_ref):
    h = jnp.dot(f_ref[...], w1_ref[...], preferred_element_type=jnp.float32)
    h = jnp.maximum(h + b1_ref[...], 0.0)                       # mlp_act='relu'
    e = jnp.dot(h, w2_ref[...], preferred_element_type=jnp.float32) + b2_ref[...]
    nrm = jnp.sqrt(jnp.sum(e * e, axis=1, keepdims=True))       # F.normalize(dim=1)
    e = e / jnp.maximum(nrm, 1e-12)
    o_ref[...] = e.astype(o_ref.dtype)


def mlp_embed(features, w1, b1, w2, b2, *, tile):
    N, in_dim = features.shape
    hid = w1.shape[1]
    d_pad = _round_up(w2.shape[1], _LANE)
    w2p = _pad2d(w2, hid, d_pad).astype(jnp.float32)
    b2p = _pad2d(b2.reshape(1, -1), 1, d_pad).astype(jnp.float32)
    b1r = b1.reshape(1, hid).astype(jnp.float32)
    tm = min(tile, N)
    assert N % tm == 0
    return pl.pallas_call(
        _mlp_kernel,
        out_shape=jax.ShapeDtypeStruct((N, d_pad), jnp.bfloat16),
        grid_spec=pl.GridSpec(
            grid=(N // tm,),
            in_specs=[
                pl.BlockSpec((tm, in_dim), lambda i: (i, 0)),
                pl.BlockSpec((in_dim, hid), lambda i: (0, 0)),
                pl.BlockSpec((1, hid), lambda i: (0, 0)),
                pl.BlockSpec((hid, d_pad), lambda i: (0, 0)),
                pl.BlockSpec((1, d_pad), lambda i: (0, 0)),
            ],
            out_specs=pl.BlockSpec((tm, d_pad), lambda i: (i, 0)),
        ),
        compiler_params=_cp(("parallel",)),
    )(features.astype(jnp.float32), w1.astype(jnp.float32), b1r, w2p, b2p)


# ----------------------------------------------------------------------------
# Kernel 2: InnerProduct similarity, tiled.  sim[i,j] tile = emb_i @ emb_j^T
# computed with dot_general contracting the last dims (no materialized emb.T).
# bf16 operands, f32 accumulation/output.
# ----------------------------------------------------------------------------
def _sim_kernel(ei_ref, ej_ref, o_ref):
    o_ref[...] = jax.lax.dot_general(
        ei_ref[...], ej_ref[...],
        dimension_numbers=(((1,), (1,)), ((), ())),
        preferred_element_type=jnp.float32)


def inner_product_sim(emb, *, tile):
    N, D = emb.shape
    tm = min(tile, N)
    assert N % tm == 0
    g = N // tm
    return pl.pallas_call(
        _sim_kernel,
        out_shape=jax.ShapeDtypeStruct((N, N), jnp.float32),
        grid_spec=pl.GridSpec(
            grid=(g, g),
            in_specs=[
                pl.BlockSpec((tm, D), lambda i, j: (i, 0)),
                pl.BlockSpec((tm, D), lambda i, j: (j, 0)),
            ],
            out_specs=pl.BlockSpec((tm, tm), lambda i, j: (i, j)),
        ),
        compiler_params=_cp(("parallel", "parallel")),
    )(emb, emb)


# ----------------------------------------------------------------------------
# Kernels 3a/3b: knn-mask + relu + symmetry + sym-normalize, tiled two-pass.
# The transpose arrives by DMA (same sim array with swapped (j,i) index_map);
# only a tile-local transpose is done in-kernel.
#   pass 1: deg[i] = sum_j sym[i,j]        (accumulated over the j grid axis)
#   pass 2: adj[i,j] = d_i * sym[i,j] * d_j,  d = 1/(sqrt(deg)+1e-10)
# NOTE: `s >= thr` with thr = (k+1)-th largest keeps >= k+1 entries on ties
# (torch.topk is index based) — same behavior as the previous version.
# ----------------------------------------------------------------------------
def _masked_sym_tile(s_ij, s_ji, thr_i, thr_j):
    nl_ij = jnp.maximum(jnp.where(s_ij >= thr_i, s_ij, 0.0), 0.0)   # knn + relu
    nl_ji = jnp.maximum(jnp.where(s_ji >= thr_j, s_ji, 0.0), 0.0)
    return (nl_ij + nl_ji.T) * 0.5                                  # symmetry()


def _deg_kernel(s_ij_ref, s_ji_ref, thr_i_ref, thr_j_ref, deg_ref):
    j = pl.program_id(1)

    @pl.when(j == 0)
    def _():
        deg_ref[...] = jnp.zeros_like(deg_ref)

    sym = _masked_sym_tile(s_ij_ref[...], s_ji_ref[...],
                           thr_i_ref[...], thr_j_ref[...])
    deg_ref[...] += jnp.sum(sym, axis=1, keepdims=True)


def _adj_kernel(s_ij_ref, s_ji_ref, thr_i_ref, thr_j_ref,
                deg_i_ref, deg_j_ref, o_ref):
    sym = _masked_sym_tile(s_ij_ref[...], s_ji_ref[...],
                           thr_i_ref[...], thr_j_ref[...])
    d_i = 1.0 / (jnp.sqrt(deg_i_ref[...]) + 1e-10)     # (tm, 1), EOS = 1e-10
    d_j = 1.0 / (jnp.sqrt(deg_j_ref[...]) + 1e-10)     # (tn, 1)
    o_ref[...] = (d_i * sym * d_j.T).astype(o_ref.dtype)


def build_adj(sim, thr, *, tile):
    N = sim.shape[0]
    tm = min(tile, N)
    assert N % tm == 0
    g = N // tm

    deg = pl.pallas_call(
        _deg_kernel,
        out_shape=jax.ShapeDtypeStruct((N, 1), jnp.float32),
        grid_spec=pl.GridSpec(
            grid=(g, g),
            in_specs=[
                pl.BlockSpec((tm, tm), lambda i, j: (i, j)),
                pl.BlockSpec((tm, tm), lambda i, j: (j, i)),
                pl.BlockSpec((tm, 1), lambda i, j: (i, 0)),
                pl.BlockSpec((tm, 1), lambda i, j: (j, 0)),
            ],
            out_specs=pl.BlockSpec((tm, 1), lambda i, j: (i, 0)),
        ),
        compiler_params=_cp(("parallel", "arbitrary")),
    )(sim, sim, thr, thr)

    adj = pl.pallas_call(
        _adj_kernel,
        out_shape=jax.ShapeDtypeStruct((N, N), jnp.float32),
        grid_spec=pl.GridSpec(
            grid=(g, g),
            in_specs=[
                pl.BlockSpec((tm, tm), lambda i, j: (i, j)),
                pl.BlockSpec((tm, tm), lambda i, j: (j, i)),
                pl.BlockSpec((tm, 1), lambda i, j: (i, 0)),
                pl.BlockSpec((tm, 1), lambda i, j: (j, 0)),
                pl.BlockSpec((tm, 1), lambda i, j: (i, 0)),
                pl.BlockSpec((tm, 1), lambda i, j: (j, 0)),
            ],
            out_specs=pl.BlockSpec((tm, tm), lambda i, j: (i, j)),
        ),
        compiler_params=_cp(("parallel", "parallel")),
    )(sim, sim, thr, thr, deg, deg)
    return adj


# ----------------------------------------------------------------------------
# Kernel 4a: xw = x @ W + b, output zero-padded to 128 lanes, stored bf16.
# ----------------------------------------------------------------------------
def _linear_kernel(x_ref, w_ref, b_ref, o_ref):
    o = jnp.dot(x_ref[...], w_ref[...],
                preferred_element_type=jnp.float32) + b_ref[...]
    o_ref[...] = o.astype(o_ref.dtype)


def linear_pad(x, w, b, *, tile):
    N, K = x.shape
    out_pad = _round_up(w.shape[1], _LANE)
    wp = _pad2d(w, K, out_pad).astype(jnp.float32)
    bp = _pad2d(b.reshape(1, -1), 1, out_pad).astype(jnp.float32)
    tm = min(tile, N)
    assert N % tm == 0
    return pl.pallas_call(
        _linear_kernel,
        out_shape=jax.ShapeDtypeStruct((N, out_pad), jnp.bfloat16),
        grid_spec=pl.GridSpec(
            grid=(N // tm,),
            in_specs=[
                pl.BlockSpec((tm, K), lambda i: (i, 0)),
                pl.BlockSpec((K, out_pad), lambda i: (0, 0)),
                pl.BlockSpec((1, out_pad), lambda i: (0, 0)),
            ],
            out_specs=pl.BlockSpec((tm, out_pad), lambda i: (i, 0)),
        ),
        compiler_params=_cp(("parallel",)),
    )(x.astype(jnp.float32), wp, bp)


# ----------------------------------------------------------------------------
# Kernel 4b: fused GCN layer 1 + second linear:
#   h2 = relu(Adj_ @ xw1) @ W2p + b2p
# Tiled reduction over the Adj_ columns with an f32 VMEM accumulator; the tiny
# W2/b2 stay resident in VMEM so the narrow hidden tensor never hits HBM.
# ----------------------------------------------------------------------------
def _gcn_fused_kernel(adj_ref, xw_ref, w2_ref, b2_ref, o_ref, acc_ref):
    k = pl.program_id(1)

    @pl.when(k == 0)
    def _():
        acc_ref[...] = jnp.zeros_like(acc_ref)

    acc_ref[...] += jnp.dot(adj_ref[...].astype(jnp.bfloat16), xw_ref[...],
                            preferred_element_type=jnp.float32)

    @pl.when(k == pl.num_programs(1) - 1)
    def _():
        h = jnp.maximum(acc_ref[...], 0.0)                  # relu(Adj_ @ (x@W1+b1))
        o = jnp.dot(h.astype(jnp.bfloat16), w2_ref[...],
                    preferred_element_type=jnp.float32) + b2_ref[...]
        o_ref[...] = o.astype(o_ref.dtype)


def gcn_layer1_fused(adj, xw1, w2, b2, *, tile):
    N = adj.shape[0]
    hp = xw1.shape[1]                              # padded hidden width
    op = _round_up(w2.shape[1], _LANE)             # padded nclasses width
    w2p = _pad2d(w2, hp, op).astype(jnp.bfloat16)  # zero rows/cols are inert
    b2p = _pad2d(b2.reshape(1, -1), 1, op).astype(jnp.float32)
    tm = min(tile, N)
    tk = min(tile, N)
    assert N % tm == 0 and N % tk == 0
    return pl.pallas_call(
        _gcn_fused_kernel,
        out_shape=jax.ShapeDtypeStruct((N, op), jnp.bfloat16),
        grid_spec=pltpu.PrefetchScalarGridSpec(
            num_scalar_prefetch=0,
            grid=(N // tm, N // tk),
            in_specs=[
                pl.BlockSpec((tm, tk), lambda i, k: (i, k)),
                pl.BlockSpec((tk, hp), lambda i, k: (k, 0)),
                pl.BlockSpec((hp, op), lambda i, k: (0, 0)),
                pl.BlockSpec((1, op), lambda i, k: (0, 0)),
            ],
            out_specs=pl.BlockSpec((tm, op), lambda i, k: (i, 0)),
            scratch_shapes=[pltpu.VMEM((tm, hp), jnp.float32)],
        ),
        compiler_params=_cp(("parallel", "arbitrary")),
    )(adj, xw1, w2p, b2p)


# ----------------------------------------------------------------------------
# Kernel 5: out = Adj_ @ h2   (no bias, no activation), tiled reduction.
# ----------------------------------------------------------------------------
def _gcn_out_kernel(adj_ref, h_ref, o_ref, acc_ref):
    k = pl.program_id(1)

    @pl.when(k == 0)
    def _():
        acc_ref[...] = jnp.zeros_like(acc_ref)

    acc_ref[...] += jnp.dot(adj_ref[...].astype(jnp.bfloat16), h_ref[...],
                            preferred_element_type=jnp.float32)

    @pl.when(k == pl.num_programs(1) - 1)
    def _():
        o_ref[...] = acc_ref[...].astype(o_ref.dtype)


def gcn_out(adj, h, *, tile):
    N = adj.shape[0]
    op = h.shape[1]
    tm = min(tile, N)
    tk = min(tile, N)
    assert N % tm == 0 and N % tk == 0
    return pl.pallas_call(
        _gcn_out_kernel,
        out_shape=jax.ShapeDtypeStruct((N, op), jnp.float32),
        grid_spec=pltpu.PrefetchScalarGridSpec(
            num_scalar_prefetch=0,
            grid=(N // tm, N // tk),
            in_specs=[
                pl.BlockSpec((tm, tk), lambda i, k: (i, k)),
                pl.BlockSpec((tk, op), lambda i, k: (k, 0)),
            ],
            out_specs=pl.BlockSpec((tm, op), lambda i, k: (i, 0)),
            scratch_shapes=[pltpu.VMEM((tm, op), jnp.float32)],
        ),
        compiler_params=_cp(("parallel", "arbitrary")),
    )(adj, h)


# ----------------------------------------------------------------------------
# Full GCN_DAE forward (glue around the Pallas kernels).
# ----------------------------------------------------------------------------
def gcn_dae_forward(params, features, x, k, *, tile=256):
    # --- graph_gen: fused 2-layer MLP + L2 row-normalize ---------------------
    emb = mlp_embed(features, params["mlp_w1"], params["mlp_b1"],
                    params["mlp_w2"], params["mlp_b2"], tile=tile)

    # --- InnerProduct similarities (no host-side transpose) ------------------
    sim = inner_product_sim(emb, tile=tile)

    # (k+1)-th largest value per row, used as the knn threshold.
    # TODO(synk): this lax.top_k pass re-reads sim from HBM once; an in-kernel
    # iterative selection would fuse it with the degree pass.
    thr = jax.lax.top_k(sim, k + 1)[0][:, -1:]

    # --- knn mask + relu + symmetrize + sym-normalize (tiled 2-pass) ---------
    adj = build_adj(sim, thr, tile=tile)

    # --- GCNEncoder (dense; dropout / dropout_adj identity in eval mode) -----
    # TODO(synk): UnGSL sparse-tensor hook and .to_sparse() conversions are
    # skipped (forward is exercised with UnGSL=None; adjacency kept dense).
    xw1 = linear_pad(x, params["gcn_w1"], params["gcn_b1"], tile=tile)
    h2 = gcn_layer1_fused(adj, xw1, params["gcn_w2"], params["gcn_b2"], tile=tile)
    out_pad = gcn_out(adj, h2, tile=tile)
    nclasses = params["gcn_w2"].shape[1]
    return out_pad[:, :nclasses], adj


# ----------------------------------------------------------------------------
if __name__ == "__main__":
    key = jax.random.PRNGKey(0)

    # Small shapes consistent with the module's __init__.
    N = 256                      # number of nodes
    in_dim = 64                  # features.shape[1]
    mlp_h = 16                   # mlp_h (graph_gen output size)
    mlp_hidden = math.floor(math.sqrt(in_dim * mlp_h))   # = 32
    gcn_hidden = 32              # hidden_dim
    nclasses = 8
    k = 20                       # knn k (graph_gen uses k+1)
    tile = 128                   # 2x2 grids at N=256; use 256-512 for large N

    ks = jax.random.split(key, 10)

    def linear_init(kw, kb, fan_in, fan_out):
        # deterministic torch.nn.Linear-style init (uniform +-1/sqrt(fan_in))
        bound = 1.0 / math.sqrt(fan_in)
        w = jax.random.uniform(kw, (fan_in, fan_out), jnp.float32, -bound, bound)
        b = jax.random.uniform(kb, (fan_out,), jnp.float32, -bound, bound)
        return w, b

    # TODO(synk): MLP.mlp_knn_init (the Adam/KNN pre-training loop) is
    # init-time training, not forward compute; weights are initialized
    # deterministically instead.
    params = {}
    params["mlp_w1"], params["mlp_b1"] = linear_init(ks[0], ks[1], in_dim, mlp_hidden)
    params["mlp_w2"], params["mlp_b2"] = linear_init(ks[2], ks[3], mlp_hidden, mlp_h)
    params["gcn_w1"], params["gcn_b1"] = linear_init(ks[4], ks[5], in_dim, gcn_hidden)
    params["gcn_w2"], params["gcn_b2"] = linear_init(ks[6], ks[7], gcn_hidden, nclasses)

    features = jax.random.normal(ks[8], (N, in_dim), jnp.float32)
    x = jax.random.normal(ks[9], (N, in_dim), jnp.float32)

    fwd = jax.jit(functools.partial(gcn_dae_forward, k=k, tile=tile))
    out, adj = fwd(params, features, x)
    jax.block_until_ready((out, adj))

    assert out.shape == (N, nclasses) and out.dtype == jnp.float32
    assert adj.shape == (N, N) and adj.dtype == jnp.float32
    assert bool(jnp.all(jnp.isfinite(out))) and bool(jnp.all(jnp.isfinite(adj)))
    print("KERNEL_OK")
</pallas_src>

<mosaic_0001>
module attributes {stable_mosaic.version = 11 : i64} {
  func.func @_mlp_kernel(%arg0: i32, %arg1: memref<128x64xf32, #tpu.memory_space<vmem>>, %arg2: memref<64x32xf32, #tpu.memory_space<vmem>>, %arg3: memref<1x32xf32, #tpu.memory_space<vmem>>, %arg4: memref<32x128xf32, #tpu.memory_space<vmem>>, %arg5: memref<1x128xf32, #tpu.memory_space<vmem>>, %arg6: memref<128x128xbf16, #tpu.memory_space<vmem>>) attributes {dimension_semantics = [#tpu.dimension_semantics<parallel>], iteration_bounds = array<i64: 2>, scalar_prefetch = 0 : i64, scratch_operands = 0 : i64, tpu.core_type = #tpu.core_type<tc>, window_params = [{transform_indices = @transform_0, window_bounds = array<i64: 128, 64>}, {pipeline_mode = #tpu.pipeline_mode<synchronous>, transform_indices = @transform_1, window_bounds = array<i64: 64, 32>}, {pipeline_mode = #tpu.pipeline_mode<synchronous>, transform_indices = @transform_2, window_bounds = array<i64: 1, 32>}, {pipeline_mode = #tpu.pipeline_mode<synchronous>, transform_indices = @transform_3, window_bounds = array<i64: 32, 128>}, {pipeline_mode = #tpu.pipeline_mode<synchronous>, transform_indices = @transform_4, window_bounds = array<i64: 1, 128>}, {transform_indices = @transform_5, window_bounds = array<i64: 128, 128>}]} {
    %c0 = arith.constant 0 : index
    %c0_0 = arith.constant 0 : index
    %0 = vector.load %arg1[%c0, %c0_0] : memref<128x64xf32, #tpu.memory_space<vmem>>, vector<128x64xf32>
    %c0_1 = arith.constant 0 : index
    %c0_2 = arith.constant 0 : index
    %1 = vector.load %arg2[%c0_1, %c0_2] : memref<64x32xf32, #tpu.memory_space<vmem>>, vector<64x32xf32>
    %cst = arith.constant dense<0.000000e+00> : vector<128x32xf32>
    %2 = tpu.matmul %0, %1, %cst {dimension_numbers = #tpu.dot_dimension_numbers<[1], [0], [0], [1], [0, 0, 1, 1], [], []>} : vector<128x64xf32>, vector<64x32xf32>, vector<128x32xf32> -> vector<128x32xf32>
    %c0_3 = arith.constant 0 : index
    %c0_4 = arith.constant 0 : index
    %3 = vector.load %arg3[%c0_3, %c0_4] : memref<1x32xf32, #tpu.memory_space<vmem>>, vector<1x32xf32>
    %4 = vector.broadcast %3 : vector<1x32xf32> to vector<128x32xf32>
    %5 = arith.addf %2, %4 : vector<128x32xf32>
    %cst_5 = arith.constant 0.000000e+00 : f32
    %6 = vector.broadcast %cst_5 : f32 to vector<128x32xf32>
    %7 = arith.maximumf %5, %6 : vector<128x32xf32>
    %c0_6 = arith.constant 0 : index
    %c0_7 = arith.constant 0 : index
    %8 = vector.load %arg4[%c0_6, %c0_7] : memref<32x128xf32, #tpu.memory_space<vmem>>, vector<32x128xf32>
    %cst_8 = arith.constant dense<0.000000e+00> : vector<128x128xf32>
    %9 = tpu.matmul %7, %8, %cst_8 {dimension_numbers = #tpu.dot_dimension_numbers<[1], [0], [0], [1], [0, 0, 1, 1], [], []>} : vector<128x32xf32>, vector<32x128xf32>, vector<128x128xf32> -> vector<128x128xf32>
    %c0_9 = arith.constant 0 : index
    %c0_10 = arith.constant 0 : index
    %10 = vector.load %arg5[%c0_9, %c0_10] : memref<1x128xf32, #tpu.memory_space<vmem>>, vector<1x128xf32>
    %11 = vector.broadcast %10 : vector<1x128xf32> to vector<128x128xf32>
    %12 = arith.addf %9, %11 : vector<128x128xf32>
    %13 = arith.mulf %12, %12 : vector<128x128xf32>
    %cst_11 = arith.constant dense<0.000000e+00> : vector<128xf32>
    %14 = vector.multi_reduction <add>, %13, %cst_11 [1] : vector<128x128xf32> to vector<128xf32>
    %15 = vector.shape_cast %14 : vector<128xf32> to vector<128x1xf32>
    %16 = math.sqrt %15 : vector<128x1xf32>
    %cst_12 = arith.constant 9.99999996E-13 : f32
    %17 = vector.broadcast %cst_12 : f32 to vector<128x1xf32>
    %18 = arith.maximumf %16, %17 : vector<128x1xf32>
    %19 = vector.broadcast %18 : vector<128x1xf32> to vector<128x128xf32>
    %20 = arith.divf %12, %19 : vector<128x128xf32>
    %21 = arith.truncf %20 : vector<128x128xf32> to vector<128x128xbf16>
    %c0_13 = arith.constant 0 : index
    %c0_14 = arith.constant 0 : index
    %22 = vector.load %arg6[%c0_13, %c0_14] : memref<128x128xbf16, #tpu.memory_space<vmem>>, vector<128x128xbf16>
    tpu.vector_store %arg6[%c0_13, %c0_14], %21 {strides = array<i32>} : memref<128x128xbf16, #tpu.memory_space<vmem>>, vector<128x128xbf16>,
    return
  }
  func.func @transform_0(%arg0: i32) -> (i32, i32) {
    %c0_i32 = arith.constant 0 : i32
    %c0_i32_0 = arith.constant 0 : i32
    return %arg0, %c0_i32 : i32, i32
  }
  func.func @transform_1(%arg0: i32) -> (i32, i32) {
    %c0_i32 = arith.constant 0 : i32
    %c0_i32_0 = arith.constant 0 : i32
    %c0_i32_1 = arith.constant 0 : i32
    return %c0_i32, %c0_i32_0 : i32, i32
  }
  func.func @transform_2(%arg0: i32) -> (i32, i32) {
    %c0_i32 = arith.constant 0 : i32
    %c0_i32_0 = arith.constant 0 : i32
    %c0_i32_1 = arith.constant 0 : i32
    return %c0_i32, %c0_i32_0 : i32, i32
  }
  func.func @transform_3(%arg0: i32) -> (i32, i32) {
    %c0_i32 = arith.constant 0 : i32
    %c0_i32_0 = arith.constant 0 : i32
    %c0_i32_1 = arith.constant 0 : i32
    return %c0_i32, %c0_i32_0 : i32, i32
  }
  func.func @transform_4(%arg0: i32) -> (i32, i32) {
    %c0_i32 = arith.constant 0 : i32
    %c0_i32_0 = arith.constant 0 : i32
    %c0_i32_1 = arith.constant 0 : i32
    return %c0_i32, %c0_i32_0 : i32, i32
  }
  func.func @transform_5(%arg0: i32) -> (i32, i32) {
    %c0_i32 = arith.constant 0 : i32
    %c0_i32_0 = arith.constant 0 : i32
    return %arg0, %c0_i32 : i32, i32
  }
}

module attributes {stable_mosaic.version = 11 : i64} {
  func.func @_sim_kernel(%arg0: i32, %arg1: i32, %arg2: memref<128x128xbf16, #tpu.memory_space<vmem>>, %arg3: memref<128x128xbf16, #tpu.memory_space<vmem>>, %arg4: memref<128x128xf32, #tpu.memory_space<vmem>>) attributes {dimension_semantics = [#tpu.dimension_semantics<parallel>, #tpu.dimension_semantics<parallel>], iteration_bounds = array<i64: 2, 2>, scalar_prefetch = 0 : i64, scratch_operands = 0 : i64, tpu.core_type = #tpu.core_type<tc>, window_params = [{transform_indices = @transform_0, window_bounds = array<i64: 128, 128>}, {transform_indices = @transform_1, window_bounds = array<i64: 128, 128>}, {transform_indices = @transform_2, window_bounds = array<i64: 128, 128>}]} {
    %c0 = arith.constant 0 : index
    %c0_0 = arith.constant 0 : index
    %0 = vector.load %arg2[%c0, %c0_0] : memref<128x128xbf16, #tpu.memory_space<vmem>>, vector<128x128xbf16>
    %c0_1 = arith.constant 0 : index
    %c0_2 = arith.constant 0 : index
    %1 = vector.load %arg3[%c0_1, %c0_2] : memref<128x128xbf16, #tpu.memory_space<vmem>>, vector<128x128xbf16>
    %cst = arith.constant dense<0.000000e+00> : vector<128x128xf32>
    %2 = tpu.matmul %0, %1, %cst {dimension_numbers = #tpu.dot_dimension_numbers<[1], [1], [0], [0], [0, 0, 1, 0], [], []>} : vector<128x128xbf16>, vector<128x128xbf16>, vector<128x128xf32> -> vector<128x128xf32>
    %c0_3 = arith.constant 0 : index
    %c0_4 = arith.constant 0 : index
    %3 = vector.load %arg4[%c0_3, %c0_4] : memref<128x128xf32, #tpu.memory_space<vmem>>, vector<128x128xf32>
    tpu.vector_store %arg4[%c0_3, %c0_4], %2 {strides = array<i32>} : memref<128x128xf32, #tpu.memory_space<vmem>>, vector<128x128xf32>,
    return
  }
  func.func @transform_0(%arg0: i32, %arg1: i32) -> (i32, i32) {
    %c0_i32 = arith.constant 0 : i32
    %c0_i32_0 = arith.constant 0 : i32
    return %arg0, %c0_i32 : i32, i32
  }
  func.func @transform_1(%arg0: i32, %arg1: i32) -> (i32, i32) {
    %c0_i32 = arith.constant 0 : i32
    %c0_i32_0 = arith.constant 0 : i32
    return %arg1, %c0_i32 : i32, i32
  }
  func.func @transform_2(%arg0: i32, %arg1: i32) -> (i32, i32) {
    %c0_i32 = arith.constant 0 : i32
    return %arg0, %arg1 : i32, i32
  }
}

module attributes {stable_mosaic.version = 11 : i64} {
  func.func @_deg_kernel(%arg0: i32, %arg1: i32, %arg2: memref<128x128xf32, #tpu.memory_space<vmem>>, %arg3: memref<128x128xf32, #tpu.memory_space<vmem>>, %arg4: memref<128x1xf32, #tpu.memory_space<vmem>>, %arg5: memref<128x1xf32, #tpu.memory_space<vmem>>, %arg6: memref<128x1xf32, #tpu.memory_space<vmem>>) attributes {dimension_semantics = [#tpu.dimension_semantics<parallel>, #tpu.dimension_semantics<arbitrary>], iteration_bounds = array<i64: 2, 2>, scalar_prefetch = 0 : i64, scratch_operands = 0 : i64, tpu.core_type = #tpu.core_type<tc>, window_params = [{transform_indices = @transform_0, window_bounds = array<i64: 128, 128>}, {transform_indices = @transform_1, window_bounds = array<i64: 128, 128>}, {transform_indices = @transform_2, window_bounds = array<i64: 128, 1>}, {transform_indices = @transform_3, window_bounds = array<i64: 128, 1>}, {transform_indices = @transform_4, window_bounds = array<i64: 128, 1>}]} {
    %c0_i32 = arith.constant 0 : i32
    %0 = arith.cmpi eq, %arg1, %c0_i32 : i32
    %1 = arith.extui %0 : i1 to i32
    %c0_i32_0 = arith.constant 0 : i32
    %2 = arith.cmpi ne, %1, %c0_i32_0 : i32
    scf.if %2 {
      %cst_17 = arith.constant 0.000000e+00 : f32
      %28 = vector.broadcast %cst_17 : f32 to vector<128x1xf32>
      %c0_18 = arith.constant 0 : index
      %c0_19 = arith.constant 0 : index
      %29 = vector.load %arg6[%c0_18, %c0_19] : memref<128x1xf32, #tpu.memory_space<vmem>>, vector<128x1xf32>
      tpu.vector_store %arg6[%c0_18, %c0_19], %28 {strides = array<i32>} : memref<128x1xf32, #tpu.memory_space<vmem>>, vector<128x1xf32>,
    } else {
    }
    %c0 = arith.constant 0 : index
    %c0_1 = arith.constant 0 : index
    %3 = vector.load %arg2[%c0, %c0_1] : memref<128x128xf32, #tpu.memory_space<vmem>>, vector<128x128xf32>
    %c0_2 = arith.constant 0 : index
    %c0_3 = arith.constant 0 : index
    %4 = vector.load %arg3[%c0_2, %c0_3] : memref<128x128xf32, #tpu.memory_space<vmem>>, vector<128x128xf32>
    %c0_4 = arith.constant 0 : index
    %c0_5 = arith.constant 0 : index
    %5 = vector.load %arg4[%c0_4, %c0_5] : memref<128x1xf32, #tpu.memory_space<vmem>>, vector<128x1xf32>
    %c0_6 = arith.constant 0 : index
    %c0_7 = arith.constant 0 : index
    %6 = vector.load %arg5[%c0_6, %c0_7] : memref<128x1xf32, #tpu.memory_space<vmem>>, vector<128x1xf32>
    %7 = vector.broadcast %5 : vector<128x1xf32> to vector<128x128xf32>
    %8 = arith.cmpf oge, %3, %7 : vector<128x128xf32>
    %cst = arith.constant 0.000000e+00 : f32
    %9 = vector.broadcast %cst : f32 to vector<128x128xf32>
    %10 = arith.select %8, %3, %9 : vector<128x128xi1>, vector<128x128xf32>
    %cst_8 = arith.constant 0.000000e+00 : f32
    %11 = vector.broadcast %cst_8 : f32 to vector<128x128xf32>
    %12 = arith.maximumf %10, %11 : vector<128x128xf32>
    %13 = vector.broadcast %6 : vector<128x1xf32> to vector<128x128xf32>
    %14 = arith.cmpf oge, %4, %13 : vector<128x128xf32>
    %cst_9 = arith.constant 0.000000e+00 : f32
    %15 = vector.broadcast %cst_9 : f32 to vector<128x128xf32>
    %16 = arith.select %14, %4, %15 : vector<128x128xi1>, vector<128x128xf32>
    %cst_10 = arith.constant 0.000000e+00 : f32
    %17 = vector.broadcast %cst_10 : f32 to vector<128x128xf32>
    %18 = arith.maximumf %16, %17 : vector<128x128xf32>
    %19 = tpu.transpose %18, [1, 0] : vector<128x128xf32> -> vector<128x128xf32>
    %20 = arith.addf %12, %19 : vector<128x128xf32>
    %cst_11 = arith.constant 5.000000e-01 : f32
    %21 = vector.broadcast %cst_11 : f32 to vector<128x128xf32>
    %22 = arith.mulf %20, %21 : vector<128x128xf32>
    %c0_12 = arith.constant 0 : index
    %c0_13 = arith.constant 0 : index
    %23 = vector.load %arg6[%c0_12, %c0_13] : memref<128x1xf32, #tpu.memory_space<vmem>>, vector<128x1xf32>
    %cst_14 = arith.constant dense<0.000000e+00> : vector<128xf32>
    %24 = vector.multi_reduction <add>, %22, %cst_14 [1] : vector<128x128xf32> to vector<128xf32>
    %25 = vector.shape_cast %24 : vector<128xf32> to vector<128x1xf32>
    %26 = arith.addf %23, %25 : vector<128x1xf32>
    %c0_15 = arith.constant 0 : index
    %c0_16 = arith.constant 0 : index
    %27 = vector.load %arg6[%c0_15, %c0_16] : memref<128x1xf32, #tpu.memory_space<vmem>>, vector<128x1xf32>
    tpu.vector_store %arg6[%c0_15, %c0_16], %26 {strides = array<i32>} : memref<128x1xf32, #tpu.memory_space<vmem>>, vector<128x1xf32>,
    return
  }
  func.func @transform_0(%arg0: i32, %arg1: i32) -> (i32, i32) {
    %c0_i32 = arith.constant 0 : i32
    return %arg0, %arg1 : i32, i32
  }
  func.func @transform_1(%arg0: i32, %arg1: i32) -> (i32, i32) {
    %c0_i32 = arith.constant 0 : i32
    return %arg1, %arg0 : i32, i32
  }
  func.func @transform_2(%arg0: i32, %arg1: i32) -> (i32, i32) {
    %c0_i32 = arith.constant 0 : i32
    %c0_i32_0 = arith.constant 0 : i32
    return %arg0, %c0_i32 : i32, i32
  }
  func.func @transform_3(%arg0: i32, %arg1: i32) -> (i32, i32) {
    %c0_i32 = arith.constant 0 : i32
    %c0_i32_0 = arith.constant 0 : i32
    return %arg1, %c0_i32 : i32, i32
  }
  func.func @transform_4(%arg0: i32, %arg1: i32) -> (i32, i32) {
    %c0_i32 = arith.constant 0 : i32
    %c0_i32_0 = arith.constant 0 : i32
    return %arg0, %c0_i32 : i32, i32
  }
}

module attributes {stable_mosaic.version = 11 : i64} {
  func.func @_adj_kernel(%arg0: i32, %arg1: i32, %arg2: memref<128x128xf32, #tpu.memory_space<vmem>>, %arg3: memref<128x128xf32, #tpu.memory_space<vmem>>, %arg4: memref<128x1xf32, #tpu.memory_space<vmem>>, %arg5: memref<128x1xf32, #tpu.memory_space<vmem>>, %arg6: memref<128x1xf32, #tpu.memory_space<vmem>>, %arg7: memref<128x1xf32, #tpu.memory_space<vmem>>, %arg8: memref<128x128xf32, #tpu.memory_space<vmem>>) attributes {dimension_semantics = [#tpu.dimension_semantics<parallel>, #tpu.dimension_semantics<parallel>], iteration_bounds = array<i64: 2, 2>, scalar_prefetch = 0 : i64, scratch_operands = 0 : i64, tpu.core_type = #tpu.core_type<tc>, window_params = [{transform_indices = @transform_0, window_bounds = array<i64: 128, 128>}, {transform_indices = @transform_1, window_bounds = array<i64: 128, 128>}, {transform_indices = @transform_2, window_bounds = array<i64: 128, 1>}, {transform_indices = @transform_3, window_bounds = array<i64: 128, 1>}, {transform_indices = @transform_4, window_bounds = array<i64: 128, 1>}, {transform_indices = @transform_5, window_bounds = array<i64: 128, 1>}, {transform_indices = @transform_6, window_bounds = array<i64: 128, 128>}]} {
    %c0 = arith.constant 0 : index
    %c0_0 = arith.constant 0 : index
    %0 = vector.load %arg2[%c0, %c0_0] : memref<128x128xf32, #tpu.memory_space<vmem>>, vector<128x128xf32>
    %c0_1 = arith.constant 0 : index
    %c0_2 = arith.constant 0 : index
    %1 = vector.load %arg3[%c0_1, %c0_2] : memref<128x128xf32, #tpu.memory_space<vmem>>, vector<128x128xf32>
    %c0_3 = arith.constant 0 : index
    %c0_4 = arith.constant 0 : index
    %2 = vector.load %arg4[%c0_3, %c0_4] : memref<128x1xf32, #tpu.memory_space<vmem>>, vector<128x1xf32>
    %c0_5 = arith.constant 0 : index
    %c0_6 = arith.constant 0 : index
    %3 = vector.load %arg5[%c0_5, %c0_6] : memref<128x1xf32, #tpu.memory_space<vmem>>, vector<128x1xf32>
    %4 = vector.broadcast %2 : vector<128x1xf32> to vector<128x128xf32>
    %5 = arith.cmpf oge, %0, %4 : vector<128x128xf32>
    %cst = arith.constant 0.000000e+00 : f32
    %6 = vector.broadcast %cst : f32 to vector<128x128xf32>
    %7 = arith.select %5, %0, %6 : vector<128x128xi1>, vector<128x128xf32>
    %cst_7 = arith.constant 0.000000e+00 : f32
    %8 = vector.broadcast %cst_7 : f32 to vector<128x128xf32>
    %9 = arith.maximumf %7, %8 : vector<128x128xf32>
    %10 = vector.broadcast %3 : vector<128x1xf32> to vector<128x128xf32>
    %11 = arith.cmpf oge, %1, %10 : vector<128x128xf32>
    %cst_8 = arith.constant 0.000000e+00 : f32
    %12 = vector.broadcast %cst_8 : f32 to vector<128x128xf32>
    %13 = arith.select %11, %1, %12 : vector<128x128xi1>, vector<128x128xf32>
    %cst_9 = arith.constant 0.000000e+00 : f32
    %14 = vector.broadcast %cst_9 : f32 to vector<128x128xf32>
    %15 = arith.maximumf %13, %14 : vector<128x128xf32>
    %16 = tpu.transpose %15, [1, 0] : vector<128x128xf32> -> vector<128x128xf32>
    %17 = arith.addf %9, %16 : vector<128x128xf32>
    %cst_10 = arith.constant 5.000000e-01 : f32
    %18 = vector.broadcast %cst_10 : f32 to vector<128x128xf32>
    %19 = arith.mulf %17, %18 : vector<128x128xf32>
    %c0_11 = arith.constant 0 : index
    %c0_12 = arith.constant 0 : index
    %20 = vector.load %arg6[%c0_11, %c0_12] : memref<128x1xf32, #tpu.memory_space<vmem>>, vector<128x1xf32>
    %21 = math.sqrt %20 : vector<128x1xf32>
    %cst_13 = arith.constant 1.000000e-10 : f32
    %22 = vector.broadcast %cst_13 : f32 to vector<128x1xf32>
    %23 = arith.addf %21, %22 : vector<128x1xf32>
    %cst_14 = arith.constant 1.000000e+00 : f32
    %24 = vector.broadcast %cst_14 : f32 to vector<128x1xf32>
    %25 = arith.divf %24, %23 : vector<128x1xf32>
    %c0_15 = arith.constant 0 : index
    %c0_16 = arith.constant 0 : index
    %26 = vector.load %arg7[%c0_15, %c0_16] : memref<128x1xf32, #tpu.memory_space<vmem>>, vector<128x1xf32>
    %27 = math.sqrt %26 : vector<128x1xf32>
    %cst_17 = arith.constant 1.000000e-10 : f32
    %28 = vector.broadcast %cst_17 : f32 to vector<128x1xf32>
    %29 = arith.addf %27, %28 : vector<128x1xf32>
    %cst_18 = arith.constant 1.000000e+00 : f32
    %30 = vector.broadcast %cst_18 : f32 to vector<128x1xf32>
    %31 = arith.divf %30, %29 : vector<128x1xf32>
    %32 = vector.broadcast %25 : vector<128x1xf32> to vector<128x128xf32>
    %33 = arith.mulf %32, %19 : vector<128x128xf32>
    %34 = tpu.transpose %31, [1, 0] : vector<128x1xf32> -> vector<1x128xf32>
    %35 = vector.broadcast %34 : vector<1x128xf32> to vector<128x128xf32>
    %36 = arith.mulf %33, %35 : vector<128x128xf32>
    %c0_19 = arith.constant 0 : index
    %c0_20 = arith.constant 0 : index
    %37 = vector.load %arg8[%c0_19, %c0_20] : memref<128x128xf32, #tpu.memory_space<vmem>>, vector<128x128xf32>
    tpu.vector_store %arg8[%c0_19, %c0_20], %36 {strides = array<i32>} : memref<128x128xf32, #tpu.memory_space<vmem>>, vector<128x128xf32>,
    return
  }
  func.func @transform_0(%arg0: i32, %arg1: i32) -> (i32, i32) {
    %c0_i32 = arith.constant 0 : i32
    return %arg0, %arg1 : i32, i32
  }
  func.func @transform_1(%arg0: i32, %arg1: i32) -> (i32, i32) {
    %c0_i32 = arith.constant 0 : i32
    return %arg1, %arg0 : i32, i32
  }
  func.func @transform_2(%arg0: i32, %arg1: i32) -> (i32, i32) {
    %c0_i32 = arith.constant 0 : i32
    %c0_i32_0 = arith.constant 0 : i32
    return %arg0, %c0_i32 : i32, i32
  }
  func.func @transform_3(%arg0: i32, %arg1: i32) -> (i32, i32) {
    %c0_i32 = arith.constant 0 : i32
    %c0_i32_0 = arith.constant 0 : i32
    return %arg1, %c0_i32 : i32, i32
  }
  func.func @transform_4(%arg0: i32, %arg1: i32) -> (i32, i32) {
    %c0_i32 = arith.constant 0 : i32
    %c0_i32_0 = arith.constant 0 : i32
    return %arg0, %c0_i32 : i32, i32
  }
  func.func @transform_5(%arg0: i32, %arg1: i32) -> (i32, i32) {
    %c0_i32 = arith.constant 0 : i32
    %c0_i32_0 = arith.constant 0 : i32
    return %arg1, %c0_i32 : i32, i32
  }
  func.func @transform_6(%arg0: i32, %arg1: i32) -> (i32, i32) {
    %c0_i32 = arith.constant 0 : i32
    return %arg0, %arg1 : i32, i32
  }
}

module attributes {stable_mosaic.version = 11 : i64} {
  func.func @_linear_kernel(%arg0: i32, %arg1: memref<128x64xf32, #tpu.memory_space<vmem>>, %arg2: memref<64x128xf32, #tpu.memory_space<vmem>>, %arg3: memref<1x128xf32, #tpu.memory_space<vmem>>, %arg4: memref<128x128xbf16, #tpu.memory_space<vmem>>) attributes {dimension_semantics = [#tpu.dimension_semantics<parallel>], iteration_bounds = array<i64: 2>, scalar_prefetch = 0 : i64, scratch_operands = 0 : i64, tpu.core_type = #tpu.core_type<tc>, window_params = [{transform_indices = @transform_0, window_bounds = array<i64: 128, 64>}, {pipeline_mode = #tpu.pipeline_mode<synchronous>, transform_indices = @transform_1, window_bounds = array<i64: 64, 128>}, {pipeline_mode = #tpu.pipeline_mode<synchronous>, transform_indices = @transform_2, window_bounds = array<i64: 1, 128>}, {transform_indices = @transform_3, window_bounds = array<i64: 128, 128>}]} {
    %c0 = arith.constant 0 : index
    %c0_0 = arith.constant 0 : index
    %0 = vector.load %arg1[%c0, %c0_0] : memref<128x64xf32, #tpu.memory_space<vmem>>, vector<128x64xf32>
    %c0_1 = arith.constant 0 : index
    %c0_2 = arith.constant 0 : index
    %1 = vector.load %arg2[%c0_1, %c0_2] : memref<64x128xf32, #tpu.memory_space<vmem>>, vector<64x128xf32>
    %cst = arith.constant dense<0.000000e+00> : vector<128x128xf32>
    %2 = tpu.matmul %0, %1, %cst {dimension_numbers = #tpu.dot_dimension_numbers<[1], [0], [0], [1], [0, 0, 1, 1], [], []>} : vector<128x64xf32>, vector<64x128xf32>, vector<128x128xf32> -> vector<128x128xf32>
    %c0_3 = arith.constant 0 : index
    %c0_4 = arith.constant 0 : index
    %3 = vector.load %arg3[%c0_3, %c0_4] : memref<1x128xf32, #tpu.memory_space<vmem>>, vector<1x128xf32>
    %4 = vector.broadcast %3 : vector<1x128xf32> to vector<128x128xf32>
    %5 = arith.addf %2, %4 : vector<128x128xf32>
    %6 = arith.truncf %5 : vector<128x128xf32> to vector<128x128xbf16>
    %c0_5 = arith.constant 0 : index
    %c0_6 = arith.constant 0 : index
    %7 = vector.load %arg4[%c0_5, %c0_6] : memref<128x128xbf16, #tpu.memory_space<vmem>>, vector<128x128xbf16>
    tpu.vector_store %arg4[%c0_5, %c0_6], %6 {strides = array<i32>} : memref<128x128xbf16, #tpu.memory_space<vmem>>, vector<128x128xbf16>,
    return
  }
  func.func @transform_0(%arg0: i32) -> (i32, i32) {
    %c0_i32 = arith.constant 0 : i32
    %c0_i32_0 = arith.constant 0 : i32
    return %arg0, %c0_i32 : i32, i32
  }
  func.func @transform_1(%arg0: i32) -> (i32, i32) {
    %c0_i32 = arith.constant 0 : i32
    %c0_i32_0 = arith.constant 0 : i32
    %c0_i32_1 = arith.constant 0 : i32
    return %c0_i32, %c0_i32_0 : i32, i32
  }
  func.func @transform_2(%arg0: i32) -> (i32, i32) {
    %c0_i32 = arith.constant 0 : i32
    %c0_i32_0 = arith.constant 0 : i32
    %c0_i32_1 = arith.constant 0 : i32
    return %c0_i32, %c0_i32_0 : i32, i32
  }
  func.func @transform_3(%arg0: i32) -> (i32, i32) {
    %c0_i32 = arith.constant 0 : i32
    %c0_i32_0 = arith.constant 0 : i32
    return %arg0, %c0_i32 : i32, i32
  }
}

module attributes {stable_mosaic.version = 11 : i64} {
  func.func @_gcn_out_kernel(%arg0: i32, %arg1: i32, %arg2: memref<128x128xf32, #tpu.memory_space<vmem>>, %arg3: memref<128x128xbf16, #tpu.memory_space<vmem>>, %arg4: memref<128x128xf32, #tpu.memory_space<vmem>>, %arg5: memref<128x128xf32, #tpu.memory_space<vmem>>) attributes {dimension_semantics = [#tpu.dimension_semantics<parallel>, #tpu.dimension_semantics<arbitrary>], iteration_bounds = array<i64: 2, 2>, scalar_prefetch = 0 : i64, scratch_operands = 1 : i64, tpu.core_type = #tpu.core_type<tc>, window_params = [{transform_indices = @transform_0, window_bounds = array<i64: 128, 128>}, {transform_indices = @transform_1, window_bounds = array<i64: 128, 128>}, {transform_indices = @transform_2, window_bounds = array<i64: 128, 128>}]} {
    %c0_i32 = arith.constant 0 : i32
    %0 = arith.cmpi eq, %arg1, %c0_i32 : i32
    %1 = arith.extui %0 : i1 to i32
    %c0_i32_0 = arith.constant 0 : i32
    %2 = arith.cmpi ne, %1, %c0_i32_0 : i32
    scf.if %2 {
      %cst_9 = arith.constant 0.000000e+00 : f32
      %13 = vector.broadcast %cst_9 : f32 to vector<128x128xf32>
      %c0_10 = arith.constant 0 : index
      %c0_11 = arith.constant 0 : index
      %14 = vector.load %arg5[%c0_10, %c0_11] : memref<128x128xf32, #tpu.memory_space<vmem>>, vector<128x128xf32>
      tpu.vector_store %arg5[%c0_10, %c0_11], %13 {strides = array<i32>} : memref<128x128xf32, #tpu.memory_space<vmem>>, vector<128x128xf32>,
    } else {
    }
    %c0 = arith.constant 0 : index
    %c0_1 = arith.constant 0 : index
    %3 = vector.load %arg5[%c0, %c0_1] : memref<128x128xf32, #tpu.memory_space<vmem>>, vector<128x128xf32>
    %c0_2 = arith.constant 0 : index
    %c0_3 = arith.constant 0 : index
    %4 = vector.load %arg2[%c0_2, %c0_3] : memref<128x128xf32, #tpu.memory_space<vmem>>, vector<128x128xf32>
    %5 = arith.truncf %4 : vector<128x128xf32> to vector<128x128xbf16>
    %c0_4 = arith.constant 0 : index
    %c0_5 = arith.constant 0 : index
    %6 = vector.load %arg3[%c0_4, %c0_5] : memref<128x128xbf16, #tpu.memory_space<vmem>>, vector<128x128xbf16>
    %cst = arith.constant dense<0.000000e+00> : vector<128x128xf32>
    %7 = tpu.matmul %5, %6, %cst {dimension_numbers = #tpu.dot_dimension_numbers<[1], [0], [0], [1], [0, 0, 1, 1], [], []>} : vector<128x128xbf16>, vector<128x128xbf16>, vector<128x128xf32> -> vector<128x128xf32>
    %8 = arith.addf %3, %7 : vector<128x128xf32>
    %c0_6 = arith.constant 0 : index
    %c0_7 = arith.constant 0 : index
    %9 = vector.load %arg5[%c0_6, %c0_7] : memref<128x128xf32, #tpu.memory_space<vmem>>, vector<128x128xf32>
    tpu.vector_store %arg5[%c0_6, %c0_7], %8 {strides = array<i32>} : memref<128x128xf32, #tpu.memory_space<vmem>>, vector<128x128xf32>,
    %c1_i32 = arith.constant 1 : i32
    %10 = arith.cmpi eq, %arg1, %c1_i32 : i32
    %11 = arith.extui %10 : i1 to i32
    %c0_i32_8 = arith.constant 0 : i32
    %12 = arith.cmpi ne, %11, %c0_i32_8 : i32
    scf.if %12 {
      %c0_9 = arith.constant 0 : index
      %c0_10 = arith.constant 0 : index
      %13 = vector.load %arg5[%c0_9, %c0_10] : memref<128x128xf32, #tpu.memory_space<vmem>>, vector<128x128xf32>
      %c0_11 = arith.constant 0 : index
      %c0_12 = arith.constant 0 : index
      %14 = vector.load %arg4[%c0_11, %c0_12] : memref<128x128xf32, #tpu.memory_space<vmem>>, vector<128x128xf32>
      tpu.vector_store %arg4[%c0_11, %c0_12], %13 {strides = array<i32>} : memref<128x128xf32, #tpu.memory_space<vmem>>, vector<128x128xf32>,
    } else {
    }
    return
  }
  func.func @transform_0(%arg0: i32, %arg1: i32) -> (i32, i32) {
    %c0_i32 = arith.constant 0 : i32
    return %arg0, %arg1 : i32, i32
  }
  func.func @transform_1(%arg0: i32, %arg1: i32) -> (i32, i32) {
    %c0_i32 = arith.constant 0 : i32
    %c0_i32_0 = arith.constant 0 : i32
    return %arg1, %c0_i32 : i32, i32
  }
  func.func @transform_2(%arg0: i32, %arg1: i32) -> (i32, i32) {
    %c0_i32 = arith.constant 0 : i32
    %c0_i32_0 = arith.constant 0 : i32
    return %arg0, %c0_i32 : i32, i32
  }
}

module attributes {stable_mosaic.version = 11 : i64} {
  func.func @_gcn_fused_kernel(%arg0: i32, %arg1: i32, %arg2: memref<128x128xf32, #tpu.memory_space<vmem>>, %arg3: memref<128x128xbf16, #tpu.memory_space<vmem>>, %arg4: memref<128x128xbf16, #tpu.memory_space<vmem>>, %arg5: memref<1x128xf32, #tpu.memory_space<vmem>>, %arg6: memref<128x128xbf16, #tpu.memory_space<vmem>>, %arg7: memref<128x128xf32, #tpu.memory_space<vmem>>) attributes {dimension_semantics = [#tpu.dimension_semantics<parallel>, #tpu.dimension_semantics<arbitrary>], iteration_bounds = array<i64: 2, 2>, scalar_prefetch = 0 : i64, scratch_operands = 1 : i64, tpu.core_type = #tpu.core_type<tc>, window_params = [{transform_indices = @transform_0, window_bounds = array<i64: 128, 128>}, {transform_indices = @transform_1, window_bounds = array<i64: 128, 128>}, {pipeline_mode = #tpu.pipeline_mode<synchronous>, transform_indices = @transform_2, window_bounds = array<i64: 128, 128>}, {pipeline_mode = #tpu.pipeline_mode<synchronous>, transform_indices = @transform_3, window_bounds = array<i64: 1, 128>}, {transform_indices = @transform_4, window_bounds = array<i64: 128, 128>}]} {
    %c0_i32 = arith.constant 0 : i32
    %0 = arith.cmpi eq, %arg1, %c0_i32 : i32
    %1 = arith.extui %0 : i1 to i32
    %c0_i32_0 = arith.constant 0 : i32
    %2 = arith.cmpi ne, %1, %c0_i32_0 : i32
    scf.if %2 {
      %cst_9 = arith.constant 0.000000e+00 : f32
      %13 = vector.broadcast %cst_9 : f32 to vector<128x128xf32>
      %c0_10 = arith.constant 0 : index
      %c0_11 = arith.constant 0 : index
      %14 = vector.load %arg7[%c0_10, %c0_11] : memref<128x128xf32, #tpu.memory_space<vmem>>, vector<128x128xf32>
      tpu.vector_store %arg7[%c0_10, %c0_11], %13 {strides = array<i32>} : memref<128x128xf32, #tpu.memory_space<vmem>>, vector<128x128xf32>,
    } else {
    }
    %c0 = arith.constant 0 : index
    %c0_1 = arith.constant 0 : index
    %3 = vector.load %arg7[%c0, %c0_1] : memref<128x128xf32, #tpu.memory_space<vmem>>, vector<128x128xf32>
    %c0_2 = arith.constant 0 : index
    %c0_3 = arith.constant 0 : index
    %4 = vector.load %arg2[%c0_2, %c0_3] : memref<128x128xf32, #tpu.memory_space<vmem>>, vector<128x128xf32>
    %5 = arith.truncf %4 : vector<128x128xf32> to vector<128x128xbf16>
    %c0_4 = arith.constant 0 : index
    %c0_5 = arith.constant 0 : index
    %6 = vector.load %arg3[%c0_4, %c0_5] : memref<128x128xbf16, #tpu.memory_space<vmem>>, vector<128x128xbf16>
    %cst = arith.constant dense<0.000000e+00> : vector<128x128xf32>
    %7 = tpu.matmul %5, %6, %cst {dimension_numbers = #tpu.dot_dimension_numbers<[1], [0], [0], [1], [0, 0, 1, 1], [], []>} : vector<128x128xbf16>, vector<128x128xbf16>, vector<128x128xf32> -> vector<128x128xf32>
    %8 = arith.addf %3, %7 : vector<128x128xf32>
    %c0_6 = arith.constant 0 : index
    %c0_7 = arith.constant 0 : index
    %9 = vector.load %arg7[%c0_6, %c0_7] : memref<128x128xf32, #tpu.memory_space<vmem>>, vector<128x128xf32>
    tpu.vector_store %arg7[%c0_6, %c0_7], %8 {strides = array<i32>} : memref<128x128xf32, #tpu.memory_space<vmem>>, vector<128x128xf32>,
    %c1_i32 = arith.constant 1 : i32
    %10 = arith.cmpi eq, %arg1, %c1_i32 : i32
    %11 = arith.extui %10 : i1 to i32
    %c0_i32_8 = arith.constant 0 : i32
    %12 = arith.cmpi ne, %11, %c0_i32_8 : i32
    scf.if %12 {
      %c0_9 = arith.constant 0 : index
      %c0_10 = arith.constant 0 : index
      %13 = vector.load %arg7[%c0_9, %c0_10] : memref<128x128xf32, #tpu.memory_space<vmem>>, vector<128x128xf32>
      %cst_11 = arith.constant 0.000000e+00 : f32
      %14 = vector.broadcast %cst_11 : f32 to vector<128x128xf32>
      %15 = arith.maximumf %13, %14 : vector<128x128xf32>
      %16 = arith.truncf %15 : vector<128x128xf32> to vector<128x128xbf16>
      %c0_12 = arith.constant 0 : index
      %c0_13 = arith.constant 0 : index
      %17 = vector.load %arg4[%c0_12, %c0_13] : memref<128x128xbf16, #tpu.memory_space<vmem>>, vector<128x128xbf16>
      %cst_14 = arith.constant dense<0.000000e+00> : vector<128x128xf32>
      %18 = tpu.matmul %16, %17, %cst_14 {dimension_numbers = #tpu.dot_dimension_numbers<[1], [0], [0], [1], [0, 0, 1, 1], [], []>} : vector<128x128xbf16>, vector<128x128xbf16>, vector<128x128xf32> -> vector<128x128xf32>
      %c0_15 = arith.constant 0 : index
      %c0_16 = arith.constant 0 : index
      %19 = vector.load %arg5[%c0_15, %c0_16] : memref<1x128xf32, #tpu.memory_space<vmem>>, vector<1x128xf32>
      %20 = vector.broadcast %19 : vector<1x128xf32> to vector<128x128xf32>
      %21 = arith.addf %18, %20 : vector<128x128xf32>
      %22 = arith.truncf %21 : vector<128x128xf32> to vector<128x128xbf16>
      %c0_17 = arith.constant 0 : index
      %c0_18 = arith.constant 0 : index
      %23 = vector.load %arg6[%c0_17, %c0_18] : memref<128x128xbf16, #tpu.memory_space<vmem>>, vector<128x128xbf16>
      tpu.vector_store %arg6[%c0_17, %c0_18], %22 {strides = array<i32>} : memref<128x128xbf16, #tpu.memory_space<vmem>>, vector<128x128xbf16>,
    } else {
    }
    return
  }
  func.func @transform_0(%arg0: i32, %arg1: i32) -> (i32, i32) {
    %c0_i32 = arith.constant 0 : i32
    return %arg0, %arg1 : i32, i32
  }
  func.func @transform_1(%arg0: i32, %arg1: i32) -> (i32, i32) {
    %c0_i32 = arith.constant 0 : i32
    %c0_i32_0 = arith.constant 0 : i32
    return %arg1, %c0_i32 : i32, i32
  }
  func.func @transform_2(%arg0: i32, %arg1: i32) -> (i32, i32) {
    %c0_i32 = arith.constant 0 : i32
    %c0_i32_0 = arith.constant 0 : i32
    %c0_i32_1 = arith.constant 0 : i32
    return %c0_i32, %c0_i32_0 : i32, i32
  }
  func.func @transform_3(%arg0: i32, %arg1: i32) -> (i32, i32) {
    %c0_i32 = arith.constant 0 : i32
    %c0_i32_0 = arith.constant 0 : i32
    %c0_i32_1 = arith.constant 0 : i32
    return %c0_i32, %c0_i32_0 : i32, i32
  }
  func.func @transform_4(%arg0: i32, %arg1: i32) -> (i32, i32) {
    %c0_i32 = arith.constant 0 : i32
    %c0_i32_0 = arith.constant 0 : i32
    return %arg0, %c0_i32 : i32, i32
  }
}

</mosaic_0001>

<llo_original>
// kernel: gcn_dae_forward.7
$region0: #{gcn_dae_forward.7}
  #allocation0 [shape = 'u32[]', space=smem, size = 0x4, offset = 0x4, fixed_abs, tag = 'smem constant byte address 0x4 - core index']
  #allocation1 [shape = 'u32[72,128]{1,0:T(1,128)}', space=vmem, size = 0x9000, scoped, tag = 'internal scratch']
  %s0 = inlined_call_operand.vmem [shape: f32[256,64], index: 0, kind: input, shape index: {}]
  %s1 = inlined_call_operand.vmem [shape: f32[64,32], index: 1, kind: input, shape index: {}]
  %s2 = inlined_call_operand.vmem [shape: f32[1,32], index: 2, kind: input, shape index: {}]
  %s3 = inlined_call_operand.vmem [shape: f32[32,128], index: 3, kind: input, shape index: {}]
  %s4 = inlined_call_operand.vmem [shape: f32[1,128], index: 4, kind: input, shape index: {}]
  %s5 = inlined_call_operand.vmem [shape: bf16[256,128], index: 5, kind: output, shape index: {}]
  %s6 = sld [smem:[#allocation0]]
  $region53: #{gcn_dae_forward.7} parent=0
    _
  %s8 = ssub.s32 1, %s6
  %s9 = scalar_select 0, %s8, %s6
  loop: start=0, step=1, limit=4
  $region2: #{gcn_dae_forward.7} parent=0 // loop_pre_header
    _
  $region3: #{gcn_dae_forward.7} parent=0 // loop_header
    %s11 = sphi 0, %s15
    %p12 = scmp.ge.s32.totalorder %s11, 4
    %s21 = sphi 0, %s23
    %s24 = sphi 0, %s21
    %s25 = sphi 0, %s24
    %s41 = sphi 0, %s25
    %s45 = sphi 0, %s45
    %s47 = sphi 0, %s45
    %s48 = sphi 0, %s47
    %s62 = sphi 0, %s48
    %s66 = sphi 0, %s66
    %s68 = sphi 0, %s66
    %s69 = sphi 0, %s68
    %s83 = sphi 0, %s69
    %s87 = sphi 0, %s87
    %s89 = sphi 0, %s87
    %s90 = sphi 0, %s89
    %s104 = sphi 0, %s90
    %s108 = sphi 0, %s108
    %s110 = sphi 0, %s108
    %s111 = sphi 0, %s110
    %s125 = sphi 0, %s111
    %s131 = sphi 0, %s133
    %s134 = sphi 0, %s131
    %s135 = sphi 0, %s134
    %s151 = sphi 0, %s135
  $region4: #{gcn_dae_forward.7} parent=0 // loop_header_branch
    %14 = sbr.rel (%p12) target = $region8
  $region5: #{gcn_dae_forward.7} parent=0 // loop_body
    %s16 = ssub.s32 %s11, 1
    %s17 = ssub.s32 %s11, 2
    %s18 = sadd.s32 %s11, 1
    %s19 = ssub.s32 %s11, %s18
    %p20 = scmp.eq.s32.totalorder %s19, 0
    %s22 = sadd.s32 %s21, 1
    %s23 = scalar_select %p20, %s21, %s22
    %p26 = pneg %p20
    %p27 = scmp.eq.s32.totalorder %s11, 1
    %p28 = por %p26, %p27
    %p29 = scmp.ne.s32.totalorder %s21, %s24
    %p30 = scmp.eq.s32.totalorder %s11, 0
    %p31 = por %p29, %p30
    %p32 = scmp.ne.s32.totalorder %s21, %s24
    %p33 = scmp.eq.s32.totalorder %s16, 1
    %p34 = por %p32, %p33
    %p35 = scmp.ne.s32.totalorder %s24, %s25
    %p36 = scmp.eq.s32.totalorder %s16, 0
    %p37 = por %p35, %p36
    %p38 = scmp.ne.s32.totalorder %s24, %s25
    %p39 = scmp.eq.s32.totalorder %s17, 1
    %p40 = por %p38, %p39
    %p42 = scmp.ne.s32.totalorder %s25, %s41
    %p43 = scmp.eq.s32.totalorder %s17, 0
    %p44 = por %p42, %p43
    %s46 = sadd.s32 %s45, 1
    %p49 = scmp.eq.s32.totalorder %s11, 1
    %p50 = scmp.ne.s32.totalorder %s45, %s47
    %p51 = scmp.eq.s32.totalorder %s11, 0
    %p52 = por %p50, %p51
    %p53 = scmp.ne.s32.totalorder %s45, %s47
    %p54 = scmp.eq.s32.totalorder %s16, 1
    %p55 = por %p53, %p54
    %p56 = scmp.ne.s32.totalorder %s47, %s48
    %p57 = scmp.eq.s32.totalorder %s16, 0
    %p58 = por %p56, %p57
    %p59 = scmp.ne.s32.totalorder %s47, %s48
    %p60 = scmp.eq.s32.totalorder %s17, 1
    %p61 = por %p59, %p60
    %p63 = scmp.ne.s32.totalorder %s48, %s62
    %p64 = scmp.eq.s32.totalorder %s17, 0
    %p65 = por %p63, %p64
    %s67 = sadd.s32 %s66, 1
    %p70 = scmp.eq.s32.totalorder %s11, 1
    %p71 = scmp.ne.s32.totalorder %s66, %s68
    %p72 = scmp.eq.s32.totalorder %s11, 0
    %p73 = por %p71, %p72
    %p74 = scmp.ne.s32.totalorder %s66, %s68
    %p75 = scmp.eq.s32.totalorder %s16, 1
    %p76 = por %p74, %p75
    %p77 = scmp.ne.s32.totalorder %s68, %s69
    %p78 = scmp.eq.s32.totalorder %s16, 0
    %p79 = por %p77, %p78
    %p80 = scmp.ne.s32.totalorder %s68, %s69
    %p81 = scmp.eq.s32.totalorder %s17, 1
    %p82 = por %p80, %p81
    %p84 = scmp.ne.s32.totalorder %s69, %s83
    %p85 = scmp.eq.s32.totalorder %s17, 0
    %p86 = por %p84, %p85
    %s88 = sadd.s32 %s87, 1
    %p91 = scmp.eq.s32.totalorder %s11, 1
    %p92 = scmp.ne.s32.totalorder %s87, %s89
    %p93 = scmp.eq.s32.totalorder %s11, 0
    %p94 = por %p92, %p93
    %p95 = scmp.ne.s32.totalorder %s87, %s89
    %p96 = scmp.eq.s32.totalorder %s16, 1
    %p97 = por %p95, %p96
    %p98 = scmp.ne.s32.totalorder %s89, %s90
    %p99 = scmp.eq.s32.totalorder %s16, 0
    %p100 = por %p98, %p99
    %p101 = scmp.ne.s32.totalorder %s89, %s90
    %p102 = scmp.eq.s32.totalorder %s17, 1
    %p103 = por %p101, %p102
    %p105 = scmp.ne.s32.totalorder %s90, %s104
    %p106 = scmp.eq.s32.totalorder %s17, 0
    %p107 = por %p105, %p106
    %s109 = sadd.s32 %s108, 1
    %p112 = scmp.eq.s32.totalorder %s11, 1
    %p113 = scmp.ne.s32.totalorder %s108, %s110
    %p114 = scmp.eq.s32.totalorder %s11, 0
    %p115 = por %p113, %p114
    %p116 = scmp.ne.s32.totalorder %s108, %s110
    %p117 = scmp.eq.s32.totalorder %s16, 1
    %p118 = por %p116, %p117
    %p119 = scmp.ne.s32.totalorder %s110, %s111
    %p120 = scmp.eq.s32.totalorder %s16, 0
    %p121 = por %p119, %p120
    %p122 = scmp.ne.s32.totalorder %s110, %s111
    %p123 = scmp.eq.s32.totalorder %s17, 1
    %p124 = por %p122, %p123
    %p126 = scmp.ne.s32.totalorder %s111, %s125
    %p127 = scmp.eq.s32.totalorder %s17, 0
    %p128 = por %p126, %p127
    %s129 = ssub.s32 %s11, %s18
    %p130 = scmp.eq.s32.totalorder %s129, 0
    %s132 = sadd.s32 %s131, 1
    %s133 = scalar_select %p130, %s131, %s132
    %p136 = pneg %p130
    %p137 = scmp.eq.s32.totalorder %s11, 1
    %p138 = por %p136, %p137
    %p139 = scmp.ne.s32.totalorder %s131, %s134
    %p140 = scmp.eq.s32.totalorder %s11, 0
    %p141 = por %p139, %p140
    %p142 = scmp.ne.s32.totalorder %s131, %s134
    %p143 = scmp.eq.s32.totalorder %s16, 1
    %p144 = por %p142, %p143
    %p145 = scmp.ne.s32.totalorder %s134, %s135
    %p146 = scmp.eq.s32.totalorder %s16, 0
    %p147 = por %p145, %p146
    %p148 = scmp.ne.s32.totalorder %s134, %s135
    %p149 = scmp.eq.s32.totalorder %s17, 1
    %p150 = por %p148, %p149
    %p152 = scmp.ne.s32.totalorder %s135, %s151
    %p153 = scmp.eq.s32.totalorder %s17, 0
    %p154 = por %p152, %p153
    %p155 = scmp.le.s32.totalorder 1, %s11
    %p156 = scmp.lt.s32.totalorder %s11, 3
    %p157 = pnand %p155, %p156
    %p158 = pneg %p157
    // Predicated region
    $region9: #{gcn_dae_forward.7} parent=5 // pred_check
      _
    $region10: #{gcn_dae_forward.7} parent=5 // pred_check_branch
      %160 = sbr.rel (%p157) target = $region12
    $region11: #{gcn_dae_forward.7} parent=5 // pred_region
      %s161 = ssub.s32 %s11, 1
      // Predicated region
      $region13: #{gcn_dae_forward.7} parent=11 // pred_check
        %p162 = pneg %p58
      $region14: #{gcn_dae_forward.7} parent=11 // pred_check_branch
        %164 = sbr.rel (%p162) target = $region16
      $region15: #{gcn_dae_forward.7} parent=11 // pred_region
        _
      $region16: #{gcn_dae_forward.7} parent=11 // pred_fallthru
        _
      // Predicated region
      $region17: #{gcn_dae_forward.7} parent=11 // pred_check
        %p165 = pneg %p79
      $region18: #{gcn_dae_forward.7} parent=11 // pred_check_branch
        %167 = sbr.rel (%p165) target = $region20
      $region19: #{gcn_dae_forward.7} parent=11 // pred_region
        _
      $region20: #{gcn_dae_forward.7} parent=11 // pred_fallthru
        _
      // Predicated region
      $region21: #{gcn_dae_forward.7} parent=11 // pred_check
        %p168 = pneg %p100
      $region22: #{gcn_dae_forward.7} parent=11 // pred_check_branch
        %170 = sbr.rel (%p168) target = $region24
      $region23: #{gcn_dae_forward.7} parent=11 // pred_region
        _
      $region24: #{gcn_dae_forward.7} parent=11 // pred_fallthru
        _
      // Predicated region
      $region25: #{gcn_dae_forward.7} parent=11 // pred_check
        %p171 = pneg %p121
      $region26: #{gcn_dae_forward.7} parent=11 // pred_check_branch
        %173 = sbr.rel (%p171) target = $region28
      $region27: #{gcn_dae_forward.7} parent=11 // pred_region
        _
      $region28: #{gcn_dae_forward.7} parent=11 // pred_fallthru
        _
    $region12: #{gcn_dae_forward.7} parent=5 // pred_fallthru
      _
    %p174 = scmp.lt.s32.totalorder %s11, 2
    // Predicated region
    $region29: #{gcn_dae_forward.7} parent=5 // pred_check
      %p175 = pneg %p174
    $region30: #{gcn_dae_forward.7} parent=5 // pred_check_branch
      %177 = sbr.rel (%p175) target = $region32
    $region31: #{gcn_dae_forward.7} parent=5 // pred_region
      // Predicated region
      $region33: #{gcn_dae_forward.7} parent=31 // pred_check
        %p178 = pneg %p31
      $region34: #{gcn_dae_forward.7} parent=31 // pred_check_branch
        %180 = sbr.rel (%p178) target = $region36
      $region35: #{gcn_dae_forward.7} parent=31 // pred_region
        %s181 = smul.u32 16, %s11
        %p182 = scmp.lt.s32.totalorder %s181, 31
        %s183 = scalar_select %p182, %s181, 31
        %s184 = smul.addr %s183, 8
        %s185 = scalar_lea.vmem %s0, %s184
        %s186 = smul.u32 16, %s11
      $region36: #{gcn_dae_forward.7} parent=31 // pred_fallthru
        _
    $region32: #{gcn_dae_forward.7} parent=5 // pred_fallthru
      _
    %p187 = scmp.le.s32.totalorder 1, %s11
    %p188 = scmp.lt.s32.totalorder %s11, 3
    %p189 = pnand %p187, %p188
    %p190 = pneg %p189
    // Predicated region
    $region37: #{gcn_dae_forward.7} parent=5 // pred_check
      _
    $region38: #{gcn_dae_forward.7} parent=5 // pred_check_branch
      %192 = sbr.rel (%p189) target = $region40
    $region39: #{gcn_dae_forward.7} parent=5 // pred_region
      %s193 = ssub.s32 %s11, 1
      %s194 = smul.u32 16, %s16
      %p195 = scmp.lt.s32.totalorder %s194, 31
      %s196 = scalar_select %p195, %s194, 31
      %s197 = smul.addr %s196, 8
      %s198 = scalar_lea.vmem %s0, %s197
      %p199 = pneg %p37
      %p200 = pneg %p34
      %p201 = pneg %p58
      %p202 = pneg %p55
      %p203 = pneg %p79
      %p204 = pneg %p76
      %p205 = pneg %p100
      %p206 = pneg %p97
      %p207 = pneg %p121
      %p208 = pneg %p118
      %p209 = pneg %p147
      %p210 = pneg %p144
      %s211 = smul.u32 16, %s16
      %p212 = scmp.lt.s32.totalorder %s211, 31
      %s213 = scalar_select %p212, %s211, 31
      %s214 = smul.addr %s213, 4
      %s215 = scalar_lea.vmem %s5, %s214
      %s216 = smul.u32 16, %s16
      %p217 = scmp.lt.s32.totalorder %s216, 31
      %s218 = scalar_select %p217, %s216, 31
      %s219 = smul.addr %s218, 8
      %s220 = scalar_lea.vmem %s0, %s219
      %s221 = smul.u32 16, %s16
      %s222 = smul.u32 16, %s16
      %p223 = scmp.lt.s32.totalorder %s222, 31
      %s224 = scalar_select %p223, %s222, 31
      %s225 = smul.addr %s224, 4
      %s226 = scalar_lea.vmem %s5, %s225
      %s227 = smul.u32 16, %s16
      %v228 = vld [vmem:[%s220] sm:$0xff]
      %v229 = vld [vmem:[%s220 + $0x8] sm:$0xff]
      %v230 = vld [vmem:[%s220 + $0x10] sm:$0xff]
      %v231 = vld [vmem:[%s220 + $0x18] sm:$0xff]
      %v232 = vld [vmem:[%s220 + $0x20] sm:$0xff]
      %v233 = vld [vmem:[%s220 + $0x28] sm:$0xff]
      %v234 = vld [vmem:[%s220 + $0x30] sm:$0xff]
      %v235 = vld [vmem:[%s220 + $0x38] sm:$0xff]
      %v236 = vld [vmem:[%s220 + $0x40] sm:$0xff]
      %v237 = vld [vmem:[%s220 + $0x48] sm:$0xff]
      %v238 = vld [vmem:[%s220 + $0x50] sm:$0xff]
      %v239 = vld [vmem:[%s220 + $0x58] sm:$0xff]
      %v240 = vld [vmem:[%s220 + $0x60] sm:$0xff]
      %v241 = vld [vmem:[%s220 + $0x68] sm:$0xff]
      %v242 = vld [vmem:[%s220 + $0x70] sm:$0xff]
      %v243 = vld [vmem:[%s220 + $0x78] sm:$0xff]
      %v244 = vld [vmem:[%s1] sm:$0xff]
      %v245 = vld [vmem:[%s1 + $0x8] sm:$0xff]
      %v246 = vld [vmem:[%s1 + $0x10] sm:$0xff]
      %v247 = vld [vmem:[%s1 + $0x18] sm:$0xff]
      %v248 = vld [vmem:[%s1 + $0x20] sm:$0xff]
      %v249 = vld [vmem:[%s1 + $0x28] sm:$0xff]
      %v250 = vld [vmem:[%s1 + $0x30] sm:$0xff]
      %v251 = vld [vmem:[%s1 + $0x38] sm:$0xff]
      %v252 = vld [vmem:[%s2] sm:$0x1]
      %v254 = vperm.slane %v252, 0
      %vm256 = vcmask 523264
      %v258 = vsel %vm256, %v228, 0
      %v261 = vsel %vm256, %v229, 0
      %v264 = vsel %vm256, %v230, 0
      %v267 = vsel %vm256, %v231, 0
      %v270 = vsel %vm256, %v232, 0
      %v273 = vsel %vm256, %v233, 0
      %v276 = vsel %vm256, %v234, 0
      %v279 = vsel %vm256, %v235, 0
      %v282 = vsel %vm256, %v236, 0
      %v285 = vsel %vm256, %v237, 0
      %v288 = vsel %vm256, %v238, 0
      %v291 = vsel %vm256, %v239, 0
      %v294 = vsel %vm256, %v240, 0
      %v297 = vsel %vm256, %v241, 0
      %v300 = vsel %vm256, %v242, 0
      %v303 = vsel %vm256, %v243, 0
      %305 = vmatpush.msra.mxu0 0.0
      %306 = vmatpush.msra.mxu0 0.0
      %307 = vmatpush.msra.mxu0 0.0
      %308 = vmatpush.msra.mxu0 0.0
      %309 = vmatpush.msra.mxu0 0.0
      %310 = vmatpush.msra.mxu0 0.0
      %311 = vmatpush.msra.mxu0 0.0
      %312 = vmatpush.msra.mxu0 0.0
      %313 = vmatpush.msra.mxu0 %v251
      %314 = vmatpush.msra.mxu0 %v250
      %315 = vmatpush.msra.mxu0 %v249
      %316 = vmatpush.msra.mxu0 %v248
      %317 = vmatpush.msra.mxu0 %v247
      %318 = vmatpush.msra.mxu0 %v246
      %319 = vmatpush.msra.mxu0 %v245
      %320 = vmatpush.msra.mxu0 %v244
      %321 = vmatmul.f32.gmra.mxu0 %v258
      %v322 = vpop.f32.mrf.mxu0
      %v323 = vadd.f32 %v254, %v322
      %324 = vmatmul.f32.gmra.mxu0 %v261
      %v325 = vpop.f32.mrf.mxu0
      %v326 = vadd.f32 %v254, %v325
      %327 = vmatmul.f32.gmra.mxu0 %v264
      %v328 = vpop.f32.mrf.mxu0
      %v329 = vadd.f32 %v254, %v328
      %330 = vmatmul.f32.gmra.mxu0 %v267
      %v331 = vpop.f32.mrf.mxu0
      %v332 = vadd.f32 %v254, %v331
      %333 = vmatmul.f32.gmra.mxu0 %v270
      %v334 = vpop.f32.mrf.mxu0
      %v335 = vadd.f32 %v254, %v334
      %336 = vmatmul.f32.gmra.mxu0 %v273
      %v337 = vpop.f32.mrf.mxu0
      %v338 = vadd.f32 %v254, %v337
      %339 = vmatmul.f32.gmra.mxu0 %v276
      %v340 = vpop.f32.mrf.mxu0
      %v341 = vadd.f32 %v254, %v340
      %342 = vmatmul.f32.gmra.mxu0 %v279
      %v343 = vpop.f32.mrf.mxu0
      %v344 = vadd.f32 %v254, %v343
      %345 = vmatmul.f32.gmra.mxu0 %v282
      %v346 = vpop.f32.mrf.mxu0
      %v347 = vadd.f32 %v254, %v346
      %348 = vmatmul.f32.gmra.mxu0 %v285
      %v349 = vpop.f32.mrf.mxu0
      %v350 = vadd.f32 %v254, %v349
      %351 = vmatmul.f32.gmra.mxu0 %v288
      %v352 = vpop.f32.mrf.mxu0
      %v353 = vadd.f32 %v254, %v352
      %354 = vmatmul.f32.gmra.mxu0 %v291
      %v355 = vpop.f32.mrf.mxu0
      %v356 = vadd.f32 %v254, %v355
      %357 = vmatmul.f32.gmra.mxu0 %v294
      %v358 = vpop.f32.mrf.mxu0
      %v359 = vadd.f32 %v254, %v358
      %360 = vmatmul.f32.gmra.mxu0 %v297
      %v361 = vpop.f32.mrf.mxu0
      %v362 = vadd.f32 %v254, %v361
      %363 = vmatmul.f32.gmra.mxu0 %v300
      %v364 = vpop.f32.mrf.mxu0
      %v365 = vadd.f32 %v254, %v364
      %366 = vmatmul.f32.gmra.mxu0 %v303
      %v367 = vpop.f32.mrf.mxu0
      %v368 = vadd.f32 %v254, %v367
      %369 = vdwg.mxu0
      %v370 = vmax.f32 %v323, 0.0
      %v371 = vmax.f32 %v326, 0.0
      %v372 = vmax.f32 %v329, 0.0
      %v373 = vmax.f32 %v332, 0.0
      %v374 = vmax.f32 %v335, 0.0
      %v375 = vmax.f32 %v338, 0.0
      %v376 = vmax.f32 %v341, 0.0
      %v377 = vmax.f32 %v344, 0.0
      %v378 = vmax.f32 %v347, 0.0
      %v379 = vmax.f32 %v350, 0.0
      %v380 = vmax.f32 %v353, 0.0
      %v381 = vmax.f32 %v356, 0.0
      %v382 = vmax.f32 %v359, 0.0
      %v383 = vmax.f32 %v362, 0.0
      %v384 = vmax.f32 %v365, 0.0
      %v385 = vmax.f32 %v368, 0.0
      %v386 = vld [vmem:[%s3] sm:$0xff]
      %v387 = vld [vmem:[%s3 + $0x8] sm:$0xff]
      %v388 = vld [vmem:[%s3 + $0x10] sm:$0xff]
      %v389 = vld [vmem:[%s3 + $0x18] sm:$0xff]
      %v390 = vld [vmem:[%s4] sm:$0x1]
      %v392 = vperm.slane %v390, 0
      %vm394 = vcmask 261120
      %v396 = vsel %vm394, %v370, 0
      %v399 = vsel %vm394, %v371, 0
      %v402 = vsel %vm394, %v372, 0
      %v405 = vsel %vm394, %v373, 0
      %v408 = vsel %vm394, %v374, 0
      %v411 = vsel %vm394, %v375, 0
      %v414 = vsel %vm394, %v376, 0
      %v417 = vsel %vm394, %v377, 0
      %v420 = vsel %vm394, %v378, 0
      %v423 = vsel %vm394, %v379, 0
      %v426 = vsel %vm394, %v380, 0
      %v429 = vsel %vm394, %v381, 0
      %v432 = vsel %vm394, %v382, 0
      %v435 = vsel %vm394, %v383, 0
      %v438 = vsel %vm394, %v384, 0
      %v441 = vsel %vm394, %v385, 0
      %443 = vmatpush.msra.mxu0 0.0
      %444 = vmatpush.msra.mxu0 0.0
      %445 = vmatpush.msra.mxu0 0.0
      %446 = vmatpush.msra.mxu0 0.0
      %447 = vmatpush.msra.mxu0 0.0
      %448 = vmatpush.msra.mxu0 0.0
      %449 = vmatpush.msra.mxu0 0.0
      %450 = vmatpush.msra.mxu0 0.0
      %451 = vmatpush.msra.mxu0 0.0
      %452 = vmatpush.msra.mxu0 0.0
      %453 = vmatpush.msra.mxu0 0.0
      %454 = vmatpush.msra.mxu0 0.0
      %455 = vmatpush.msra.mxu0 %v389
      %456 = vmatpush.msra.mxu0 %v388
      %457 = vmatpush.msra.mxu0 %v387
      %458 = vmatpush.msra.mxu0 %v386
      %459 = vmatmul.f32.gmra.mxu0 %v396
      %v460 = vpop.f32.mrf.mxu0
      %v461 = vadd.f32 %v392, %v460
      %462 = vmatmul.f32.gmra.mxu0 %v399
      %v463 = vpop.f32.mrf.mxu0
      %v464 = vadd.f32 %v392, %v463
      %465 = vmatmul.f32.gmra.mxu0 %v402
      %v466 = vpop.f32.mrf.mxu0
      %v467 = vadd.f32 %v392, %v466
      %468 = vmatmul.f32.gmra.mxu0 %v405
      %v469 = vpop.f32.mrf.mxu0
      %v470 = vadd.f32 %v392, %v469
      %471 = vmatmul.f32.gmra.mxu0 %v408
      %v472 = vpop.f32.mrf.mxu0
      %v473 = vadd.f32 %v392, %v472
      %474 = vmatmul.f32.gmra.mxu0 %v411
      %v475 = vpop.f32.mrf.mxu0
      %v476 = vadd.f32 %v392, %v475
      %477 = vmatmul.f32.gmra.mxu0 %v414
      %v478 = vpop.f32.mrf.mxu0
      %v479 = vadd.f32 %v392, %v478
      %480 = vmatmul.f32.gmra.mxu0 %v417
      %v481 = vpop.f32.mrf.mxu0
      %v482 = vadd.f32 %v392, %v481
      %483 = vmatmul.f32.gmra.mxu0 %v420
      %v484 = vpop.f32.mrf.mxu0
      %v485 = vadd.f32 %v392, %v484
      %486 = vmatmul.f32.gmra.mxu0 %v423
      %v487 = vpop.f32.mrf.mxu0
      %v488 = vadd.f32 %v392, %v487
      %489 = vmatmul.f32.gmra.mxu0 %v426
      %v490 = vpop.f32.mrf.mxu0
      %v491 = vadd.f32 %v392, %v490
      %492 = vmatmul.f32.gmra.mxu0 %v429
      %v493 = vpop.f32.mrf.mxu0
      %v494 = vadd.f32 %v392, %v493
      %495 = vmatmul.f32.gmra.mxu0 %v432
      %v496 = vpop.f32.mrf.mxu0
      %v497 = vadd.f32 %v392, %v496
      %498 = vmatmul.f32.gmra.mxu0 %v435
      %v499 = vpop.f32.mrf.mxu0
      %v500 = vadd.f32 %v392, %v499
      %501 = vmatmul.f32.gmra.mxu0 %v438
      %v502 = vpop.f32.mrf.mxu0
      %v503 = vadd.f32 %v392, %v502
      %504 = vmatmul.f32.gmra.mxu0 %v441
      %v505 = vpop.f32.mrf.mxu0
      %v506 = vadd.f32 %v392, %v505
      %507 = vdwg.mxu0
      %v508 = vmul.f32 %v461, %v461
      %v509 = vmul.f32 %v464, %v464
      %v510 = vmul.f32 %v467, %v467
      %v511 = vmul.f32 %v470, %v470
      %v512 = vmul.f32 %v473, %v473
      %v513 = vmul.f32 %v476, %v476
      %v514 = vmul.f32 %v479, %v479
      %v515 = vmul.f32 %v482, %v482
      %v516 = vmul.f32 %v485, %v485
      %v517 = vmul.f32 %v488, %v488
      %v518 = vmul.f32 %v491, %v491
      %v519 = vmul.f32 %v494, %v494
      %v520 = vmul.f32 %v497, %v497
      %v521 = vmul.f32 %v500, %v500
      %v522 = vmul.f32 %v503, %v503
      %v523 = vmul.f32 %v506, %v506
      %524 = vadd.xlane.f32.xlu0 %v508
      %v525 = vpop.xlane.xlu0 %524
      %526 = vadd.xlane.f32.xlu0 %v509
      %v527 = vpop.xlane.xlu0 %526
      %528 = vadd.xlane.f32.xlu0 %v510
      %v529 = vpop.xlane.xlu0 %528
      %530 = vadd.xlane.f32.xlu0 %v511
      %v531 = vpop.xlane.xlu0 %530
      %532 = vadd.xlane.f32.xlu0 %v512
      %v533 = vpop.xlane.xlu0 %532
      %534 = vadd.xlane.f32.xlu0 %v513
      %v535 = vpop.xlane.xlu0 %534
      %536 = vadd.xlane.f32.xlu0 %v514
      %v537 = vpop.xlane.xlu0 %536
      %538 = vadd.xlane.f32.xlu0 %v515
      %v539 = vpop.xlane.xlu0 %538
      %540 = vadd.xlane.f32.xlu0 %v516
      %v541 = vpop.xlane.xlu0 %540
      %542 = vadd.xlane.f32.xlu0 %v517
      %v543 = vpop.xlane.xlu0 %542
      %544 = vadd.xlane.f32.xlu0 %v518
      %v545 = vpop.xlane.xlu0 %544
      %546 = vadd.xlane.f32.xlu0 %v519
      %v547 = vpop.xlane.xlu0 %546
      %548 = vadd.xlane.f32.xlu0 %v520
      %v549 = vpop.xlane.xlu0 %548
      %550 = vadd.xlane.f32.xlu0 %v521
      %v551 = vpop.xlane.xlu0 %550
      %552 = vadd.xlane.f32.xlu0 %v522
      %v553 = vpop.xlane.xlu0 %552
      %554 = vadd.xlane.f32.xlu0 %v523
      %v555 = vpop.xlane.xlu0 %554
      %v556 = vrsqrt.pop %v525
      %v557 = vmul.f32 %v556, %v525
      %v558 = vmul.f32 %v557, %v556
      %v559 = vmul.f32 0.5, %v558
      %v560 = vsub.f32 1.5, %v559
      %v561 = vmul.f32 %v556, %v560
      %v562 = vmul.f32 %v525, %v561
      %vm563 = vcmp.eq.f32.partialorder %v525, inf
      %v564 = vsel %vm563, %v525, %v562
      %vm565 = vcmp.eq.f32.partialorder %v525, 0.0
      %v566 = vand.u32 %v525, 2147483648
      %v567 = vsel %vm565, %v566, %v564
      %v568 = vrsqrt.pop %v527
      %v569 = vmul.f32 %v568, %v527
      %v570 = vmul.f32 %v569, %v568
      %v571 = vmul.f32 0.5, %v570
      %v572 = vsub.f32 1.5, %v571
      %v573 = vmul.f32 %v568, %v572
      %v574 = vmul.f32 %v527, %v573
      %vm575 = vcmp.eq.f32.partialorder %v527, inf
      %v576 = vsel %vm575, %v527, %v574
      %vm577 = vcmp.eq.f32.partialorder %v527, 0.0
      %v578 = vand.u32 %v527, 2147483648
      %v579 = vsel %vm577, %v578, %v576
      %v580 = vrsqrt.pop %v529
      %v581 = vmul.f32 %v580, %v529
      %v582 = vmul.f32 %v581, %v580
      %v583 = vmul.f32 0.5, %v582
      %v584 = vsub.f32 1.5, %v583
      %v585 = vmul.f32 %v580, %v584
      %v586 = vmul.f32 %v529, %v585
      %vm587 = vcmp.eq.f32.partialorder %v529, inf
      %v588 = vsel %vm587, %v529, %v586
      %vm589 = vcmp.eq.f32.partialorder %v529, 0.0
      %v590 = vand.u32 %v529, 2147483648
      %v591 = vsel %vm589, %v590, %v588
      %v592 = vrsqrt.pop %v531
      %v593 = vmul.f32 %v592, %v531
      %v594 = vmul.f32 %v593, %v592
      %v595 = vmul.f32 0.5, %v594
      %v596 = vsub.f32 1.5, %v595
      %v597 = vmul.f32 %v592, %v596
      %v598 = vmul.f32 %v531, %v597
      %vm599 = vcmp.eq.f32.partialorder %v531, inf
      %v600 = vsel %vm599, %v531, %v598
      %vm601 = vcmp.eq.f32.partialorder %v531, 0.0
      %v602 = vand.u32 %v531, 2147483648
      %v603 = vsel %vm601, %v602, %v600
      %v604 = vrsqrt.pop %v533
      %v605 = vmul.f32 %v604, %v533
      %v606 = vmul.f32 %v605, %v604
      %v607 = vmul.f32 0.5, %v606
      %v608 = vsub.f32 1.5, %v607
      %v609 = vmul.f32 %v604, %v608
      %v610 = vmul.f32 %v533, %v609
      %vm611 = vcmp.eq.f32.partialorder %v533, inf
      %v612 = vsel %vm611, %v533, %v610
      %vm613 = vcmp.eq.f32.partialorder %v533, 0.0
      %v614 = vand.u32 %v533, 2147483648
      %v615 = vsel %vm613, %v614, %v612
      %v616 = vrsqrt.pop %v535
      %v617 = vmul.f32 %v616, %v535
      %v618 = vmul.f32 %v617, %v616
      %v619 = vmul.f32 0.5, %v618
      %v620 = vsub.f32 1.5, %v619
      %v621 = vmul.f32 %v616, %v620
      %v622 = vmul.f32 %v535, %v621
      %vm623 = vcmp.eq.f32.partialorder %v535, inf
      %v624 = vsel %vm623, %v535, %v622
      %vm625 = vcmp.eq.f32.partialorder %v535, 0.0
      %v626 = vand.u32 %v535, 2147483648
      %v627 = vsel %vm625, %v626, %v624
      %v628 = vrsqrt.pop %v537
      %v629 = vmul.f32 %v628, %v537
      %v630 = vmul.f32 %v629, %v628
      %v631 = vmul.f32 0.5, %v630
      %v632 = vsub.f32 1.5, %v631
      %v633 = vmul.f32 %v628, %v632
      %v634 = vmul.f32 %v537, %v633
      %vm635 = vcmp.eq.f32.partialorder %v537, inf
      %v636 = vsel %vm635, %v537, %v634
      %vm637 = vcmp.eq.f32.partialorder %v537, 0.0
      %v638 = vand.u32 %v537, 2147483648
      %v639 = vsel %vm637, %v638, %v636
      %v640 = vrsqrt.pop %v539
      %v641 = vmul.f32 %v640, %v539
      %v642 = vmul.f32 %v641, %v640
      %v643 = vmul.f32 0.5, %v642
      %v644 = vsub.f32 1.5, %v643
      %v645 = vmul.f32 %v640, %v644
      %v646 = vmul.f32 %v539, %v645
      %vm647 = vcmp.eq.f32.partialorder %v539, inf
      %v648 = vsel %vm647, %v539, %v646
      %vm649 = vcmp.eq.f32.partialorder %v539, 0.0
      %v650 = vand.u32 %v539, 2147483648
      %v651 = vsel %vm649, %v650, %v648
      %v652 = vrsqrt.pop %v541
      %v653 = vmul.f32 %v652, %v541
      %v654 = vmul.f32 %v653, %v652
      %v655 = vmul.f32 0.5, %v654
      %v656 = vsub.f32 1.5, %v655
      %v657 = vmul.f32 %v652, %v656
      %v658 = vmul.f32 %v541, %v657
      %vm659 = vcmp.eq.f32.partialorder %v541, inf
      %v660 = vsel %vm659, %v541, %v658
      %vm661 = vcmp.eq.f32.partialorder %v541, 0.0
      %v662 = vand.u32 %v541, 2147483648
      %v663 = vsel %vm661, %v662, %v660
      %v664 = vrsqrt.pop %v543
      %v665 = vmul.f32 %v664, %v543
      %v666 = vmul.f32 %v665, %v664
      %v667 = vmul.f32 0.5, %v666
      %v668 = vsub.f32 1.5, %v667
      %v669 = vmul.f32 %v664, %v668
      %v670 = vmul.f32 %v543, %v669
      %vm671 = vcmp.eq.f32.partialorder %v543, inf
      %v672 = vsel %vm671, %v543, %v670
      %vm673 = vcmp.eq.f32.partialorder %v543, 0.0
      %v674 = vand.u32 %v543, 2147483648
      %v675 = vsel %vm673, %v674, %v672
      %v676 = vrsqrt.pop %v545
      %v677 = vmul.f32 %v676, %v545
      %v678 = vmul.f32 %v677, %v676
      %v679 = vmul.f32 0.5, %v678
      %v680 = vsub.f32 1.5, %v679
      %v681 = vmul.f32 %v676, %v680
      %v682 = vmul.f32 %v545, %v681
      %vm683 = vcmp.eq.f32.partialorder %v545, inf
      %v684 = vsel %vm683, %v545, %v682
      %vm685 = vcmp.eq.f32.partialorder %v545, 0.0
      %v686 = vand.u32 %v545, 2147483648
      %v687 = vsel %vm685, %v686, %v684
      %v688 = vrsqrt.pop %v547
      %v689 = vmul.f32 %v688, %v547
      %v690 = vmul.f32 %v689, %v688
      %v691 = vmul.f32 0.5, %v690
      %v692 = vsub.f32 1.5, %v691
      %v693 = vmul.f32 %v688, %v692
      %v694 = vmul.f32 %v547, %v693
      %vm695 = vcmp.eq.f32.partialorder %v547, inf
      %v696 = vsel %vm695, %v547, %v694
      %vm697 = vcmp.eq.f32.partialorder %v547, 0.0
      %v698 = vand.u32 %v547, 2147483648
      %v699 = vsel %vm697, %v698, %v696
      %v700 = vrsqrt.pop %v549
      %v701 = vmul.f32 %v700, %v549
      %v702 = vmul.f32 %v701, %v700
      %v703 = vmul.f32 0.5, %v702
      %v704 = vsub.f32 1.5, %v703
      %v705 = vmul.f32 %v700, %v704
      %v706 = vmul.f32 %v549, %v705
      %vm707 = vcmp.eq.f32.partialorder %v549, inf
      %v708 = vsel %vm707, %v549, %v706
      %vm709 = vcmp.eq.f32.partialorder %v549, 0.0
      %v710 = vand.u32 %v549, 2147483648
      %v711 = vsel %vm709, %v710, %v708
      %v712 = vrsqrt.pop %v551
      %v713 = vmul.f32 %v712, %v551
      %v714 = vmul.f32 %v713, %v712
      %v715 = vmul.f32 0.5, %v714
      %v716 = vsub.f32 1.5, %v715
      %v717 = vmul.f32 %v712, %v716
      %v718 = vmul.f32 %v551, %v717
      %vm719 = vcmp.eq.f32.partialorder %v551, inf
      %v720 = vsel %vm719, %v551, %v718
      %vm721 = vcmp.eq.f32.partialorder %v551, 0.0
      %v722 = vand.u32 %v551, 2147483648
      %v723 = vsel %vm721, %v722, %v720
      %v724 = vrsqrt.pop %v553
      %v725 = vmul.f32 %v724, %v553
      %v726 = vmul.f32 %v725, %v724
      %v727 = vmul.f32 0.5, %v726
      %v728 = vsub.f32 1.5, %v727
      %v729 = vmul.f32 %v724, %v728
      %v730 = vmul.f32 %v553, %v729
      %vm731 = vcmp.eq.f32.partialorder %v553, inf
      %v732 = vsel %vm731, %v553, %v730
      %vm733 = vcmp.eq.f32.partialorder %v553, 0.0
      %v734 = vand.u32 %v553, 2147483648
      %v735 = vsel %vm733, %v734, %v732
      %v736 = vrsqrt.pop %v555
      %v737 = vmul.f32 %v736, %v555
      %v738 = vmul.f32 %v737, %v736
      %v739 = vmul.f32 0.5, %v738
      %v740 = vsub.f32 1.5, %v739
      %v741 = vmul.f32 %v736, %v740
      %v742 = vmul.f32 %v555, %v741
      %vm743 = vcmp.eq.f32.partialorder %v555, inf
      %v744 = vsel %vm743, %v555, %v742
      %vm745 = vcmp.eq.f32.partialorder %v555, 0.0
      %v746 = vand.u32 %v555, 2147483648
      %v747 = vsel %vm745, %v746, %v744
      %v748 = vmax.f32 %v567, 1e-12
      %v749 = vmax.f32 %v579, 1e-12
      %v750 = vmax.f32 %v591, 1e-12
      %v751 = vmax.f32 %v603, 1e-12
      %v752 = vmax.f32 %v615, 1e-12
      %v753 = vmax.f32 %v627, 1e-12
      %v754 = vmax.f32 %v639, 1e-12
      %v755 = vmax.f32 %v651, 1e-12
      %v756 = vmax.f32 %v663, 1e-12
      %v757 = vmax.f32 %v675, 1e-12
      %v758 = vmax.f32 %v687, 1e-12
      %v759 = vmax.f32 %v699, 1e-12
      %v760 = vmax.f32 %v711, 1e-12
      %v761 = vmax.f32 %v723, 1e-12
      %v762 = vmax.f32 %v735, 1e-12
      %v763 = vmax.f32 %v747, 1e-12
      %v764 = vrcp.pop %v748
      %v765 = vmul.f32 %v748, %v764
      %v766 = vsub.f32 1.0, %v765
      %v767 = vmul.f32 %v764, %v766
      %v768 = vadd.f32 %v764, %v767
      %vm769 = vweird.f32 %v748
      %vm770 = vweird.f32 %v764
      %vm771 = vmor %vm769, %vm770
      %v772 = vsel %vm771, %v764, %v768
      %v773 = vand.u32 2147483647, %v748
      %vm774 = vcmp.eq.f32.partialorder %v773, 8.507059e+37
      %v775 = vand.u32 %v748, 2147483648
      %v776 = vor.u32 1.1754944e-38, %v775
      %v777 = vsel %vm774, %v776, %v772
      %v778 = vmul.f32 %v461, %v777
      %v779 = vrcp.pop %v749
      %v780 = vmul.f32 %v749, %v779
      %v781 = vsub.f32 1.0, %v780
      %v782 = vmul.f32 %v779, %v781
      %v783 = vadd.f32 %v779, %v782
      %vm784 = vweird.f32 %v749
      %vm785 = vweird.f32 %v779
      %vm786 = vmor %vm784, %vm785
      %v787 = vsel %vm786, %v779, %v783
      %v788 = vand.u32 2147483647, %v749
      %vm789 = vcmp.eq.f32.partialorder %v788, 8.507059e+37
      %v790 = vand.u32 %v749, 2147483648
      %v791 = vor.u32 1.1754944e-38, %v790
      %v792 = vsel %vm789, %v791, %v787
      %v793 = vmul.f32 %v464, %v792
      %v794 = vrcp.pop %v750
      %v795 = vmul.f32 %v750, %v794
      %v796 = vsub.f32 1.0, %v795
      %v797 = vmul.f32 %v794, %v796
      %v798 = vadd.f32 %v794, %v797
      %vm799 = vweird.f32 %v750
      %vm800 = vweird.f32 %v794
      %vm801 = vmor %vm799, %vm800
      %v802 = vsel %vm801, %v794, %v798
      %v803 = vand.u32 2147483647, %v750
      %vm804 = vcmp.eq.f32.partialorder %v803, 8.507059e+37
      %v805 = vand.u32 %v750, 2147483648
      %v806 = vor.u32 1.1754944e-38, %v805
      %v807 = vsel %vm804, %v806, %v802
      %v808 = vmul.f32 %v467, %v807
      %v809 = vrcp.pop %v751
      %v810 = vmul.f32 %v751, %v809
      %v811 = vsub.f32 1.0, %v810
      %v812 = vmul.f32 %v809, %v811
      %v813 = vadd.f32 %v809, %v812
      %vm814 = vweird.f32 %v751
      %vm815 = vweird.f32 %v809
      %vm816 = vmor %vm814, %vm815
      %v817 = vsel %vm816, %v809, %v813
      %v818 = vand.u32 2147483647, %v751
      %vm819 = vcmp.eq.f32.partialorder %v818, 8.507059e+37
      %v820 = vand.u32 %v751, 2147483648
      %v821 = vor.u32 1.1754944e-38, %v820
      %v822 = vsel %vm819, %v821, %v817
      %v823 = vmul.f32 %v470, %v822
      %v824 = vrcp.pop %v752
      %v825 = vmul.f32 %v752, %v824
      %v826 = vsub.f32 1.0, %v825
      %v827 = vmul.f32 %v824, %v826
      %v828 = vadd.f32 %v824, %v827
      %vm829 = vweird.f32 %v752
      %vm830 = vweird.f32 %v824
      %vm831 = vmor %vm829, %vm830
      %v832 = vsel %vm831, %v824, %v828
      %v833 = vand.u32 2147483647, %v752
      %vm834 = vcmp.eq.f32.partialorder %v833, 8.507059e+37
      %v835 = vand.u32 %v752, 2147483648
      %v836 = vor.u32 1.1754944e-38, %v835
      %v837 = vsel %vm834, %v836, %v832
      %v838 = vmul.f32 %v473, %v837
      %v839 = vrcp.pop %v753
      %v840 = vmul.f32 %v753, %v839
      %v841 = vsub.f32 1.0, %v840
      %v842 = vmul.f32 %v839, %v841
      %v843 = vadd.f32 %v839, %v842
      %vm844 = vweird.f32 %v753
      %vm845 = vweird.f32 %v839
      %vm846 = vmor %vm844, %vm845
      %v847 = vsel %vm846, %v839, %v843
      %v848 = vand.u32 2147483647, %v753
      %vm849 = vcmp.eq.f32.partialorder %v848, 8.507059e+37
      %v850 = vand.u32 %v753, 2147483648
      %v851 = vor.u32 1.1754944e-38, %v850
      %v852 = vsel %vm849, %v851, %v847
      %v853 = vmul.f32 %v476, %v852
      %v854 = vrcp.pop %v754
      %v855 = vmul.f32 %v754, %v854
      %v856 = vsub.f32 1.0, %v855
      %v857 = vmul.f32 %v854, %v856
      %v858 = vadd.f32 %v854, %v857
      %vm859 = vweird.f32 %v754
      %vm860 = vweird.f32 %v854
      %vm861 = vmor %vm859, %vm860
      %v862 = vsel %vm861, %v854, %v858
      %v863 = vand.u32 2147483647, %v754
      %vm864 = vcmp.eq.f32.partialorder %v863, 8.507059e+37
      %v865 = vand.u32 %v754, 2147483648
      %v866 = vor.u32 1.1754944e-38, %v865
      %v867 = vsel %vm864, %v866, %v862
      %v868 = vmul.f32 %v479, %v867
      %v869 = vrcp.pop %v755
      %v870 = vmul.f32 %v755, %v869
      %v871 = vsub.f32 1.0, %v870
      %v872 = vmul.f32 %v869, %v871
      %v873 = vadd.f32 %v869, %v872
      %vm874 = vweird.f32 %v755
      %vm875 = vweird.f32 %v869
      %vm876 = vmor %vm874, %vm875
      %v877 = vsel %vm876, %v869, %v873
      %v878 = vand.u32 2147483647, %v755
      %vm879 = vcmp.eq.f32.partialorder %v878, 8.507059e+37
      %v880 = vand.u32 %v755, 2147483648
      %v881 = vor.u32 1.1754944e-38, %v880
      %v882 = vsel %vm879, %v881, %v877
      %v883 = vmul.f32 %v482, %v882
      %v884 = vrcp.pop %v756
      %v885 = vmul.f32 %v756, %v884
      %v886 = vsub.f32 1.0, %v885
      %v887 = vmul.f32 %v884, %v886
      %v888 = vadd.f32 %v884, %v887
      %vm889 = vweird.f32 %v756
      %vm890 = vweird.f32 %v884
      %vm891 = vmor %vm889, %vm890
      %v892 = vsel %vm891, %v884, %v888
      %v893 = vand.u32 2147483647, %v756
      %vm894 = vcmp.eq.f32.partialorder %v893, 8.507059e+37
      %v895 = vand.u32 %v756, 2147483648
      %v896 = vor.u32 1.1754944e-38, %v895
      %v897 = vsel %vm894, %v896, %v892
      %v898 = vmul.f32 %v485, %v897
      %v899 = vrcp.pop %v757
      %v900 = vmul.f32 %v757, %v899
      %v901 = vsub.f32 1.0, %v900
      %v902 = vmul.f32 %v899, %v901
      %v903 = vadd.f32 %v899, %v902
      %vm904 = vweird.f32 %v757
      %vm905 = vweird.f32 %v899
      %vm906 = vmor %vm904, %vm905
      %v907 = vsel %vm906, %v899, %v903
      %v908 = vand.u32 2147483647, %v757
      %vm909 = vcmp.eq.f32.partialorder %v908, 8.507059e+37
      %v910 = vand.u32 %v757, 2147483648
      %v911 = vor.u32 1.1754944e-38, %v910
      %v912 = vsel %vm909, %v911, %v907
      %v913 = vmul.f32 %v488, %v912
      %v914 = vrcp.pop %v758
      %v915 = vmul.f32 %v758, %v914
      %v916 = vsub.f32 1.0, %v915
      %v917 = vmul.f32 %v914, %v916
      %v918 = vadd.f32 %v914, %v917
      %vm919 = vweird.f32 %v758
      %vm920 = vweird.f32 %v914
      %vm921 = vmor %vm919, %vm920
      %v922 = vsel %vm921, %v914, %v918
      %v923 = vand.u32 2147483647, %v758
      %vm924 = vcmp.eq.f32.partialorder %v923, 8.507059e+37
      %v925 = vand.u32 %v758, 2147483648
      %v926 = vor.u32 1.1754944e-38, %v925
      %v927 = vsel %vm924, %v926, %v922
      %v928 = vmul.f32 %v491, %v927
      %v929 = vrcp.pop %v759
      %v930 = vmul.f32 %v759, %v929
      %v931 = vsub.f32 1.0, %v930
      %v932 = vmul.f32 %v929, %v931
      %v933 = vadd.f32 %v929, %v932
      %vm934 = vweird.f32 %v759
      %vm935 = vweird.f32 %v929
      %vm936 = vmor %vm934, %vm935
      %v937 = vsel %vm936, %v929, %v933
      %v938 = vand.u32 2147483647, %v759
      %vm939 = vcmp.eq.f32.partialorder %v938, 8.507059e+37
      %v940 = vand.u32 %v759, 2147483648
      %v941 = vor.u32 1.1754944e-38, %v940
      %v942 = vsel %vm939, %v941, %v937
      %v943 = vmul.f32 %v494, %v942
      %v944 = vrcp.pop %v760
      %v945 = vmul.f32 %v760, %v944
      %v946 = vsub.f32 1.0, %v945
      %v947 = vmul.f32 %v944, %v946
      %v948 = vadd.f32 %v944, %v947
      %vm949 = vweird.f32 %v760
      %vm950 = vweird.f32 %v944
      %vm951 = vmor %vm949, %vm950
      %v952 = vsel %vm951, %v944, %v948
      %v953 = vand.u32 2147483647, %v760
      %vm954 = vcmp.eq.f32.partialorder %v953, 8.507059e+37
      %v955 = vand.u32 %v760, 2147483648
      %v956 = vor.u32 1.1754944e-38, %v955
      %v957 = vsel %vm954, %v956, %v952
      %v958 = vmul.f32 %v497, %v957
      %v959 = vrcp.pop %v761
      %v960 = vmul.f32 %v761, %v959
      %v961 = vsub.f32 1.0, %v960
      %v962 = vmul.f32 %v959, %v961
      %v963 = vadd.f32 %v959, %v962
      %vm964 = vweird.f32 %v761
      %vm965 = vweird.f32 %v959
      %vm966 = vmor %vm964, %vm965
      %v967 = vsel %vm966, %v959, %v963
      %v968 = vand.u32 2147483647, %v761
      %vm969 = vcmp.eq.f32.partialorder %v968, 8.507059e+37
      %v970 = vand.u32 %v761, 2147483648
      %v971 = vor.u32 1.1754944e-38, %v970
      %v972 = vsel %vm969, %v971, %v967
      %v973 = vmul.f32 %v500, %v972
      %v974 = vrcp.pop %v762
      %v975 = vmul.f32 %v762, %v974
      %v976 = vsub.f32 1.0, %v975
      %v977 = vmul.f32 %v974, %v976
      %v978 = vadd.f32 %v974, %v977
      %vm979 = vweird.f32 %v762
      %vm980 = vweird.f32 %v974
      %vm981 = vmor %vm979, %vm980
      %v982 = vsel %vm981, %v974, %v978
      %v983 = vand.u32 2147483647, %v762
      %vm984 = vcmp.eq.f32.partialorder %v983, 8.507059e+37
      %v985 = vand.u32 %v762, 2147483648
      %v986 = vor.u32 1.1754944e-38, %v985
      %v987 = vsel %vm984, %v986, %v982
      %v988 = vmul.f32 %v503, %v987
      %v989 = vrcp.pop %v763
      %v990 = vmul.f32 %v763, %v989
      %v991 = vsub.f32 1.0, %v990
      %v992 = vmul.f32 %v989, %v991
      %v993 = vadd.f32 %v989, %v992
      %vm994 = vweird.f32 %v763
      %vm995 = vweird.f32 %v989
      %vm996 = vmor %vm994, %vm995
      %v997 = vsel %vm996, %v989, %v993
      %v998 = vand.u32 2147483647, %v763
      %vm999 = vcmp.eq.f32.partialorder %v998, 8.507059e+37
      %v1000 = vand.u32 %v763, 2147483648
      %v1001 = vor.u32 1.1754944e-38, %v1000
      %v1002 = vsel %vm999, %v1001, %v997
      %v1003 = vmul.f32 %v506, %v1002
      %v1004 = vpack.c.bf16 %v778, %v778
      %v1005 = vpack.c.bf16 %v793, %v793
      %v1006 = vpack.c.bf16 %v808, %v808
      %v1007 = vpack.c.bf16 %v823, %v823
      %v1008 = vpack.c.bf16 %v838, %v838
      %v1009 = vpack.c.bf16 %v853, %v853
      %v1010 = vpack.c.bf16 %v868, %v868
      %v1011 = vpack.c.bf16 %v883, %v883
      %v1012 = vpack.c.bf16 %v898, %v898
      %v1013 = vpack.c.bf16 %v913, %v913
      %v1014 = vpack.c.bf16 %v928, %v928
      %v1015 = vpack.c.bf16 %v943, %v943
      %v1016 = vpack.c.bf16 %v958, %v958
      %v1017 = vpack.c.bf16 %v973, %v973
      %v1018 = vpack.c.bf16 %v988, %v988
      %v1019 = vpack.c.bf16 %v1003, %v1003
      %1020 = vst [vmem:[%s226] sm:$0xf] %v1004
      %1021 = vst [vmem:[%s226 + $0x4] sm:$0xf] %v1005
      %1022 = vst [vmem:[%s226 + $0x8] sm:$0xf] %v1006
      %1023 = vst [vmem:[%s226 + $0xc] sm:$0xf] %v1007
      %1024 = vst [vmem:[%s226 + $0x10] sm:$0xf] %v1008
      %1025 = vst [vmem:[%s226 + $0x14] sm:$0xf] %v1009
      %1026 = vst [vmem:[%s226 + $0x18] sm:$0xf] %v1010
      %1027 = vst [vmem:[%s226 + $0x1c] sm:$0xf] %v1011
      %1028 = vst [vmem:[%s226 + $0x20] sm:$0xf] %v1012
      %1029 = vst [vmem:[%s226 + $0x24] sm:$0xf] %v1013
      %1030 = vst [vmem:[%s226 + $0x28] sm:$0xf] %v1014
      %1031 = vst [vmem:[%s226 + $0x2c] sm:$0xf] %v1015
      %1032 = vst [vmem:[%s226 + $0x30] sm:$0xf] %v1016
      %1033 = vst [vmem:[%s226 + $0x34] sm:$0xf] %v1017
      %1034 = vst [vmem:[%s226 + $0x38] sm:$0xf] %v1018
      %1035 = vst [vmem:[%s226 + $0x3c] sm:$0xf] %v1019
      %s1036 = smul.u32 16, %s16
      %p1037 = scmp.lt.s32.totalorder %s1036, 31
      %s1038 = scalar_select %p1037, %s1036, 31
      %s1039 = smul.addr %s1038, 4
      %s1040 = scalar_lea.vmem %s5, %s1039
      // Predicated region
      $region41: #{gcn_dae_forward.7} parent=39 // pred_check
        %p1041 = pneg %p144
      $region42: #{gcn_dae_forward.7} parent=39 // pred_check_branch
        %1043 = sbr.rel (%p1041) target = $region44
      $region43: #{gcn_dae_forward.7} parent=39 // pred_region
        %s1044 = smul.u32 16, %s16
      $region44: #{gcn_dae_forward.7} parent=39 // pred_fallthru
        _
    $region40: #{gcn_dae_forward.7} parent=5 // pred_fallthru
      _
    %p1045 = scmp.le.s32.totalorder 2, %s11
    // Predicated region
    $region45: #{gcn_dae_forward.7} parent=5 // pred_check
      %p1046 = pneg %p1045
    $region46: #{gcn_dae_forward.7} parent=5 // pred_check_branch
      %1048 = sbr.rel (%p1046) target = $region48
    $region47: #{gcn_dae_forward.7} parent=5 // pred_region
      %s1049 = ssub.s32 %s11, 2
      // Predicated region
      $region49: #{gcn_dae_forward.7} parent=47 // pred_check
        %p1050 = pneg %p150
      $region50: #{gcn_dae_forward.7} parent=47 // pred_check_branch
        %1052 = sbr.rel (%p1050) target = $region52
      $region51: #{gcn_dae_forward.7} parent=47 // pred_region
        %s1053 = smul.u32 16, %s17
        %p1054 = scmp.lt.s32.totalorder %s1053, 31
        %s1055 = scalar_select %p1054, %s1053, 31
        %s1056 = smul.addr %s1055, 4
        %s1057 = scalar_lea.vmem %s5, %s1056
      $region52: #{gcn_dae_forward.7} parent=47 // pred_fallthru
        _
    $region48: #{gcn_dae_forward.7} parent=5 // pred_fallthru
      _
  $region6: #{gcn_dae_forward.7} parent=0 // loop_footer
    %s15 = sadd.s32 1, %s11
  $region7: #{gcn_dae_forward.7} parent=0 // loop_footer_branch
    %10 = sbr.rel target = $region3
  $region8: #{gcn_dae_forward.7} parent=0 // loop_exit
    _

// kernel: gcn_dae_forward.8
$region0: #{gcn_dae_forward.8}
  #allocation0 [shape = 'u32[]', space=smem, size = 0x4, offset = 0x4, fixed_abs, tag = 'smem constant byte address 0x4 - core index']
  #allocation1 [shape = 'u32[72,128]{1,0:T(1,128)}', space=vmem, size = 0x9000, scoped, tag = 'internal scratch']
  %s0 = inlined_call_operand.vmem [shape: bf16[256,128], index: 0, kind: input, shape index: {}, may-alias: {0,1}]
  %s1 = inlined_call_operand.vmem [shape: bf16[256,128], index: 1, kind: input, shape index: {}, may-alias: {0,1}]
  %s2 = inlined_call_operand.vmem [shape: f32[256,256], index: 2, kind: output, shape index: {}]
  %s3 = sld [smem:[#allocation0]]
  $region75: #{gcn_dae_forward.8} parent=0
    _
  %s5 = ssub.s32 1, %s3
  %s6 = scalar_select 0, %s5, %s3
  $region1: #{gcn_dae_forward.8} parent=0
    #allocation2 [shape = 'u8[131072]{0}', space=vmem, size = 0x20000, scoped, tag = 'output window, operand 0']
    loop: start=0, step=1, limit=6
    $region2: #{gcn_dae_forward.8} parent=1 // loop_pre_header
      _
    $region3: #{gcn_dae_forward.8} parent=1 // loop_header
      %s8 = sphi 0, %s12
      %p9 = scmp.ge.s32.totalorder %s8, 6
      %s15 = sphi 0, %s27
      %s16 = sphi 0, %s23
      %s17 = sphi 0, %s15
      %s18 = sphi 0, %s16
      %s19 = sphi 0, %s17
      %s20 = sphi 0, %s18
      %s30 = sphi 0, %s32
      %s33 = sphi 0, %s30
      %s34 = sphi 0, %s33
      %s50 = sphi 0, %s34
      %s56 = sphi 0, %s58
      %s59 = sphi 0, %s56
      %s60 = sphi 0, %s59
      %s76 = sphi 0, %s60
      %s84 = sphi 0, %s86
      %s87 = sphi 0, %s84
      %s88 = sphi 0, %s87
      %s104 = sphi 0, %s88
    $region4: #{gcn_dae_forward.8} parent=1 // loop_header_branch
      %11 = sbr.rel (%p9) target = $region8
    $region5: #{gcn_dae_forward.8} parent=1 // loop_body
      %s13 = ssub.s32 %s8, 1
      %s14 = ssub.s32 %s8, 2
      %s21 = sadd.s32 1, %s16
      %p22 = scmp.ge.s32.totalorder %s21, 2
      %s23 = scalar_select %p22, 0, %s21
      %s24 = sadd.s32 1, %s15
      %s25 = scalar_select %p22, %s24, %s15
      %p26 = scmp.ge.s32.totalorder %s25, 2
      %s27 = scalar_select %p26, 0, %s25
      %s28 = ssub.s32 %s15, %s27
      %p29 = scmp.eq.s32.totalorder %s28, 0
      %s31 = sadd.s32 %s30, 1
      %s32 = scalar_select %p29, %s30, %s31
      %p35 = pneg %p29
      %p36 = scmp.eq.s32.totalorder %s8, 3
      %p37 = por %p35, %p36
      %p38 = scmp.ne.s32.totalorder %s30, %s33
      %p39 = scmp.eq.s32.totalorder %s8, 0
      %p40 = por %p38, %p39
      %p41 = scmp.ne.s32.totalorder %s30, %s33
      %p42 = scmp.eq.s32.totalorder %s13, 3
      %p43 = por %p41, %p42
      %p44 = scmp.ne.s32.totalorder %s33, %s34
      %p45 = scmp.eq.s32.totalorder %s13, 0
      %p46 = por %p44, %p45
      %p47 = scmp.ne.s32.totalorder %s33, %s34
      %p48 = scmp.eq.s32.totalorder %s14, 3
      %p49 = por %p47, %p48
      %p51 = scmp.ne.s32.totalorder %s34, %s50
      %p52 = scmp.eq.s32.totalorder %s14, 0
      %p53 = por %p51, %p52
      %s54 = ssub.s32 %s16, %s23
      %p55 = scmp.eq.s32.totalorder %s54, 0
      %s57 = sadd.s32 %s56, 1
      %s58 = scalar_select %p55, %s56, %s57
      %p61 = pneg %p55
      %p62 = scmp.eq.s32.totalorder %s8, 3
      %p63 = por %p61, %p62
      %p64 = scmp.ne.s32.totalorder %s56, %s59
      %p65 = scmp.eq.s32.totalorder %s8, 0
      %p66 = por %p64, %p65
      %p67 = scmp.ne.s32.totalorder %s56, %s59
      %p68 = scmp.eq.s32.totalorder %s13, 3
      %p69 = por %p67, %p68
      %p70 = scmp.ne.s32.totalorder %s59, %s60
      %p71 = scmp.eq.s32.totalorder %s13, 0
      %p72 = por %p70, %p71
      %p73 = scmp.ne.s32.totalorder %s59, %s60
      %p74 = scmp.eq.s32.totalorder %s14, 3
      %p75 = por %p73, %p74
      %p77 = scmp.ne.s32.totalorder %s60, %s76
      %p78 = scmp.eq.s32.totalorder %s14, 0
      %p79 = por %p77, %p78
      %s80 = ssub.s32 %s15, %s27
      %s81 = ssub.s32 %s16, %s23
      %s82 = sor.u32 %s80, %s81
      %p83 = scmp.eq.s32.totalorder %s82, 0
      %s85 = sadd.s32 %s84, 1
      %s86 = scalar_select %p83, %s84, %s85
      %p89 = pneg %p83
      %p90 = scmp.eq.s32.totalorder %s8, 3
      %p91 = por %p89, %p90
      %p92 = scmp.ne.s32.totalorder %s84, %s87
      %p93 = scmp.eq.s32.totalorder %s8, 0
      %p94 = por %p92, %p93
      %p95 = scmp.ne.s32.totalorder %s84, %s87
      %p96 = scmp.eq.s32.totalorder %s13, 3
      %p97 = por %p95, %p96
      %p98 = scmp.ne.s32.totalorder %s87, %s88
      %p99 = scmp.eq.s32.totalorder %s13, 0
      %p100 = por %p98, %p99
      %p101 = scmp.ne.s32.totalorder %s87, %s88
      %p102 = scmp.eq.s32.totalorder %s14, 3
      %p103 = por %p101, %p102
      %p105 = scmp.ne.s32.totalorder %s88, %s104
      %p106 = scmp.eq.s32.totalorder %s14, 0
      %p107 = por %p105, %p106
      %p108 = scmp.le.s32.totalorder 1, %s8
      %p109 = scmp.lt.s32.totalorder %s8, 5
      %p110 = pnand %p108, %p109
      %p111 = pneg %p110
      // Predicated region
      $region9: #{gcn_dae_forward.8} parent=5 // pred_check
        _
      $region10: #{gcn_dae_forward.8} parent=5 // pred_check_branch
        %113 = sbr.rel (%p110) target = $region12
      $region11: #{gcn_dae_forward.8} parent=5 // pred_region
        %s114 = ssub.s32 %s8, 1
      $region12: #{gcn_dae_forward.8} parent=5 // pred_fallthru
        _
      %p115 = scmp.lt.s32.totalorder %s8, 4
      // Predicated region
      $region13: #{gcn_dae_forward.8} parent=5 // pred_check
        %p116 = pneg %p115
      $region14: #{gcn_dae_forward.8} parent=5 // pred_check_branch
        %118 = sbr.rel (%p116) target = $region16
      $region15: #{gcn_dae_forward.8} parent=5 // pred_region
        // Predicated region
        $region17: #{gcn_dae_forward.8} parent=15 // pred_check
          %p119 = pneg %p40
        $region18: #{gcn_dae_forward.8} parent=15 // pred_check_branch
          %121 = sbr.rel (%p119) target = $region20
        $region19: #{gcn_dae_forward.8} parent=15 // pred_region
          %s122 = smul.u32 16, %s15
          %p123 = scmp.lt.s32.totalorder %s122, 31
          %s124 = scalar_select %p123, %s122, 31
          %s125 = smul.addr %s124, 4
          %s126 = scalar_lea.vmem %s0, %s125
          %s127 = smul.u32 16, %s15
        $region20: #{gcn_dae_forward.8} parent=15 // pred_fallthru
          _
        // Predicated region
        $region21: #{gcn_dae_forward.8} parent=15 // pred_check
          %p128 = pneg %p66
        $region22: #{gcn_dae_forward.8} parent=15 // pred_check_branch
          %130 = sbr.rel (%p128) target = $region24
        $region23: #{gcn_dae_forward.8} parent=15 // pred_region
          %s131 = smul.u32 16, %s16
          %p132 = scmp.lt.s32.totalorder %s131, 31
          %s133 = scalar_select %p132, %s131, 31
          %s134 = smul.addr %s133, 4
          %s135 = scalar_lea.vmem %s1, %s134
          %s136 = smul.u32 16, %s16
        $region24: #{gcn_dae_forward.8} parent=15 // pred_fallthru
          _
      $region16: #{gcn_dae_forward.8} parent=5 // pred_fallthru
        _
      %p137 = scmp.le.s32.totalorder 1, %s8
      %p138 = scmp.lt.s32.totalorder %s8, 5
      %p139 = pnand %p137, %p138
      %p140 = pneg %p139
      // Predicated region
      $region25: #{gcn_dae_forward.8} parent=5 // pred_check
        _
      $region26: #{gcn_dae_forward.8} parent=5 // pred_check_branch
        %142 = sbr.rel (%p139) target = $region28
      $region27: #{gcn_dae_forward.8} parent=5 // pred_region
        %s143 = ssub.s32 %s8, 1
        %s144 = smul.u32 16, %s17
        %p145 = scmp.lt.s32.totalorder %s144, 31
        %s146 = scalar_select %p145, %s144, 31
        %s147 = smul.addr %s146, 4
        %s148 = scalar_lea.vmem %s0, %s147
        %p149 = pneg %p46
        %p150 = pneg %p43
        %s151 = smul.u32 16, %s18
        %p152 = scmp.lt.s32.totalorder %s151, 31
        %s153 = scalar_select %p152, %s151, 31
        %s154 = smul.addr %s153, 4
        %s155 = scalar_lea.vmem %s1, %s154
        %p156 = pneg %p72
        %p157 = pneg %p69
        %p158 = pneg %p100
        %p159 = pneg %p97
        %s160 = sand.u32 %s87, 1
        %s161 = sand.u32 %s87, 1
        %s162 = smul.addr %s161, 128
        %s163 = scalar_lea.vmem [#allocation2], %s162
        %s164 = smul.u32 16, %s17
        %p165 = scmp.lt.s32.totalorder %s164, 31
        %s166 = scalar_select %p165, %s164, 31
        %s167 = smul.addr %s166, 4
        %s168 = scalar_lea.vmem %s0, %s167
        %s169 = smul.u32 16, %s17
        %s170 = smul.u32 16, %s18
        %p171 = scmp.lt.s32.totalorder %s170, 31
        %s172 = scalar_select %p171, %s170, 31
        %s173 = smul.addr %s172, 4
        %s174 = scalar_lea.vmem %s1, %s173
        %s175 = smul.u32 16, %s18
        %s176 = smul.u32 16, %s17
        %v177 = vld [vmem:[%s168] sm:$0xf]
        %v178 = vld [vmem:[%s168 + $0x4] sm:$0xf]
        %v179 = vld [vmem:[%s168 + $0x8] sm:$0xf]
        %v180 = vld [vmem:[%s168 + $0xc] sm:$0xf]
        %v181 = vld [vmem:[%s168 + $0x10] sm:$0xf]
        %v182 = vld [vmem:[%s168 + $0x14] sm:$0xf]
        %v183 = vld [vmem:[%s168 + $0x18] sm:$0xf]
        %v184 = vld [vmem:[%s168 + $0x1c] sm:$0xf]
        %v185 = vld [vmem:[%s168 + $0x20] sm:$0xf]
        %v186 = vld [vmem:[%s168 + $0x24] sm:$0xf]
        %v187 = vld [vmem:[%s168 + $0x28] sm:$0xf]
        %v188 = vld [vmem:[%s168 + $0x2c] sm:$0xf]
        %v189 = vld [vmem:[%s168 + $0x30] sm:$0xf]
        %v190 = vld [vmem:[%s168 + $0x34] sm:$0xf]
        %v191 = vld [vmem:[%s168 + $0x38] sm:$0xf]
        %v192 = vld [vmem:[%s168 + $0x3c] sm:$0xf]
        %v193 = vld [vmem:[%s174] sm:$0xf]
        %v194 = vld [vmem:[%s174 + $0x4] sm:$0xf]
        %v195 = vld [vmem:[%s174 + $0x8] sm:$0xf]
        %v196 = vld [vmem:[%s174 + $0xc] sm:$0xf]
        %v197 = vld [vmem:[%s174 + $0x10] sm:$0xf]
        %v198 = vld [vmem:[%s174 + $0x14] sm:$0xf]
        %v199 = vld [vmem:[%s174 + $0x18] sm:$0xf]
        %v200 = vld [vmem:[%s174 + $0x1c] sm:$0xf]
        %v201 = vld [vmem:[%s174 + $0x20] sm:$0xf]
        %v202 = vld [vmem:[%s174 + $0x24] sm:$0xf]
        %v203 = vld [vmem:[%s174 + $0x28] sm:$0xf]
        %v204 = vld [vmem:[%s174 + $0x2c] sm:$0xf]
        %v205 = vld [vmem:[%s174 + $0x30] sm:$0xf]
        %v206 = vld [vmem:[%s174 + $0x34] sm:$0xf]
        %v207 = vld [vmem:[%s174 + $0x38] sm:$0xf]
        %v208 = vld [vmem:[%s174 + $0x3c] sm:$0xf]
        %v225 = vunpack.c.l.b16 %v177
        %v226 = vunpack.c.l.b16 %v178
        %v227 = vunpack.c.l.b16 %v179
        %v228 = vunpack.c.l.b16 %v180
        %v229 = vunpack.c.l.b16 %v181
        %v230 = vunpack.c.l.b16 %v182
        %v231 = vunpack.c.l.b16 %v183
        %v232 = vunpack.c.l.b16 %v184
        %v233 = vunpack.c.l.b16 %v185
        %v234 = vunpack.c.l.b16 %v186
        %v235 = vunpack.c.l.b16 %v187
        %v236 = vunpack.c.l.b16 %v188
        %v237 = vunpack.c.l.b16 %v189
        %v238 = vunpack.c.l.b16 %v190
        %v239 = vunpack.c.l.b16 %v191
        %v240 = vunpack.c.l.b16 %v192
        %v241 = vpack.c.b16 %v226, %v225
        %v242 = vpack.c.b16 %v228, %v227
        %v243 = vpack.c.b16 %v230, %v229
        %v244 = vpack.c.b16 %v232, %v231
        %v245 = vpack.c.b16 %v234, %v233
        %v246 = vpack.c.b16 %v236, %v235
        %v247 = vpack.c.b16 %v238, %v237
        %v248 = vpack.c.b16 %v240, %v239
        %v273 = vunpack.c.l.b16 %v193
        %v274 = vunpack.c.l.b16 %v194
        %v275 = vunpack.c.l.b16 %v195
        %v276 = vunpack.c.l.b16 %v196
        %v277 = vunpack.c.l.b16 %v197
        %v278 = vunpack.c.l.b16 %v198
        %v279 = vunpack.c.l.b16 %v199
        %v280 = vunpack.c.l.b16 %v200
        %v281 = vunpack.c.l.b16 %v201
        %v282 = vunpack.c.l.b16 %v202
        %v283 = vunpack.c.l.b16 %v203
        %v284 = vunpack.c.l.b16 %v204
        %v285 = vunpack.c.l.b16 %v205
        %v286 = vunpack.c.l.b16 %v206
        %v287 = vunpack.c.l.b16 %v207
        %v288 = vunpack.c.l.b16 %v208
        %v289 = vpack.c.b16 %v274, %v273
        %v290 = vpack.c.b16 %v276, %v275
        %v291 = vpack.c.b16 %v278, %v277
        %v292 = vpack.c.b16 %v280, %v279
        %v293 = vpack.c.b16 %v282, %v281
        %v294 = vpack.c.b16 %v284, %v283
        %v295 = vpack.c.b16 %v286, %v285
        %v296 = vpack.c.b16 %v288, %v287
        %305 = vmatpush.bf16.xpose.msra.mxu0 %v296
        %306 = vmatpush.bf16.xpose.msra.mxu0 %v295
        %307 = vmatpush.bf16.xpose.msra.mxu0 %v294
        %308 = vmatpush.bf16.xpose.msra.mxu0 %v293
        %309 = vmatpush.bf16.xpose.msra.mxu0 %v292
        %310 = vmatpush.bf16.xpose.msra.mxu0 %v291
        %311 = vmatpush.bf16.xpose.msra.mxu0 %v290
        %312 = vmatpush.bf16.xpose.msra.mxu0 %v289
        %313 = vmatmul.bf16.gmra.mxu0 %v241
        %v314 = vpop.f32.mrf.mxu0
        %v315 = vadd.f32 0.0, %v314
        %v316 = vpop.f32.mrf.mxu0
        %v317 = vadd.f32 0.0, %v316
        %318 = vmatmul.bf16.gmra.mxu0 %v242
        %v319 = vpop.f32.mrf.mxu0
        %v320 = vadd.f32 0.0, %v319
        %v321 = vpop.f32.mrf.mxu0
        %v322 = vadd.f32 0.0, %v321
        %323 = vmatmul.bf16.gmra.mxu0 %v243
        %v324 = vpop.f32.mrf.mxu0
        %v325 = vadd.f32 0.0, %v324
        %v326 = vpop.f32.mrf.mxu0
        %v327 = vadd.f32 0.0, %v326
        %328 = vmatmul.bf16.gmra.mxu0 %v244
        %v329 = vpop.f32.mrf.mxu0
        %v330 = vadd.f32 0.0, %v329
        %v331 = vpop.f32.mrf.mxu0
        %v332 = vadd.f32 0.0, %v331
        %333 = vmatmul.bf16.gmra.mxu0 %v245
        %v334 = vpop.f32.mrf.mxu0
        %v335 = vadd.f32 0.0, %v334
        %v336 = vpop.f32.mrf.mxu0
        %v337 = vadd.f32 0.0, %v336
        %338 = vmatmul.bf16.gmra.mxu0 %v246
        %v339 = vpop.f32.mrf.mxu0
        %v340 = vadd.f32 0.0, %v339
        %v341 = vpop.f32.mrf.mxu0
        %v342 = vadd.f32 0.0, %v341
        %343 = vmatmul.bf16.gmra.mxu0 %v247
        %v344 = vpop.f32.mrf.mxu0
        %v345 = vadd.f32 0.0, %v344
        %v346 = vpop.f32.mrf.mxu0
        %v347 = vadd.f32 0.0, %v346
        %348 = vmatmul.bf16.gmra.mxu0 %v248
        %v349 = vpop.f32.mrf.mxu0
        %v350 = vadd.f32 0.0, %v349
        %v351 = vpop.f32.mrf.mxu0
        %v352 = vadd.f32 0.0, %v351
        %353 = vdwg.mxu0
        %354 = vst [vmem:[%s163] sm:$0xff] %v315
        %355 = vst [vmem:[%s163 + $0x8] sm:$0xff] %v317
        %356 = vst [vmem:[%s163 + $0x10] sm:$0xff] %v320
        %357 = vst [vmem:[%s163 + $0x18] sm:$0xff] %v322
        %358 = vst [vmem:[%s163 + $0x20] sm:$0xff] %v325
        %359 = vst [vmem:[%s163 + $0x28] sm:$0xff] %v327
        %360 = vst [vmem:[%s163 + $0x30] sm:$0xff] %v330
        %361 = vst [vmem:[%s163 + $0x38] sm:$0xff] %v332
        %362 = vst [vmem:[%s163 + $0x40] sm:$0xff] %v335
        %363 = vst [vmem:[%s163 + $0x48] sm:$0xff] %v337
        %364 = vst [vmem:[%s163 + $0x50] sm:$0xff] %v340
        %365 = vst [vmem:[%s163 + $0x58] sm:$0xff] %v342
        %366 = vst [vmem:[%s163 + $0x60] sm:$0xff] %v345
        %367 = vst [vmem:[%s163 + $0x68] sm:$0xff] %v347
        %368 = vst [vmem:[%s163 + $0x70] sm:$0xff] %v350
        %369 = vst [vmem:[%s163 + $0x78] sm:$0xff] %v352
        %s370 = sand.u32 %s87, 1
        %s371 = sand.u32 %s87, 1
        %s372 = smul.addr %s371, 128
        %s373 = scalar_lea.vmem [#allocation2], %s372
        // Predicated region
        $region29: #{gcn_dae_forward.8} parent=27 // pred_check
          %p374 = pneg %p97
        $region30: #{gcn_dae_forward.8} parent=27 // pred_check_branch
          %376 = sbr.rel (%p374) target = $region32
        $region31: #{gcn_dae_forward.8} parent=27 // pred_region
          %s377 = smul.u32 16, %s17
          %s378 = smul.addr %s377, 2
          %s379 = sadd.s32 %s18, %s378
          %s380 = smul.addr %s379, 8
          %s381 = scalar_lea.vmem %s2, %s380
          // Predicated region
          $region33: #{gcn_dae_forward.8} parent=31 // pred_check
            _
          $region34: #{gcn_dae_forward.8} parent=31 // pred_check_branch
            %383 = sbr.rel (0) target = $region36
          $region35: #{gcn_dae_forward.8} parent=31 // pred_region
            // Predicated region
            $region37: #{gcn_dae_forward.8} parent=35 // pred_check
              _
            $region38: #{gcn_dae_forward.8} parent=35 // pred_check_branch
              %385 = sbr.rel (0) target = $region40
            $region39: #{gcn_dae_forward.8} parent=35 // pred_region
              // Predicated region
              $region52: #{gcn_dae_forward.8} parent=39 // pred_check
                _
              $region53: #{gcn_dae_forward.8} parent=39 // pred_check_branch
                %431 = sbr.rel (0) target = $region55
              $region54: #{gcn_dae_forward.8} parent=39 // pred_region
                loop: start=0, step=1, limit=1
                $region56: #{gcn_dae_forward.8} parent=54 // loop_pre_header
                  _
                $region57: #{gcn_dae_forward.8} parent=54 // loop_header
                  %s433 = sphi 0, %s437
                  %p434 = scmp.ge.s32.totalorder %s433, 1
                  %s438 = sphi %s373, %s373
                  %s439 = sphi %s381, %s381
                $region58: #{gcn_dae_forward.8} parent=54 // loop_header_branch
                  %436 = sbr.rel (%p434) target = $region62
                $region59: #{gcn_dae_forward.8} parent=54 // loop_body
                  %v440 = vld [vmem:[%s438] sm:$0xff]
                  %441 = vst [vmem:[%s439] sm:$0xff] %v440
                  %v442 = vld [vmem:[%s438 + $0x8] sm:$0xff]
                  %443 = vst [vmem:[%s439 + $0x10] sm:$0xff] %v442
                  %v444 = vld [vmem:[%s438 + $0x10] sm:$0xff]
                  %445 = vst [vmem:[%s439 + $0x20] sm:$0xff] %v444
                  %v446 = vld [vmem:[%s438 + $0x18] sm:$0xff]
                  %447 = vst [vmem:[%s439 + $0x30] sm:$0xff] %v446
                  %v448 = vld [vmem:[%s438 + $0x20] sm:$0xff]
                  %449 = vst [vmem:[%s439 + $0x40] sm:$0xff] %v448
                  %v450 = vld [vmem:[%s438 + $0x28] sm:$0xff]
                  %451 = vst [vmem:[%s439 + $0x50] sm:$0xff] %v450
                  %v452 = vld [vmem:[%s438 + $0x30] sm:$0xff]
                  %453 = vst [vmem:[%s439 + $0x60] sm:$0xff] %v452
                  %v454 = vld [vmem:[%s438 + $0x38] sm:$0xff]
                  %455 = vst [vmem:[%s439 + $0x70] sm:$0xff] %v454
                  %v456 = vld [vmem:[%s438 + $0x40] sm:$0xff]
                  %457 = vst [vmem:[%s439 + $0x80] sm:$0xff] %v456
                  %v458 = vld [vmem:[%s438 + $0x48] sm:$0xff]
                  %459 = vst [vmem:[%s439 + $0x90] sm:$0xff] %v458
                  %v460 = vld [vmem:[%s438 + $0x50] sm:$0xff]
                  %461 = vst [vmem:[%s439 + $0xa0] sm:$0xff] %v460
                  %v462 = vld [vmem:[%s438 + $0x58] sm:$0xff]
                  %463 = vst [vmem:[%s439 + $0xb0] sm:$0xff] %v462
                  %v464 = vld [vmem:[%s438 + $0x60] sm:$0xff]
                  %465 = vst [vmem:[%s439 + $0xc0] sm:$0xff] %v464
                  %v466 = vld [vmem:[%s438 + $0x68] sm:$0xff]
                  %467 = vst [vmem:[%s439 + $0xd0] sm:$0xff] %v466
                  %v468 = vld [vmem:[%s438 + $0x70] sm:$0xff]
                  %469 = vst [vmem:[%s439 + $0xe0] sm:$0xff] %v468
                  %v470 = vld [vmem:[%s438 + $0x78] sm:$0xff]
                  %471 = vst [vmem:[%s439 + $0xf0] sm:$0xff] %v470
                $region60: #{gcn_dae_forward.8} parent=54 // loop_footer
                  %s437 = sadd.s32 1, %s433
                $region61: #{gcn_dae_forward.8} parent=54 // loop_footer_branch
                  %432 = sbr.rel target = $region57
                $region62: #{gcn_dae_forward.8} parent=54 // loop_exit
                  _
              $region55: #{gcn_dae_forward.8} parent=39 // pred_fallthru
                _
              // Predicated region
              $region63: #{gcn_dae_forward.8} parent=39 // pred_check
                _
              $region64: #{gcn_dae_forward.8} parent=39 // pred_check_branch
                %473 = sbr.rel target = $region66
              $region65: #{gcn_dae_forward.8} parent=39 // pred_region
                _
              $region66: #{gcn_dae_forward.8} parent=39 // pred_fallthru
                _
            $region40: #{gcn_dae_forward.8} parent=35 // pred_fallthru
              _
            // Predicated region
            $region41: #{gcn_dae_forward.8} parent=35 // pred_check
              _
            $region42: #{gcn_dae_forward.8} parent=35 // pred_check_branch
              %387 = sbr.rel target = $region44
            $region43: #{gcn_dae_forward.8} parent=35 // pred_region
              %s389 = ssub.s32 256, 1
              loop: start=0, step=1, limit=1
              $region45: #{gcn_dae_forward.8} parent=43 // loop_pre_header
                _
              $region46: #{gcn_dae_forward.8} parent=43 // loop_header
                %s391 = sphi 0, %s395
                %p392 = scmp.ge.s32.totalorder %s391, 1
                %s396 = sphi %s373, %s373
                %s397 = sphi %s381, %s381
              $region47: #{gcn_dae_forward.8} parent=43 // loop_header_branch
                %394 = sbr.rel (%p392) target = $region51
              $region48: #{gcn_dae_forward.8} parent=43 // loop_body
                %v398 = vld [vmem:[%s396] sm:%s389]
                %399 = vst [vmem:[%s397] sm:%s389] %v398
                %v400 = vld [vmem:[%s396 + $0x8] sm:%s389]
                %401 = vst [vmem:[%s397 + $0x10] sm:%s389] %v400
                %v402 = vld [vmem:[%s396 + $0x10] sm:%s389]
                %403 = vst [vmem:[%s397 + $0x20] sm:%s389] %v402
                %v404 = vld [vmem:[%s396 + $0x18] sm:%s389]
                %405 = vst [vmem:[%s397 + $0x30] sm:%s389] %v404
                %v406 = vld [vmem:[%s396 + $0x20] sm:%s389]
                %407 = vst [vmem:[%s397 + $0x40] sm:%s389] %v406
                %v408 = vld [vmem:[%s396 + $0x28] sm:%s389]
                %409 = vst [vmem:[%s397 + $0x50] sm:%s389] %v408
                %v410 = vld [vmem:[%s396 + $0x30] sm:%s389]
                %411 = vst [vmem:[%s397 + $0x60] sm:%s389] %v410
                %v412 = vld [vmem:[%s396 + $0x38] sm:%s389]
                %413 = vst [vmem:[%s397 + $0x70] sm:%s389] %v412
                %v414 = vld [vmem:[%s396 + $0x40] sm:%s389]
                %415 = vst [vmem:[%s397 + $0x80] sm:%s389] %v414
                %v416 = vld [vmem:[%s396 + $0x48] sm:%s389]
                %417 = vst [vmem:[%s397 + $0x90] sm:%s389] %v416
                %v418 = vld [vmem:[%s396 + $0x50] sm:%s389]
                %419 = vst [vmem:[%s397 + $0xa0] sm:%s389] %v418
                %v420 = vld [vmem:[%s396 + $0x58] sm:%s389]
                %421 = vst [vmem:[%s397 + $0xb0] sm:%s389] %v420
                %v422 = vld [vmem:[%s396 + $0x60] sm:%s389]
                %423 = vst [vmem:[%s397 + $0xc0] sm:%s389] %v422
                %v424 = vld [vmem:[%s396 + $0x68] sm:%s389]
                %425 = vst [vmem:[%s397 + $0xd0] sm:%s389] %v424
                %v426 = vld [vmem:[%s396 + $0x70] sm:%s389]
                %427 = vst [vmem:[%s397 + $0xe0] sm:%s389] %v426
                %v428 = vld [vmem:[%s396 + $0x78] sm:%s389]
                %429 = vst [vmem:[%s397 + $0xf0] sm:%s389] %v428
              $region49: #{gcn_dae_forward.8} parent=43 // loop_footer
                %s395 = sadd.s32 1, %s391
              $region50: #{gcn_dae_forward.8} parent=43 // loop_footer_branch
                %390 = sbr.rel target = $region46
              $region51: #{gcn_dae_forward.8} parent=43 // loop_exit
                _
            $region44: #{gcn_dae_forward.8} parent=35 // pred_fallthru
              _
          $region36: #{gcn_dae_forward.8} parent=31 // pred_fallthru
            _
          %474 = vnop
        $region32: #{gcn_dae_forward.8} parent=27 // pred_fallthru
          _
      $region28: #{gcn_dae_forward.8} parent=5 // pred_fallthru
        _
      %p475 = scmp.le.s32.totalorder 2, %s8
      // Predicated region
      $region67: #{gcn_dae_forward.8} parent=5 // pred_check
        %p476 = pneg %p475
      $region68: #{gcn_dae_forward.8} parent=5 // pred_check_branch
        %478 = sbr.rel (%p476) target = $region70
      $region69: #{gcn_dae_forward.8} parent=5 // pred_region
        %s479 = ssub.s32 %s8, 2
        // Predicated region
        $region71: #{gcn_dae_forward.8} parent=69 // pred_check
          %p480 = pneg %p103
        $region72: #{gcn_dae_forward.8} parent=69 // pred_check_branch
          %482 = sbr.rel (%p480) target = $region74
        $region73: #{gcn_dae_forward.8} parent=69 // pred_region
          %s483 = sand.u32 %s88, 1
          %s484 = sand.u32 %s88, 1
          %s485 = smul.addr %s484, 128
          %s486 = scalar_lea.vmem [#allocation2], %s485
        $region74: #{gcn_dae_forward.8} parent=69 // pred_fallthru
          _
      $region70: #{gcn_dae_forward.8} parent=5 // pred_fallthru
        _
    $region6: #{gcn_dae_forward.8} parent=1 // loop_footer
      %s12 = sadd.s32 1, %s8
    $region7: #{gcn_dae_forward.8} parent=1 // loop_footer_branch
      %7 = sbr.rel target = $region3
    $region8: #{gcn_dae_forward.8} parent=1 // loop_exit
      _

// kernel: gcn_dae_forward.9
$region0: #{gcn_dae_forward.9}
  #allocation0 [shape = 'u32[]', space=smem, size = 0x4, offset = 0x4, fixed_abs, tag = 'smem constant byte address 0x4 - core index']
  #allocation1 [shape = 'u32[72,128]{1,0:T(1,128)}', space=vmem, size = 0x9000, scoped, tag = 'internal scratch']
  %s0 = inlined_call_operand.vmem [shape: f32[256,256], index: 0, kind: input, shape index: {}, may-alias: {0,1}]
  %s1 = inlined_call_operand.vmem [shape: f32[256,256], index: 1, kind: input, shape index: {}, may-alias: {0,1}]
  %s2 = inlined_call_operand.vmem [shape: f32[256,1], index: 2, kind: input, shape index: {}, may-alias: {2,3}]
  %s3 = inlined_call_operand.vmem [shape: f32[256,1], index: 3, kind: input, shape index: {}, may-alias: {2,3}]
  %s4 = inlined_call_operand.vmem [shape: f32[256,1], index: 4, kind: output, shape index: {}]
  %s5 = sld [smem:[#allocation0]]
  $region129: #{gcn_dae_forward.9} parent=0
    _
  %s7 = ssub.s32 1, %s5
  %s8 = scalar_select 0, %s7, %s5
  $region1: #{gcn_dae_forward.9} parent=0
    #allocation2 [shape = 'u8[131072]{0}', space=vmem, size = 0x20000, scoped, tag = 'input window, operand 0']
    #allocation3 [shape = 'u8[131072]{0}', space=vmem, size = 0x20000, scoped, tag = 'input window, operand 1']
    loop: start=0, step=1, limit=6
    $region2: #{gcn_dae_forward.9} parent=1 // loop_pre_header
      _
    $region3: #{gcn_dae_forward.9} parent=1 // loop_header
      %s10 = sphi 0, %s14
      %p11 = scmp.ge.s32.totalorder %s10, 6
      %s17 = sphi 0, %s29
      %s18 = sphi 0, %s25
      %s19 = sphi 0, %s17
      %s20 = sphi 0, %s18
      %s21 = sphi 0, %s19
      %s22 = sphi 0, %s20
      %s34 = sphi 0, %s36
      %s37 = sphi 0, %s34
      %s38 = sphi 0, %s37
      %s54 = sphi 0, %s38
      %s62 = sphi 0, %s64
      %s65 = sphi 0, %s62
      %s66 = sphi 0, %s65
      %s82 = sphi 0, %s66
      %s88 = sphi 0, %s90
      %s91 = sphi 0, %s88
      %s92 = sphi 0, %s91
      %s108 = sphi 0, %s92
      %s114 = sphi 0, %s116
      %s117 = sphi 0, %s114
      %s118 = sphi 0, %s117
      %s134 = sphi 0, %s118
      %s140 = sphi 0, %s142
      %s143 = sphi 0, %s140
      %s144 = sphi 0, %s143
      %s160 = sphi 0, %s144
    $region4: #{gcn_dae_forward.9} parent=1 // loop_header_branch
      %13 = sbr.rel (%p11) target = $region8
    $region5: #{gcn_dae_forward.9} parent=1 // loop_body
      %s15 = ssub.s32 %s10, 1
      %s16 = ssub.s32 %s10, 2
      %s23 = sadd.s32 1, %s18
      %p24 = scmp.ge.s32.totalorder %s23, 2
      %s25 = scalar_select %p24, 0, %s23
      %s26 = sadd.s32 1, %s17
      %s27 = scalar_select %p24, %s26, %s17
      %p28 = scmp.ge.s32.totalorder %s27, 2
      %s29 = scalar_select %p28, 0, %s27
      %s30 = ssub.s32 %s17, %s29
      %s31 = ssub.s32 %s18, %s25
      %s32 = sor.u32 %s30, %s31
      %p33 = scmp.eq.s32.totalorder %s32, 0
      %s35 = sadd.s32 %s34, 1
      %s36 = scalar_select %p33, %s34, %s35
      %p39 = pneg %p33
      %p40 = scmp.eq.s32.totalorder %s10, 3
      %p41 = por %p39, %p40
      %p42 = scmp.ne.s32.totalorder %s34, %s37
      %p43 = scmp.eq.s32.totalorder %s10, 0
      %p44 = por %p42, %p43
      %p45 = scmp.ne.s32.totalorder %s34, %s37
      %p46 = scmp.eq.s32.totalorder %s15, 3
      %p47 = por %p45, %p46
      %p48 = scmp.ne.s32.totalorder %s37, %s38
      %p49 = scmp.eq.s32.totalorder %s15, 0
      %p50 = por %p48, %p49
      %p51 = scmp.ne.s32.totalorder %s37, %s38
      %p52 = scmp.eq.s32.totalorder %s16, 3
      %p53 = por %p51, %p52
      %p55 = scmp.ne.s32.totalorder %s38, %s54
      %p56 = scmp.eq.s32.totalorder %s16, 0
      %p57 = por %p55, %p56
      %s58 = ssub.s32 %s18, %s25
      %s59 = ssub.s32 %s17, %s29
      %s60 = sor.u32 %s58, %s59
      %p61 = scmp.eq.s32.totalorder %s60, 0
      %s63 = sadd.s32 %s62, 1
      %s64 = scalar_select %p61, %s62, %s63
      %p67 = pneg %p61
      %p68 = scmp.eq.s32.totalorder %s10, 3
      %p69 = por %p67, %p68
      %p70 = scmp.ne.s32.totalorder %s62, %s65
      %p71 = scmp.eq.s32.totalorder %s10, 0
      %p72 = por %p70, %p71
      %p73 = scmp.ne.s32.totalorder %s62, %s65
      %p74 = scmp.eq.s32.totalorder %s15, 3
      %p75 = por %p73, %p74
      %p76 = scmp.ne.s32.totalorder %s65, %s66
      %p77 = scmp.eq.s32.totalorder %s15, 0
      %p78 = por %p76, %p77
      %p79 = scmp.ne.s32.totalorder %s65, %s66
      %p80 = scmp.eq.s32.totalorder %s16, 3
      %p81 = por %p79, %p80
      %p83 = scmp.ne.s32.totalorder %s66, %s82
      %p84 = scmp.eq.s32.totalorder %s16, 0
      %p85 = por %p83, %p84
      %s86 = ssub.s32 %s17, %s29
      %p87 = scmp.eq.s32.totalorder %s86, 0
      %s89 = sadd.s32 %s88, 1
      %s90 = scalar_select %p87, %s88, %s89
      %p93 = pneg %p87
      %p94 = scmp.eq.s32.totalorder %s10, 3
      %p95 = por %p93, %p94
      %p96 = scmp.ne.s32.totalorder %s88, %s91
      %p97 = scmp.eq.s32.totalorder %s10, 0
      %p98 = por %p96, %p97
      %p99 = scmp.ne.s32.totalorder %s88, %s91
      %p100 = scmp.eq.s32.totalorder %s15, 3
      %p101 = por %p99, %p100
      %p102 = scmp.ne.s32.totalorder %s91, %s92
      %p103 = scmp.eq.s32.totalorder %s15, 0
      %p104 = por %p102, %p103
      %p105 = scmp.ne.s32.totalorder %s91, %s92
      %p106 = scmp.eq.s32.totalorder %s16, 3
      %p107 = por %p105, %p106
      %p109 = scmp.ne.s32.totalorder %s92, %s108
      %p110 = scmp.eq.s32.totalorder %s16, 0
      %p111 = por %p109, %p110
      %s112 = ssub.s32 %s18, %s25
      %p113 = scmp.eq.s32.totalorder %s112, 0
      %s115 = sadd.s32 %s114, 1
      %s116 = scalar_select %p113, %s114, %s115
      %p119 = pneg %p113
      %p120 = scmp.eq.s32.totalorder %s10, 3
      %p121 = por %p119, %p120
      %p122 = scmp.ne.s32.totalorder %s114, %s117
      %p123 = scmp.eq.s32.totalorder %s10, 0
      %p124 = por %p122, %p123
      %p125 = scmp.ne.s32.totalorder %s114, %s117
      %p126 = scmp.eq.s32.totalorder %s15, 3
      %p127 = por %p125, %p126
      %p128 = scmp.ne.s32.totalorder %s117, %s118
      %p129 = scmp.eq.s32.totalorder %s15, 0
      %p130 = por %p128, %p129
      %p131 = scmp.ne.s32.totalorder %s117, %s118
      %p132 = scmp.eq.s32.totalorder %s16, 3
      %p133 = por %p131, %p132
      %p135 = scmp.ne.s32.totalorder %s118, %s134
      %p136 = scmp.eq.s32.totalorder %s16, 0
      %p137 = por %p135, %p136
      %s138 = ssub.s32 %s17, %s29
      %p139 = scmp.eq.s32.totalorder %s138, 0
      %s141 = sadd.s32 %s140, 1
      %s142 = scalar_select %p139, %s140, %s141
      %p145 = pneg %p139
      %p146 = scmp.eq.s32.totalorder %s10, 3
      %p147 = por %p145, %p146
      %p148 = scmp.ne.s32.totalorder %s140, %s143
      %p149 = scmp.eq.s32.totalorder %s10, 0
      %p150 = por %p148, %p149
      %p151 = scmp.ne.s32.totalorder %s140, %s143
      %p152 = scmp.eq.s32.totalorder %s15, 3
      %p153 = por %p151, %p152
      %p154 = scmp.ne.s32.totalorder %s143, %s144
      %p155 = scmp.eq.s32.totalorder %s15, 0
      %p156 = por %p154, %p155
      %p157 = scmp.ne.s32.totalorder %s143, %s144
      %p158 = scmp.eq.s32.totalorder %s16, 3
      %p159 = por %p157, %p158
      %p161 = scmp.ne.s32.totalorder %s144, %s160
      %p162 = scmp.eq.s32.totalorder %s16, 0
      %p163 = por %p161, %p162
      %p164 = scmp.le.s32.totalorder 1, %s10
      %p165 = scmp.lt.s32.totalorder %s10, 5
      %p166 = pnand %p164, %p165
      %p167 = pneg %p166
      // Predicated region
      $region9: #{gcn_dae_forward.9} parent=5 // pred_check
        _
      $region10: #{gcn_dae_forward.9} parent=5 // pred_check_branch
        %169 = sbr.rel (%p166) target = $region12
      $region11: #{gcn_dae_forward.9} parent=5 // pred_region
        %s170 = ssub.s32 %s10, 1
      $region12: #{gcn_dae_forward.9} parent=5 // pred_fallthru
        _
      %p171 = scmp.lt.s32.totalorder %s10, 4
      // Predicated region
      $region13: #{gcn_dae_forward.9} parent=5 // pred_check
        %p172 = pneg %p171
      $region14: #{gcn_dae_forward.9} parent=5 // pred_check_branch
        %174 = sbr.rel (%p172) target = $region16
      $region15: #{gcn_dae_forward.9} parent=5 // pred_region
        // Predicated region
        $region17: #{gcn_dae_forward.9} parent=15 // pred_check
          %p175 = pneg %p44
        $region18: #{gcn_dae_forward.9} parent=15 // pred_check_branch
          %177 = sbr.rel (%p175) target = $region20
        $region19: #{gcn_dae_forward.9} parent=15 // pred_region
          %s178 = sand.u32 %s34, 1
          %s179 = sand.u32 %s34, 1
          %s180 = smul.addr %s179, 128
          %s181 = scalar_lea.vmem [#allocation2], %s180
          %s182 = smul.u32 16, %s17
          %s183 = smul.addr %s182, 2
          %s184 = sadd.s32 %s18, %s183
          %s185 = smul.addr %s184, 8
          %s186 = scalar_lea.vmem %s0, %s185
          // Predicated region
          $region21: #{gcn_dae_forward.9} parent=19 // pred_check
            _
          $region22: #{gcn_dae_forward.9} parent=19 // pred_check_branch
            %188 = sbr.rel (0) target = $region24
          $region23: #{gcn_dae_forward.9} parent=19 // pred_region
            // Predicated region
            $region25: #{gcn_dae_forward.9} parent=23 // pred_check
              _
            $region26: #{gcn_dae_forward.9} parent=23 // pred_check_branch
              %190 = sbr.rel (0) target = $region28
            $region27: #{gcn_dae_forward.9} parent=23 // pred_region
              // Predicated region
              $region40: #{gcn_dae_forward.9} parent=27 // pred_check
                _
              $region41: #{gcn_dae_forward.9} parent=27 // pred_check_branch
                %236 = sbr.rel (0) target = $region43
              $region42: #{gcn_dae_forward.9} parent=27 // pred_region
                loop: start=0, step=1, limit=1
                $region44: #{gcn_dae_forward.9} parent=42 // loop_pre_header
                  _
                $region45: #{gcn_dae_forward.9} parent=42 // loop_header
                  %s238 = sphi 0, %s242
                  %p239 = scmp.ge.s32.totalorder %s238, 1
                  %s243 = sphi %s186, %s186
                  %s244 = sphi %s181, %s181
                $region46: #{gcn_dae_forward.9} parent=42 // loop_header_branch
                  %241 = sbr.rel (%p239) target = $region50
                $region47: #{gcn_dae_forward.9} parent=42 // loop_body
                  %v245 = vld [vmem:[%s243] sm:$0xff]
                  %246 = vst [vmem:[%s244] sm:$0xff] %v245
                  %v247 = vld [vmem:[%s243 + $0x10] sm:$0xff]
                  %248 = vst [vmem:[%s244 + $0x8] sm:$0xff] %v247
                  %v249 = vld [vmem:[%s243 + $0x20] sm:$0xff]
                  %250 = vst [vmem:[%s244 + $0x10] sm:$0xff] %v249
                  %v251 = vld [vmem:[%s243 + $0x30] sm:$0xff]
                  %252 = vst [vmem:[%s244 + $0x18] sm:$0xff] %v251
                  %v253 = vld [vmem:[%s243 + $0x40] sm:$0xff]
                  %254 = vst [vmem:[%s244 + $0x20] sm:$0xff] %v253
                  %v255 = vld [vmem:[%s243 + $0x50] sm:$0xff]
                  %256 = vst [vmem:[%s244 + $0x28] sm:$0xff] %v255
                  %v257 = vld [vmem:[%s243 + $0x60] sm:$0xff]
                  %258 = vst [vmem:[%s244 + $0x30] sm:$0xff] %v257
                  %v259 = vld [vmem:[%s243 + $0x70] sm:$0xff]
                  %260 = vst [vmem:[%s244 + $0x38] sm:$0xff] %v259
                  %v261 = vld [vmem:[%s243 + $0x80] sm:$0xff]
                  %262 = vst [vmem:[%s244 + $0x40] sm:$0xff] %v261
                  %v263 = vld [vmem:[%s243 + $0x90] sm:$0xff]
                  %264 = vst [vmem:[%s244 + $0x48] sm:$0xff] %v263
                  %v265 = vld [vmem:[%s243 + $0xa0] sm:$0xff]
                  %266 = vst [vmem:[%s244 + $0x50] sm:$0xff] %v265
                  %v267 = vld [vmem:[%s243 + $0xb0] sm:$0xff]
                  %268 = vst [vmem:[%s244 + $0x58] sm:$0xff] %v267
                  %v269 = vld [vmem:[%s243 + $0xc0] sm:$0xff]
                  %270 = vst [vmem:[%s244 + $0x60] sm:$0xff] %v269
                  %v271 = vld [vmem:[%s243 + $0xd0] sm:$0xff]
                  %272 = vst [vmem:[%s244 + $0x68] sm:$0xff] %v271
                  %v273 = vld [vmem:[%s243 + $0xe0] sm:$0xff]
                  %274 = vst [vmem:[%s244 + $0x70] sm:$0xff] %v273
                  %v275 = vld [vmem:[%s243 + $0xf0] sm:$0xff]
                  %276 = vst [vmem:[%s244 + $0x78] sm:$0xff] %v275
                $region48: #{gcn_dae_forward.9} parent=42 // loop_footer
                  %s242 = sadd.s32 1, %s238
                $region49: #{gcn_dae_forward.9} parent=42 // loop_footer_branch
                  %237 = sbr.rel target = $region45
                $region50: #{gcn_dae_forward.9} parent=42 // loop_exit
                  _
              $region43: #{gcn_dae_forward.9} parent=27 // pred_fallthru
                _
              // Predicated region
              $region51: #{gcn_dae_forward.9} parent=27 // pred_check
                _
              $region52: #{gcn_dae_forward.9} parent=27 // pred_check_branch
                %278 = sbr.rel target = $region54
              $region53: #{gcn_dae_forward.9} parent=27 // pred_region
                _
              $region54: #{gcn_dae_forward.9} parent=27 // pred_fallthru
                _
            $region28: #{gcn_dae_forward.9} parent=23 // pred_fallthru
              _
            // Predicated region
            $region29: #{gcn_dae_forward.9} parent=23 // pred_check
              _
            $region30: #{gcn_dae_forward.9} parent=23 // pred_check_branch
              %192 = sbr.rel target = $region32
            $region31: #{gcn_dae_forward.9} parent=23 // pred_region
              %s194 = ssub.s32 256, 1
              loop: start=0, step=1, limit=1
              $region33: #{gcn_dae_forward.9} parent=31 // loop_pre_header
                _
              $region34: #{gcn_dae_forward.9} parent=31 // loop_header
                %s196 = sphi 0, %s200
                %p197 = scmp.ge.s32.totalorder %s196, 1
                %s201 = sphi %s186, %s186
                %s202 = sphi %s181, %s181
              $region35: #{gcn_dae_forward.9} parent=31 // loop_header_branch
                %199 = sbr.rel (%p197) target = $region39
              $region36: #{gcn_dae_forward.9} parent=31 // loop_body
                %v203 = vld [vmem:[%s201] sm:%s194]
                %204 = vst [vmem:[%s202] sm:%s194] %v203
                %v205 = vld [vmem:[%s201 + $0x10] sm:%s194]
                %206 = vst [vmem:[%s202 + $0x8] sm:%s194] %v205
                %v207 = vld [vmem:[%s201 + $0x20] sm:%s194]
                %208 = vst [vmem:[%s202 + $0x10] sm:%s194] %v207
                %v209 = vld [vmem:[%s201 + $0x30] sm:%s194]
                %210 = vst [vmem:[%s202 + $0x18] sm:%s194] %v209
                %v211 = vld [vmem:[%s201 + $0x40] sm:%s194]
                %212 = vst [vmem:[%s202 + $0x20] sm:%s194] %v211
                %v213 = vld [vmem:[%s201 + $0x50] sm:%s194]
                %214 = vst [vmem:[%s202 + $0x28] sm:%s194] %v213
                %v215 = vld [vmem:[%s201 + $0x60] sm:%s194]
                %216 = vst [vmem:[%s202 + $0x30] sm:%s194] %v215
                %v217 = vld [vmem:[%s201 + $0x70] sm:%s194]
                %218 = vst [vmem:[%s202 + $0x38] sm:%s194] %v217
                %v219 = vld [vmem:[%s201 + $0x80] sm:%s194]
                %220 = vst [vmem:[%s202 + $0x40] sm:%s194] %v219
                %v221 = vld [vmem:[%s201 + $0x90] sm:%s194]
                %222 = vst [vmem:[%s202 + $0x48] sm:%s194] %v221
                %v223 = vld [vmem:[%s201 + $0xa0] sm:%s194]
                %224 = vst [vmem:[%s202 + $0x50] sm:%s194] %v223
                %v225 = vld [vmem:[%s201 + $0xb0] sm:%s194]
                %226 = vst [vmem:[%s202 + $0x58] sm:%s194] %v225
                %v227 = vld [vmem:[%s201 + $0xc0] sm:%s194]
                %228 = vst [vmem:[%s202 + $0x60] sm:%s194] %v227
                %v229 = vld [vmem:[%s201 + $0xd0] sm:%s194]
                %230 = vst [vmem:[%s202 + $0x68] sm:%s194] %v229
                %v231 = vld [vmem:[%s201 + $0xe0] sm:%s194]
                %232 = vst [vmem:[%s202 + $0x70] sm:%s194] %v231
                %v233 = vld [vmem:[%s201 + $0xf0] sm:%s194]
                %234 = vst [vmem:[%s202 + $0x78] sm:%s194] %v233
              $region37: #{gcn_dae_forward.9} parent=31 // loop_footer
                %s200 = sadd.s32 1, %s196
              $region38: #{gcn_dae_forward.9} parent=31 // loop_footer_branch
                %195 = sbr.rel target = $region34
              $region39: #{gcn_dae_forward.9} parent=31 // loop_exit
                _
            $region32: #{gcn_dae_forward.9} parent=23 // pred_fallthru
              _
          $region24: #{gcn_dae_forward.9} parent=19 // pred_fallthru
            _
          %279 = vnop
        $region20: #{gcn_dae_forward.9} parent=15 // pred_fallthru
          _
        // Predicated region
        $region55: #{gcn_dae_forward.9} parent=15 // pred_check
          %p280 = pneg %p72
        $region56: #{gcn_dae_forward.9} parent=15 // pred_check_branch
          %282 = sbr.rel (%p280) target = $region58
        $region57: #{gcn_dae_forward.9} parent=15 // pred_region
          %s283 = sand.u32 %s62, 1
          %s284 = sand.u32 %s62, 1
          %s285 = smul.addr %s284, 128
          %s286 = scalar_lea.vmem [#allocation3], %s285
          %s287 = smul.u32 16, %s18
          %s288 = smul.addr %s287, 2
          %s289 = sadd.s32 %s17, %s288
          %s290 = smul.addr %s289, 8
          %s291 = scalar_lea.vmem %s1, %s290
          // Predicated region
          $region59: #{gcn_dae_forward.9} parent=57 // pred_check
            _
          $region60: #{gcn_dae_forward.9} parent=57 // pred_check_branch
            %293 = sbr.rel (0) target = $region62
          $region61: #{gcn_dae_forward.9} parent=57 // pred_region
            // Predicated region
            $region63: #{gcn_dae_forward.9} parent=61 // pred_check
              _
            $region64: #{gcn_dae_forward.9} parent=61 // pred_check_branch
              %295 = sbr.rel (0) target = $region66
            $region65: #{gcn_dae_forward.9} parent=61 // pred_region
              // Predicated region
              $region78: #{gcn_dae_forward.9} parent=65 // pred_check
                _
              $region79: #{gcn_dae_forward.9} parent=65 // pred_check_branch
                %341 = sbr.rel (0) target = $region81
              $region80: #{gcn_dae_forward.9} parent=65 // pred_region
                loop: start=0, step=1, limit=1
                $region82: #{gcn_dae_forward.9} parent=80 // loop_pre_header
                  _
                $region83: #{gcn_dae_forward.9} parent=80 // loop_header
                  %s343 = sphi 0, %s347
                  %p344 = scmp.ge.s32.totalorder %s343, 1
                  %s348 = sphi %s291, %s291
                  %s349 = sphi %s286, %s286
                $region84: #{gcn_dae_forward.9} parent=80 // loop_header_branch
                  %346 = sbr.rel (%p344) target = $region88
                $region85: #{gcn_dae_forward.9} parent=80 // loop_body
                  %v350 = vld [vmem:[%s348] sm:$0xff]
                  %351 = vst [vmem:[%s349] sm:$0xff] %v350
                  %v352 = vld [vmem:[%s348 + $0x10] sm:$0xff]
                  %353 = vst [vmem:[%s349 + $0x8] sm:$0xff] %v352
                  %v354 = vld [vmem:[%s348 + $0x20] sm:$0xff]
                  %355 = vst [vmem:[%s349 + $0x10] sm:$0xff] %v354
                  %v356 = vld [vmem:[%s348 + $0x30] sm:$0xff]
                  %357 = vst [vmem:[%s349 + $0x18] sm:$0xff] %v356
                  %v358 = vld [vmem:[%s348 + $0x40] sm:$0xff]
                  %359 = vst [vmem:[%s349 + $0x20] sm:$0xff] %v358
                  %v360 = vld [vmem:[%s348 + $0x50] sm:$0xff]
                  %361 = vst [vmem:[%s349 + $0x28] sm:$0xff] %v360
                  %v362 = vld [vmem:[%s348 + $0x60] sm:$0xff]
                  %363 = vst [vmem:[%s349 + $0x30] sm:$0xff] %v362
                  %v364 = vld [vmem:[%s348 + $0x70] sm:$0xff]
                  %365 = vst [vmem:[%s349 + $0x38] sm:$0xff] %v364
                  %v366 = vld [vmem:[%s348 + $0x80] sm:$0xff]
                  %367 = vst [vmem:[%s349 + $0x40] sm:$0xff] %v366
                  %v368 = vld [vmem:[%s348 + $0x90] sm:$0xff]
                  %369 = vst [vmem:[%s349 + $0x48] sm:$0xff] %v368
                  %v370 = vld [vmem:[%s348 + $0xa0] sm:$0xff]
                  %371 = vst [vmem:[%s349 + $0x50] sm:$0xff] %v370
                  %v372 = vld [vmem:[%s348 + $0xb0] sm:$0xff]
                  %373 = vst [vmem:[%s349 + $0x58] sm:$0xff] %v372
                  %v374 = vld [vmem:[%s348 + $0xc0] sm:$0xff]
                  %375 = vst [vmem:[%s349 + $0x60] sm:$0xff] %v374
                  %v376 = vld [vmem:[%s348 + $0xd0] sm:$0xff]
                  %377 = vst [vmem:[%s349 + $0x68] sm:$0xff] %v376
                  %v378 = vld [vmem:[%s348 + $0xe0] sm:$0xff]
                  %379 = vst [vmem:[%s349 + $0x70] sm:$0xff] %v378
                  %v380 = vld [vmem:[%s348 + $0xf0] sm:$0xff]
                  %381 = vst [vmem:[%s349 + $0x78] sm:$0xff] %v380
                $region86: #{gcn_dae_forward.9} parent=80 // loop_footer
                  %s347 = sadd.s32 1, %s343
                $region87: #{gcn_dae_forward.9} parent=80 // loop_footer_branch
                  %342 = sbr.rel target = $region83
                $region88: #{gcn_dae_forward.9} parent=80 // loop_exit
                  _
              $region81: #{gcn_dae_forward.9} parent=65 // pred_fallthru
                _
              // Predicated region
              $region89: #{gcn_dae_forward.9} parent=65 // pred_check
                _
              $region90: #{gcn_dae_forward.9} parent=65 // pred_check_branch
                %383 = sbr.rel target = $region92
              $region91: #{gcn_dae_forward.9} parent=65 // pred_region
                _
              $region92: #{gcn_dae_forward.9} parent=65 // pred_fallthru
                _
            $region66: #{gcn_dae_forward.9} parent=61 // pred_fallthru
              _
            // Predicated region
            $region67: #{gcn_dae_forward.9} parent=61 // pred_check
              _
            $region68: #{gcn_dae_forward.9} parent=61 // pred_check_branch
              %297 = sbr.rel target = $region70
            $region69: #{gcn_dae_forward.9} parent=61 // pred_region
              %s299 = ssub.s32 256, 1
              loop: start=0, step=1, limit=1
              $region71: #{gcn_dae_forward.9} parent=69 // loop_pre_header
                _
              $region72: #{gcn_dae_forward.9} parent=69 // loop_header
                %s301 = sphi 0, %s305
                %p302 = scmp.ge.s32.totalorder %s301, 1
                %s306 = sphi %s291, %s291
                %s307 = sphi %s286, %s286
              $region73: #{gcn_dae_forward.9} parent=69 // loop_header_branch
                %304 = sbr.rel (%p302) target = $region77
              $region74: #{gcn_dae_forward.9} parent=69 // loop_body
                %v308 = vld [vmem:[%s306] sm:%s299]
                %309 = vst [vmem:[%s307] sm:%s299] %v308
                %v310 = vld [vmem:[%s306 + $0x10] sm:%s299]
                %311 = vst [vmem:[%s307 + $0x8] sm:%s299] %v310
                %v312 = vld [vmem:[%s306 + $0x20] sm:%s299]
                %313 = vst [vmem:[%s307 + $0x10] sm:%s299] %v312
                %v314 = vld [vmem:[%s306 + $0x30] sm:%s299]
                %315 = vst [vmem:[%s307 + $0x18] sm:%s299] %v314
                %v316 = vld [vmem:[%s306 + $0x40] sm:%s299]
                %317 = vst [vmem:[%s307 + $0x20] sm:%s299] %v316
                %v318 = vld [vmem:[%s306 + $0x50] sm:%s299]
                %319 = vst [vmem:[%s307 + $0x28] sm:%s299] %v318
                %v320 = vld [vmem:[%s306 + $0x60] sm:%s299]
                %321 = vst [vmem:[%s307 + $0x30] sm:%s299] %v320
                %v322 = vld [vmem:[%s306 + $0x70] sm:%s299]
                %323 = vst [vmem:[%s307 + $0x38] sm:%s299] %v322
                %v324 = vld [vmem:[%s306 + $0x80] sm:%s299]
                %325 = vst [vmem:[%s307 + $0x40] sm:%s299] %v324
                %v326 = vld [vmem:[%s306 + $0x90] sm:%s299]
                %327 = vst [vmem:[%s307 + $0x48] sm:%s299] %v326
                %v328 = vld [vmem:[%s306 + $0xa0] sm:%s299]
                %329 = vst [vmem:[%s307 + $0x50] sm:%s299] %v328
                %v330 = vld [vmem:[%s306 + $0xb0] sm:%s299]
                %331 = vst [vmem:[%s307 + $0x58] sm:%s299] %v330
                %v332 = vld [vmem:[%s306 + $0xc0] sm:%s299]
                %333 = vst [vmem:[%s307 + $0x60] sm:%s299] %v332
                %v334 = vld [vmem:[%s306 + $0xd0] sm:%s299]
                %335 = vst [vmem:[%s307 + $0x68] sm:%s299] %v334
                %v336 = vld [vmem:[%s306 + $0xe0] sm:%s299]
                %337 = vst [vmem:[%s307 + $0x70] sm:%s299] %v336
                %v338 = vld [vmem:[%s306 + $0xf0] sm:%s299]
                %339 = vst [vmem:[%s307 + $0x78] sm:%s299] %v338
              $region75: #{gcn_dae_forward.9} parent=69 // loop_footer
                %s305 = sadd.s32 1, %s301
              $region76: #{gcn_dae_forward.9} parent=69 // loop_footer_branch
                %300 = sbr.rel target = $region72
              $region77: #{gcn_dae_forward.9} parent=69 // loop_exit
                _
            $region70: #{gcn_dae_forward.9} parent=61 // pred_fallthru
              _
          $region62: #{gcn_dae_forward.9} parent=57 // pred_fallthru
            _
          %384 = vnop
        $region58: #{gcn_dae_forward.9} parent=15 // pred_fallthru
          _
        // Predicated region
        $region93: #{gcn_dae_forward.9} parent=15 // pred_check
          %p385 = pneg %p98
        $region94: #{gcn_dae_forward.9} parent=15 // pred_check_branch
          %387 = sbr.rel (%p385) target = $region96
        $region95: #{gcn_dae_forward.9} parent=15 // pred_region
          %s388 = smul.u32 16, %s17
          %p389 = scmp.lt.s32.totalorder %s388, 31
          %s390 = scalar_select %p389, %s388, 31
          %s391 = smul.addr %s390, 8
          %s392 = scalar_lea.vmem %s2, %s391
          %s393 = smul.u32 16, %s17
        $region96: #{gcn_dae_forward.9} parent=15 // pred_fallthru
          _
        // Predicated region
        $region97: #{gcn_dae_forward.9} parent=15 // pred_check
          %p394 = pneg %p124
        $region98: #{gcn_dae_forward.9} parent=15 // pred_check_branch
          %396 = sbr.rel (%p394) target = $region100
        $region99: #{gcn_dae_forward.9} parent=15 // pred_region
          %s397 = smul.u32 16, %s18
          %p398 = scmp.lt.s32.totalorder %s397, 31
          %s399 = scalar_select %p398, %s397, 31
          %s400 = smul.addr %s399, 8
          %s401 = scalar_lea.vmem %s3, %s400
          %s402 = smul.u32 16, %s18
        $region100: #{gcn_dae_forward.9} parent=15 // pred_fallthru
          _
      $region16: #{gcn_dae_forward.9} parent=5 // pred_fallthru
        _
      %p403 = scmp.le.s32.totalorder 1, %s10
      %p404 = scmp.lt.s32.totalorder %s10, 5
      %p405 = pnand %p403, %p404
      %p406 = pneg %p405
      // Predicated region
      $region101: #{gcn_dae_forward.9} parent=5 // pred_check
        _
      $region102: #{gcn_dae_forward.9} parent=5 // pred_check_branch
        %408 = sbr.rel (%p405) target = $region104
      $region103: #{gcn_dae_forward.9} parent=5 // pred_region
        %s409 = ssub.s32 %s10, 1
        %s410 = sand.u32 %s37, 1
        %s411 = sand.u32 %s37, 1
        %s412 = smul.addr %s411, 128
        %s413 = scalar_lea.vmem [#allocation2], %s412
        // Predicated region
        $region105: #{gcn_dae_forward.9} parent=103 // pred_check
          %p414 = pneg %p50
        $region106: #{gcn_dae_forward.9} parent=103 // pred_check_branch
          %416 = sbr.rel (%p414) target = $region108
        $region107: #{gcn_dae_forward.9} parent=103 // pred_region
          _
        $region108: #{gcn_dae_forward.9} parent=103 // pred_fallthru
          _
        %s417 = sand.u32 %s65, 1
        %s418 = sand.u32 %s65, 1
        %s419 = smul.addr %s418, 128
        %s420 = scalar_lea.vmem [#allocation3], %s419
        // Predicated region
        $region109: #{gcn_dae_forward.9} parent=103 // pred_check
          %p421 = pneg %p78
        $region110: #{gcn_dae_forward.9} parent=103 // pred_check_branch
          %423 = sbr.rel (%p421) target = $region112
        $region111: #{gcn_dae_forward.9} parent=103 // pred_region
          _
        $region112: #{gcn_dae_forward.9} parent=103 // pred_fallthru
          _
        %s424 = sand.u32 %s37, 1
        %s425 = sand.u32 %s37, 1
        %s426 = smul.addr %s425, 128
        %s427 = scalar_lea.vmem [#allocation2], %s426
        %p428 = pneg %p50
        %p429 = pneg %p47
        %s430 = sand.u32 %s65, 1
        %s431 = sand.u32 %s65, 1
        %s432 = smul.addr %s431, 128
        %s433 = scalar_lea.vmem [#allocation3], %s432
        %p434 = pneg %p78
        %p435 = pneg %p75
        %s436 = smul.u32 16, %s19
        %p437 = scmp.lt.s32.totalorder %s436, 31
        %s438 = scalar_select %p437, %s436, 31
        %s439 = smul.addr %s438, 8
        %s440 = scalar_lea.vmem %s2, %s439
        %p441 = pneg %p104
        %p442 = pneg %p101
        %s443 = smul.u32 16, %s20
        %p444 = scmp.lt.s32.totalorder %s443, 31
        %s445 = scalar_select %p444, %s443, 31
        %s446 = smul.addr %s445, 8
        %s447 = scalar_lea.vmem %s3, %s446
        %p448 = pneg %p130
        %p449 = pneg %p127
        %p450 = pneg %p156
        %p451 = pneg %p153
        %s452 = smul.u32 16, %s19
        %p453 = scmp.lt.s32.totalorder %s452, 31
        %s454 = scalar_select %p453, %s452, 31
        %s455 = smul.addr %s454, 8
        %s456 = scalar_lea.vmem %s4, %s455
        %s457 = smul.u32 16, %s19
        %s458 = smul.u32 16, %s20
        %s459 = smul.u32 16, %s19
        %p460 = scmp.lt.s32.totalorder %s459, 31
        %s461 = scalar_select %p460, %s459, 31
        %s462 = smul.addr %s461, 8
        %s463 = scalar_lea.vmem %s2, %s462
        %s464 = smul.u32 16, %s19
        %s465 = smul.u32 16, %s20
        %p466 = scmp.lt.s32.totalorder %s465, 31
        %s467 = scalar_select %p466, %s465, 31
        %s468 = smul.addr %s467, 8
        %s469 = scalar_lea.vmem %s3, %s468
        %s470 = smul.u32 16, %s20
        %s471 = smul.u32 16, %s19
        %p472 = scmp.lt.s32.totalorder %s471, 31
        %s473 = scalar_select %p472, %s471, 31
        %s474 = smul.addr %s473, 8
        %s475 = scalar_lea.vmem %s4, %s474
        %s476 = smul.u32 16, %s19
        %p477 = scmp.eq.s32.totalorder %s20, 0
        // Predicated region
        $region113: #{gcn_dae_forward.9} parent=103 // pred_check
          %p478 = pneg %p477
        $region114: #{gcn_dae_forward.9} parent=103 // pred_check_branch
          %480 = sbr.rel (%p478) target = $region116
        $region115: #{gcn_dae_forward.9} parent=103 // pred_region
          %vm481 = vcmask 7168
          %482 = vst.msk [vmem:[%s475] sm:$0xff] %vm481, 0.0
          %483 = vst.msk [vmem:[%s475 + $0x8] sm:$0xff] %vm481, 0.0
          %484 = vst.msk [vmem:[%s475 + $0x10] sm:$0xff] %vm481, 0.0
          %485 = vst.msk [vmem:[%s475 + $0x18] sm:$0xff] %vm481, 0.0
          %486 = vst.msk [vmem:[%s475 + $0x20] sm:$0xff] %vm481, 0.0
          %487 = vst.msk [vmem:[%s475 + $0x28] sm:$0xff] %vm481, 0.0
          %488 = vst.msk [vmem:[%s475 + $0x30] sm:$0xff] %vm481, 0.0
          %489 = vst.msk [vmem:[%s475 + $0x38] sm:$0xff] %vm481, 0.0
          %490 = vst.msk [vmem:[%s475 + $0x40] sm:$0xff] %vm481, 0.0
          %491 = vst.msk [vmem:[%s475 + $0x48] sm:$0xff] %vm481, 0.0
          %492 = vst.msk [vmem:[%s475 + $0x50] sm:$0xff] %vm481, 0.0
          %493 = vst.msk [vmem:[%s475 + $0x58] sm:$0xff] %vm481, 0.0
          %494 = vst.msk [vmem:[%s475 + $0x60] sm:$0xff] %vm481, 0.0
          %495 = vst.msk [vmem:[%s475 + $0x68] sm:$0xff] %vm481, 0.0
          %496 = vst.msk [vmem:[%s475 + $0x70] sm:$0xff] %vm481, 0.0
          %497 = vst.msk [vmem:[%s475 + $0x78] sm:$0xff] %vm481, 0.0
        $region116: #{gcn_dae_forward.9} parent=103 // pred_fallthru
          _
        %v498 = vld [vmem:[%s413] sm:$0xff]
        %v499 = vld [vmem:[%s413 + $0x8] sm:$0xff]
        %v500 = vld [vmem:[%s413 + $0x10] sm:$0xff]
        %v501 = vld [vmem:[%s413 + $0x18] sm:$0xff]
        %v502 = vld [vmem:[%s413 + $0x20] sm:$0xff]
        %v503 = vld [vmem:[%s413 + $0x28] sm:$0xff]
        %v504 = vld [vmem:[%s413 + $0x30] sm:$0xff]
        %v505 = vld [vmem:[%s413 + $0x38] sm:$0xff]
        %v506 = vld [vmem:[%s413 + $0x40] sm:$0xff]
        %v507 = vld [vmem:[%s413 + $0x48] sm:$0xff]
        %v508 = vld [vmem:[%s413 + $0x50] sm:$0xff]
        %v509 = vld [vmem:[%s413 + $0x58] sm:$0xff]
        %v510 = vld [vmem:[%s413 + $0x60] sm:$0xff]
        %v511 = vld [vmem:[%s413 + $0x68] sm:$0xff]
        %v512 = vld [vmem:[%s413 + $0x70] sm:$0xff]
        %v513 = vld [vmem:[%s413 + $0x78] sm:$0xff]
        %v514 = vld [vmem:[%s420] sm:$0xff]
        %v515 = vld [vmem:[%s420 + $0x8] sm:$0xff]
        %v516 = vld [vmem:[%s420 + $0x10] sm:$0xff]
        %v517 = vld [vmem:[%s420 + $0x18] sm:$0xff]
        %v518 = vld [vmem:[%s420 + $0x20] sm:$0xff]
        %v519 = vld [vmem:[%s420 + $0x28] sm:$0xff]
        %v520 = vld [vmem:[%s420 + $0x30] sm:$0xff]
        %v521 = vld [vmem:[%s420 + $0x38] sm:$0xff]
        %v522 = vld [vmem:[%s420 + $0x40] sm:$0xff]
        %v523 = vld [vmem:[%s420 + $0x48] sm:$0xff]
        %v524 = vld [vmem:[%s420 + $0x50] sm:$0xff]
        %v525 = vld [vmem:[%s420 + $0x58] sm:$0xff]
        %v526 = vld [vmem:[%s420 + $0x60] sm:$0xff]
        %v527 = vld [vmem:[%s420 + $0x68] sm:$0xff]
        %v528 = vld [vmem:[%s420 + $0x70] sm:$0xff]
        %v529 = vld [vmem:[%s420 + $0x78] sm:$0xff]
        %v530 = vld [vmem:[%s463] sm:$0xff]
        %v531 = vld [vmem:[%s463 + $0x8] sm:$0xff]
        %v532 = vld [vmem:[%s463 + $0x10] sm:$0xff]
        %v533 = vld [vmem:[%s463 + $0x18] sm:$0xff]
        %v534 = vld [vmem:[%s463 + $0x20] sm:$0xff]
        %v535 = vld [vmem:[%s463 + $0x28] sm:$0xff]
        %v536 = vld [vmem:[%s463 + $0x30] sm:$0xff]
        %v537 = vld [vmem:[%s463 + $0x38] sm:$0xff]
        %v538 = vld [vmem:[%s463 + $0x40] sm:$0xff]
        %v539 = vld [vmem:[%s463 + $0x48] sm:$0xff]
        %v540 = vld [vmem:[%s463 + $0x50] sm:$0xff]
        %v541 = vld [vmem:[%s463 + $0x58] sm:$0xff]
        %v542 = vld [vmem:[%s463 + $0x60] sm:$0xff]
        %v543 = vld [vmem:[%s463 + $0x68] sm:$0xff]
        %v544 = vld [vmem:[%s463 + $0x70] sm:$0xff]
        %v545 = vld [vmem:[%s463 + $0x78] sm:$0xff]
        %v546 = vld [vmem:[%s469] sm:$0xff]
        %v547 = vld [vmem:[%s469 + $0x8] sm:$0xff]
        %v548 = vld [vmem:[%s469 + $0x10] sm:$0xff]
        %v549 = vld [vmem:[%s469 + $0x18] sm:$0xff]
        %v550 = vld [vmem:[%s469 + $0x20] sm:$0xff]
        %v551 = vld [vmem:[%s469 + $0x28] sm:$0xff]
        %v552 = vld [vmem:[%s469 + $0x30] sm:$0xff]
        %v553 = vld [vmem:[%s469 + $0x38] sm:$0xff]
        %v554 = vld [vmem:[%s469 + $0x40] sm:$0xff]
        %v555 = vld [vmem:[%s469 + $0x48] sm:$0xff]
        %v556 = vld [vmem:[%s469 + $0x50] sm:$0xff]
        %v557 = vld [vmem:[%s469 + $0x58] sm:$0xff]
        %v558 = vld [vmem:[%s469 + $0x60] sm:$0xff]
        %v559 = vld [vmem:[%s469 + $0x68] sm:$0xff]
        %v560 = vld [vmem:[%s469 + $0x70] sm:$0xff]
        %v561 = vld [vmem:[%s469 + $0x78] sm:$0xff]
        %563 = vset.pattern.permute.xlu0 0
        %564 = vperm.xlu0 %563, %v530
        %v565 = vpop.permute.xlu0 %564
        %568 = vset.pattern.permute.xlu0 0
        %569 = vperm.xlu0 %568, %v531
        %v570 = vpop.permute.xlu0 %569
        %573 = vset.pattern.permute.xlu0 0
        %574 = vperm.xlu0 %573, %v532
        %v575 = vpop.permute.xlu0 %574
        %578 = vset.pattern.permute.xlu0 0
        %579 = vperm.xlu0 %578, %v533
        %v580 = vpop.permute.xlu0 %579
        %583 = vset.pattern.permute.xlu0 0
        %584 = vperm.xlu0 %583, %v534
        %v585 = vpop.permute.xlu0 %584
        %588 = vset.pattern.permute.xlu0 0
        %589 = vperm.xlu0 %588, %v535
        %v590 = vpop.permute.xlu0 %589
        %593 = vset.pattern.permute.xlu0 0
        %594 = vperm.xlu0 %593, %v536
        %v595 = vpop.permute.xlu0 %594
        %598 = vset.pattern.permute.xlu0 0
        %599 = vperm.xlu0 %598, %v537
        %v600 = vpop.permute.xlu0 %599
        %603 = vset.pattern.permute.xlu0 0
        %604 = vperm.xlu0 %603, %v538
        %v605 = vpop.permute.xlu0 %604
        %608 = vset.pattern.permute.xlu0 0
        %609 = vperm.xlu0 %608, %v539
        %v610 = vpop.permute.xlu0 %609
        %613 = vset.pattern.permute.xlu0 0
        %614 = vperm.xlu0 %613, %v540
        %v615 = vpop.permute.xlu0 %614
        %618 = vset.pattern.permute.xlu0 0
        %619 = vperm.xlu0 %618, %v541
        %v620 = vpop.permute.xlu0 %619
        %623 = vset.pattern.permute.xlu0 0
        %624 = vperm.xlu0 %623, %v542
        %v625 = vpop.permute.xlu0 %624
        %628 = vset.pattern.permute.xlu0 0
        %629 = vperm.xlu0 %628, %v543
        %v630 = vpop.permute.xlu0 %629
        %633 = vset.pattern.permute.xlu0 0
        %634 = vperm.xlu0 %633, %v544
        %v635 = vpop.permute.xlu0 %634
        %638 = vset.pattern.permute.xlu0 0
        %639 = vperm.xlu0 %638, %v545
        %v640 = vpop.permute.xlu0 %639
        %vm642 = vcmp.ge.f32.partialorder %v498, %v565
        %vm643 = vcmp.ge.f32.partialorder %v499, %v570
        %vm644 = vcmp.ge.f32.partialorder %v500, %v575
        %vm645 = vcmp.ge.f32.partialorder %v501, %v580
        %vm646 = vcmp.ge.f32.partialorder %v502, %v585
        %vm647 = vcmp.ge.f32.partialorder %v503, %v590
        %vm648 = vcmp.ge.f32.partialorder %v504, %v595
        %vm649 = vcmp.ge.f32.partialorder %v505, %v600
        %vm650 = vcmp.ge.f32.partialorder %v506, %v605
        %vm651 = vcmp.ge.f32.partialorder %v507, %v610
        %vm652 = vcmp.ge.f32.partialorder %v508, %v615
        %vm653 = vcmp.ge.f32.partialorder %v509, %v620
        %vm654 = vcmp.ge.f32.partialorder %v510, %v625
        %vm655 = vcmp.ge.f32.partialorder %v511, %v630
        %vm656 = vcmp.ge.f32.partialorder %v512, %v635
        %vm657 = vcmp.ge.f32.partialorder %v513, %v640
        %v658 = vsel %vm642, %v498, 0.0
        %v659 = vsel %vm643, %v499, 0.0
        %v660 = vsel %vm644, %v500, 0.0
        %v661 = vsel %vm645, %v501, 0.0
        %v662 = vsel %vm646, %v502, 0.0
        %v663 = vsel %vm647, %v503, 0.0
        %v664 = vsel %vm648, %v504, 0.0
        %v665 = vsel %vm649, %v505, 0.0
        %v666 = vsel %vm650, %v506, 0.0
        %v667 = vsel %vm651, %v507, 0.0
        %v668 = vsel %vm652, %v508, 0.0
        %v669 = vsel %vm653, %v509, 0.0
        %v670 = vsel %vm654, %v510, 0.0
        %v671 = vsel %vm655, %v511, 0.0
        %v672 = vsel %vm656, %v512, 0.0
        %v673 = vsel %vm657, %v513, 0.0
        %v674 = vmax.f32 %v658, 0.0
        %v675 = vmax.f32 %v659, 0.0
        %v676 = vmax.f32 %v660, 0.0
        %v677 = vmax.f32 %v661, 0.0
        %v678 = vmax.f32 %v662, 0.0
        %v679 = vmax.f32 %v663, 0.0
        %v680 = vmax.f32 %v664, 0.0
        %v681 = vmax.f32 %v665, 0.0
        %v682 = vmax.f32 %v666, 0.0
        %v683 = vmax.f32 %v667, 0.0
        %v684 = vmax.f32 %v668, 0.0
        %v685 = vmax.f32 %v669, 0.0
        %v686 = vmax.f32 %v670, 0.0
        %v687 = vmax.f32 %v671, 0.0
        %v688 = vmax.f32 %v672, 0.0
        %v689 = vmax.f32 %v673, 0.0
        %691 = vset.pattern.permute.xlu0 0
        %692 = vperm.xlu0 %691, %v546
        %v693 = vpop.permute.xlu0 %692
        %696 = vset.pattern.permute.xlu0 0
        %697 = vperm.xlu0 %696, %v547
        %v698 = vpop.permute.xlu0 %697
        %701 = vset.pattern.permute.xlu0 0
        %702 = vperm.xlu0 %701, %v548
        %v703 = vpop.permute.xlu0 %702
        %706 = vset.pattern.permute.xlu0 0
        %707 = vperm.xlu0 %706, %v549
        %v708 = vpop.permute.xlu0 %707
        %711 = vset.pattern.permute.xlu0 0
        %712 = vperm.xlu0 %711, %v550
        %v713 = vpop.permute.xlu0 %712
        %716 = vset.pattern.permute.xlu0 0
        %717 = vperm.xlu0 %716, %v551
        %v718 = vpop.permute.xlu0 %717
        %721 = vset.pattern.permute.xlu0 0
        %722 = vperm.xlu0 %721, %v552
        %v723 = vpop.permute.xlu0 %722
        %726 = vset.pattern.permute.xlu0 0
        %727 = vperm.xlu0 %726, %v553
        %v728 = vpop.permute.xlu0 %727
        %731 = vset.pattern.permute.xlu0 0
        %732 = vperm.xlu0 %731, %v554
        %v733 = vpop.permute.xlu0 %732
        %736 = vset.pattern.permute.xlu0 0
        %737 = vperm.xlu0 %736, %v555
        %v738 = vpop.permute.xlu0 %737
        %741 = vset.pattern.permute.xlu0 0
        %742 = vperm.xlu0 %741, %v556
        %v743 = vpop.permute.xlu0 %742
        %746 = vset.pattern.permute.xlu0 0
        %747 = vperm.xlu0 %746, %v557
        %v748 = vpop.permute.xlu0 %747
        %751 = vset.pattern.permute.xlu0 0
        %752 = vperm.xlu0 %751, %v558
        %v753 = vpop.permute.xlu0 %752
        %756 = vset.pattern.permute.xlu0 0
        %757 = vperm.xlu0 %756, %v559
        %v758 = vpop.permute.xlu0 %757
        %761 = vset.pattern.permute.xlu0 0
        %762 = vperm.xlu0 %761, %v560
        %v763 = vpop.permute.xlu0 %762
        %766 = vset.pattern.permute.xlu0 0
        %767 = vperm.xlu0 %766, %v561
        %v768 = vpop.permute.xlu0 %767
        %vm770 = vcmp.ge.f32.partialorder %v514, %v693
        %vm771 = vcmp.ge.f32.partialorder %v515, %v698
        %vm772 = vcmp.ge.f32.partialorder %v516, %v703
        %vm773 = vcmp.ge.f32.partialorder %v517, %v708
        %vm774 = vcmp.ge.f32.partialorder %v518, %v713
        %vm775 = vcmp.ge.f32.partialorder %v519, %v718
        %vm776 = vcmp.ge.f32.partialorder %v520, %v723
        %vm777 = vcmp.ge.f32.partialorder %v521, %v728
        %vm778 = vcmp.ge.f32.partialorder %v522, %v733
        %vm779 = vcmp.ge.f32.partialorder %v523, %v738
        %vm780 = vcmp.ge.f32.partialorder %v524, %v743
        %vm781 = vcmp.ge.f32.partialorder %v525, %v748
        %vm782 = vcmp.ge.f32.partialorder %v526, %v753
        %vm783 = vcmp.ge.f32.partialorder %v527, %v758
        %vm784 = vcmp.ge.f32.partialorder %v528, %v763
        %vm785 = vcmp.ge.f32.partialorder %v529, %v768
        %v786 = vsel %vm770, %v514, 0.0
        %v787 = vsel %vm771, %v515, 0.0
        %v788 = vsel %vm772, %v516, 0.0
        %v789 = vsel %vm773, %v517, 0.0
        %v790 = vsel %vm774, %v518, 0.0
        %v791 = vsel %vm775, %v519, 0.0
        %v792 = vsel %vm776, %v520, 0.0
        %v793 = vsel %vm777, %v521, 0.0
        %v794 = vsel %vm778, %v522, 0.0
        %v795 = vsel %vm779, %v523, 0.0
        %v796 = vsel %vm780, %v524, 0.0
        %v797 = vsel %vm781, %v525, 0.0
        %v798 = vsel %vm782, %v526, 0.0
        %v799 = vsel %vm783, %v527, 0.0
        %v800 = vsel %vm784, %v528, 0.0
        %v801 = vsel %vm785, %v529, 0.0
        %v802 = vmax.f32 %v786, 0.0
        %v803 = vmax.f32 %v787, 0.0
        %v804 = vmax.f32 %v788, 0.0
        %v805 = vmax.f32 %v789, 0.0
        %v806 = vmax.f32 %v790, 0.0
        %v807 = vmax.f32 %v791, 0.0
        %v808 = vmax.f32 %v792, 0.0
        %v809 = vmax.f32 %v793, 0.0
        %v810 = vmax.f32 %v794, 0.0
        %v811 = vmax.f32 %v795, 0.0
        %v812 = vmax.f32 %v796, 0.0
        %v813 = vmax.f32 %v797, 0.0
        %v814 = vmax.f32 %v798, 0.0
        %v815 = vmax.f32 %v799, 0.0
        %v816 = vmax.f32 %v800, 0.0
        %v817 = vmax.f32 %v801, 0.0
        %818 = vxpose.xlu0.b32.start [1/16] %v802, 128
        %819 = vxpose.xlu0.b32.cont [2/16] %v803, 128
        %820 = vxpose.xlu0.b32.cont [3/16] %v804, 128
        %821 = vxpose.xlu0.b32.cont [4/16] %v805, 128
        %822 = vxpose.xlu0.b32.cont [5/16] %v806, 128
        %823 = vxpose.xlu0.b32.cont [6/16] %v807, 128
        %824 = vxpose.xlu0.b32.cont [7/16] %v808, 128
        %825 = vxpose.xlu0.b32.cont [8/16] %v809, 128
        %826 = vxpose.xlu0.b32.cont [9/16] %v810, 128
        %827 = vxpose.xlu0.b32.cont [10/16] %v811, 128
        %828 = vxpose.xlu0.b32.cont [11/16] %v812, 128
        %829 = vxpose.xlu0.b32.cont [12/16] %v813, 128
        %830 = vxpose.xlu0.b32.cont [13/16] %v814, 128
        %831 = vxpose.xlu0.b32.cont [14/16] %v815, 128
        %832 = vxpose.xlu0.b32.cont [15/16] %v816, 128
        %833 = vxpose.xlu0.b32.end [16/16] %v817, 128
        %v834 = vpop.trf.xlu0
        %v835 = vpop.trf.xlu0
        %v836 = vpop.trf.xlu0
        %v837 = vpop.trf.xlu0
        %v838 = vpop.trf.xlu0
        %v839 = vpop.trf.xlu0
        %v840 = vpop.trf.xlu0
        %v841 = vpop.trf.xlu0
        %v842 = vpop.trf.xlu0
        %v843 = vpop.trf.xlu0
        %v844 = vpop.trf.xlu0
        %v845 = vpop.trf.xlu0
        %v846 = vpop.trf.xlu0
        %v847 = vpop.trf.xlu0
        %v848 = vpop.trf.xlu0
        %v849 = vpop.trf.xlu0
        %v850 = vadd.f32 %v674, %v834
        %v851 = vadd.f32 %v675, %v835
        %v852 = vadd.f32 %v676, %v836
        %v853 = vadd.f32 %v677, %v837
        %v854 = vadd.f32 %v678, %v838
        %v855 = vadd.f32 %v679, %v839
        %v856 = vadd.f32 %v680, %v840
        %v857 = vadd.f32 %v681, %v841
        %v858 = vadd.f32 %v682, %v842
        %v859 = vadd.f32 %v683, %v843
        %v860 = vadd.f32 %v684, %v844
        %v861 = vadd.f32 %v685, %v845
        %v862 = vadd.f32 %v686, %v846
        %v863 = vadd.f32 %v687, %v847
        %v864 = vadd.f32 %v688, %v848
        %v865 = vadd.f32 %v689, %v849
        %v866 = vmul.f32 %v850, 0.5
        %v867 = vmul.f32 %v851, 0.5
        %v868 = vmul.f32 %v852, 0.5
        %v869 = vmul.f32 %v853, 0.5
        %v870 = vmul.f32 %v854, 0.5
        %v871 = vmul.f32 %v855, 0.5
        %v872 = vmul.f32 %v856, 0.5
        %v873 = vmul.f32 %v857, 0.5
        %v874 = vmul.f32 %v858, 0.5
        %v875 = vmul.f32 %v859, 0.5
        %v876 = vmul.f32 %v860, 0.5
        %v877 = vmul.f32 %v861, 0.5
        %v878 = vmul.f32 %v862, 0.5
        %v879 = vmul.f32 %v863, 0.5
        %v880 = vmul.f32 %v864, 0.5
        %v881 = vmul.f32 %v865, 0.5
        %v882 = vld [vmem:[%s475] sm:$0xff]
        %v883 = vld [vmem:[%s475 + $0x8] sm:$0xff]
        %v884 = vld [vmem:[%s475 + $0x10] sm:$0xff]
        %v885 = vld [vmem:[%s475 + $0x18] sm:$0xff]
        %v886 = vld [vmem:[%s475 + $0x20] sm:$0xff]
        %v887 = vld [vmem:[%s475 + $0x28] sm:$0xff]
        %v888 = vld [vmem:[%s475 + $0x30] sm:$0xff]
        %v889 = vld [vmem:[%s475 + $0x38] sm:$0xff]
        %v890 = vld [vmem:[%s475 + $0x40] sm:$0xff]
        %v891 = vld [vmem:[%s475 + $0x48] sm:$0xff]
        %v892 = vld [vmem:[%s475 + $0x50] sm:$0xff]
        %v893 = vld [vmem:[%s475 + $0x58] sm:$0xff]
        %v894 = vld [vmem:[%s475 + $0x60] sm:$0xff]
        %v895 = vld [vmem:[%s475 + $0x68] sm:$0xff]
        %v896 = vld [vmem:[%s475 + $0x70] sm:$0xff]
        %v897 = vld [vmem:[%s475 + $0x78] sm:$0xff]
        %898 = vadd.xlane.f32.xlu0 %v866
        %v899 = vpop.xlane.xlu0 %898
        %900 = vadd.xlane.f32.xlu0 %v867
        %v901 = vpop.xlane.xlu0 %900
        %902 = vadd.xlane.f32.xlu0 %v868
        %v903 = vpop.xlane.xlu0 %902
        %904 = vadd.xlane.f32.xlu0 %v869
        %v905 = vpop.xlane.xlu0 %904
        %906 = vadd.xlane.f32.xlu0 %v870
        %v907 = vpop.xlane.xlu0 %906
        %908 = vadd.xlane.f32.xlu0 %v871
        %v909 = vpop.xlane.xlu0 %908
        %910 = vadd.xlane.f32.xlu0 %v872
        %v911 = vpop.xlane.xlu0 %910
        %912 = vadd.xlane.f32.xlu0 %v873
        %v913 = vpop.xlane.xlu0 %912
        %914 = vadd.xlane.f32.xlu0 %v874
        %v915 = vpop.xlane.xlu0 %914
        %916 = vadd.xlane.f32.xlu0 %v875
        %v917 = vpop.xlane.xlu0 %916
        %918 = vadd.xlane.f32.xlu0 %v876
        %v919 = vpop.xlane.xlu0 %918
        %920 = vadd.xlane.f32.xlu0 %v877
        %v921 = vpop.xlane.xlu0 %920
        %922 = vadd.xlane.f32.xlu0 %v878
        %v923 = vpop.xlane.xlu0 %922
        %924 = vadd.xlane.f32.xlu0 %v879
        %v925 = vpop.xlane.xlu0 %924
        %926 = vadd.xlane.f32.xlu0 %v880
        %v927 = vpop.xlane.xlu0 %926
        %928 = vadd.xlane.f32.xlu0 %v881
        %v929 = vpop.xlane.xlu0 %928
        %v930 = vadd.f32 %v882, %v899
        %v931 = vadd.f32 %v883, %v901
        %v932 = vadd.f32 %v884, %v903
        %v933 = vadd.f32 %v885, %v905
        %v934 = vadd.f32 %v886, %v907
        %v935 = vadd.f32 %v887, %v909
        %v936 = vadd.f32 %v888, %v911
        %v937 = vadd.f32 %v889, %v913
        %v938 = vadd.f32 %v890, %v915
        %v939 = vadd.f32 %v891, %v917
        %v940 = vadd.f32 %v892, %v919
        %v941 = vadd.f32 %v893, %v921
        %v942 = vadd.f32 %v894, %v923
        %v943 = vadd.f32 %v895, %v925
        %v944 = vadd.f32 %v896, %v927
        %v945 = vadd.f32 %v897, %v929
        %vm946 = vcmask 7168
        %947 = vst.msk [vmem:[%s475] sm:$0xff] %vm946, %v930
        %948 = vst.msk [vmem:[%s475 + $0x8] sm:$0xff] %vm946, %v931
        %949 = vst.msk [vmem:[%s475 + $0x10] sm:$0xff] %vm946, %v932
        %950 = vst.msk [vmem:[%s475 + $0x18] sm:$0xff] %vm946, %v933
        %951 = vst.msk [vmem:[%s475 + $0x20] sm:$0xff] %vm946, %v934
        %952 = vst.msk [vmem:[%s475 + $0x28] sm:$0xff] %vm946, %v935
        %953 = vst.msk [vmem:[%s475 + $0x30] sm:$0xff] %vm946, %v936
        %954 = vst.msk [vmem:[%s475 + $0x38] sm:$0xff] %vm946, %v937
        %955 = vst.msk [vmem:[%s475 + $0x40] sm:$0xff] %vm946, %v938
        %956 = vst.msk [vmem:[%s475 + $0x48] sm:$0xff] %vm946, %v939
        %957 = vst.msk [vmem:[%s475 + $0x50] sm:$0xff] %vm946, %v940
        %958 = vst.msk [vmem:[%s475 + $0x58] sm:$0xff] %vm946, %v941
        %959 = vst.msk [vmem:[%s475 + $0x60] sm:$0xff] %vm946, %v942
        %960 = vst.msk [vmem:[%s475 + $0x68] sm:$0xff] %vm946, %v943
        %961 = vst.msk [vmem:[%s475 + $0x70] sm:$0xff] %vm946, %v944
        %962 = vst.msk [vmem:[%s475 + $0x78] sm:$0xff] %vm946, %v945
        %s963 = smul.u32 16, %s19
        %p964 = scmp.lt.s32.totalorder %s963, 31
        %s965 = scalar_select %p964, %s963, 31
        %s966 = smul.addr %s965, 8
        %s967 = scalar_lea.vmem %s4, %s966
        // Predicated region
        $region117: #{gcn_dae_forward.9} parent=103 // pred_check
          %p968 = pneg %p153
        $region118: #{gcn_dae_forward.9} parent=103 // pred_check_branch
          %970 = sbr.rel (%p968) target = $region120
        $region119: #{gcn_dae_forward.9} parent=103 // pred_region
          %s971 = smul.u32 16, %s19
        $region120: #{gcn_dae_forward.9} parent=103 // pred_fallthru
          _
      $region104: #{gcn_dae_forward.9} parent=5 // pred_fallthru
        _
      %p972 = scmp.le.s32.totalorder 2, %s10
      // Predicated region
      $region121: #{gcn_dae_forward.9} parent=5 // pred_check
        %p973 = pneg %p972
      $region122: #{gcn_dae_forward.9} parent=5 // pred_check_branch
        %975 = sbr.rel (%p973) target = $region124
      $region123: #{gcn_dae_forward.9} parent=5 // pred_region
        %s976 = ssub.s32 %s10, 2
        // Predicated region
        $region125: #{gcn_dae_forward.9} parent=123 // pred_check
          %p977 = pneg %p159
        $region126: #{gcn_dae_forward.9} parent=123 // pred_check_branch
          %979 = sbr.rel (%p977) target = $region128
        $region127: #{gcn_dae_forward.9} parent=123 // pred_region
          %s980 = smul.u32 16, %s21
          %p981 = scmp.lt.s32.totalorder %s980, 31
          %s982 = scalar_select %p981, %s980, 31
          %s983 = smul.addr %s982, 8
          %s984 = scalar_lea.vmem %s4, %s983
        $region128: #{gcn_dae_forward.9} parent=123 // pred_fallthru
          _
      $region124: #{gcn_dae_forward.9} parent=5 // pred_fallthru
        _
    $region6: #{gcn_dae_forward.9} parent=1 // loop_footer
      %s14 = sadd.s32 1, %s10
    $region7: #{gcn_dae_forward.9} parent=1 // loop_footer_branch
      %9 = sbr.rel target = $region3
    $region8: #{gcn_dae_forward.9} parent=1 // loop_exit
      _

// kernel: gcn_dae_forward.10
$region0: #{gcn_dae_forward.10}
  #allocation0 [shape = 'u32[]', space=smem, size = 0x4, offset = 0x4, fixed_abs, tag = 'smem constant byte address 0x4 - core index']
  #allocation1 [shape = 'u32[72,128]{1,0:T(1,128)}', space=vmem, size = 0x9000, scoped, tag = 'internal scratch']
  %s0 = inlined_call_operand.vmem [shape: f32[256,256], index: 0, kind: input, shape index: {}, may-alias: {0,1}]
  %s1 = inlined_call_operand.vmem [shape: f32[256,256], index: 1, kind: input, shape index: {}, may-alias: {0,1}]
  %s2 = inlined_call_operand.vmem [shape: f32[256,1], index: 2, kind: input, shape index: {}, may-alias: {2,3}]
  %s3 = inlined_call_operand.vmem [shape: f32[256,1], index: 3, kind: input, shape index: {}, may-alias: {2,3}]
  %s4 = inlined_call_operand.vmem [shape: f32[256,1], index: 4, kind: input, shape index: {}, may-alias: {4,5}]
  %s5 = inlined_call_operand.vmem [shape: f32[256,1], index: 5, kind: input, shape index: {}, may-alias: {4,5}]
  %s6 = inlined_call_operand.vmem [shape: f32[256,256], index: 6, kind: output, shape index: {}]
  %s7 = sld [smem:[#allocation0]]
  $region167: #{gcn_dae_forward.10} parent=0
    _
  %s9 = ssub.s32 1, %s7
  %s10 = scalar_select 0, %s9, %s7
  $region1: #{gcn_dae_forward.10} parent=0
    #allocation2 [shape = 'u8[131072]{0}', space=vmem, size = 0x20000, scoped, tag = 'input window, operand 0']
    #allocation3 [shape = 'u8[131072]{0}', space=vmem, size = 0x20000, scoped, tag = 'input window, operand 1']
    #allocation4 [shape = 'u8[131072]{0}', space=vmem, size = 0x20000, scoped, tag = 'output window, operand 0']
    loop: start=0, step=1, limit=6
    $region2: #{gcn_dae_forward.10} parent=1 // loop_pre_header
      _
    $region3: #{gcn_dae_forward.10} parent=1 // loop_header
      %s12 = sphi 0, %s16
      %p13 = scmp.ge.s32.totalorder %s12, 6
      %s19 = sphi 0, %s31
      %s20 = sphi 0, %s27
      %s21 = sphi 0, %s19
      %s22 = sphi 0, %s20
      %s23 = sphi 0, %s21
      %s24 = sphi 0, %s22
      %s36 = sphi 0, %s38
      %s39 = sphi 0, %s36
      %s40 = sphi 0, %s39
      %s56 = sphi 0, %s40
      %s64 = sphi 0, %s66
      %s67 = sphi 0, %s64
      %s68 = sphi 0, %s67
      %s84 = sphi 0, %s68
      %s90 = sphi 0, %s92
      %s93 = sphi 0, %s90
      %s94 = sphi 0, %s93
      %s110 = sphi 0, %s94
      %s116 = sphi 0, %s118
      %s119 = sphi 0, %s116
      %s120 = sphi 0, %s119
      %s136 = sphi 0, %s120
      %s142 = sphi 0, %s144
      %s145 = sphi 0, %s142
      %s146 = sphi 0, %s145
      %s162 = sphi 0, %s146
      %s168 = sphi 0, %s170
      %s171 = sphi 0, %s168
      %s172 = sphi 0, %s171
      %s188 = sphi 0, %s172
      %s196 = sphi 0, %s198
      %s199 = sphi 0, %s196
      %s200 = sphi 0, %s199
      %s216 = sphi 0, %s200
    $region4: #{gcn_dae_forward.10} parent=1 // loop_header_branch
      %15 = sbr.rel (%p13) target = $region8
    $region5: #{gcn_dae_forward.10} parent=1 // loop_body
      %s17 = ssub.s32 %s12, 1
      %s18 = ssub.s32 %s12, 2
      %s25 = sadd.s32 1, %s20
      %p26 = scmp.ge.s32.totalorder %s25, 2
      %s27 = scalar_select %p26, 0, %s25
      %s28 = sadd.s32 1, %s19
      %s29 = scalar_select %p26, %s28, %s19
      %p30 = scmp.ge.s32.totalorder %s29, 2
      %s31 = scalar_select %p30, 0, %s29
      %s32 = ssub.s32 %s19, %s31
      %s33 = ssub.s32 %s20, %s27
      %s34 = sor.u32 %s32, %s33
      %p35 = scmp.eq.s32.totalorder %s34, 0
      %s37 = sadd.s32 %s36, 1
      %s38 = scalar_select %p35, %s36, %s37
      %p41 = pneg %p35
      %p42 = scmp.eq.s32.totalorder %s12, 3
      %p43 = por %p41, %p42
      %p44 = scmp.ne.s32.totalorder %s36, %s39
      %p45 = scmp.eq.s32.totalorder %s12, 0
      %p46 = por %p44, %p45
      %p47 = scmp.ne.s32.totalorder %s36, %s39
      %p48 = scmp.eq.s32.totalorder %s17, 3
      %p49 = por %p47, %p48
      %p50 = scmp.ne.s32.totalorder %s39, %s40
      %p51 = scmp.eq.s32.totalorder %s17, 0
      %p52 = por %p50, %p51
      %p53 = scmp.ne.s32.totalorder %s39, %s40
      %p54 = scmp.eq.s32.totalorder %s18, 3
      %p55 = por %p53, %p54
      %p57 = scmp.ne.s32.totalorder %s40, %s56
      %p58 = scmp.eq.s32.totalorder %s18, 0
      %p59 = por %p57, %p58
      %s60 = ssub.s32 %s20, %s27
      %s61 = ssub.s32 %s19, %s31
      %s62 = sor.u32 %s60, %s61
      %p63 = scmp.eq.s32.totalorder %s62, 0
      %s65 = sadd.s32 %s64, 1
      %s66 = scalar_select %p63, %s64, %s65
      %p69 = pneg %p63
      %p70 = scmp.eq.s32.totalorder %s12, 3
      %p71 = por %p69, %p70
      %p72 = scmp.ne.s32.totalorder %s64, %s67
      %p73 = scmp.eq.s32.totalorder %s12, 0
      %p74 = por %p72, %p73
      %p75 = scmp.ne.s32.totalorder %s64, %s67
      %p76 = scmp.eq.s32.totalorder %s17, 3
      %p77 = por %p75, %p76
      %p78 = scmp.ne.s32.totalorder %s67, %s68
      %p79 = scmp.eq.s32.totalorder %s17, 0
      %p80 = por %p78, %p79
      %p81 = scmp.ne.s32.totalorder %s67, %s68
      %p82 = scmp.eq.s32.totalorder %s18, 3
      %p83 = por %p81, %p82
      %p85 = scmp.ne.s32.totalorder %s68, %s84
      %p86 = scmp.eq.s32.totalorder %s18, 0
      %p87 = por %p85, %p86
      %s88 = ssub.s32 %s19, %s31
      %p89 = scmp.eq.s32.totalorder %s88, 0
      %s91 = sadd.s32 %s90, 1
      %s92 = scalar_select %p89, %s90, %s91
      %p95 = pneg %p89
      %p96 = scmp.eq.s32.totalorder %s12, 3
      %p97 = por %p95, %p96
      %p98 = scmp.ne.s32.totalorder %s90, %s93
      %p99 = scmp.eq.s32.totalorder %s12, 0
      %p100 = por %p98, %p99
      %p101 = scmp.ne.s32.totalorder %s90, %s93
      %p102 = scmp.eq.s32.totalorder %s17, 3
      %p103 = por %p101, %p102
      %p104 = scmp.ne.s32.totalorder %s93, %s94
      %p105 = scmp.eq.s32.totalorder %s17, 0
      %p106 = por %p104, %p105
      %p107 = scmp.ne.s32.totalorder %s93, %s94
      %p108 = scmp.eq.s32.totalorder %s18, 3
      %p109 = por %p107, %p108
      %p111 = scmp.ne.s32.totalorder %s94, %s110
      %p112 = scmp.eq.s32.totalorder %s18, 0
      %p113 = por %p111, %p112
      %s114 = ssub.s32 %s20, %s27
      %p115 = scmp.eq.s32.totalorder %s114, 0
      %s117 = sadd.s32 %s116, 1
      %s118 = scalar_select %p115, %s116, %s117
      %p121 = pneg %p115
      %p122 = scmp.eq.s32.totalorder %s12, 3
      %p123 = por %p121, %p122
      %p124 = scmp.ne.s32.totalorder %s116, %s119
      %p125 = scmp.eq.s32.totalorder %s12, 0
      %p126 = por %p124, %p125
      %p127 = scmp.ne.s32.totalorder %s116, %s119
      %p128 = scmp.eq.s32.totalorder %s17, 3
      %p129 = por %p127, %p128
      %p130 = scmp.ne.s32.totalorder %s119, %s120
      %p131 = scmp.eq.s32.totalorder %s17, 0
      %p132 = por %p130, %p131
      %p133 = scmp.ne.s32.totalorder %s119, %s120
      %p134 = scmp.eq.s32.totalorder %s18, 3
      %p135 = por %p133, %p134
      %p137 = scmp.ne.s32.totalorder %s120, %s136
      %p138 = scmp.eq.s32.totalorder %s18, 0
      %p139 = por %p137, %p138
      %s140 = ssub.s32 %s19, %s31
      %p141 = scmp.eq.s32.totalorder %s140, 0
      %s143 = sadd.s32 %s142, 1
      %s144 = scalar_select %p141, %s142, %s143
      %p147 = pneg %p141
      %p148 = scmp.eq.s32.totalorder %s12, 3
      %p149 = por %p147, %p148
      %p150 = scmp.ne.s32.totalorder %s142, %s145
      %p151 = scmp.eq.s32.totalorder %s12, 0
      %p152 = por %p150, %p151
      %p153 = scmp.ne.s32.totalorder %s142, %s145
      %p154 = scmp.eq.s32.totalorder %s17, 3
      %p155 = por %p153, %p154
      %p156 = scmp.ne.s32.totalorder %s145, %s146
      %p157 = scmp.eq.s32.totalorder %s17, 0
      %p158 = por %p156, %p157
      %p159 = scmp.ne.s32.totalorder %s145, %s146
      %p160 = scmp.eq.s32.totalorder %s18, 3
      %p161 = por %p159, %p160
      %p163 = scmp.ne.s32.totalorder %s146, %s162
      %p164 = scmp.eq.s32.totalorder %s18, 0
      %p165 = por %p163, %p164
      %s166 = ssub.s32 %s20, %s27
      %p167 = scmp.eq.s32.totalorder %s166, 0
      %s169 = sadd.s32 %s168, 1
      %s170 = scalar_select %p167, %s168, %s169
      %p173 = pneg %p167
      %p174 = scmp.eq.s32.totalorder %s12, 3
      %p175 = por %p173, %p174
      %p176 = scmp.ne.s32.totalorder %s168, %s171
      %p177 = scmp.eq.s32.totalorder %s12, 0
      %p178 = por %p176, %p177
      %p179 = scmp.ne.s32.totalorder %s168, %s171
      %p180 = scmp.eq.s32.totalorder %s17, 3
      %p181 = por %p179, %p180
      %p182 = scmp.ne.s32.totalorder %s171, %s172
      %p183 = scmp.eq.s32.totalorder %s17, 0
      %p184 = por %p182, %p183
      %p185 = scmp.ne.s32.totalorder %s171, %s172
      %p186 = scmp.eq.s32.totalorder %s18, 3
      %p187 = por %p185, %p186
      %p189 = scmp.ne.s32.totalorder %s172, %s188
      %p190 = scmp.eq.s32.totalorder %s18, 0
      %p191 = por %p189, %p190
      %s192 = ssub.s32 %s19, %s31
      %s193 = ssub.s32 %s20, %s27
      %s194 = sor.u32 %s192, %s193
      %p195 = scmp.eq.s32.totalorder %s194, 0
      %s197 = sadd.s32 %s196, 1
      %s198 = scalar_select %p195, %s196, %s197
      %p201 = pneg %p195
      %p202 = scmp.eq.s32.totalorder %s12, 3
      %p203 = por %p201, %p202
      %p204 = scmp.ne.s32.totalorder %s196, %s199
      %p205 = scmp.eq.s32.totalorder %s12, 0
      %p206 = por %p204, %p205
      %p207 = scmp.ne.s32.totalorder %s196, %s199
      %p208 = scmp.eq.s32.totalorder %s17, 3
      %p209 = por %p207, %p208
      %p210 = scmp.ne.s32.totalorder %s199, %s200
      %p211 = scmp.eq.s32.totalorder %s17, 0
      %p212 = por %p210, %p211
      %p213 = scmp.ne.s32.totalorder %s199, %s200
      %p214 = scmp.eq.s32.totalorder %s18, 3
      %p215 = por %p213, %p214
      %p217 = scmp.ne.s32.totalorder %s200, %s216
      %p218 = scmp.eq.s32.totalorder %s18, 0
      %p219 = por %p217, %p218
      %p220 = scmp.le.s32.totalorder 1, %s12
      %p221 = scmp.lt.s32.totalorder %s12, 5
      %p222 = pnand %p220, %p221
      %p223 = pneg %p222
      // Predicated region
      $region9: #{gcn_dae_forward.10} parent=5 // pred_check
        _
      $region10: #{gcn_dae_forward.10} parent=5 // pred_check_branch
        %225 = sbr.rel (%p222) target = $region12
      $region11: #{gcn_dae_forward.10} parent=5 // pred_region
        %s226 = ssub.s32 %s12, 1
      $region12: #{gcn_dae_forward.10} parent=5 // pred_fallthru
        _
      %p227 = scmp.lt.s32.totalorder %s12, 4
      // Predicated region
      $region13: #{gcn_dae_forward.10} parent=5 // pred_check
        %p228 = pneg %p227
      $region14: #{gcn_dae_forward.10} parent=5 // pred_check_branch
        %230 = sbr.rel (%p228) target = $region16
      $region15: #{gcn_dae_forward.10} parent=5 // pred_region
        // Predicated region
        $region17: #{gcn_dae_forward.10} parent=15 // pred_check
          %p231 = pneg %p46
        $region18: #{gcn_dae_forward.10} parent=15 // pred_check_branch
          %233 = sbr.rel (%p231) target = $region20
        $region19: #{gcn_dae_forward.10} parent=15 // pred_region
          %s234 = sand.u32 %s36, 1
          %s235 = sand.u32 %s36, 1
          %s236 = smul.addr %s235, 128
          %s237 = scalar_lea.vmem [#allocation2], %s236
          %s238 = smul.u32 16, %s19
          %s239 = smul.addr %s238, 2
          %s240 = sadd.s32 %s20, %s239
          %s241 = smul.addr %s240, 8
          %s242 = scalar_lea.vmem %s0, %s241
          // Predicated region
          $region21: #{gcn_dae_forward.10} parent=19 // pred_check
            _
          $region22: #{gcn_dae_forward.10} parent=19 // pred_check_branch
            %244 = sbr.rel (0) target = $region24
          $region23: #{gcn_dae_forward.10} parent=19 // pred_region
            // Predicated region
            $region25: #{gcn_dae_forward.10} parent=23 // pred_check
              _
            $region26: #{gcn_dae_forward.10} parent=23 // pred_check_branch
              %246 = sbr.rel (0) target = $region28
            $region27: #{gcn_dae_forward.10} parent=23 // pred_region
              // Predicated region
              $region40: #{gcn_dae_forward.10} parent=27 // pred_check
                _
              $region41: #{gcn_dae_forward.10} parent=27 // pred_check_branch
                %292 = sbr.rel (0) target = $region43
              $region42: #{gcn_dae_forward.10} parent=27 // pred_region
                loop: start=0, step=1, limit=1
                $region44: #{gcn_dae_forward.10} parent=42 // loop_pre_header
                  _
                $region45: #{gcn_dae_forward.10} parent=42 // loop_header
                  %s294 = sphi 0, %s298
                  %p295 = scmp.ge.s32.totalorder %s294, 1
                  %s299 = sphi %s242, %s242
                  %s300 = sphi %s237, %s237
                $region46: #{gcn_dae_forward.10} parent=42 // loop_header_branch
                  %297 = sbr.rel (%p295) target = $region50
                $region47: #{gcn_dae_forward.10} parent=42 // loop_body
                  %v301 = vld [vmem:[%s299] sm:$0xff]
                  %302 = vst [vmem:[%s300] sm:$0xff] %v301
                  %v303 = vld [vmem:[%s299 + $0x10] sm:$0xff]
                  %304 = vst [vmem:[%s300 + $0x8] sm:$0xff] %v303
                  %v305 = vld [vmem:[%s299 + $0x20] sm:$0xff]
                  %306 = vst [vmem:[%s300 + $0x10] sm:$0xff] %v305
                  %v307 = vld [vmem:[%s299 + $0x30] sm:$0xff]
                  %308 = vst [vmem:[%s300 + $0x18] sm:$0xff] %v307
                  %v309 = vld [vmem:[%s299 + $0x40] sm:$0xff]
                  %310 = vst [vmem:[%s300 + $0x20] sm:$0xff] %v309
                  %v311 = vld [vmem:[%s299 + $0x50] sm:$0xff]
                  %312 = vst [vmem:[%s300 + $0x28] sm:$0xff] %v311
                  %v313 = vld [vmem:[%s299 + $0x60] sm:$0xff]
                  %314 = vst [vmem:[%s300 + $0x30] sm:$0xff] %v313
                  %v315 = vld [vmem:[%s299 + $0x70] sm:$0xff]
                  %316 = vst [vmem:[%s300 + $0x38] sm:$0xff] %v315
                  %v317 = vld [vmem:[%s299 + $0x80] sm:$0xff]
                  %318 = vst [vmem:[%s300 + $0x40] sm:$0xff] %v317
                  %v319 = vld [vmem:[%s299 + $0x90] sm:$0xff]
                  %320 = vst [vmem:[%s300 + $0x48] sm:$0xff] %v319
                  %v321 = vld [vmem:[%s299 + $0xa0] sm:$0xff]
                  %322 = vst [vmem:[%s300 + $0x50] sm:$0xff] %v321
                  %v323 = vld [vmem:[%s299 + $0xb0] sm:$0xff]
                  %324 = vst [vmem:[%s300 + $0x58] sm:$0xff] %v323
                  %v325 = vld [vmem:[%s299 + $0xc0] sm:$0xff]
                  %326 = vst [vmem:[%s300 + $0x60] sm:$0xff] %v325
                  %v327 = vld [vmem:[%s299 + $0xd0] sm:$0xff]
                  %328 = vst [vmem:[%s300 + $0x68] sm:$0xff] %v327
                  %v329 = vld [vmem:[%s299 + $0xe0] sm:$0xff]
                  %330 = vst [vmem:[%s300 + $0x70] sm:$0xff] %v329
                  %v331 = vld [vmem:[%s299 + $0xf0] sm:$0xff]
                  %332 = vst [vmem:[%s300 + $0x78] sm:$0xff] %v331
                $region48: #{gcn_dae_forward.10} parent=42 // loop_footer
                  %s298 = sadd.s32 1, %s294
                $region49: #{gcn_dae_forward.10} parent=42 // loop_footer_branch
                  %293 = sbr.rel target = $region45
                $region50: #{gcn_dae_forward.10} parent=42 // loop_exit
                  _
              $region43: #{gcn_dae_forward.10} parent=27 // pred_fallthru
                _
              // Predicated region
              $region51: #{gcn_dae_forward.10} parent=27 // pred_check
                _
              $region52: #{gcn_dae_forward.10} parent=27 // pred_check_branch
                %334 = sbr.rel target = $region54
              $region53: #{gcn_dae_forward.10} parent=27 // pred_region
                _
              $region54: #{gcn_dae_forward.10} parent=27 // pred_fallthru
                _
            $region28: #{gcn_dae_forward.10} parent=23 // pred_fallthru
              _
            // Predicated region
            $region29: #{gcn_dae_forward.10} parent=23 // pred_check
              _
            $region30: #{gcn_dae_forward.10} parent=23 // pred_check_branch
              %248 = sbr.rel target = $region32
            $region31: #{gcn_dae_forward.10} parent=23 // pred_region
              %s250 = ssub.s32 256, 1
              loop: start=0, step=1, limit=1
              $region33: #{gcn_dae_forward.10} parent=31 // loop_pre_header
                _
              $region34: #{gcn_dae_forward.10} parent=31 // loop_header
                %s252 = sphi 0, %s256
                %p253 = scmp.ge.s32.totalorder %s252, 1
                %s257 = sphi %s242, %s242
                %s258 = sphi %s237, %s237
              $region35: #{gcn_dae_forward.10} parent=31 // loop_header_branch
                %255 = sbr.rel (%p253) target = $region39
              $region36: #{gcn_dae_forward.10} parent=31 // loop_body
                %v259 = vld [vmem:[%s257] sm:%s250]
                %260 = vst [vmem:[%s258] sm:%s250] %v259
                %v261 = vld [vmem:[%s257 + $0x10] sm:%s250]
                %262 = vst [vmem:[%s258 + $0x8] sm:%s250] %v261
                %v263 = vld [vmem:[%s257 + $0x20] sm:%s250]
                %264 = vst [vmem:[%s258 + $0x10] sm:%s250] %v263
                %v265 = vld [vmem:[%s257 + $0x30] sm:%s250]
                %266 = vst [vmem:[%s258 + $0x18] sm:%s250] %v265
                %v267 = vld [vmem:[%s257 + $0x40] sm:%s250]
                %268 = vst [vmem:[%s258 + $0x20] sm:%s250] %v267
                %v269 = vld [vmem:[%s257 + $0x50] sm:%s250]
                %270 = vst [vmem:[%s258 + $0x28] sm:%s250] %v269
                %v271 = vld [vmem:[%s257 + $0x60] sm:%s250]
                %272 = vst [vmem:[%s258 + $0x30] sm:%s250] %v271
                %v273 = vld [vmem:[%s257 + $0x70] sm:%s250]
                %274 = vst [vmem:[%s258 + $0x38] sm:%s250] %v273
                %v275 = vld [vmem:[%s257 + $0x80] sm:%s250]
                %276 = vst [vmem:[%s258 + $0x40] sm:%s250] %v275
                %v277 = vld [vmem:[%s257 + $0x90] sm:%s250]
                %278 = vst [vmem:[%s258 + $0x48] sm:%s250] %v277
                %v279 = vld [vmem:[%s257 + $0xa0] sm:%s250]
                %280 = vst [vmem:[%s258 + $0x50] sm:%s250] %v279
                %v281 = vld [vmem:[%s257 + $0xb0] sm:%s250]
                %282 = vst [vmem:[%s258 + $0x58] sm:%s250] %v281
                %v283 = vld [vmem:[%s257 + $0xc0] sm:%s250]
                %284 = vst [vmem:[%s258 + $0x60] sm:%s250] %v283
                %v285 = vld [vmem:[%s257 + $0xd0] sm:%s250]
                %286 = vst [vmem:[%s258 + $0x68] sm:%s250] %v285
                %v287 = vld [vmem:[%s257 + $0xe0] sm:%s250]
                %288 = vst [vmem:[%s258 + $0x70] sm:%s250] %v287
                %v289 = vld [vmem:[%s257 + $0xf0] sm:%s250]
                %290 = vst [vmem:[%s258 + $0x78] sm:%s250] %v289
              $region37: #{gcn_dae_forward.10} parent=31 // loop_footer
                %s256 = sadd.s32 1, %s252
              $region38: #{gcn_dae_forward.10} parent=31 // loop_footer_branch
                %251 = sbr.rel target = $region34
              $region39: #{gcn_dae_forward.10} parent=31 // loop_exit
                _
            $region32: #{gcn_dae_forward.10} parent=23 // pred_fallthru
              _
          $region24: #{gcn_dae_forward.10} parent=19 // pred_fallthru
            _
          %335 = vnop
        $region20: #{gcn_dae_forward.10} parent=15 // pred_fallthru
          _
        // Predicated region
        $region55: #{gcn_dae_forward.10} parent=15 // pred_check
          %p336 = pneg %p74
        $region56: #{gcn_dae_forward.10} parent=15 // pred_check_branch
          %338 = sbr.rel (%p336) target = $region58
        $region57: #{gcn_dae_forward.10} parent=15 // pred_region
          %s339 = sand.u32 %s64, 1
          %s340 = sand.u32 %s64, 1
          %s341 = smul.addr %s340, 128
          %s342 = scalar_lea.vmem [#allocation3], %s341
          %s343 = smul.u32 16, %s20
          %s344 = smul.addr %s343, 2
          %s345 = sadd.s32 %s19, %s344
          %s346 = smul.addr %s345, 8
          %s347 = scalar_lea.vmem %s1, %s346
          // Predicated region
          $region59: #{gcn_dae_forward.10} parent=57 // pred_check
            _
          $region60: #{gcn_dae_forward.10} parent=57 // pred_check_branch
            %349 = sbr.rel (0) target = $region62
          $region61: #{gcn_dae_forward.10} parent=57 // pred_region
            // Predicated region
            $region63: #{gcn_dae_forward.10} parent=61 // pred_check
              _
            $region64: #{gcn_dae_forward.10} parent=61 // pred_check_branch
              %351 = sbr.rel (0) target = $region66
            $region65: #{gcn_dae_forward.10} parent=61 // pred_region
              // Predicated region
              $region78: #{gcn_dae_forward.10} parent=65 // pred_check
                _
              $region79: #{gcn_dae_forward.10} parent=65 // pred_check_branch
                %397 = sbr.rel (0) target = $region81
              $region80: #{gcn_dae_forward.10} parent=65 // pred_region
                loop: start=0, step=1, limit=1
                $region82: #{gcn_dae_forward.10} parent=80 // loop_pre_header
                  _
                $region83: #{gcn_dae_forward.10} parent=80 // loop_header
                  %s399 = sphi 0, %s403
                  %p400 = scmp.ge.s32.totalorder %s399, 1
                  %s404 = sphi %s347, %s347
                  %s405 = sphi %s342, %s342
                $region84: #{gcn_dae_forward.10} parent=80 // loop_header_branch
                  %402 = sbr.rel (%p400) target = $region88
                $region85: #{gcn_dae_forward.10} parent=80 // loop_body
                  %v406 = vld [vmem:[%s404] sm:$0xff]
                  %407 = vst [vmem:[%s405] sm:$0xff] %v406
                  %v408 = vld [vmem:[%s404 + $0x10] sm:$0xff]
                  %409 = vst [vmem:[%s405 + $0x8] sm:$0xff] %v408
                  %v410 = vld [vmem:[%s404 + $0x20] sm:$0xff]
                  %411 = vst [vmem:[%s405 + $0x10] sm:$0xff] %v410
                  %v412 = vld [vmem:[%s404 + $0x30] sm:$0xff]
                  %413 = vst [vmem:[%s405 + $0x18] sm:$0xff] %v412
                  %v414 = vld [vmem:[%s404 + $0x40] sm:$0xff]
                  %415 = vst [vmem:[%s405 + $0x20] sm:$0xff] %v414
                  %v416 = vld [vmem:[%s404 + $0x50] sm:$0xff]
                  %417 = vst [vmem:[%s405 + $0x28] sm:$0xff] %v416
                  %v418 = vld [vmem:[%s404 + $0x60] sm:$0xff]
                  %419 = vst [vmem:[%s405 + $0x30] sm:$0xff] %v418
                  %v420 = vld [vmem:[%s404 + $0x70] sm:$0xff]
                  %421 = vst [vmem:[%s405 + $0x38] sm:$0xff] %v420
                  %v422 = vld [vmem:[%s404 + $0x80] sm:$0xff]
                  %423 = vst [vmem:[%s405 + $0x40] sm:$0xff] %v422
                  %v424 = vld [vmem:[%s404 + $0x90] sm:$0xff]
                  %425 = vst [vmem:[%s405 + $0x48] sm:$0xff] %v424
                  %v426 = vld [vmem:[%s404 + $0xa0] sm:$0xff]
                  %427 = vst [vmem:[%s405 + $0x50] sm:$0xff] %v426
                  %v428 = vld [vmem:[%s404 + $0xb0] sm:$0xff]
                  %429 = vst [vmem:[%s405 + $0x58] sm:$0xff] %v428
                  %v430 = vld [vmem:[%s404 + $0xc0] sm:$0xff]
                  %431 = vst [vmem:[%s405 + $0x60] sm:$0xff] %v430
                  %v432 = vld [vmem:[%s404 + $0xd0] sm:$0xff]
                  %433 = vst [vmem:[%s405 + $0x68] sm:$0xff] %v432
                  %v434 = vld [vmem:[%s404 + $0xe0] sm:$0xff]
                  %435 = vst [vmem:[%s405 + $0x70] sm:$0xff] %v434
                  %v436 = vld [vmem:[%s404 + $0xf0] sm:$0xff]
                  %437 = vst [vmem:[%s405 + $0x78] sm:$0xff] %v436
                $region86: #{gcn_dae_forward.10} parent=80 // loop_footer
                  %s403 = sadd.s32 1, %s399
                $region87: #{gcn_dae_forward.10} parent=80 // loop_footer_branch
                  %398 = sbr.rel target = $region83
                $region88: #{gcn_dae_forward.10} parent=80 // loop_exit
                  _
              $region81: #{gcn_dae_forward.10} parent=65 // pred_fallthru
                _
              // Predicated region
              $region89: #{gcn_dae_forward.10} parent=65 // pred_check
                _
              $region90: #{gcn_dae_forward.10} parent=65 // pred_check_branch
                %439 = sbr.rel target = $region92
              $region91: #{gcn_dae_forward.10} parent=65 // pred_region
                _
              $region92: #{gcn_dae_forward.10} parent=65 // pred_fallthru
                _
            $region66: #{gcn_dae_forward.10} parent=61 // pred_fallthru
              _
            // Predicated region
            $region67: #{gcn_dae_forward.10} parent=61 // pred_check
              _
            $region68: #{gcn_dae_forward.10} parent=61 // pred_check_branch
              %353 = sbr.rel target = $region70
            $region69: #{gcn_dae_forward.10} parent=61 // pred_region
              %s355 = ssub.s32 256, 1
              loop: start=0, step=1, limit=1
              $region71: #{gcn_dae_forward.10} parent=69 // loop_pre_header
                _
              $region72: #{gcn_dae_forward.10} parent=69 // loop_header
                %s357 = sphi 0, %s361
                %p358 = scmp.ge.s32.totalorder %s357, 1
                %s362 = sphi %s347, %s347
                %s363 = sphi %s342, %s342
              $region73: #{gcn_dae_forward.10} parent=69 // loop_header_branch
                %360 = sbr.rel (%p358) target = $region77
              $region74: #{gcn_dae_forward.10} parent=69 // loop_body
                %v364 = vld [vmem:[%s362] sm:%s355]
                %365 = vst [vmem:[%s363] sm:%s355] %v364
                %v366 = vld [vmem:[%s362 + $0x10] sm:%s355]
                %367 = vst [vmem:[%s363 + $0x8] sm:%s355] %v366
                %v368 = vld [vmem:[%s362 + $0x20] sm:%s355]
                %369 = vst [vmem:[%s363 + $0x10] sm:%s355] %v368
                %v370 = vld [vmem:[%s362 + $0x30] sm:%s355]
                %371 = vst [vmem:[%s363 + $0x18] sm:%s355] %v370
                %v372 = vld [vmem:[%s362 + $0x40] sm:%s355]
                %373 = vst [vmem:[%s363 + $0x20] sm:%s355] %v372
                %v374 = vld [vmem:[%s362 + $0x50] sm:%s355]
                %375 = vst [vmem:[%s363 + $0x28] sm:%s355] %v374
                %v376 = vld [vmem:[%s362 + $0x60] sm:%s355]
                %377 = vst [vmem:[%s363 + $0x30] sm:%s355] %v376
                %v378 = vld [vmem:[%s362 + $0x70] sm:%s355]
                %379 = vst [vmem:[%s363 + $0x38] sm:%s355] %v378
                %v380 = vld [vmem:[%s362 + $0x80] sm:%s355]
                %381 = vst [vmem:[%s363 + $0x40] sm:%s355] %v380
                %v382 = vld [vmem:[%s362 + $0x90] sm:%s355]
                %383 = vst [vmem:[%s363 + $0x48] sm:%s355] %v382
                %v384 = vld [vmem:[%s362 + $0xa0] sm:%s355]
                %385 = vst [vmem:[%s363 + $0x50] sm:%s355] %v384
                %v386 = vld [vmem:[%s362 + $0xb0] sm:%s355]
                %387 = vst [vmem:[%s363 + $0x58] sm:%s355] %v386
                %v388 = vld [vmem:[%s362 + $0xc0] sm:%s355]
                %389 = vst [vmem:[%s363 + $0x60] sm:%s355] %v388
                %v390 = vld [vmem:[%s362 + $0xd0] sm:%s355]
                %391 = vst [vmem:[%s363 + $0x68] sm:%s355] %v390
                %v392 = vld [vmem:[%s362 + $0xe0] sm:%s355]
                %393 = vst [vmem:[%s363 + $0x70] sm:%s355] %v392
                %v394 = vld [vmem:[%s362 + $0xf0] sm:%s355]
                %395 = vst [vmem:[%s363 + $0x78] sm:%s355] %v394
              $region75: #{gcn_dae_forward.10} parent=69 // loop_footer
                %s361 = sadd.s32 1, %s357
              $region76: #{gcn_dae_forward.10} parent=69 // loop_footer_branch
                %356 = sbr.rel target = $region72
              $region77: #{gcn_dae_forward.10} parent=69 // loop_exit
                _
            $region70: #{gcn_dae_forward.10} parent=61 // pred_fallthru
              _
          $region62: #{gcn_dae_forward.10} parent=57 // pred_fallthru
            _
          %440 = vnop
        $region58: #{gcn_dae_forward.10} parent=15 // pred_fallthru
          _
        // Predicated region
        $region93: #{gcn_dae_forward.10} parent=15 // pred_check
          %p441 = pneg %p100
        $region94: #{gcn_dae_forward.10} parent=15 // pred_check_branch
          %443 = sbr.rel (%p441) target = $region96
        $region95: #{gcn_dae_forward.10} parent=15 // pred_region
          %s444 = smul.u32 16, %s19
          %p445 = scmp.lt.s32.totalorder %s444, 31
          %s446 = scalar_select %p445, %s444, 31
          %s447 = smul.addr %s446, 8
          %s448 = scalar_lea.vmem %s2, %s447
          %s449 = smul.u32 16, %s19
        $region96: #{gcn_dae_forward.10} parent=15 // pred_fallthru
          _
        // Predicated region
        $region97: #{gcn_dae_forward.10} parent=15 // pred_check
          %p450 = pneg %p126
        $region98: #{gcn_dae_forward.10} parent=15 // pred_check_branch
          %452 = sbr.rel (%p450) target = $region100
        $region99: #{gcn_dae_forward.10} parent=15 // pred_region
          %s453 = smul.u32 16, %s20
          %p454 = scmp.lt.s32.totalorder %s453, 31
          %s455 = scalar_select %p454, %s453, 31
          %s456 = smul.addr %s455, 8
          %s457 = scalar_lea.vmem %s3, %s456
          %s458 = smul.u32 16, %s20
        $region100: #{gcn_dae_forward.10} parent=15 // pred_fallthru
          _
        // Predicated region
        $region101: #{gcn_dae_forward.10} parent=15 // pred_check
          %p459 = pneg %p152
        $region102: #{gcn_dae_forward.10} parent=15 // pred_check_branch
          %461 = sbr.rel (%p459) target = $region104
        $region103: #{gcn_dae_forward.10} parent=15 // pred_region
          %s462 = smul.u32 16, %s19
          %p463 = scmp.lt.s32.totalorder %s462, 31
          %s464 = scalar_select %p463, %s462, 31
          %s465 = smul.addr %s464, 8
          %s466 = scalar_lea.vmem %s4, %s465
          %s467 = smul.u32 16, %s19
        $region104: #{gcn_dae_forward.10} parent=15 // pred_fallthru
          _
        // Predicated region
        $region105: #{gcn_dae_forward.10} parent=15 // pred_check
          %p468 = pneg %p178
        $region106: #{gcn_dae_forward.10} parent=15 // pred_check_branch
          %470 = sbr.rel (%p468) target = $region108
        $region107: #{gcn_dae_forward.10} parent=15 // pred_region
          %s471 = smul.u32 16, %s20
          %p472 = scmp.lt.s32.totalorder %s471, 31
          %s473 = scalar_select %p472, %s471, 31
          %s474 = smul.addr %s473, 8
          %s475 = scalar_lea.vmem %s5, %s474
          %s476 = smul.u32 16, %s20
        $region108: #{gcn_dae_forward.10} parent=15 // pred_fallthru
          _
      $region16: #{gcn_dae_forward.10} parent=5 // pred_fallthru
        _
      %p477 = scmp.le.s32.totalorder 1, %s12
      %p478 = scmp.lt.s32.totalorder %s12, 5
      %p479 = pnand %p477, %p478
      %p480 = pneg %p479
      // Predicated region
      $region109: #{gcn_dae_forward.10} parent=5 // pred_check
        _
      $region110: #{gcn_dae_forward.10} parent=5 // pred_check_branch
        %482 = sbr.rel (%p479) target = $region112
      $region111: #{gcn_dae_forward.10} parent=5 // pred_region
        %s483 = ssub.s32 %s12, 1
        %s484 = sand.u32 %s39, 1
        %s485 = sand.u32 %s39, 1
        %s486 = smul.addr %s485, 128
        %s487 = scalar_lea.vmem [#allocation2], %s486
        // Predicated region
        $region113: #{gcn_dae_forward.10} parent=111 // pred_check
          %p488 = pneg %p52
        $region114: #{gcn_dae_forward.10} parent=111 // pred_check_branch
          %490 = sbr.rel (%p488) target = $region116
        $region115: #{gcn_dae_forward.10} parent=111 // pred_region
          _
        $region116: #{gcn_dae_forward.10} parent=111 // pred_fallthru
          _
        %s491 = sand.u32 %s67, 1
        %s492 = sand.u32 %s67, 1
        %s493 = smul.addr %s492, 128
        %s494 = scalar_lea.vmem [#allocation3], %s493
        // Predicated region
        $region117: #{gcn_dae_forward.10} parent=111 // pred_check
          %p495 = pneg %p80
        $region118: #{gcn_dae_forward.10} parent=111 // pred_check_branch
          %497 = sbr.rel (%p495) target = $region120
        $region119: #{gcn_dae_forward.10} parent=111 // pred_region
          _
        $region120: #{gcn_dae_forward.10} parent=111 // pred_fallthru
          _
        %s498 = sand.u32 %s39, 1
        %s499 = sand.u32 %s39, 1
        %s500 = smul.addr %s499, 128
        %s501 = scalar_lea.vmem [#allocation2], %s500
        %p502 = pneg %p52
        %p503 = pneg %p49
        %s504 = sand.u32 %s67, 1
        %s505 = sand.u32 %s67, 1
        %s506 = smul.addr %s505, 128
        %s507 = scalar_lea.vmem [#allocation3], %s506
        %p508 = pneg %p80
        %p509 = pneg %p77
        %s510 = smul.u32 16, %s21
        %p511 = scmp.lt.s32.totalorder %s510, 31
        %s512 = scalar_select %p511, %s510, 31
        %s513 = smul.addr %s512, 8
        %s514 = scalar_lea.vmem %s2, %s513
        %p515 = pneg %p106
        %p516 = pneg %p103
        %s517 = smul.u32 16, %s22
        %p518 = scmp.lt.s32.totalorder %s517, 31
        %s519 = scalar_select %p518, %s517, 31
        %s520 = smul.addr %s519, 8
        %s521 = scalar_lea.vmem %s3, %s520
        %p522 = pneg %p132
        %p523 = pneg %p129
        %s524 = smul.u32 16, %s21
        %p525 = scmp.lt.s32.totalorder %s524, 31
        %s526 = scalar_select %p525, %s524, 31
        %s527 = smul.addr %s526, 8
        %s528 = scalar_lea.vmem %s4, %s527
        %p529 = pneg %p158
        %p530 = pneg %p155
        %s531 = smul.u32 16, %s22
        %p532 = scmp.lt.s32.totalorder %s531, 31
        %s533 = scalar_select %p532, %s531, 31
        %s534 = smul.addr %s533, 8
        %s535 = scalar_lea.vmem %s5, %s534
        %p536 = pneg %p184
        %p537 = pneg %p181
        %p538 = pneg %p212
        %p539 = pneg %p209
        %s540 = sand.u32 %s199, 1
        %s541 = sand.u32 %s199, 1
        %s542 = smul.addr %s541, 128
        %s543 = scalar_lea.vmem [#allocation4], %s542
        %s544 = smul.u32 16, %s21
        %s545 = smul.u32 16, %s22
        %s546 = smul.u32 16, %s21
        %p547 = scmp.lt.s32.totalorder %s546, 31
        %s548 = scalar_select %p547, %s546, 31
        %s549 = smul.addr %s548, 8
        %s550 = scalar_lea.vmem %s2, %s549
        %s551 = smul.u32 16, %s21
        %s552 = smul.u32 16, %s22
        %p553 = scmp.lt.s32.totalorder %s552, 31
        %s554 = scalar_select %p553, %s552, 31
        %s555 = smul.addr %s554, 8
        %s556 = scalar_lea.vmem %s3, %s555
        %s557 = smul.u32 16, %s22
        %s558 = smul.u32 16, %s21
        %p559 = scmp.lt.s32.totalorder %s558, 31
        %s560 = scalar_select %p559, %s558, 31
        %s561 = smul.addr %s560, 8
        %s562 = scalar_lea.vmem %s4, %s561
        %s563 = smul.u32 16, %s21
        %s564 = smul.u32 16, %s22
        %p565 = scmp.lt.s32.totalorder %s564, 31
        %s566 = scalar_select %p565, %s564, 31
        %s567 = smul.addr %s566, 8
        %s568 = scalar_lea.vmem %s5, %s567
        %s569 = smul.u32 16, %s22
        %s570 = smul.u32 16, %s21
        %v571 = vld [vmem:[%s487] sm:$0xff]
        %v572 = vld [vmem:[%s487 + $0x8] sm:$0xff]
        %v573 = vld [vmem:[%s487 + $0x10] sm:$0xff]
        %v574 = vld [vmem:[%s487 + $0x18] sm:$0xff]
        %v575 = vld [vmem:[%s487 + $0x20] sm:$0xff]
        %v576 = vld [vmem:[%s487 + $0x28] sm:$0xff]
        %v577 = vld [vmem:[%s487 + $0x30] sm:$0xff]
        %v578 = vld [vmem:[%s487 + $0x38] sm:$0xff]
        %v579 = vld [vmem:[%s487 + $0x40] sm:$0xff]
        %v580 = vld [vmem:[%s487 + $0x48] sm:$0xff]
        %v581 = vld [vmem:[%s487 + $0x50] sm:$0xff]
        %v582 = vld [vmem:[%s487 + $0x58] sm:$0xff]
        %v583 = vld [vmem:[%s487 + $0x60] sm:$0xff]
        %v584 = vld [vmem:[%s487 + $0x68] sm:$0xff]
        %v585 = vld [vmem:[%s487 + $0x70] sm:$0xff]
        %v586 = vld [vmem:[%s487 + $0x78] sm:$0xff]
        %v587 = vld [vmem:[%s494] sm:$0xff]
        %v588 = vld [vmem:[%s494 + $0x8] sm:$0xff]
        %v589 = vld [vmem:[%s494 + $0x10] sm:$0xff]
        %v590 = vld [vmem:[%s494 + $0x18] sm:$0xff]
        %v591 = vld [vmem:[%s494 + $0x20] sm:$0xff]
        %v592 = vld [vmem:[%s494 + $0x28] sm:$0xff]
        %v593 = vld [vmem:[%s494 + $0x30] sm:$0xff]
        %v594 = vld [vmem:[%s494 + $0x38] sm:$0xff]
        %v595 = vld [vmem:[%s494 + $0x40] sm:$0xff]
        %v596 = vld [vmem:[%s494 + $0x48] sm:$0xff]
        %v597 = vld [vmem:[%s494 + $0x50] sm:$0xff]
        %v598 = vld [vmem:[%s494 + $0x58] sm:$0xff]
        %v599 = vld [vmem:[%s494 + $0x60] sm:$0xff]
        %v600 = vld [vmem:[%s494 + $0x68] sm:$0xff]
        %v601 = vld [vmem:[%s494 + $0x70] sm:$0xff]
        %v602 = vld [vmem:[%s494 + $0x78] sm:$0xff]
        %v603 = vld [vmem:[%s550] sm:$0xff]
        %v604 = vld [vmem:[%s550 + $0x8] sm:$0xff]
        %v605 = vld [vmem:[%s550 + $0x10] sm:$0xff]
        %v606 = vld [vmem:[%s550 + $0x18] sm:$0xff]
        %v607 = vld [vmem:[%s550 + $0x20] sm:$0xff]
        %v608 = vld [vmem:[%s550 + $0x28] sm:$0xff]
        %v609 = vld [vmem:[%s550 + $0x30] sm:$0xff]
        %v610 = vld [vmem:[%s550 + $0x38] sm:$0xff]
        %v611 = vld [vmem:[%s550 + $0x40] sm:$0xff]
        %v612 = vld [vmem:[%s550 + $0x48] sm:$0xff]
        %v613 = vld [vmem:[%s550 + $0x50] sm:$0xff]
        %v614 = vld [vmem:[%s550 + $0x58] sm:$0xff]
        %v615 = vld [vmem:[%s550 + $0x60] sm:$0xff]
        %v616 = vld [vmem:[%s550 + $0x68] sm:$0xff]
        %v617 = vld [vmem:[%s550 + $0x70] sm:$0xff]
        %v618 = vld [vmem:[%s550 + $0x78] sm:$0xff]
        %v619 = vld [vmem:[%s556] sm:$0xff]
        %v620 = vld [vmem:[%s556 + $0x8] sm:$0xff]
        %v621 = vld [vmem:[%s556 + $0x10] sm:$0xff]
        %v622 = vld [vmem:[%s556 + $0x18] sm:$0xff]
        %v623 = vld [vmem:[%s556 + $0x20] sm:$0xff]
        %v624 = vld [vmem:[%s556 + $0x28] sm:$0xff]
        %v625 = vld [vmem:[%s556 + $0x30] sm:$0xff]
        %v626 = vld [vmem:[%s556 + $0x38] sm:$0xff]
        %v627 = vld [vmem:[%s556 + $0x40] sm:$0xff]
        %v628 = vld [vmem:[%s556 + $0x48] sm:$0xff]
        %v629 = vld [vmem:[%s556 + $0x50] sm:$0xff]
        %v630 = vld [vmem:[%s556 + $0x58] sm:$0xff]
        %v631 = vld [vmem:[%s556 + $0x60] sm:$0xff]
        %v632 = vld [vmem:[%s556 + $0x68] sm:$0xff]
        %v633 = vld [vmem:[%s556 + $0x70] sm:$0xff]
        %v634 = vld [vmem:[%s556 + $0x78] sm:$0xff]
        %636 = vset.pattern.permute.xlu0 0
        %637 = vperm.xlu0 %636, %v603
        %v638 = vpop.permute.xlu0 %637
        %641 = vset.pattern.permute.xlu0 0
        %642 = vperm.xlu0 %641, %v604
        %v643 = vpop.permute.xlu0 %642
        %646 = vset.pattern.permute.xlu0 0
        %647 = vperm.xlu0 %646, %v605
        %v648 = vpop.permute.xlu0 %647
        %651 = vset.pattern.permute.xlu0 0
        %652 = vperm.xlu0 %651, %v606
        %v653 = vpop.permute.xlu0 %652
        %656 = vset.pattern.permute.xlu0 0
        %657 = vperm.xlu0 %656, %v607
        %v658 = vpop.permute.xlu0 %657
        %661 = vset.pattern.permute.xlu0 0
        %662 = vperm.xlu0 %661, %v608
        %v663 = vpop.permute.xlu0 %662
        %666 = vset.pattern.permute.xlu0 0
        %667 = vperm.xlu0 %666, %v609
        %v668 = vpop.permute.xlu0 %667
        %671 = vset.pattern.permute.xlu0 0
        %672 = vperm.xlu0 %671, %v610
        %v673 = vpop.permute.xlu0 %672
        %676 = vset.pattern.permute.xlu0 0
        %677 = vperm.xlu0 %676, %v611
        %v678 = vpop.permute.xlu0 %677
        %681 = vset.pattern.permute.xlu0 0
        %682 = vperm.xlu0 %681, %v612
        %v683 = vpop.permute.xlu0 %682
        %686 = vset.pattern.permute.xlu0 0
        %687 = vperm.xlu0 %686, %v613
        %v688 = vpop.permute.xlu0 %687
        %691 = vset.pattern.permute.xlu0 0
        %692 = vperm.xlu0 %691, %v614
        %v693 = vpop.permute.xlu0 %692
        %696 = vset.pattern.permute.xlu0 0
        %697 = vperm.xlu0 %696, %v615
        %v698 = vpop.permute.xlu0 %697
        %701 = vset.pattern.permute.xlu0 0
        %702 = vperm.xlu0 %701, %v616
        %v703 = vpop.permute.xlu0 %702
        %706 = vset.pattern.permute.xlu0 0
        %707 = vperm.xlu0 %706, %v617
        %v708 = vpop.permute.xlu0 %707
        %711 = vset.pattern.permute.xlu0 0
        %712 = vperm.xlu0 %711, %v618
        %v713 = vpop.permute.xlu0 %712
        %vm715 = vcmp.ge.f32.partialorder %v571, %v638
        %vm716 = vcmp.ge.f32.partialorder %v572, %v643
        %vm717 = vcmp.ge.f32.partialorder %v573, %v648
        %vm718 = vcmp.ge.f32.partialorder %v574, %v653
        %vm719 = vcmp.ge.f32.partialorder %v575, %v658
        %vm720 = vcmp.ge.f32.partialorder %v576, %v663
        %vm721 = vcmp.ge.f32.partialorder %v577, %v668
        %vm722 = vcmp.ge.f32.partialorder %v578, %v673
        %vm723 = vcmp.ge.f32.partialorder %v579, %v678
        %vm724 = vcmp.ge.f32.partialorder %v580, %v683
        %vm725 = vcmp.ge.f32.partialorder %v581, %v688
        %vm726 = vcmp.ge.f32.partialorder %v582, %v693
        %vm727 = vcmp.ge.f32.partialorder %v583, %v698
        %vm728 = vcmp.ge.f32.partialorder %v584, %v703
        %vm729 = vcmp.ge.f32.partialorder %v585, %v708
        %vm730 = vcmp.ge.f32.partialorder %v586, %v713
        %v731 = vsel %vm715, %v571, 0.0
        %v732 = vsel %vm716, %v572, 0.0
        %v733 = vsel %vm717, %v573, 0.0
        %v734 = vsel %vm718, %v574, 0.0
        %v735 = vsel %vm719, %v575, 0.0
        %v736 = vsel %vm720, %v576, 0.0
        %v737 = vsel %vm721, %v577, 0.0
        %v738 = vsel %vm722, %v578, 0.0
        %v739 = vsel %vm723, %v579, 0.0
        %v740 = vsel %vm724, %v580, 0.0
        %v741 = vsel %vm725, %v581, 0.0
        %v742 = vsel %vm726, %v582, 0.0
        %v743 = vsel %vm727, %v583, 0.0
        %v744 = vsel %vm728, %v584, 0.0
        %v745 = vsel %vm729, %v585, 0.0
        %v746 = vsel %vm730, %v586, 0.0
        %v747 = vmax.f32 %v731, 0.0
        %v748 = vmax.f32 %v732, 0.0
        %v749 = vmax.f32 %v733, 0.0
        %v750 = vmax.f32 %v734, 0.0
        %v751 = vmax.f32 %v735, 0.0
        %v752 = vmax.f32 %v736, 0.0
        %v753 = vmax.f32 %v737, 0.0
        %v754 = vmax.f32 %v738, 0.0
        %v755 = vmax.f32 %v739, 0.0
        %v756 = vmax.f32 %v740, 0.0
        %v757 = vmax.f32 %v741, 0.0
        %v758 = vmax.f32 %v742, 0.0
        %v759 = vmax.f32 %v743, 0.0
        %v760 = vmax.f32 %v744, 0.0
        %v761 = vmax.f32 %v745, 0.0
        %v762 = vmax.f32 %v746, 0.0
        %764 = vset.pattern.permute.xlu0 0
        %765 = vperm.xlu0 %764, %v619
        %v766 = vpop.permute.xlu0 %765
        %769 = vset.pattern.permute.xlu0 0
        %770 = vperm.xlu0 %769, %v620
        %v771 = vpop.permute.xlu0 %770
        %774 = vset.pattern.permute.xlu0 0
        %775 = vperm.xlu0 %774, %v621
        %v776 = vpop.permute.xlu0 %775
        %779 = vset.pattern.permute.xlu0 0
        %780 = vperm.xlu0 %779, %v622
        %v781 = vpop.permute.xlu0 %780
        %784 = vset.pattern.permute.xlu0 0
        %785 = vperm.xlu0 %784, %v623
        %v786 = vpop.permute.xlu0 %785
        %789 = vset.pattern.permute.xlu0 0
        %790 = vperm.xlu0 %789, %v624
        %v791 = vpop.permute.xlu0 %790
        %794 = vset.pattern.permute.xlu0 0
        %795 = vperm.xlu0 %794, %v625
        %v796 = vpop.permute.xlu0 %795
        %799 = vset.pattern.permute.xlu0 0
        %800 = vperm.xlu0 %799, %v626
        %v801 = vpop.permute.xlu0 %800
        %804 = vset.pattern.permute.xlu0 0
        %805 = vperm.xlu0 %804, %v627
        %v806 = vpop.permute.xlu0 %805
        %809 = vset.pattern.permute.xlu0 0
        %810 = vperm.xlu0 %809, %v628
        %v811 = vpop.permute.xlu0 %810
        %814 = vset.pattern.permute.xlu0 0
        %815 = vperm.xlu0 %814, %v629
        %v816 = vpop.permute.xlu0 %815
        %819 = vset.pattern.permute.xlu0 0
        %820 = vperm.xlu0 %819, %v630
        %v821 = vpop.permute.xlu0 %820
        %824 = vset.pattern.permute.xlu0 0
        %825 = vperm.xlu0 %824, %v631
        %v826 = vpop.permute.xlu0 %825
        %829 = vset.pattern.permute.xlu0 0
        %830 = vperm.xlu0 %829, %v632
        %v831 = vpop.permute.xlu0 %830
        %834 = vset.pattern.permute.xlu0 0
        %835 = vperm.xlu0 %834, %v633
        %v836 = vpop.permute.xlu0 %835
        %839 = vset.pattern.permute.xlu0 0
        %840 = vperm.xlu0 %839, %v634
        %v841 = vpop.permute.xlu0 %840
        %vm843 = vcmp.ge.f32.partialorder %v587, %v766
        %vm844 = vcmp.ge.f32.partialorder %v588, %v771
        %vm845 = vcmp.ge.f32.partialorder %v589, %v776
        %vm846 = vcmp.ge.f32.partialorder %v590, %v781
        %vm847 = vcmp.ge.f32.partialorder %v591, %v786
        %vm848 = vcmp.ge.f32.partialorder %v592, %v791
        %vm849 = vcmp.ge.f32.partialorder %v593, %v796
        %vm850 = vcmp.ge.f32.partialorder %v594, %v801
        %vm851 = vcmp.ge.f32.partialorder %v595, %v806
        %vm852 = vcmp.ge.f32.partialorder %v596, %v811
        %vm853 = vcmp.ge.f32.partialorder %v597, %v816
        %vm854 = vcmp.ge.f32.partialorder %v598, %v821
        %vm855 = vcmp.ge.f32.partialorder %v599, %v826
        %vm856 = vcmp.ge.f32.partialorder %v600, %v831
        %vm857 = vcmp.ge.f32.partialorder %v601, %v836
        %vm858 = vcmp.ge.f32.partialorder %v602, %v841
        %v859 = vsel %vm843, %v587, 0.0
        %v860 = vsel %vm844, %v588, 0.0
        %v861 = vsel %vm845, %v589, 0.0
        %v862 = vsel %vm846, %v590, 0.0
        %v863 = vsel %vm847, %v591, 0.0
        %v864 = vsel %vm848, %v592, 0.0
        %v865 = vsel %vm849, %v593, 0.0
        %v866 = vsel %vm850, %v594, 0.0
        %v867 = vsel %vm851, %v595, 0.0
        %v868 = vsel %vm852, %v596, 0.0
        %v869 = vsel %vm853, %v597, 0.0
        %v870 = vsel %vm854, %v598, 0.0
        %v871 = vsel %vm855, %v599, 0.0
        %v872 = vsel %vm856, %v600, 0.0
        %v873 = vsel %vm857, %v601, 0.0
        %v874 = vsel %vm858, %v602, 0.0
        %v875 = vmax.f32 %v859, 0.0
        %v876 = vmax.f32 %v860, 0.0
        %v877 = vmax.f32 %v861, 0.0
        %v878 = vmax.f32 %v862, 0.0
        %v879 = vmax.f32 %v863, 0.0
        %v880 = vmax.f32 %v864, 0.0
        %v881 = vmax.f32 %v865, 0.0
        %v882 = vmax.f32 %v866, 0.0
        %v883 = vmax.f32 %v867, 0.0
        %v884 = vmax.f32 %v868, 0.0
        %v885 = vmax.f32 %v869, 0.0
        %v886 = vmax.f32 %v870, 0.0
        %v887 = vmax.f32 %v871, 0.0
        %v888 = vmax.f32 %v872, 0.0
        %v889 = vmax.f32 %v873, 0.0
        %v890 = vmax.f32 %v874, 0.0
        %891 = vxpose.xlu0.b32.start [1/16] %v875, 128
        %892 = vxpose.xlu0.b32.cont [2/16] %v876, 128
        %893 = vxpose.xlu0.b32.cont [3/16] %v877, 128
        %894 = vxpose.xlu0.b32.cont [4/16] %v878, 128
        %895 = vxpose.xlu0.b32.cont [5/16] %v879, 128
        %896 = vxpose.xlu0.b32.cont [6/16] %v880, 128
        %897 = vxpose.xlu0.b32.cont [7/16] %v881, 128
        %898 = vxpose.xlu0.b32.cont [8/16] %v882, 128
        %899 = vxpose.xlu0.b32.cont [9/16] %v883, 128
        %900 = vxpose.xlu0.b32.cont [10/16] %v884, 128
        %901 = vxpose.xlu0.b32.cont [11/16] %v885, 128
        %902 = vxpose.xlu0.b32.cont [12/16] %v886, 128
        %903 = vxpose.xlu0.b32.cont [13/16] %v887, 128
        %904 = vxpose.xlu0.b32.cont [14/16] %v888, 128
        %905 = vxpose.xlu0.b32.cont [15/16] %v889, 128
        %906 = vxpose.xlu0.b32.end [16/16] %v890, 128
        %v907 = vpop.trf.xlu0
        %v908 = vpop.trf.xlu0
        %v909 = vpop.trf.xlu0
        %v910 = vpop.trf.xlu0
        %v911 = vpop.trf.xlu0
        %v912 = vpop.trf.xlu0
        %v913 = vpop.trf.xlu0
        %v914 = vpop.trf.xlu0
        %v915 = vpop.trf.xlu0
        %v916 = vpop.trf.xlu0
        %v917 = vpop.trf.xlu0
        %v918 = vpop.trf.xlu0
        %v919 = vpop.trf.xlu0
        %v920 = vpop.trf.xlu0
        %v921 = vpop.trf.xlu0
        %v922 = vpop.trf.xlu0
        %v923 = vadd.f32 %v747, %v907
        %v924 = vadd.f32 %v748, %v908
        %v925 = vadd.f32 %v749, %v909
        %v926 = vadd.f32 %v750, %v910
        %v927 = vadd.f32 %v751, %v911
        %v928 = vadd.f32 %v752, %v912
        %v929 = vadd.f32 %v753, %v913
        %v930 = vadd.f32 %v754, %v914
        %v931 = vadd.f32 %v755, %v915
        %v932 = vadd.f32 %v756, %v916
        %v933 = vadd.f32 %v757, %v917
        %v934 = vadd.f32 %v758, %v918
        %v935 = vadd.f32 %v759, %v919
        %v936 = vadd.f32 %v760, %v920
        %v937 = vadd.f32 %v761, %v921
        %v938 = vadd.f32 %v762, %v922
        %v939 = vmul.f32 %v923, 0.5
        %v940 = vmul.f32 %v924, 0.5
        %v941 = vmul.f32 %v925, 0.5
        %v942 = vmul.f32 %v926, 0.5
        %v943 = vmul.f32 %v927, 0.5
        %v944 = vmul.f32 %v928, 0.5
        %v945 = vmul.f32 %v929, 0.5
        %v946 = vmul.f32 %v930, 0.5
        %v947 = vmul.f32 %v931, 0.5
        %v948 = vmul.f32 %v932, 0.5
        %v949 = vmul.f32 %v933, 0.5
        %v950 = vmul.f32 %v934, 0.5
        %v951 = vmul.f32 %v935, 0.5
        %v952 = vmul.f32 %v936, 0.5
        %v953 = vmul.f32 %v937, 0.5
        %v954 = vmul.f32 %v938, 0.5
        %v955 = vld [vmem:[%s562] sm:$0xff]
        %v956 = vld [vmem:[%s562 + $0x8] sm:$0xff]
        %v957 = vld [vmem:[%s562 + $0x10] sm:$0xff]
        %v958 = vld [vmem:[%s562 + $0x18] sm:$0xff]
        %v959 = vld [vmem:[%s562 + $0x20] sm:$0xff]
        %v960 = vld [vmem:[%s562 + $0x28] sm:$0xff]
        %v961 = vld [vmem:[%s562 + $0x30] sm:$0xff]
        %v962 = vld [vmem:[%s562 + $0x38] sm:$0xff]
        %v963 = vld [vmem:[%s562 + $0x40] sm:$0xff]
        %v964 = vld [vmem:[%s562 + $0x48] sm:$0xff]
        %v965 = vld [vmem:[%s562 + $0x50] sm:$0xff]
        %v966 = vld [vmem:[%s562 + $0x58] sm:$0xff]
        %v967 = vld [vmem:[%s562 + $0x60] sm:$0xff]
        %v968 = vld [vmem:[%s562 + $0x68] sm:$0xff]
        %v969 = vld [vmem:[%s562 + $0x70] sm:$0xff]
        %v970 = vld [vmem:[%s562 + $0x78] sm:$0xff]
        %v971 = vrsqrt.pop %v955
        %v972 = vmul.f32 %v971, %v955
        %v973 = vmul.f32 %v972, %v971
        %v974 = vmul.f32 0.5, %v973
        %v975 = vsub.f32 1.5, %v974
        %v976 = vmul.f32 %v971, %v975
        %v977 = vmul.f32 %v955, %v976
        %vm978 = vcmp.eq.f32.partialorder %v955, inf
        %v979 = vsel %vm978, %v955, %v977
        %vm980 = vcmp.eq.f32.partialorder %v955, 0.0
        %v981 = vand.u32 %v955, 2147483648
        %v982 = vsel %vm980, %v981, %v979
        %v983 = vrsqrt.pop %v956
        %v984 = vmul.f32 %v983, %v956
        %v985 = vmul.f32 %v984, %v983
        %v986 = vmul.f32 0.5, %v985
        %v987 = vsub.f32 1.5, %v986
        %v988 = vmul.f32 %v983, %v987
        %v989 = vmul.f32 %v956, %v988
        %vm990 = vcmp.eq.f32.partialorder %v956, inf
        %v991 = vsel %vm990, %v956, %v989
        %vm992 = vcmp.eq.f32.partialorder %v956, 0.0
        %v993 = vand.u32 %v956, 2147483648
        %v994 = vsel %vm992, %v993, %v991
        %v995 = vrsqrt.pop %v957
        %v996 = vmul.f32 %v995, %v957
        %v997 = vmul.f32 %v996, %v995
        %v998 = vmul.f32 0.5, %v997
        %v999 = vsub.f32 1.5, %v998
        %v1000 = vmul.f32 %v995, %v999
        %v1001 = vmul.f32 %v957, %v1000
        %vm1002 = vcmp.eq.f32.partialorder %v957, inf
        %v1003 = vsel %vm1002, %v957, %v1001
        %vm1004 = vcmp.eq.f32.partialorder %v957, 0.0
        %v1005 = vand.u32 %v957, 2147483648
        %v1006 = vsel %vm1004, %v1005, %v1003
        %v1007 = vrsqrt.pop %v958
        %v1008 = vmul.f32 %v1007, %v958
        %v1009 = vmul.f32 %v1008, %v1007
        %v1010 = vmul.f32 0.5, %v1009
        %v1011 = vsub.f32 1.5, %v1010
        %v1012 = vmul.f32 %v1007, %v1011
        %v1013 = vmul.f32 %v958, %v1012
        %vm1014 = vcmp.eq.f32.partialorder %v958, inf
        %v1015 = vsel %vm1014, %v958, %v1013
        %vm1016 = vcmp.eq.f32.partialorder %v958, 0.0
        %v1017 = vand.u32 %v958, 2147483648
        %v1018 = vsel %vm1016, %v1017, %v1015
        %v1019 = vrsqrt.pop %v959
        %v1020 = vmul.f32 %v1019, %v959
        %v1021 = vmul.f32 %v1020, %v1019
        %v1022 = vmul.f32 0.5, %v1021
        %v1023 = vsub.f32 1.5, %v1022
        %v1024 = vmul.f32 %v1019, %v1023
        %v1025 = vmul.f32 %v959, %v1024
        %vm1026 = vcmp.eq.f32.partialorder %v959, inf
        %v1027 = vsel %vm1026, %v959, %v1025
        %vm1028 = vcmp.eq.f32.partialorder %v959, 0.0
        %v1029 = vand.u32 %v959, 2147483648
        %v1030 = vsel %vm1028, %v1029, %v1027
        %v1031 = vrsqrt.pop %v960
        %v1032 = vmul.f32 %v1031, %v960
        %v1033 = vmul.f32 %v1032, %v1031
        %v1034 = vmul.f32 0.5, %v1033
        %v1035 = vsub.f32 1.5, %v1034
        %v1036 = vmul.f32 %v1031, %v1035
        %v1037 = vmul.f32 %v960, %v1036
        %vm1038 = vcmp.eq.f32.partialorder %v960, inf
        %v1039 = vsel %vm1038, %v960, %v1037
        %vm1040 = vcmp.eq.f32.partialorder %v960, 0.0
        %v1041 = vand.u32 %v960, 2147483648
        %v1042 = vsel %vm1040, %v1041, %v1039
        %v1043 = vrsqrt.pop %v961
        %v1044 = vmul.f32 %v1043, %v961
        %v1045 = vmul.f32 %v1044, %v1043
        %v1046 = vmul.f32 0.5, %v1045
        %v1047 = vsub.f32 1.5, %v1046
        %v1048 = vmul.f32 %v1043, %v1047
        %v1049 = vmul.f32 %v961, %v1048
        %vm1050 = vcmp.eq.f32.partialorder %v961, inf
        %v1051 = vsel %vm1050, %v961, %v1049
        %vm1052 = vcmp.eq.f32.partialorder %v961, 0.0
        %v1053 = vand.u32 %v961, 2147483648
        %v1054 = vsel %vm1052, %v1053, %v1051
        %v1055 = vrsqrt.pop %v962
        %v1056 = vmul.f32 %v1055, %v962
        %v1057 = vmul.f32 %v1056, %v1055
        %v1058 = vmul.f32 0.5, %v1057
        %v1059 = vsub.f32 1.5, %v1058
        %v1060 = vmul.f32 %v1055, %v1059
        %v1061 = vmul.f32 %v962, %v1060
        %vm1062 = vcmp.eq.f32.partialorder %v962, inf
        %v1063 = vsel %vm1062, %v962, %v1061
        %vm1064 = vcmp.eq.f32.partialorder %v962, 0.0
        %v1065 = vand.u32 %v962, 2147483648
        %v1066 = vsel %vm1064, %v1065, %v1063
        %v1067 = vrsqrt.pop %v963
        %v1068 = vmul.f32 %v1067, %v963
        %v1069 = vmul.f32 %v1068, %v1067
        %v1070 = vmul.f32 0.5, %v1069
        %v1071 = vsub.f32 1.5, %v1070
        %v1072 = vmul.f32 %v1067, %v1071
        %v1073 = vmul.f32 %v963, %v1072
        %vm1074 = vcmp.eq.f32.partialorder %v963, inf
        %v1075 = vsel %vm1074, %v963, %v1073
        %vm1076 = vcmp.eq.f32.partialorder %v963, 0.0
        %v1077 = vand.u32 %v963, 2147483648
        %v1078 = vsel %vm1076, %v1077, %v1075
        %v1079 = vrsqrt.pop %v964
        %v1080 = vmul.f32 %v1079, %v964
        %v1081 = vmul.f32 %v1080, %v1079
        %v1082 = vmul.f32 0.5, %v1081
        %v1083 = vsub.f32 1.5, %v1082
        %v1084 = vmul.f32 %v1079, %v1083
        %v1085 = vmul.f32 %v964, %v1084
        %vm1086 = vcmp.eq.f32.partialorder %v964, inf
        %v1087 = vsel %vm1086, %v964, %v1085
        %vm1088 = vcmp.eq.f32.partialorder %v964, 0.0
        %v1089 = vand.u32 %v964, 2147483648
        %v1090 = vsel %vm1088, %v1089, %v1087
        %v1091 = vrsqrt.pop %v965
        %v1092 = vmul.f32 %v1091, %v965
        %v1093 = vmul.f32 %v1092, %v1091
        %v1094 = vmul.f32 0.5, %v1093
        %v1095 = vsub.f32 1.5, %v1094
        %v1096 = vmul.f32 %v1091, %v1095
        %v1097 = vmul.f32 %v965, %v1096
        %vm1098 = vcmp.eq.f32.partialorder %v965, inf
        %v1099 = vsel %vm1098, %v965, %v1097
        %vm1100 = vcmp.eq.f32.partialorder %v965, 0.0
        %v1101 = vand.u32 %v965, 2147483648
        %v1102 = vsel %vm1100, %v1101, %v1099
        %v1103 = vrsqrt.pop %v966
        %v1104 = vmul.f32 %v1103, %v966
        %v1105 = vmul.f32 %v1104, %v1103
        %v1106 = vmul.f32 0.5, %v1105
        %v1107 = vsub.f32 1.5, %v1106
        %v1108 = vmul.f32 %v1103, %v1107
        %v1109 = vmul.f32 %v966, %v1108
        %vm1110 = vcmp.eq.f32.partialorder %v966, inf
        %v1111 = vsel %vm1110, %v966, %v1109
        %vm1112 = vcmp.eq.f32.partialorder %v966, 0.0
        %v1113 = vand.u32 %v966, 2147483648
        %v1114 = vsel %vm1112, %v1113, %v1111
        %v1115 = vrsqrt.pop %v967
        %v1116 = vmul.f32 %v1115, %v967
        %v1117 = vmul.f32 %v1116, %v1115
        %v1118 = vmul.f32 0.5, %v1117
        %v1119 = vsub.f32 1.5, %v1118
        %v1120 = vmul.f32 %v1115, %v1119
        %v1121 = vmul.f32 %v967, %v1120
        %vm1122 = vcmp.eq.f32.partialorder %v967, inf
        %v1123 = vsel %vm1122, %v967, %v1121
        %vm1124 = vcmp.eq.f32.partialorder %v967, 0.0
        %v1125 = vand.u32 %v967, 2147483648
        %v1126 = vsel %vm1124, %v1125, %v1123
        %v1127 = vrsqrt.pop %v968
        %v1128 = vmul.f32 %v1127, %v968
        %v1129 = vmul.f32 %v1128, %v1127
        %v1130 = vmul.f32 0.5, %v1129
        %v1131 = vsub.f32 1.5, %v1130
        %v1132 = vmul.f32 %v1127, %v1131
        %v1133 = vmul.f32 %v968, %v1132
        %vm1134 = vcmp.eq.f32.partialorder %v968, inf
        %v1135 = vsel %vm1134, %v968, %v1133
        %vm1136 = vcmp.eq.f32.partialorder %v968, 0.0
        %v1137 = vand.u32 %v968, 2147483648
        %v1138 = vsel %vm1136, %v1137, %v1135
        %v1139 = vrsqrt.pop %v969
        %v1140 = vmul.f32 %v1139, %v969
        %v1141 = vmul.f32 %v1140, %v1139
        %v1142 = vmul.f32 0.5, %v1141
        %v1143 = vsub.f32 1.5, %v1142
        %v1144 = vmul.f32 %v1139, %v1143
        %v1145 = vmul.f32 %v969, %v1144
        %vm1146 = vcmp.eq.f32.partialorder %v969, inf
        %v1147 = vsel %vm1146, %v969, %v1145
        %vm1148 = vcmp.eq.f32.partialorder %v969, 0.0
        %v1149 = vand.u32 %v969, 2147483648
        %v1150 = vsel %vm1148, %v1149, %v1147
        %v1151 = vrsqrt.pop %v970
        %v1152 = vmul.f32 %v1151, %v970
        %v1153 = vmul.f32 %v1152, %v1151
        %v1154 = vmul.f32 0.5, %v1153
        %v1155 = vsub.f32 1.5, %v1154
        %v1156 = vmul.f32 %v1151, %v1155
        %v1157 = vmul.f32 %v970, %v1156
        %vm1158 = vcmp.eq.f32.partialorder %v970, inf
        %v1159 = vsel %vm1158, %v970, %v1157
        %vm1160 = vcmp.eq.f32.partialorder %v970, 0.0
        %v1161 = vand.u32 %v970, 2147483648
        %v1162 = vsel %vm1160, %v1161, %v1159
        %v1163 = vadd.f32 %v982, 1e-10
        %v1164 = vadd.f32 %v994, 1e-10
        %v1165 = vadd.f32 %v1006, 1e-10
        %v1166 = vadd.f32 %v1018, 1e-10
        %v1167 = vadd.f32 %v1030, 1e-10
        %v1168 = vadd.f32 %v1042, 1e-10
        %v1169 = vadd.f32 %v1054, 1e-10
        %v1170 = vadd.f32 %v1066, 1e-10
        %v1171 = vadd.f32 %v1078, 1e-10
        %v1172 = vadd.f32 %v1090, 1e-10
        %v1173 = vadd.f32 %v1102, 1e-10
        %v1174 = vadd.f32 %v1114, 1e-10
        %v1175 = vadd.f32 %v1126, 1e-10
        %v1176 = vadd.f32 %v1138, 1e-10
        %v1177 = vadd.f32 %v1150, 1e-10
        %v1178 = vadd.f32 %v1162, 1e-10
        %v1179 = vrcp.pop %v1163
        %v1180 = vmul.f32 %v1163, %v1179
        %v1181 = vsub.f32 1.0, %v1180
        %v1182 = vmul.f32 %v1179, %v1181
        %v1183 = vadd.f32 %v1179, %v1182
        %vm1184 = vweird.f32 %v1163
        %vm1185 = vweird.f32 %v1179
        %vm1186 = vmor %vm1184, %vm1185
        %v1187 = vsel %vm1186, %v1179, %v1183
        %v1188 = vand.u32 2147483647, %v1163
        %vm1189 = vcmp.eq.f32.partialorder %v1188, 8.507059e+37
        %v1190 = vand.u32 %v1163, 2147483648
        %v1191 = vor.u32 1.1754944e-38, %v1190
        %v1192 = vsel %vm1189, %v1191, %v1187
        %v1193 = vmul.f32 1.0, %v1192
        %v1194 = vrcp.pop %v1164
        %v1195 = vmul.f32 %v1164, %v1194
        %v1196 = vsub.f32 1.0, %v1195
        %v1197 = vmul.f32 %v1194, %v1196
        %v1198 = vadd.f32 %v1194, %v1197
        %vm1199 = vweird.f32 %v1164
        %vm1200 = vweird.f32 %v1194
        %vm1201 = vmor %vm1199, %vm1200
        %v1202 = vsel %vm1201, %v1194, %v1198
        %v1203 = vand.u32 2147483647, %v1164
        %vm1204 = vcmp.eq.f32.partialorder %v1203, 8.507059e+37
        %v1205 = vand.u32 %v1164, 2147483648
        %v1206 = vor.u32 1.1754944e-38, %v1205
        %v1207 = vsel %vm1204, %v1206, %v1202
        %v1208 = vmul.f32 1.0, %v1207
        %v1209 = vrcp.pop %v1165
        %v1210 = vmul.f32 %v1165, %v1209
        %v1211 = vsub.f32 1.0, %v1210
        %v1212 = vmul.f32 %v1209, %v1211
        %v1213 = vadd.f32 %v1209, %v1212
        %vm1214 = vweird.f32 %v1165
        %vm1215 = vweird.f32 %v1209
        %vm1216 = vmor %vm1214, %vm1215
        %v1217 = vsel %vm1216, %v1209, %v1213
        %v1218 = vand.u32 2147483647, %v1165
        %vm1219 = vcmp.eq.f32.partialorder %v1218, 8.507059e+37
        %v1220 = vand.u32 %v1165, 2147483648
        %v1221 = vor.u32 1.1754944e-38, %v1220
        %v1222 = vsel %vm1219, %v1221, %v1217
        %v1223 = vmul.f32 1.0, %v1222
        %v1224 = vrcp.pop %v1166
        %v1225 = vmul.f32 %v1166, %v1224
        %v1226 = vsub.f32 1.0, %v1225
        %v1227 = vmul.f32 %v1224, %v1226
        %v1228 = vadd.f32 %v1224, %v1227
        %vm1229 = vweird.f32 %v1166
        %vm1230 = vweird.f32 %v1224
        %vm1231 = vmor %vm1229, %vm1230
        %v1232 = vsel %vm1231, %v1224, %v1228
        %v1233 = vand.u32 2147483647, %v1166
        %vm1234 = vcmp.eq.f32.partialorder %v1233, 8.507059e+37
        %v1235 = vand.u32 %v1166, 2147483648
        %v1236 = vor.u32 1.1754944e-38, %v1235
        %v1237 = vsel %vm1234, %v1236, %v1232
        %v1238 = vmul.f32 1.0, %v1237
        %v1239 = vrcp.pop %v1167
        %v1240 = vmul.f32 %v1167, %v1239
        %v1241 = vsub.f32 1.0, %v1240
        %v1242 = vmul.f32 %v1239, %v1241
        %v1243 = vadd.f32 %v1239, %v1242
        %vm1244 = vweird.f32 %v1167
        %vm1245 = vweird.f32 %v1239
        %vm1246 = vmor %vm1244, %vm1245
        %v1247 = vsel %vm1246, %v1239, %v1243
        %v1248 = vand.u32 2147483647, %v1167
        %vm1249 = vcmp.eq.f32.partialorder %v1248, 8.507059e+37
        %v1250 = vand.u32 %v1167, 2147483648
        %v1251 = vor.u32 1.1754944e-38, %v1250
        %v1252 = vsel %vm1249, %v1251, %v1247
        %v1253 = vmul.f32 1.0, %v1252
        %v1254 = vrcp.pop %v1168
        %v1255 = vmul.f32 %v1168, %v1254
        %v1256 = vsub.f32 1.0, %v1255
        %v1257 = vmul.f32 %v1254, %v1256
        %v1258 = vadd.f32 %v1254, %v1257
        %vm1259 = vweird.f32 %v1168
        %vm1260 = vweird.f32 %v1254
        %vm1261 = vmor %vm1259, %vm1260
        %v1262 = vsel %vm1261, %v1254, %v1258
        %v1263 = vand.u32 2147483647, %v1168
        %vm1264 = vcmp.eq.f32.partialorder %v1263, 8.507059e+37
        %v1265 = vand.u32 %v1168, 2147483648
        %v1266 = vor.u32 1.1754944e-38, %v1265
        %v1267 = vsel %vm1264, %v1266, %v1262
        %v1268 = vmul.f32 1.0, %v1267
        %v1269 = vrcp.pop %v1169
        %v1270 = vmul.f32 %v1169, %v1269
        %v1271 = vsub.f32 1.0, %v1270
        %v1272 = vmul.f32 %v1269, %v1271
        %v1273 = vadd.f32 %v1269, %v1272
        %vm1274 = vweird.f32 %v1169
        %vm1275 = vweird.f32 %v1269
        %vm1276 = vmor %vm1274, %vm1275
        %v1277 = vsel %vm1276, %v1269, %v1273
        %v1278 = vand.u32 2147483647, %v1169
        %vm1279 = vcmp.eq.f32.partialorder %v1278, 8.507059e+37
        %v1280 = vand.u32 %v1169, 2147483648
        %v1281 = vor.u32 1.1754944e-38, %v1280
        %v1282 = vsel %vm1279, %v1281, %v1277
        %v1283 = vmul.f32 1.0, %v1282
        %v1284 = vrcp.pop %v1170
        %v1285 = vmul.f32 %v1170, %v1284
        %v1286 = vsub.f32 1.0, %v1285
        %v1287 = vmul.f32 %v1284, %v1286
        %v1288 = vadd.f32 %v1284, %v1287
        %vm1289 = vweird.f32 %v1170
        %vm1290 = vweird.f32 %v1284
        %vm1291 = vmor %vm1289, %vm1290
        %v1292 = vsel %vm1291, %v1284, %v1288
        %v1293 = vand.u32 2147483647, %v1170
        %vm1294 = vcmp.eq.f32.partialorder %v1293, 8.507059e+37
        %v1295 = vand.u32 %v1170, 2147483648
        %v1296 = vor.u32 1.1754944e-38, %v1295
        %v1297 = vsel %vm1294, %v1296, %v1292
        %v1298 = vmul.f32 1.0, %v1297
        %v1299 = vrcp.pop %v1171
        %v1300 = vmul.f32 %v1171, %v1299
        %v1301 = vsub.f32 1.0, %v1300
        %v1302 = vmul.f32 %v1299, %v1301
        %v1303 = vadd.f32 %v1299, %v1302
        %vm1304 = vweird.f32 %v1171
        %vm1305 = vweird.f32 %v1299
        %vm1306 = vmor %vm1304, %vm1305
        %v1307 = vsel %vm1306, %v1299, %v1303
        %v1308 = vand.u32 2147483647, %v1171
        %vm1309 = vcmp.eq.f32.partialorder %v1308, 8.507059e+37
        %v1310 = vand.u32 %v1171, 2147483648
        %v1311 = vor.u32 1.1754944e-38, %v1310
        %v1312 = vsel %vm1309, %v1311, %v1307
        %v1313 = vmul.f32 1.0, %v1312
        %v1314 = vrcp.pop %v1172
        %v1315 = vmul.f32 %v1172, %v1314
        %v1316 = vsub.f32 1.0, %v1315
        %v1317 = vmul.f32 %v1314, %v1316
        %v1318 = vadd.f32 %v1314, %v1317
        %vm1319 = vweird.f32 %v1172
        %vm1320 = vweird.f32 %v1314
        %vm1321 = vmor %vm1319, %vm1320
        %v1322 = vsel %vm1321, %v1314, %v1318
        %v1323 = vand.u32 2147483647, %v1172
        %vm1324 = vcmp.eq.f32.partialorder %v1323, 8.507059e+37
        %v1325 = vand.u32 %v1172, 2147483648
        %v1326 = vor.u32 1.1754944e-38, %v1325
        %v1327 = vsel %vm1324, %v1326, %v1322
        %v1328 = vmul.f32 1.0, %v1327
        %v1329 = vrcp.pop %v1173
        %v1330 = vmul.f32 %v1173, %v1329
        %v1331 = vsub.f32 1.0, %v1330
        %v1332 = vmul.f32 %v1329, %v1331
        %v1333 = vadd.f32 %v1329, %v1332
        %vm1334 = vweird.f32 %v1173
        %vm1335 = vweird.f32 %v1329
        %vm1336 = vmor %vm1334, %vm1335
        %v1337 = vsel %vm1336, %v1329, %v1333
        %v1338 = vand.u32 2147483647, %v1173
        %vm1339 = vcmp.eq.f32.partialorder %v1338, 8.507059e+37
        %v1340 = vand.u32 %v1173, 2147483648
        %v1341 = vor.u32 1.1754944e-38, %v1340
        %v1342 = vsel %vm1339, %v1341, %v1337
        %v1343 = vmul.f32 1.0, %v1342
        %v1344 = vrcp.pop %v1174
        %v1345 = vmul.f32 %v1174, %v1344
        %v1346 = vsub.f32 1.0, %v1345
        %v1347 = vmul.f32 %v1344, %v1346
        %v1348 = vadd.f32 %v1344, %v1347
        %vm1349 = vweird.f32 %v1174
        %vm1350 = vweird.f32 %v1344
        %vm1351 = vmor %vm1349, %vm1350
        %v1352 = vsel %vm1351, %v1344, %v1348
        %v1353 = vand.u32 2147483647, %v1174
        %vm1354 = vcmp.eq.f32.partialorder %v1353, 8.507059e+37
        %v1355 = vand.u32 %v1174, 2147483648
        %v1356 = vor.u32 1.1754944e-38, %v1355
        %v1357 = vsel %vm1354, %v1356, %v1352
        %v1358 = vmul.f32 1.0, %v1357
        %v1359 = vrcp.pop %v1175
        %v1360 = vmul.f32 %v1175, %v1359
        %v1361 = vsub.f32 1.0, %v1360
        %v1362 = vmul.f32 %v1359, %v1361
        %v1363 = vadd.f32 %v1359, %v1362
        %vm1364 = vweird.f32 %v1175
        %vm1365 = vweird.f32 %v1359
        %vm1366 = vmor %vm1364, %vm1365
        %v1367 = vsel %vm1366, %v1359, %v1363
        %v1368 = vand.u32 2147483647, %v1175
        %vm1369 = vcmp.eq.f32.partialorder %v1368, 8.507059e+37
        %v1370 = vand.u32 %v1175, 2147483648
        %v1371 = vor.u32 1.1754944e-38, %v1370
        %v1372 = vsel %vm1369, %v1371, %v1367
        %v1373 = vmul.f32 1.0, %v1372
        %v1374 = vrcp.pop %v1176
        %v1375 = vmul.f32 %v1176, %v1374
        %v1376 = vsub.f32 1.0, %v1375
        %v1377 = vmul.f32 %v1374, %v1376
        %v1378 = vadd.f32 %v1374, %v1377
        %vm1379 = vweird.f32 %v1176
        %vm1380 = vweird.f32 %v1374
        %vm1381 = vmor %vm1379, %vm1380
        %v1382 = vsel %vm1381, %v1374, %v1378
        %v1383 = vand.u32 2147483647, %v1176
        %vm1384 = vcmp.eq.f32.partialorder %v1383, 8.507059e+37
        %v1385 = vand.u32 %v1176, 2147483648
        %v1386 = vor.u32 1.1754944e-38, %v1385
        %v1387 = vsel %vm1384, %v1386, %v1382
        %v1388 = vmul.f32 1.0, %v1387
        %v1389 = vrcp.pop %v1177
        %v1390 = vmul.f32 %v1177, %v1389
        %v1391 = vsub.f32 1.0, %v1390
        %v1392 = vmul.f32 %v1389, %v1391
        %v1393 = vadd.f32 %v1389, %v1392
        %vm1394 = vweird.f32 %v1177
        %vm1395 = vweird.f32 %v1389
        %vm1396 = vmor %vm1394, %vm1395
        %v1397 = vsel %vm1396, %v1389, %v1393
        %v1398 = vand.u32 2147483647, %v1177
        %vm1399 = vcmp.eq.f32.partialorder %v1398, 8.507059e+37
        %v1400 = vand.u32 %v1177, 2147483648
        %v1401 = vor.u32 1.1754944e-38, %v1400
        %v1402 = vsel %vm1399, %v1401, %v1397
        %v1403 = vmul.f32 1.0, %v1402
        %v1404 = vrcp.pop %v1178
        %v1405 = vmul.f32 %v1178, %v1404
        %v1406 = vsub.f32 1.0, %v1405
        %v1407 = vmul.f32 %v1404, %v1406
        %v1408 = vadd.f32 %v1404, %v1407
        %vm1409 = vweird.f32 %v1178
        %vm1410 = vweird.f32 %v1404
        %vm1411 = vmor %vm1409, %vm1410
        %v1412 = vsel %vm1411, %v1404, %v1408
        %v1413 = vand.u32 2147483647, %v1178
        %vm1414 = vcmp.eq.f32.partialorder %v1413, 8.507059e+37
        %v1415 = vand.u32 %v1178, 2147483648
        %v1416 = vor.u32 1.1754944e-38, %v1415
        %v1417 = vsel %vm1414, %v1416, %v1412
        %v1418 = vmul.f32 1.0, %v1417
        %v1419 = vld [vmem:[%s568] sm:$0xff]
        %v1420 = vld [vmem:[%s568 + $0x8] sm:$0xff]
        %v1421 = vld [vmem:[%s568 + $0x10] sm:$0xff]
        %v1422 = vld [vmem:[%s568 + $0x18] sm:$0xff]
        %v1423 = vld [vmem:[%s568 + $0x20] sm:$0xff]
        %v1424 = vld [vmem:[%s568 + $0x28] sm:$0xff]
        %v1425 = vld [vmem:[%s568 + $0x30] sm:$0xff]
        %v1426 = vld [vmem:[%s568 + $0x38] sm:$0xff]
        %v1427 = vld [vmem:[%s568 + $0x40] sm:$0xff]
        %v1428 = vld [vmem:[%s568 + $0x48] sm:$0xff]
        %v1429 = vld [vmem:[%s568 + $0x50] sm:$0xff]
        %v1430 = vld [vmem:[%s568 + $0x58] sm:$0xff]
        %v1431 = vld [vmem:[%s568 + $0x60] sm:$0xff]
        %v1432 = vld [vmem:[%s568 + $0x68] sm:$0xff]
        %v1433 = vld [vmem:[%s568 + $0x70] sm:$0xff]
        %v1434 = vld [vmem:[%s568 + $0x78] sm:$0xff]
        %v1435 = vrsqrt.pop %v1419
        %v1436 = vmul.f32 %v1435, %v1419
        %v1437 = vmul.f32 %v1436, %v1435
        %v1438 = vmul.f32 0.5, %v1437
        %v1439 = vsub.f32 1.5, %v1438
        %v1440 = vmul.f32 %v1435, %v1439
        %v1441 = vmul.f32 %v1419, %v1440
        %vm1442 = vcmp.eq.f32.partialorder %v1419, inf
        %v1443 = vsel %vm1442, %v1419, %v1441
        %vm1444 = vcmp.eq.f32.partialorder %v1419, 0.0
        %v1445 = vand.u32 %v1419, 2147483648
        %v1446 = vsel %vm1444, %v1445, %v1443
        %v1447 = vrsqrt.pop %v1420
        %v1448 = vmul.f32 %v1447, %v1420
        %v1449 = vmul.f32 %v1448, %v1447
        %v1450 = vmul.f32 0.5, %v1449
        %v1451 = vsub.f32 1.5, %v1450
        %v1452 = vmul.f32 %v1447, %v1451
        %v1453 = vmul.f32 %v1420, %v1452
        %vm1454 = vcmp.eq.f32.partialorder %v1420, inf
        %v1455 = vsel %vm1454, %v1420, %v1453
        %vm1456 = vcmp.eq.f32.partialorder %v1420, 0.0
        %v1457 = vand.u32 %v1420, 2147483648
        %v1458 = vsel %vm1456, %v1457, %v1455
        %v1459 = vrsqrt.pop %v1421
        %v1460 = vmul.f32 %v1459, %v1421
        %v1461 = vmul.f32 %v1460, %v1459
        %v1462 = vmul.f32 0.5, %v1461
        %v1463 = vsub.f32 1.5, %v1462
        %v1464 = vmul.f32 %v1459, %v1463
        %v1465 = vmul.f32 %v1421, %v1464
        %vm1466 = vcmp.eq.f32.partialorder %v1421, inf
        %v1467 = vsel %vm1466, %v1421, %v1465
        %vm1468 = vcmp.eq.f32.partialorder %v1421, 0.0
        %v1469 = vand.u32 %v1421, 2147483648
        %v1470 = vsel %vm1468, %v1469, %v1467
        %v1471 = vrsqrt.pop %v1422
        %v1472 = vmul.f32 %v1471, %v1422
        %v1473 = vmul.f32 %v1472, %v1471
        %v1474 = vmul.f32 0.5, %v1473
        %v1475 = vsub.f32 1.5, %v1474
        %v1476 = vmul.f32 %v1471, %v1475
        %v1477 = vmul.f32 %v1422, %v1476
        %vm1478 = vcmp.eq.f32.partialorder %v1422, inf
        %v1479 = vsel %vm1478, %v1422, %v1477
        %vm1480 = vcmp.eq.f32.partialorder %v1422, 0.0
        %v1481 = vand.u32 %v1422, 2147483648
        %v1482 = vsel %vm1480, %v1481, %v1479
        %v1483 = vrsqrt.pop %v1423
        %v1484 = vmul.f32 %v1483, %v1423
        %v1485 = vmul.f32 %v1484, %v1483
        %v1486 = vmul.f32 0.5, %v1485
        %v1487 = vsub.f32 1.5, %v1486
        %v1488 = vmul.f32 %v1483, %v1487
        %v1489 = vmul.f32 %v1423, %v1488
        %vm1490 = vcmp.eq.f32.partialorder %v1423, inf
        %v1491 = vsel %vm1490, %v1423, %v1489
        %vm1492 = vcmp.eq.f32.partialorder %v1423, 0.0
        %v1493 = vand.u32 %v1423, 2147483648
        %v1494 = vsel %vm1492, %v1493, %v1491
        %v1495 = vrsqrt.pop %v1424
        %v1496 = vmul.f32 %v1495, %v1424
        %v1497 = vmul.f32 %v1496, %v1495
        %v1498 = vmul.f32 0.5, %v1497
        %v1499 = vsub.f32 1.5, %v1498
        %v1500 = vmul.f32 %v1495, %v1499
        %v1501 = vmul.f32 %v1424, %v1500
        %vm1502 = vcmp.eq.f32.partialorder %v1424, inf
        %v1503 = vsel %vm1502, %v1424, %v1501
        %vm1504 = vcmp.eq.f32.partialorder %v1424, 0.0
        %v1505 = vand.u32 %v1424, 2147483648
        %v1506 = vsel %vm1504, %v1505, %v1503
        %v1507 = vrsqrt.pop %v1425
        %v1508 = vmul.f32 %v1507, %v1425
        %v1509 = vmul.f32 %v1508, %v1507
        %v1510 = vmul.f32 0.5, %v1509
        %v1511 = vsub.f32 1.5, %v1510
        %v1512 = vmul.f32 %v1507, %v1511
        %v1513 = vmul.f32 %v1425, %v1512
        %vm1514 = vcmp.eq.f32.partialorder %v1425, inf
        %v1515 = vsel %vm1514, %v1425, %v1513
        %vm1516 = vcmp.eq.f32.partialorder %v1425, 0.0
        %v1517 = vand.u32 %v1425, 2147483648
        %v1518 = vsel %vm1516, %v1517, %v1515
        %v1519 = vrsqrt.pop %v1426
        %v1520 = vmul.f32 %v1519, %v1426
        %v1521 = vmul.f32 %v1520, %v1519
        %v1522 = vmul.f32 0.5, %v1521
        %v1523 = vsub.f32 1.5, %v1522
        %v1524 = vmul.f32 %v1519, %v1523
        %v1525 = vmul.f32 %v1426, %v1524
        %vm1526 = vcmp.eq.f32.partialorder %v1426, inf
        %v1527 = vsel %vm1526, %v1426, %v1525
        %vm1528 = vcmp.eq.f32.partialorder %v1426, 0.0
        %v1529 = vand.u32 %v1426, 2147483648
        %v1530 = vsel %vm1528, %v1529, %v1527
        %v1531 = vrsqrt.pop %v1427
        %v1532 = vmul.f32 %v1531, %v1427
        %v1533 = vmul.f32 %v1532, %v1531
        %v1534 = vmul.f32 0.5, %v1533
        %v1535 = vsub.f32 1.5, %v1534
        %v1536 = vmul.f32 %v1531, %v1535
        %v1537 = vmul.f32 %v1427, %v1536
        %vm1538 = vcmp.eq.f32.partialorder %v1427, inf
        %v1539 = vsel %vm1538, %v1427, %v1537
        %vm1540 = vcmp.eq.f32.partialorder %v1427, 0.0
        %v1541 = vand.u32 %v1427, 2147483648
        %v1542 = vsel %vm1540, %v1541, %v1539
        %v1543 = vrsqrt.pop %v1428
        %v1544 = vmul.f32 %v1543, %v1428
        %v1545 = vmul.f32 %v1544, %v1543
        %v1546 = vmul.f32 0.5, %v1545
        %v1547 = vsub.f32 1.5, %v1546
        %v1548 = vmul.f32 %v1543, %v1547
        %v1549 = vmul.f32 %v1428, %v1548
        %vm1550 = vcmp.eq.f32.partialorder %v1428, inf
        %v1551 = vsel %vm1550, %v1428, %v1549
        %vm1552 = vcmp.eq.f32.partialorder %v1428, 0.0
        %v1553 = vand.u32 %v1428, 2147483648
        %v1554 = vsel %vm1552, %v1553, %v1551
        %v1555 = vrsqrt.pop %v1429
        %v1556 = vmul.f32 %v1555, %v1429
        %v1557 = vmul.f32 %v1556, %v1555
        %v1558 = vmul.f32 0.5, %v1557
        %v1559 = vsub.f32 1.5, %v1558
        %v1560 = vmul.f32 %v1555, %v1559
        %v1561 = vmul.f32 %v1429, %v1560
        %vm1562 = vcmp.eq.f32.partialorder %v1429, inf
        %v1563 = vsel %vm1562, %v1429, %v1561
        %vm1564 = vcmp.eq.f32.partialorder %v1429, 0.0
        %v1565 = vand.u32 %v1429, 2147483648
        %v1566 = vsel %vm1564, %v1565, %v1563
        %v1567 = vrsqrt.pop %v1430
        %v1568 = vmul.f32 %v1567, %v1430
        %v1569 = vmul.f32 %v1568, %v1567
        %v1570 = vmul.f32 0.5, %v1569
        %v1571 = vsub.f32 1.5, %v1570
        %v1572 = vmul.f32 %v1567, %v1571
        %v1573 = vmul.f32 %v1430, %v1572
        %vm1574 = vcmp.eq.f32.partialorder %v1430, inf
        %v1575 = vsel %vm1574, %v1430, %v1573
        %vm1576 = vcmp.eq.f32.partialorder %v1430, 0.0
        %v1577 = vand.u32 %v1430, 2147483648
        %v1578 = vsel %vm1576, %v1577, %v1575
        %v1579 = vrsqrt.pop %v1431
        %v1580 = vmul.f32 %v1579, %v1431
        %v1581 = vmul.f32 %v1580, %v1579
        %v1582 = vmul.f32 0.5, %v1581
        %v1583 = vsub.f32 1.5, %v1582
        %v1584 = vmul.f32 %v1579, %v1583
        %v1585 = vmul.f32 %v1431, %v1584
        %vm1586 = vcmp.eq.f32.partialorder %v1431, inf
        %v1587 = vsel %vm1586, %v1431, %v1585
        %vm1588 = vcmp.eq.f32.partialorder %v1431, 0.0
        %v1589 = vand.u32 %v1431, 2147483648
        %v1590 = vsel %vm1588, %v1589, %v1587
        %v1591 = vrsqrt.pop %v1432
        %v1592 = vmul.f32 %v1591, %v1432
        %v1593 = vmul.f32 %v1592, %v1591
        %v1594 = vmul.f32 0.5, %v1593
        %v1595 = vsub.f32 1.5, %v1594
        %v1596 = vmul.f32 %v1591, %v1595
        %v1597 = vmul.f32 %v1432, %v1596
        %vm1598 = vcmp.eq.f32.partialorder %v1432, inf
        %v1599 = vsel %vm1598, %v1432, %v1597
        %vm1600 = vcmp.eq.f32.partialorder %v1432, 0.0
        %v1601 = vand.u32 %v1432, 2147483648
        %v1602 = vsel %vm1600, %v1601, %v1599
        %v1603 = vrsqrt.pop %v1433
        %v1604 = vmul.f32 %v1603, %v1433
        %v1605 = vmul.f32 %v1604, %v1603
        %v1606 = vmul.f32 0.5, %v1605
        %v1607 = vsub.f32 1.5, %v1606
        %v1608 = vmul.f32 %v1603, %v1607
        %v1609 = vmul.f32 %v1433, %v1608
        %vm1610 = vcmp.eq.f32.partialorder %v1433, inf
        %v1611 = vsel %vm1610, %v1433, %v1609
        %vm1612 = vcmp.eq.f32.partialorder %v1433, 0.0
        %v1613 = vand.u32 %v1433, 2147483648
        %v1614 = vsel %vm1612, %v1613, %v1611
        %v1615 = vrsqrt.pop %v1434
        %v1616 = vmul.f32 %v1615, %v1434
        %v1617 = vmul.f32 %v1616, %v1615
        %v1618 = vmul.f32 0.5, %v1617
        %v1619 = vsub.f32 1.5, %v1618
        %v1620 = vmul.f32 %v1615, %v1619
        %v1621 = vmul.f32 %v1434, %v1620
        %vm1622 = vcmp.eq.f32.partialorder %v1434, inf
        %v1623 = vsel %vm1622, %v1434, %v1621
        %vm1624 = vcmp.eq.f32.partialorder %v1434, 0.0
        %v1625 = vand.u32 %v1434, 2147483648
        %v1626 = vsel %vm1624, %v1625, %v1623
        %v1627 = vadd.f32 %v1446, 1e-10
        %v1628 = vadd.f32 %v1458, 1e-10
        %v1629 = vadd.f32 %v1470, 1e-10
        %v1630 = vadd.f32 %v1482, 1e-10
        %v1631 = vadd.f32 %v1494, 1e-10
        %v1632 = vadd.f32 %v1506, 1e-10
        %v1633 = vadd.f32 %v1518, 1e-10
        %v1634 = vadd.f32 %v1530, 1e-10
        %v1635 = vadd.f32 %v1542, 1e-10
        %v1636 = vadd.f32 %v1554, 1e-10
        %v1637 = vadd.f32 %v1566, 1e-10
        %v1638 = vadd.f32 %v1578, 1e-10
        %v1639 = vadd.f32 %v1590, 1e-10
        %v1640 = vadd.f32 %v1602, 1e-10
        %v1641 = vadd.f32 %v1614, 1e-10
        %v1642 = vadd.f32 %v1626, 1e-10
        %v1643 = vrcp.pop %v1627
        %v1644 = vmul.f32 %v1627, %v1643
        %v1645 = vsub.f32 1.0, %v1644
        %v1646 = vmul.f32 %v1643, %v1645
        %v1647 = vadd.f32 %v1643, %v1646
        %vm1648 = vweird.f32 %v1627
        %vm1649 = vweird.f32 %v1643
        %vm1650 = vmor %vm1648, %vm1649
        %v1651 = vsel %vm1650, %v1643, %v1647
        %v1652 = vand.u32 2147483647, %v1627
        %vm1653 = vcmp.eq.f32.partialorder %v1652, 8.507059e+37
        %v1654 = vand.u32 %v1627, 2147483648
        %v1655 = vor.u32 1.1754944e-38, %v1654
        %v1656 = vsel %vm1653, %v1655, %v1651
        %v1657 = vmul.f32 1.0, %v1656
        %v1658 = vrcp.pop %v1628
        %v1659 = vmul.f32 %v1628, %v1658
        %v1660 = vsub.f32 1.0, %v1659
        %v1661 = vmul.f32 %v1658, %v1660
        %v1662 = vadd.f32 %v1658, %v1661
        %vm1663 = vweird.f32 %v1628
        %vm1664 = vweird.f32 %v1658
        %vm1665 = vmor %vm1663, %vm1664
        %v1666 = vsel %vm1665, %v1658, %v1662
        %v1667 = vand.u32 2147483647, %v1628
        %vm1668 = vcmp.eq.f32.partialorder %v1667, 8.507059e+37
        %v1669 = vand.u32 %v1628, 2147483648
        %v1670 = vor.u32 1.1754944e-38, %v1669
        %v1671 = vsel %vm1668, %v1670, %v1666
        %v1672 = vmul.f32 1.0, %v1671
        %v1673 = vrcp.pop %v1629
        %v1674 = vmul.f32 %v1629, %v1673
        %v1675 = vsub.f32 1.0, %v1674
        %v1676 = vmul.f32 %v1673, %v1675
        %v1677 = vadd.f32 %v1673, %v1676
        %vm1678 = vweird.f32 %v1629
        %vm1679 = vweird.f32 %v1673
        %vm1680 = vmor %vm1678, %vm1679
        %v1681 = vsel %vm1680, %v1673, %v1677
        %v1682 = vand.u32 2147483647, %v1629
        %vm1683 = vcmp.eq.f32.partialorder %v1682, 8.507059e+37
        %v1684 = vand.u32 %v1629, 2147483648
        %v1685 = vor.u32 1.1754944e-38, %v1684
        %v1686 = vsel %vm1683, %v1685, %v1681
        %v1687 = vmul.f32 1.0, %v1686
        %v1688 = vrcp.pop %v1630
        %v1689 = vmul.f32 %v1630, %v1688
        %v1690 = vsub.f32 1.0, %v1689
        %v1691 = vmul.f32 %v1688, %v1690
        %v1692 = vadd.f32 %v1688, %v1691
        %vm1693 = vweird.f32 %v1630
        %vm1694 = vweird.f32 %v1688
        %vm1695 = vmor %vm1693, %vm1694
        %v1696 = vsel %vm1695, %v1688, %v1692
        %v1697 = vand.u32 2147483647, %v1630
        %vm1698 = vcmp.eq.f32.partialorder %v1697, 8.507059e+37
        %v1699 = vand.u32 %v1630, 2147483648
        %v1700 = vor.u32 1.1754944e-38, %v1699
        %v1701 = vsel %vm1698, %v1700, %v1696
        %v1702 = vmul.f32 1.0, %v1701
        %v1703 = vrcp.pop %v1631
        %v1704 = vmul.f32 %v1631, %v1703
        %v1705 = vsub.f32 1.0, %v1704
        %v1706 = vmul.f32 %v1703, %v1705
        %v1707 = vadd.f32 %v1703, %v1706
        %vm1708 = vweird.f32 %v1631
        %vm1709 = vweird.f32 %v1703
        %vm1710 = vmor %vm1708, %vm1709
        %v1711 = vsel %vm1710, %v1703, %v1707
        %v1712 = vand.u32 2147483647, %v1631
        %vm1713 = vcmp.eq.f32.partialorder %v1712, 8.507059e+37
        %v1714 = vand.u32 %v1631, 2147483648
        %v1715 = vor.u32 1.1754944e-38, %v1714
        %v1716 = vsel %vm1713, %v1715, %v1711
        %v1717 = vmul.f32 1.0, %v1716
        %v1718 = vrcp.pop %v1632
        %v1719 = vmul.f32 %v1632, %v1718
        %v1720 = vsub.f32 1.0, %v1719
        %v1721 = vmul.f32 %v1718, %v1720
        %v1722 = vadd.f32 %v1718, %v1721
        %vm1723 = vweird.f32 %v1632
        %vm1724 = vweird.f32 %v1718
        %vm1725 = vmor %vm1723, %vm1724
        %v1726 = vsel %vm1725, %v1718, %v1722
        %v1727 = vand.u32 2147483647, %v1632
        %vm1728 = vcmp.eq.f32.partialorder %v1727, 8.507059e+37
        %v1729 = vand.u32 %v1632, 2147483648
        %v1730 = vor.u32 1.1754944e-38, %v1729
        %v1731 = vsel %vm1728, %v1730, %v1726
        %v1732 = vmul.f32 1.0, %v1731
        %v1733 = vrcp.pop %v1633
        %v1734 = vmul.f32 %v1633, %v1733
        %v1735 = vsub.f32 1.0, %v1734
        %v1736 = vmul.f32 %v1733, %v1735
        %v1737 = vadd.f32 %v1733, %v1736
        %vm1738 = vweird.f32 %v1633
        %vm1739 = vweird.f32 %v1733
        %vm1740 = vmor %vm1738, %vm1739
        %v1741 = vsel %vm1740, %v1733, %v1737
        %v1742 = vand.u32 2147483647, %v1633
        %vm1743 = vcmp.eq.f32.partialorder %v1742, 8.507059e+37
        %v1744 = vand.u32 %v1633, 2147483648
        %v1745 = vor.u32 1.1754944e-38, %v1744
        %v1746 = vsel %vm1743, %v1745, %v1741
        %v1747 = vmul.f32 1.0, %v1746
        %v1748 = vrcp.pop %v1634
        %v1749 = vmul.f32 %v1634, %v1748
        %v1750 = vsub.f32 1.0, %v1749
        %v1751 = vmul.f32 %v1748, %v1750
        %v1752 = vadd.f32 %v1748, %v1751
        %vm1753 = vweird.f32 %v1634
        %vm1754 = vweird.f32 %v1748
        %vm1755 = vmor %vm1753, %vm1754
        %v1756 = vsel %vm1755, %v1748, %v1752
        %v1757 = vand.u32 2147483647, %v1634
        %vm1758 = vcmp.eq.f32.partialorder %v1757, 8.507059e+37
        %v1759 = vand.u32 %v1634, 2147483648
        %v1760 = vor.u32 1.1754944e-38, %v1759
        %v1761 = vsel %vm1758, %v1760, %v1756
        %v1762 = vmul.f32 1.0, %v1761
        %v1763 = vrcp.pop %v1635
        %v1764 = vmul.f32 %v1635, %v1763
        %v1765 = vsub.f32 1.0, %v1764
        %v1766 = vmul.f32 %v1763, %v1765
        %v1767 = vadd.f32 %v1763, %v1766
        %vm1768 = vweird.f32 %v1635
        %vm1769 = vweird.f32 %v1763
        %vm1770 = vmor %vm1768, %vm1769
        %v1771 = vsel %vm1770, %v1763, %v1767
        %v1772 = vand.u32 2147483647, %v1635
        %vm1773 = vcmp.eq.f32.partialorder %v1772, 8.507059e+37
        %v1774 = vand.u32 %v1635, 2147483648
        %v1775 = vor.u32 1.1754944e-38, %v1774
        %v1776 = vsel %vm1773, %v1775, %v1771
        %v1777 = vmul.f32 1.0, %v1776
        %v1778 = vrcp.pop %v1636
        %v1779 = vmul.f32 %v1636, %v1778
        %v1780 = vsub.f32 1.0, %v1779
        %v1781 = vmul.f32 %v1778, %v1780
        %v1782 = vadd.f32 %v1778, %v1781
        %vm1783 = vweird.f32 %v1636
        %vm1784 = vweird.f32 %v1778
        %vm1785 = vmor %vm1783, %vm1784
        %v1786 = vsel %vm1785, %v1778, %v1782
        %v1787 = vand.u32 2147483647, %v1636
        %vm1788 = vcmp.eq.f32.partialorder %v1787, 8.507059e+37
        %v1789 = vand.u32 %v1636, 2147483648
        %v1790 = vor.u32 1.1754944e-38, %v1789
        %v1791 = vsel %vm1788, %v1790, %v1786
        %v1792 = vmul.f32 1.0, %v1791
        %v1793 = vrcp.pop %v1637
        %v1794 = vmul.f32 %v1637, %v1793
        %v1795 = vsub.f32 1.0, %v1794
        %v1796 = vmul.f32 %v1793, %v1795
        %v1797 = vadd.f32 %v1793, %v1796
        %vm1798 = vweird.f32 %v1637
        %vm1799 = vweird.f32 %v1793
        %vm1800 = vmor %vm1798, %vm1799
        %v1801 = vsel %vm1800, %v1793, %v1797
        %v1802 = vand.u32 2147483647, %v1637
        %vm1803 = vcmp.eq.f32.partialorder %v1802, 8.507059e+37
        %v1804 = vand.u32 %v1637, 2147483648
        %v1805 = vor.u32 1.1754944e-38, %v1804
        %v1806 = vsel %vm1803, %v1805, %v1801
        %v1807 = vmul.f32 1.0, %v1806
        %v1808 = vrcp.pop %v1638
        %v1809 = vmul.f32 %v1638, %v1808
        %v1810 = vsub.f32 1.0, %v1809
        %v1811 = vmul.f32 %v1808, %v1810
        %v1812 = vadd.f32 %v1808, %v1811
        %vm1813 = vweird.f32 %v1638
        %vm1814 = vweird.f32 %v1808
        %vm1815 = vmor %vm1813, %vm1814
        %v1816 = vsel %vm1815, %v1808, %v1812
        %v1817 = vand.u32 2147483647, %v1638
        %vm1818 = vcmp.eq.f32.partialorder %v1817, 8.507059e+37
        %v1819 = vand.u32 %v1638, 2147483648
        %v1820 = vor.u32 1.1754944e-38, %v1819
        %v1821 = vsel %vm1818, %v1820, %v1816
        %v1822 = vmul.f32 1.0, %v1821
        %v1823 = vrcp.pop %v1639
        %v1824 = vmul.f32 %v1639, %v1823
        %v1825 = vsub.f32 1.0, %v1824
        %v1826 = vmul.f32 %v1823, %v1825
        %v1827 = vadd.f32 %v1823, %v1826
        %vm1828 = vweird.f32 %v1639
        %vm1829 = vweird.f32 %v1823
        %vm1830 = vmor %vm1828, %vm1829
        %v1831 = vsel %vm1830, %v1823, %v1827
        %v1832 = vand.u32 2147483647, %v1639
        %vm1833 = vcmp.eq.f32.partialorder %v1832, 8.507059e+37
        %v1834 = vand.u32 %v1639, 2147483648
        %v1835 = vor.u32 1.1754944e-38, %v1834
        %v1836 = vsel %vm1833, %v1835, %v1831
        %v1837 = vmul.f32 1.0, %v1836
        %v1838 = vrcp.pop %v1640
        %v1839 = vmul.f32 %v1640, %v1838
        %v1840 = vsub.f32 1.0, %v1839
        %v1841 = vmul.f32 %v1838, %v1840
        %v1842 = vadd.f32 %v1838, %v1841
        %vm1843 = vweird.f32 %v1640
        %vm1844 = vweird.f32 %v1838
        %vm1845 = vmor %vm1843, %vm1844
        %v1846 = vsel %vm1845, %v1838, %v1842
        %v1847 = vand.u32 2147483647, %v1640
        %vm1848 = vcmp.eq.f32.partialorder %v1847, 8.507059e+37
        %v1849 = vand.u32 %v1640, 2147483648
        %v1850 = vor.u32 1.1754944e-38, %v1849
        %v1851 = vsel %vm1848, %v1850, %v1846
        %v1852 = vmul.f32 1.0, %v1851
        %v1853 = vrcp.pop %v1641
        %v1854 = vmul.f32 %v1641, %v1853
        %v1855 = vsub.f32 1.0, %v1854
        %v1856 = vmul.f32 %v1853, %v1855
        %v1857 = vadd.f32 %v1853, %v1856
        %vm1858 = vweird.f32 %v1641
        %vm1859 = vweird.f32 %v1853
        %vm1860 = vmor %vm1858, %vm1859
        %v1861 = vsel %vm1860, %v1853, %v1857
        %v1862 = vand.u32 2147483647, %v1641
        %vm1863 = vcmp.eq.f32.partialorder %v1862, 8.507059e+37
        %v1864 = vand.u32 %v1641, 2147483648
        %v1865 = vor.u32 1.1754944e-38, %v1864
        %v1866 = vsel %vm1863, %v1865, %v1861
        %v1867 = vmul.f32 1.0, %v1866
        %v1868 = vrcp.pop %v1642
        %v1869 = vmul.f32 %v1642, %v1868
        %v1870 = vsub.f32 1.0, %v1869
        %v1871 = vmul.f32 %v1868, %v1870
        %v1872 = vadd.f32 %v1868, %v1871
        %vm1873 = vweird.f32 %v1642
        %vm1874 = vweird.f32 %v1868
        %vm1875 = vmor %vm1873, %vm1874
        %v1876 = vsel %vm1875, %v1868, %v1872
        %v1877 = vand.u32 2147483647, %v1642
        %vm1878 = vcmp.eq.f32.partialorder %v1877, 8.507059e+37
        %v1879 = vand.u32 %v1642, 2147483648
        %v1880 = vor.u32 1.1754944e-38, %v1879
        %v1881 = vsel %vm1878, %v1880, %v1876
        %v1882 = vmul.f32 1.0, %v1881
        %1884 = vset.pattern.permute.xlu0 0
        %1885 = vperm.xlu0 %1884, %v1193
        %v1886 = vpop.permute.xlu0 %1885
        %1889 = vset.pattern.permute.xlu0 0
        %1890 = vperm.xlu0 %1889, %v1208
        %v1891 = vpop.permute.xlu0 %1890
        %1894 = vset.pattern.permute.xlu0 0
        %1895 = vperm.xlu0 %1894, %v1223
        %v1896 = vpop.permute.xlu0 %1895
        %1899 = vset.pattern.permute.xlu0 0
        %1900 = vperm.xlu0 %1899, %v1238
        %v1901 = vpop.permute.xlu0 %1900
        %1904 = vset.pattern.permute.xlu0 0
        %1905 = vperm.xlu0 %1904, %v1253
        %v1906 = vpop.permute.xlu0 %1905
        %1909 = vset.pattern.permute.xlu0 0
        %1910 = vperm.xlu0 %1909, %v1268
        %v1911 = vpop.permute.xlu0 %1910
        %1914 = vset.pattern.permute.xlu0 0
        %1915 = vperm.xlu0 %1914, %v1283
        %v1916 = vpop.permute.xlu0 %1915
        %1919 = vset.pattern.permute.xlu0 0
        %1920 = vperm.xlu0 %1919, %v1298
        %v1921 = vpop.permute.xlu0 %1920
        %1924 = vset.pattern.permute.xlu0 0
        %1925 = vperm.xlu0 %1924, %v1313
        %v1926 = vpop.permute.xlu0 %1925
        %1929 = vset.pattern.permute.xlu0 0
        %1930 = vperm.xlu0 %1929, %v1328
        %v1931 = vpop.permute.xlu0 %1930
        %1934 = vset.pattern.permute.xlu0 0
        %1935 = vperm.xlu0 %1934, %v1343
        %v1936 = vpop.permute.xlu0 %1935
        %1939 = vset.pattern.permute.xlu0 0
        %1940 = vperm.xlu0 %1939, %v1358
        %v1941 = vpop.permute.xlu0 %1940
        %1944 = vset.pattern.permute.xlu0 0
        %1945 = vperm.xlu0 %1944, %v1373
        %v1946 = vpop.permute.xlu0 %1945
        %1949 = vset.pattern.permute.xlu0 0
        %1950 = vperm.xlu0 %1949, %v1388
        %v1951 = vpop.permute.xlu0 %1950
        %1954 = vset.pattern.permute.xlu0 0
        %1955 = vperm.xlu0 %1954, %v1403
        %v1956 = vpop.permute.xlu0 %1955
        %1959 = vset.pattern.permute.xlu0 0
        %1960 = vperm.xlu0 %1959, %v1418
        %v1961 = vpop.permute.xlu0 %1960
        %v1963 = vmul.f32 %v1886, %v939
        %v1964 = vmul.f32 %v1891, %v940
        %v1965 = vmul.f32 %v1896, %v941
        %v1966 = vmul.f32 %v1901, %v942
        %v1967 = vmul.f32 %v1906, %v943
        %v1968 = vmul.f32 %v1911, %v944
        %v1969 = vmul.f32 %v1916, %v945
        %v1970 = vmul.f32 %v1921, %v946
        %v1971 = vmul.f32 %v1926, %v947
        %v1972 = vmul.f32 %v1931, %v948
        %v1973 = vmul.f32 %v1936, %v949
        %v1974 = vmul.f32 %v1941, %v950
        %v1975 = vmul.f32 %v1946, %v951
        %v1976 = vmul.f32 %v1951, %v952
        %v1977 = vmul.f32 %v1956, %v953
        %v1978 = vmul.f32 %v1961, %v954
        %1979 = vxpose.xlu0.b32.start [1/16] %v1657, 128
        %1980 = vxpose.xlu0.b32.cont [2/16] %v1672, 128
        %1981 = vxpose.xlu0.b32.cont [3/16] %v1687, 128
        %1982 = vxpose.xlu0.b32.cont [4/16] %v1702, 128
        %1983 = vxpose.xlu0.b32.cont [5/16] %v1717, 128
        %1984 = vxpose.xlu0.b32.cont [6/16] %v1732, 128
        %1985 = vxpose.xlu0.b32.cont [7/16] %v1747, 128
        %1986 = vxpose.xlu0.b32.cont [8/16] %v1762, 128
        %1987 = vxpose.xlu0.b32.cont [9/16] %v1777, 128
        %1988 = vxpose.xlu0.b32.cont [10/16] %v1792, 128
        %1989 = vxpose.xlu0.b32.cont [11/16] %v1807, 128
        %1990 = vxpose.xlu0.b32.cont [12/16] %v1822, 128
        %1991 = vxpose.xlu0.b32.cont [13/16] %v1837, 128
        %1992 = vxpose.xlu0.b32.cont [14/16] %v1852, 128
        %1993 = vxpose.xlu0.b32.cont [15/16] %v1867, 128
        %1994 = vxpose.xlu0.b32.end [16/16] %v1882, 128
        %v1995 = vpop.trf.xlu0
        %v1996 = vpop.trf.xlu0
        %v1997 = vpop.trf.xlu0
        %v1998 = vpop.trf.xlu0
        %v1999 = vpop.trf.xlu0
        %v2000 = vpop.trf.xlu0
        %v2001 = vpop.trf.xlu0
        %v2002 = vpop.trf.xlu0
        %v2003 = vpop.trf.xlu0
        %v2004 = vpop.trf.xlu0
        %v2005 = vpop.trf.xlu0
        %v2006 = vpop.trf.xlu0
        %v2007 = vpop.trf.xlu0
        %v2008 = vpop.trf.xlu0
        %v2009 = vpop.trf.xlu0
        %v2010 = vpop.trf.xlu0
        %v2011 = vperm.slane %v1995, 0
        %v2012 = vmul.f32 %v1963, %v2011
        %v2013 = vmul.f32 %v1964, %v2011
        %v2014 = vmul.f32 %v1965, %v2011
        %v2015 = vmul.f32 %v1966, %v2011
        %v2016 = vmul.f32 %v1967, %v2011
        %v2017 = vmul.f32 %v1968, %v2011
        %v2018 = vmul.f32 %v1969, %v2011
        %v2019 = vmul.f32 %v1970, %v2011
        %v2020 = vmul.f32 %v1971, %v2011
        %v2021 = vmul.f32 %v1972, %v2011
        %v2022 = vmul.f32 %v1973, %v2011
        %v2023 = vmul.f32 %v1974, %v2011
        %v2024 = vmul.f32 %v1975, %v2011
        %v2025 = vmul.f32 %v1976, %v2011
        %v2026 = vmul.f32 %v1977, %v2011
        %v2027 = vmul.f32 %v1978, %v2011
        %2028 = vst [vmem:[%s543] sm:$0xff] %v2012
        %2029 = vst [vmem:[%s543 + $0x8] sm:$0xff] %v2013
        %2030 = vst [vmem:[%s543 + $0x10] sm:$0xff] %v2014
        %2031 = vst [vmem:[%s543 + $0x18] sm:$0xff] %v2015
        %2032 = vst [vmem:[%s543 + $0x20] sm:$0xff] %v2016
        %2033 = vst [vmem:[%s543 + $0x28] sm:$0xff] %v2017
        %2034 = vst [vmem:[%s543 + $0x30] sm:$0xff] %v2018
        %2035 = vst [vmem:[%s543 + $0x38] sm:$0xff] %v2019
        %2036 = vst [vmem:[%s543 + $0x40] sm:$0xff] %v2020
        %2037 = vst [vmem:[%s543 + $0x48] sm:$0xff] %v2021
        %2038 = vst [vmem:[%s543 + $0x50] sm:$0xff] %v2022
        %2039 = vst [vmem:[%s543 + $0x58] sm:$0xff] %v2023
        %2040 = vst [vmem:[%s543 + $0x60] sm:$0xff] %v2024
        %2041 = vst [vmem:[%s543 + $0x68] sm:$0xff] %v2025
        %2042 = vst [vmem:[%s543 + $0x70] sm:$0xff] %v2026
        %2043 = vst [vmem:[%s543 + $0x78] sm:$0xff] %v2027
        %s2044 = sand.u32 %s199, 1
        %s2045 = sand.u32 %s199, 1
        %s2046 = smul.addr %s2045, 128
        %s2047 = scalar_lea.vmem [#allocation4], %s2046
        // Predicated region
        $region121: #{gcn_dae_forward.10} parent=111 // pred_check
          %p2048 = pneg %p209
        $region122: #{gcn_dae_forward.10} parent=111 // pred_check_branch
          %2050 = sbr.rel (%p2048) target = $region124
        $region123: #{gcn_dae_forward.10} parent=111 // pred_region
          %s2051 = smul.u32 16, %s21
          %s2052 = smul.addr %s2051, 2
          %s2053 = sadd.s32 %s22, %s2052
          %s2054 = smul.addr %s2053, 8
          %s2055 = scalar_lea.vmem %s6, %s2054
          // Predicated region
          $region125: #{gcn_dae_forward.10} parent=123 // pred_check
            _
          $region126: #{gcn_dae_forward.10} parent=123 // pred_check_branch
            %2057 = sbr.rel (0) target = $region128
          $region127: #{gcn_dae_forward.10} parent=123 // pred_region
            // Predicated region
            $region129: #{gcn_dae_forward.10} parent=127 // pred_check
              _
            $region130: #{gcn_dae_forward.10} parent=127 // pred_check_branch
              %2059 = sbr.rel (0) target = $region132
            $region131: #{gcn_dae_forward.10} parent=127 // pred_region
              // Predicated region
              $region144: #{gcn_dae_forward.10} parent=131 // pred_check
                _
              $region145: #{gcn_dae_forward.10} parent=131 // pred_check_branch
                %2105 = sbr.rel (0) target = $region147
              $region146: #{gcn_dae_forward.10} parent=131 // pred_region
                loop: start=0, step=1, limit=1
                $region148: #{gcn_dae_forward.10} parent=146 // loop_pre_header
                  _
                $region149: #{gcn_dae_forward.10} parent=146 // loop_header
                  %s2107 = sphi 0, %s2111
                  %p2108 = scmp.ge.s32.totalorder %s2107, 1
                  %s2112 = sphi %s2047, %s2047
                  %s2113 = sphi %s2055, %s2055
                $region150: #{gcn_dae_forward.10} parent=146 // loop_header_branch
                  %2110 = sbr.rel (%p2108) target = $region154
                $region151: #{gcn_dae_forward.10} parent=146 // loop_body
                  %v2114 = vld [vmem:[%s2112] sm:$0xff]
                  %2115 = vst [vmem:[%s2113] sm:$0xff] %v2114
                  %v2116 = vld [vmem:[%s2112 + $0x8] sm:$0xff]
                  %2117 = vst [vmem:[%s2113 + $0x10] sm:$0xff] %v2116
                  %v2118 = vld [vmem:[%s2112 + $0x10] sm:$0xff]
                  %2119 = vst [vmem:[%s2113 + $0x20] sm:$0xff] %v2118
                  %v2120 = vld [vmem:[%s2112 + $0x18] sm:$0xff]
                  %2121 = vst [vmem:[%s2113 + $0x30] sm:$0xff] %v2120
                  %v2122 = vld [vmem:[%s2112 + $0x20] sm:$0xff]
                  %2123 = vst [vmem:[%s2113 + $0x40] sm:$0xff] %v2122
                  %v2124 = vld [vmem:[%s2112 + $0x28] sm:$0xff]
                  %2125 = vst [vmem:[%s2113 + $0x50] sm:$0xff] %v2124
                  %v2126 = vld [vmem:[%s2112 + $0x30] sm:$0xff]
                  %2127 = vst [vmem:[%s2113 + $0x60] sm:$0xff] %v2126
                  %v2128 = vld [vmem:[%s2112 + $0x38] sm:$0xff]
                  %2129 = vst [vmem:[%s2113 + $0x70] sm:$0xff] %v2128
                  %v2130 = vld [vmem:[%s2112 + $0x40] sm:$0xff]
                  %2131 = vst [vmem:[%s2113 + $0x80] sm:$0xff] %v2130
                  %v2132 = vld [vmem:[%s2112 + $0x48] sm:$0xff]
                  %2133 = vst [vmem:[%s2113 + $0x90] sm:$0xff] %v2132
                  %v2134 = vld [vmem:[%s2112 + $0x50] sm:$0xff]
                  %2135 = vst [vmem:[%s2113 + $0xa0] sm:$0xff] %v2134
                  %v2136 = vld [vmem:[%s2112 + $0x58] sm:$0xff]
                  %2137 = vst [vmem:[%s2113 + $0xb0] sm:$0xff] %v2136
                  %v2138 = vld [vmem:[%s2112 + $0x60] sm:$0xff]
                  %2139 = vst [vmem:[%s2113 + $0xc0] sm:$0xff] %v2138
                  %v2140 = vld [vmem:[%s2112 + $0x68] sm:$0xff]
                  %2141 = vst [vmem:[%s2113 + $0xd0] sm:$0xff] %v2140
                  %v2142 = vld [vmem:[%s2112 + $0x70] sm:$0xff]
                  %2143 = vst [vmem:[%s2113 + $0xe0] sm:$0xff] %v2142
                  %v2144 = vld [vmem:[%s2112 + $0x78] sm:$0xff]
                  %2145 = vst [vmem:[%s2113 + $0xf0] sm:$0xff] %v2144
                $region152: #{gcn_dae_forward.10} parent=146 // loop_footer
                  %s2111 = sadd.s32 1, %s2107
                $region153: #{gcn_dae_forward.10} parent=146 // loop_footer_branch
                  %2106 = sbr.rel target = $region149
                $region154: #{gcn_dae_forward.10} parent=146 // loop_exit
                  _
              $region147: #{gcn_dae_forward.10} parent=131 // pred_fallthru
                _
              // Predicated region
              $region155: #{gcn_dae_forward.10} parent=131 // pred_check
                _
              $region156: #{gcn_dae_forward.10} parent=131 // pred_check_branch
                %2147 = sbr.rel target = $region158
              $region157: #{gcn_dae_forward.10} parent=131 // pred_region
                _
              $region158: #{gcn_dae_forward.10} parent=131 // pred_fallthru
                _
            $region132: #{gcn_dae_forward.10} parent=127 // pred_fallthru
              _
            // Predicated region
            $region133: #{gcn_dae_forward.10} parent=127 // pred_check
              _
            $region134: #{gcn_dae_forward.10} parent=127 // pred_check_branch
              %2061 = sbr.rel target = $region136
            $region135: #{gcn_dae_forward.10} parent=127 // pred_region
              %s2063 = ssub.s32 256, 1
              loop: start=0, step=1, limit=1
              $region137: #{gcn_dae_forward.10} parent=135 // loop_pre_header
                _
              $region138: #{gcn_dae_forward.10} parent=135 // loop_header
                %s2065 = sphi 0, %s2069
                %p2066 = scmp.ge.s32.totalorder %s2065, 1
                %s2070 = sphi %s2047, %s2047
                %s2071 = sphi %s2055, %s2055
              $region139: #{gcn_dae_forward.10} parent=135 // loop_header_branch
                %2068 = sbr.rel (%p2066) target = $region143
              $region140: #{gcn_dae_forward.10} parent=135 // loop_body
                %v2072 = vld [vmem:[%s2070] sm:%s2063]
                %2073 = vst [vmem:[%s2071] sm:%s2063] %v2072
                %v2074 = vld [vmem:[%s2070 + $0x8] sm:%s2063]
                %2075 = vst [vmem:[%s2071 + $0x10] sm:%s2063] %v2074
                %v2076 = vld [vmem:[%s2070 + $0x10] sm:%s2063]
                %2077 = vst [vmem:[%s2071 + $0x20] sm:%s2063] %v2076
                %v2078 = vld [vmem:[%s2070 + $0x18] sm:%s2063]
                %2079 = vst [vmem:[%s2071 + $0x30] sm:%s2063] %v2078
                %v2080 = vld [vmem:[%s2070 + $0x20] sm:%s2063]
                %2081 = vst [vmem:[%s2071 + $0x40] sm:%s2063] %v2080
                %v2082 = vld [vmem:[%s2070 + $0x28] sm:%s2063]
                %2083 = vst [vmem:[%s2071 + $0x50] sm:%s2063] %v2082
                %v2084 = vld [vmem:[%s2070 + $0x30] sm:%s2063]
                %2085 = vst [vmem:[%s2071 + $0x60] sm:%s2063] %v2084
                %v2086 = vld [vmem:[%s2070 + $0x38] sm:%s2063]
                %2087 = vst [vmem:[%s2071 + $0x70] sm:%s2063] %v2086
                %v2088 = vld [vmem:[%s2070 + $0x40] sm:%s2063]
                %2089 = vst [vmem:[%s2071 + $0x80] sm:%s2063] %v2088
                %v2090 = vld [vmem:[%s2070 + $0x48] sm:%s2063]
                %2091 = vst [vmem:[%s2071 + $0x90] sm:%s2063] %v2090
                %v2092 = vld [vmem:[%s2070 + $0x50] sm:%s2063]
                %2093 = vst [vmem:[%s2071 + $0xa0] sm:%s2063] %v2092
                %v2094 = vld [vmem:[%s2070 + $0x58] sm:%s2063]
                %2095 = vst [vmem:[%s2071 + $0xb0] sm:%s2063] %v2094
                %v2096 = vld [vmem:[%s2070 + $0x60] sm:%s2063]
                %2097 = vst [vmem:[%s2071 + $0xc0] sm:%s2063] %v2096
                %v2098 = vld [vmem:[%s2070 + $0x68] sm:%s2063]
                %2099 = vst [vmem:[%s2071 + $0xd0] sm:%s2063] %v2098
                %v2100 = vld [vmem:[%s2070 + $0x70] sm:%s2063]
                %2101 = vst [vmem:[%s2071 + $0xe0] sm:%s2063] %v2100
                %v2102 = vld [vmem:[%s2070 + $0x78] sm:%s2063]
                %2103 = vst [vmem:[%s2071 + $0xf0] sm:%s2063] %v2102
              $region141: #{gcn_dae_forward.10} parent=135 // loop_footer
                %s2069 = sadd.s32 1, %s2065
              $region142: #{gcn_dae_forward.10} parent=135 // loop_footer_branch
                %2064 = sbr.rel target = $region138
              $region143: #{gcn_dae_forward.10} parent=135 // loop_exit
                _
            $region136: #{gcn_dae_forward.10} parent=127 // pred_fallthru
              _
          $region128: #{gcn_dae_forward.10} parent=123 // pred_fallthru
            _
          %2148 = vnop
        $region124: #{gcn_dae_forward.10} parent=111 // pred_fallthru
          _
      $region112: #{gcn_dae_forward.10} parent=5 // pred_fallthru
        _
      %p2149 = scmp.le.s32.totalorder 2, %s12
      // Predicated region
      $region159: #{gcn_dae_forward.10} parent=5 // pred_check
        %p2150 = pneg %p2149
      $region160: #{gcn_dae_forward.10} parent=5 // pred_check_branch
        %2152 = sbr.rel (%p2150) target = $region162
      $region161: #{gcn_dae_forward.10} parent=5 // pred_region
        %s2153 = ssub.s32 %s12, 2
        // Predicated region
        $region163: #{gcn_dae_forward.10} parent=161 // pred_check
          %p2154 = pneg %p215
        $region164: #{gcn_dae_forward.10} parent=161 // pred_check_branch
          %2156 = sbr.rel (%p2154) target = $region166
        $region165: #{gcn_dae_forward.10} parent=161 // pred_region
          %s2157 = sand.u32 %s200, 1
          %s2158 = sand.u32 %s200, 1
          %s2159 = smul.addr %s2158, 128
          %s2160 = scalar_lea.vmem [#allocation4], %s2159
        $region166: #{gcn_dae_forward.10} parent=161 // pred_fallthru
          _
      $region162: #{gcn_dae_forward.10} parent=5 // pred_fallthru
        _
    $region6: #{gcn_dae_forward.10} parent=1 // loop_footer
      %s16 = sadd.s32 1, %s12
    $region7: #{gcn_dae_forward.10} parent=1 // loop_footer_branch
      %11 = sbr.rel target = $region3
    $region8: #{gcn_dae_forward.10} parent=1 // loop_exit
      _

// kernel: gcn_dae_forward.11
$region0: #{gcn_dae_forward.11}
  #allocation0 [shape = 'u32[]', space=smem, size = 0x4, offset = 0x4, fixed_abs, tag = 'smem constant byte address 0x4 - core index']
  #allocation1 [shape = 'u32[72,128]{1,0:T(1,128)}', space=vmem, size = 0x9000, scoped, tag = 'internal scratch']
  %s0 = inlined_call_operand.vmem [shape: f32[256,64], index: 0, kind: input, shape index: {}]
  %s1 = inlined_call_operand.vmem [shape: f32[64,128], index: 1, kind: input, shape index: {}]
  %s2 = inlined_call_operand.vmem [shape: f32[1,128], index: 2, kind: input, shape index: {}]
  %s3 = inlined_call_operand.vmem [shape: bf16[256,128], index: 3, kind: output, shape index: {}]
  %s4 = sld [smem:[#allocation0]]
  $region45: #{gcn_dae_forward.11} parent=0
    _
  %s6 = ssub.s32 1, %s4
  %s7 = scalar_select 0, %s6, %s4
  loop: start=0, step=1, limit=4
  $region2: #{gcn_dae_forward.11} parent=0 // loop_pre_header
    _
  $region3: #{gcn_dae_forward.11} parent=0 // loop_header
    %s9 = sphi 0, %s13
    %p10 = scmp.ge.s32.totalorder %s9, 4
    %s19 = sphi 0, %s21
    %s22 = sphi 0, %s19
    %s23 = sphi 0, %s22
    %s39 = sphi 0, %s23
    %s43 = sphi 0, %s43
    %s45 = sphi 0, %s43
    %s46 = sphi 0, %s45
    %s60 = sphi 0, %s46
    %s64 = sphi 0, %s64
    %s66 = sphi 0, %s64
    %s67 = sphi 0, %s66
    %s81 = sphi 0, %s67
    %s87 = sphi 0, %s89
    %s90 = sphi 0, %s87
    %s91 = sphi 0, %s90
    %s107 = sphi 0, %s91
  $region4: #{gcn_dae_forward.11} parent=0 // loop_header_branch
    %12 = sbr.rel (%p10) target = $region8
  $region5: #{gcn_dae_forward.11} parent=0 // loop_body
    %s14 = ssub.s32 %s9, 1
    %s15 = ssub.s32 %s9, 2
    %s16 = sadd.s32 %s9, 1
    %s17 = ssub.s32 %s9, %s16
    %p18 = scmp.eq.s32.totalorder %s17, 0
    %s20 = sadd.s32 %s19, 1
    %s21 = scalar_select %p18, %s19, %s20
    %p24 = pneg %p18
    %p25 = scmp.eq.s32.totalorder %s9, 1
    %p26 = por %p24, %p25
    %p27 = scmp.ne.s32.totalorder %s19, %s22
    %p28 = scmp.eq.s32.totalorder %s9, 0
    %p29 = por %p27, %p28
    %p30 = scmp.ne.s32.totalorder %s19, %s22
    %p31 = scmp.eq.s32.totalorder %s14, 1
    %p32 = por %p30, %p31
    %p33 = scmp.ne.s32.totalorder %s22, %s23
    %p34 = scmp.eq.s32.totalorder %s14, 0
    %p35 = por %p33, %p34
    %p36 = scmp.ne.s32.totalorder %s22, %s23
    %p37 = scmp.eq.s32.totalorder %s15, 1
    %p38 = por %p36, %p37
    %p40 = scmp.ne.s32.totalorder %s23, %s39
    %p41 = scmp.eq.s32.totalorder %s15, 0
    %p42 = por %p40, %p41
    %s44 = sadd.s32 %s43, 1
    %p47 = scmp.eq.s32.totalorder %s9, 1
    %p48 = scmp.ne.s32.totalorder %s43, %s45
    %p49 = scmp.eq.s32.totalorder %s9, 0
    %p50 = por %p48, %p49
    %p51 = scmp.ne.s32.totalorder %s43, %s45
    %p52 = scmp.eq.s32.totalorder %s14, 1
    %p53 = por %p51, %p52
    %p54 = scmp.ne.s32.totalorder %s45, %s46
    %p55 = scmp.eq.s32.totalorder %s14, 0
    %p56 = por %p54, %p55
    %p57 = scmp.ne.s32.totalorder %s45, %s46
    %p58 = scmp.eq.s32.totalorder %s15, 1
    %p59 = por %p57, %p58
    %p61 = scmp.ne.s32.totalorder %s46, %s60
    %p62 = scmp.eq.s32.totalorder %s15, 0
    %p63 = por %p61, %p62
    %s65 = sadd.s32 %s64, 1
    %p68 = scmp.eq.s32.totalorder %s9, 1
    %p69 = scmp.ne.s32.totalorder %s64, %s66
    %p70 = scmp.eq.s32.totalorder %s9, 0
    %p71 = por %p69, %p70
    %p72 = scmp.ne.s32.totalorder %s64, %s66
    %p73 = scmp.eq.s32.totalorder %s14, 1
    %p74 = por %p72, %p73
    %p75 = scmp.ne.s32.totalorder %s66, %s67
    %p76 = scmp.eq.s32.totalorder %s14, 0
    %p77 = por %p75, %p76
    %p78 = scmp.ne.s32.totalorder %s66, %s67
    %p79 = scmp.eq.s32.totalorder %s15, 1
    %p80 = por %p78, %p79
    %p82 = scmp.ne.s32.totalorder %s67, %s81
    %p83 = scmp.eq.s32.totalorder %s15, 0
    %p84 = por %p82, %p83
    %s85 = ssub.s32 %s9, %s16
    %p86 = scmp.eq.s32.totalorder %s85, 0
    %s88 = sadd.s32 %s87, 1
    %s89 = scalar_select %p86, %s87, %s88
    %p92 = pneg %p86
    %p93 = scmp.eq.s32.totalorder %s9, 1
    %p94 = por %p92, %p93
    %p95 = scmp.ne.s32.totalorder %s87, %s90
    %p96 = scmp.eq.s32.totalorder %s9, 0
    %p97 = por %p95, %p96
    %p98 = scmp.ne.s32.totalorder %s87, %s90
    %p99 = scmp.eq.s32.totalorder %s14, 1
    %p100 = por %p98, %p99
    %p101 = scmp.ne.s32.totalorder %s90, %s91
    %p102 = scmp.eq.s32.totalorder %s14, 0
    %p103 = por %p101, %p102
    %p104 = scmp.ne.s32.totalorder %s90, %s91
    %p105 = scmp.eq.s32.totalorder %s15, 1
    %p106 = por %p104, %p105
    %p108 = scmp.ne.s32.totalorder %s91, %s107
    %p109 = scmp.eq.s32.totalorder %s15, 0
    %p110 = por %p108, %p109
    %p111 = scmp.le.s32.totalorder 1, %s9
    %p112 = scmp.lt.s32.totalorder %s9, 3
    %p113 = pnand %p111, %p112
    %p114 = pneg %p113
    // Predicated region
    $region9: #{gcn_dae_forward.11} parent=5 // pred_check
      _
    $region10: #{gcn_dae_forward.11} parent=5 // pred_check_branch
      %116 = sbr.rel (%p113) target = $region12
    $region11: #{gcn_dae_forward.11} parent=5 // pred_region
      %s117 = ssub.s32 %s9, 1
      // Predicated region
      $region13: #{gcn_dae_forward.11} parent=11 // pred_check
        %p118 = pneg %p56
      $region14: #{gcn_dae_forward.11} parent=11 // pred_check_branch
        %120 = sbr.rel (%p118) target = $region16
      $region15: #{gcn_dae_forward.11} parent=11 // pred_region
        _
      $region16: #{gcn_dae_forward.11} parent=11 // pred_fallthru
        _
      // Predicated region
      $region17: #{gcn_dae_forward.11} parent=11 // pred_check
        %p121 = pneg %p77
      $region18: #{gcn_dae_forward.11} parent=11 // pred_check_branch
        %123 = sbr.rel (%p121) target = $region20
      $region19: #{gcn_dae_forward.11} parent=11 // pred_region
        _
      $region20: #{gcn_dae_forward.11} parent=11 // pred_fallthru
        _
    $region12: #{gcn_dae_forward.11} parent=5 // pred_fallthru
      _
    %p124 = scmp.lt.s32.totalorder %s9, 2
    // Predicated region
    $region21: #{gcn_dae_forward.11} parent=5 // pred_check
      %p125 = pneg %p124
    $region22: #{gcn_dae_forward.11} parent=5 // pred_check_branch
      %127 = sbr.rel (%p125) target = $region24
    $region23: #{gcn_dae_forward.11} parent=5 // pred_region
      // Predicated region
      $region25: #{gcn_dae_forward.11} parent=23 // pred_check
        %p128 = pneg %p29
      $region26: #{gcn_dae_forward.11} parent=23 // pred_check_branch
        %130 = sbr.rel (%p128) target = $region28
      $region27: #{gcn_dae_forward.11} parent=23 // pred_region
        %s131 = smul.u32 16, %s9
        %p132 = scmp.lt.s32.totalorder %s131, 31
        %s133 = scalar_select %p132, %s131, 31
        %s134 = smul.addr %s133, 8
        %s135 = scalar_lea.vmem %s0, %s134
        %s136 = smul.u32 16, %s9
      $region28: #{gcn_dae_forward.11} parent=23 // pred_fallthru
        _
    $region24: #{gcn_dae_forward.11} parent=5 // pred_fallthru
      _
    %p137 = scmp.le.s32.totalorder 1, %s9
    %p138 = scmp.lt.s32.totalorder %s9, 3
    %p139 = pnand %p137, %p138
    %p140 = pneg %p139
    // Predicated region
    $region29: #{gcn_dae_forward.11} parent=5 // pred_check
      _
    $region30: #{gcn_dae_forward.11} parent=5 // pred_check_branch
      %142 = sbr.rel (%p139) target = $region32
    $region31: #{gcn_dae_forward.11} parent=5 // pred_region
      %s143 = ssub.s32 %s9, 1
      %s144 = smul.u32 16, %s14
      %p145 = scmp.lt.s32.totalorder %s144, 31
      %s146 = scalar_select %p145, %s144, 31
      %s147 = smul.addr %s146, 8
      %s148 = scalar_lea.vmem %s0, %s147
      %p149 = pneg %p35
      %p150 = pneg %p32
      %p151 = pneg %p56
      %p152 = pneg %p53
      %p153 = pneg %p77
      %p154 = pneg %p74
      %p155 = pneg %p103
      %p156 = pneg %p100
      %s157 = smul.u32 16, %s14
      %p158 = scmp.lt.s32.totalorder %s157, 31
      %s159 = scalar_select %p158, %s157, 31
      %s160 = smul.addr %s159, 4
      %s161 = scalar_lea.vmem %s3, %s160
      %s162 = smul.u32 16, %s14
      %p163 = scmp.lt.s32.totalorder %s162, 31
      %s164 = scalar_select %p163, %s162, 31
      %s165 = smul.addr %s164, 8
      %s166 = scalar_lea.vmem %s0, %s165
      %s167 = smul.u32 16, %s14
      %s168 = smul.u32 16, %s14
      %p169 = scmp.lt.s32.totalorder %s168, 31
      %s170 = scalar_select %p169, %s168, 31
      %s171 = smul.addr %s170, 4
      %s172 = scalar_lea.vmem %s3, %s171
      %s173 = smul.u32 16, %s14
      %v174 = vld [vmem:[%s166] sm:$0xff]
      %v175 = vld [vmem:[%s166 + $0x8] sm:$0xff]
      %v176 = vld [vmem:[%s166 + $0x10] sm:$0xff]
      %v177 = vld [vmem:[%s166 + $0x18] sm:$0xff]
      %v178 = vld [vmem:[%s166 + $0x20] sm:$0xff]
      %v179 = vld [vmem:[%s166 + $0x28] sm:$0xff]
      %v180 = vld [vmem:[%s166 + $0x30] sm:$0xff]
      %v181 = vld [vmem:[%s166 + $0x38] sm:$0xff]
      %v182 = vld [vmem:[%s166 + $0x40] sm:$0xff]
      %v183 = vld [vmem:[%s166 + $0x48] sm:$0xff]
      %v184 = vld [vmem:[%s166 + $0x50] sm:$0xff]
      %v185 = vld [vmem:[%s166 + $0x58] sm:$0xff]
      %v186 = vld [vmem:[%s166 + $0x60] sm:$0xff]
      %v187 = vld [vmem:[%s166 + $0x68] sm:$0xff]
      %v188 = vld [vmem:[%s166 + $0x70] sm:$0xff]
      %v189 = vld [vmem:[%s166 + $0x78] sm:$0xff]
      %v190 = vld [vmem:[%s1] sm:$0xff]
      %v191 = vld [vmem:[%s1 + $0x8] sm:$0xff]
      %v192 = vld [vmem:[%s1 + $0x10] sm:$0xff]
      %v193 = vld [vmem:[%s1 + $0x18] sm:$0xff]
      %v194 = vld [vmem:[%s1 + $0x20] sm:$0xff]
      %v195 = vld [vmem:[%s1 + $0x28] sm:$0xff]
      %v196 = vld [vmem:[%s1 + $0x30] sm:$0xff]
      %v197 = vld [vmem:[%s1 + $0x38] sm:$0xff]
      %v198 = vld [vmem:[%s2] sm:$0x1]
      %v200 = vperm.slane %v198, 0
      %vm202 = vcmask 523264
      %v204 = vsel %vm202, %v174, 0
      %v207 = vsel %vm202, %v175, 0
      %v210 = vsel %vm202, %v176, 0
      %v213 = vsel %vm202, %v177, 0
      %v216 = vsel %vm202, %v178, 0
      %v219 = vsel %vm202, %v179, 0
      %v222 = vsel %vm202, %v180, 0
      %v225 = vsel %vm202, %v181, 0
      %v228 = vsel %vm202, %v182, 0
      %v231 = vsel %vm202, %v183, 0
      %v234 = vsel %vm202, %v184, 0
      %v237 = vsel %vm202, %v185, 0
      %v240 = vsel %vm202, %v186, 0
      %v243 = vsel %vm202, %v187, 0
      %v246 = vsel %vm202, %v188, 0
      %v249 = vsel %vm202, %v189, 0
      %251 = vmatpush.msra.mxu0 0.0
      %252 = vmatpush.msra.mxu0 0.0
      %253 = vmatpush.msra.mxu0 0.0
      %254 = vmatpush.msra.mxu0 0.0
      %255 = vmatpush.msra.mxu0 0.0
      %256 = vmatpush.msra.mxu0 0.0
      %257 = vmatpush.msra.mxu0 0.0
      %258 = vmatpush.msra.mxu0 0.0
      %259 = vmatpush.msra.mxu0 %v197
      %260 = vmatpush.msra.mxu0 %v196
      %261 = vmatpush.msra.mxu0 %v195
      %262 = vmatpush.msra.mxu0 %v194
      %263 = vmatpush.msra.mxu0 %v193
      %264 = vmatpush.msra.mxu0 %v192
      %265 = vmatpush.msra.mxu0 %v191
      %266 = vmatpush.msra.mxu0 %v190
      %267 = vmatmul.f32.gmra.mxu0 %v204
      %v268 = vpop.f32.mrf.mxu0
      %v269 = vadd.f32 %v200, %v268
      %270 = vmatmul.f32.gmra.mxu0 %v207
      %v271 = vpop.f32.mrf.mxu0
      %v272 = vadd.f32 %v200, %v271
      %273 = vmatmul.f32.gmra.mxu0 %v210
      %v274 = vpop.f32.mrf.mxu0
      %v275 = vadd.f32 %v200, %v274
      %276 = vmatmul.f32.gmra.mxu0 %v213
      %v277 = vpop.f32.mrf.mxu0
      %v278 = vadd.f32 %v200, %v277
      %279 = vmatmul.f32.gmra.mxu0 %v216
      %v280 = vpop.f32.mrf.mxu0
      %v281 = vadd.f32 %v200, %v280
      %282 = vmatmul.f32.gmra.mxu0 %v219
      %v283 = vpop.f32.mrf.mxu0
      %v284 = vadd.f32 %v200, %v283
      %285 = vmatmul.f32.gmra.mxu0 %v222
      %v286 = vpop.f32.mrf.mxu0
      %v287 = vadd.f32 %v200, %v286
      %288 = vmatmul.f32.gmra.mxu0 %v225
      %v289 = vpop.f32.mrf.mxu0
      %v290 = vadd.f32 %v200, %v289
      %291 = vmatmul.f32.gmra.mxu0 %v228
      %v292 = vpop.f32.mrf.mxu0
      %v293 = vadd.f32 %v200, %v292
      %294 = vmatmul.f32.gmra.mxu0 %v231
      %v295 = vpop.f32.mrf.mxu0
      %v296 = vadd.f32 %v200, %v295
      %297 = vmatmul.f32.gmra.mxu0 %v234
      %v298 = vpop.f32.mrf.mxu0
      %v299 = vadd.f32 %v200, %v298
      %300 = vmatmul.f32.gmra.mxu0 %v237
      %v301 = vpop.f32.mrf.mxu0
      %v302 = vadd.f32 %v200, %v301
      %303 = vmatmul.f32.gmra.mxu0 %v240
      %v304 = vpop.f32.mrf.mxu0
      %v305 = vadd.f32 %v200, %v304
      %306 = vmatmul.f32.gmra.mxu0 %v243
      %v307 = vpop.f32.mrf.mxu0
      %v308 = vadd.f32 %v200, %v307
      %309 = vmatmul.f32.gmra.mxu0 %v246
      %v310 = vpop.f32.mrf.mxu0
      %v311 = vadd.f32 %v200, %v310
      %312 = vmatmul.f32.gmra.mxu0 %v249
      %v313 = vpop.f32.mrf.mxu0
      %v314 = vadd.f32 %v200, %v313
      %315 = vdwg.mxu0
      %v316 = vpack.c.bf16 %v269, %v269
      %v317 = vpack.c.bf16 %v272, %v272
      %v318 = vpack.c.bf16 %v275, %v275
      %v319 = vpack.c.bf16 %v278, %v278
      %v320 = vpack.c.bf16 %v281, %v281
      %v321 = vpack.c.bf16 %v284, %v284
      %v322 = vpack.c.bf16 %v287, %v287
      %v323 = vpack.c.bf16 %v290, %v290
      %v324 = vpack.c.bf16 %v293, %v293
      %v325 = vpack.c.bf16 %v296, %v296
      %v326 = vpack.c.bf16 %v299, %v299
      %v327 = vpack.c.bf16 %v302, %v302
      %v328 = vpack.c.bf16 %v305, %v305
      %v329 = vpack.c.bf16 %v308, %v308
      %v330 = vpack.c.bf16 %v311, %v311
      %v331 = vpack.c.bf16 %v314, %v314
      %332 = vst [vmem:[%s172] sm:$0xf] %v316
      %333 = vst [vmem:[%s172 + $0x4] sm:$0xf] %v317
      %334 = vst [vmem:[%s172 + $0x8] sm:$0xf] %v318
      %335 = vst [vmem:[%s172 + $0xc] sm:$0xf] %v319
      %336 = vst [vmem:[%s172 + $0x10] sm:$0xf] %v320
      %337 = vst [vmem:[%s172 + $0x14] sm:$0xf] %v321
      %338 = vst [vmem:[%s172 + $0x18] sm:$0xf] %v322
      %339 = vst [vmem:[%s172 + $0x1c] sm:$0xf] %v323
      %340 = vst [vmem:[%s172 + $0x20] sm:$0xf] %v324
      %341 = vst [vmem:[%s172 + $0x24] sm:$0xf] %v325
      %342 = vst [vmem:[%s172 + $0x28] sm:$0xf] %v326
      %343 = vst [vmem:[%s172 + $0x2c] sm:$0xf] %v327
      %344 = vst [vmem:[%s172 + $0x30] sm:$0xf] %v328
      %345 = vst [vmem:[%s172 + $0x34] sm:$0xf] %v329
      %346 = vst [vmem:[%s172 + $0x38] sm:$0xf] %v330
      %347 = vst [vmem:[%s172 + $0x3c] sm:$0xf] %v331
      %s348 = smul.u32 16, %s14
      %p349 = scmp.lt.s32.totalorder %s348, 31
      %s350 = scalar_select %p349, %s348, 31
      %s351 = smul.addr %s350, 4
      %s352 = scalar_lea.vmem %s3, %s351
      // Predicated region
      $region33: #{gcn_dae_forward.11} parent=31 // pred_check
        %p353 = pneg %p100
      $region34: #{gcn_dae_forward.11} parent=31 // pred_check_branch
        %355 = sbr.rel (%p353) target = $region36
      $region35: #{gcn_dae_forward.11} parent=31 // pred_region
        %s356 = smul.u32 16, %s14
      $region36: #{gcn_dae_forward.11} parent=31 // pred_fallthru
        _
    $region32: #{gcn_dae_forward.11} parent=5 // pred_fallthru
      _
    %p357 = scmp.le.s32.totalorder 2, %s9
    // Predicated region
    $region37: #{gcn_dae_forward.11} parent=5 // pred_check
      %p358 = pneg %p357
    $region38: #{gcn_dae_forward.11} parent=5 // pred_check_branch
      %360 = sbr.rel (%p358) target = $region40
    $region39: #{gcn_dae_forward.11} parent=5 // pred_region
      %s361 = ssub.s32 %s9, 2
      // Predicated region
      $region41: #{gcn_dae_forward.11} parent=39 // pred_check
        %p362 = pneg %p106
      $region42: #{gcn_dae_forward.11} parent=39 // pred_check_branch
        %364 = sbr.rel (%p362) target = $region44
      $region43: #{gcn_dae_forward.11} parent=39 // pred_region
        %s365 = smul.u32 16, %s15
        %p366 = scmp.lt.s32.totalorder %s365, 31
        %s367 = scalar_select %p366, %s365, 31
        %s368 = smul.addr %s367, 4
        %s369 = scalar_lea.vmem %s3, %s368
      $region44: #{gcn_dae_forward.11} parent=39 // pred_fallthru
        _
    $region40: #{gcn_dae_forward.11} parent=5 // pred_fallthru
      _
  $region6: #{gcn_dae_forward.11} parent=0 // loop_footer
    %s13 = sadd.s32 1, %s9
  $region7: #{gcn_dae_forward.11} parent=0 // loop_footer_branch
    %8 = sbr.rel target = $region3
  $region8: #{gcn_dae_forward.11} parent=0 // loop_exit
    _

// kernel: gcn_dae_forward.13
$region0: #{gcn_dae_forward.13}
  #allocation0 [shape = 'u32[]', space=smem, size = 0x4, offset = 0x4, fixed_abs, tag = 'smem constant byte address 0x4 - core index']
  #allocation1 [shape = 'u32[72,128]{1,0:T(1,128)}', space=vmem, size = 0x9000, scoped, tag = 'internal scratch']
  #allocation2 [shape = 'f32[128,128]{1,0:T(8,128)}', space=vmem, size = 0x10000, scoped, tag = 'scratch operand']
  %s0 = inlined_call_operand.vmem [shape: f32[256,256], index: 0, kind: input, shape index: {}]
  %s1 = inlined_call_operand.vmem [shape: bf16[256,128], index: 1, kind: input, shape index: {}]
  %s2 = inlined_call_operand.vmem [shape: f32[256,128], index: 2, kind: output, shape index: {}]
  %s3 = sld [smem:[#allocation0]]
  $region87: #{gcn_dae_forward.13} parent=0
    _
  %s5 = ssub.s32 1, %s3
  %s6 = scalar_select 0, %s5, %s3
  $region1: #{gcn_dae_forward.13} parent=0
    #allocation3 [shape = 'u8[131072]{0}', space=vmem, size = 0x20000, scoped, tag = 'input window, operand 0']
    loop: start=0, step=1, limit=6
    $region2: #{gcn_dae_forward.13} parent=1 // loop_pre_header
      _
    $region3: #{gcn_dae_forward.13} parent=1 // loop_header
      %s8 = sphi 0, %s12
      %p9 = scmp.ge.s32.totalorder %s8, 6
      %s15 = sphi 0, %s27
      %s16 = sphi 0, %s23
      %s17 = sphi 0, %s15
      %s18 = sphi 0, %s16
      %s19 = sphi 0, %s17
      %s20 = sphi 0, %s18
      %s32 = sphi 0, %s34
      %s35 = sphi 0, %s32
      %s36 = sphi 0, %s35
      %s52 = sphi 0, %s36
      %s58 = sphi 0, %s60
      %s61 = sphi 0, %s58
      %s62 = sphi 0, %s61
      %s78 = sphi 0, %s62
      %s84 = sphi 0, %s86
      %s87 = sphi 0, %s84
      %s88 = sphi 0, %s87
      %s104 = sphi 0, %s88
    $region4: #{gcn_dae_forward.13} parent=1 // loop_header_branch
      %11 = sbr.rel (%p9) target = $region8
    $region5: #{gcn_dae_forward.13} parent=1 // loop_body
      %s13 = ssub.s32 %s8, 1
      %s14 = ssub.s32 %s8, 2
      %s21 = sadd.s32 1, %s16
      %p22 = scmp.ge.s32.totalorder %s21, 2
      %s23 = scalar_select %p22, 0, %s21
      %s24 = sadd.s32 1, %s15
      %s25 = scalar_select %p22, %s24, %s15
      %p26 = scmp.ge.s32.totalorder %s25, 2
      %s27 = scalar_select %p26, 0, %s25
      %s28 = ssub.s32 %s15, %s27
      %s29 = ssub.s32 %s16, %s23
      %s30 = sor.u32 %s28, %s29
      %p31 = scmp.eq.s32.totalorder %s30, 0
      %s33 = sadd.s32 %s32, 1
      %s34 = scalar_select %p31, %s32, %s33
      %p37 = pneg %p31
      %p38 = scmp.eq.s32.totalorder %s8, 3
      %p39 = por %p37, %p38
      %p40 = scmp.ne.s32.totalorder %s32, %s35
      %p41 = scmp.eq.s32.totalorder %s8, 0
      %p42 = por %p40, %p41
      %p43 = scmp.ne.s32.totalorder %s32, %s35
      %p44 = scmp.eq.s32.totalorder %s13, 3
      %p45 = por %p43, %p44
      %p46 = scmp.ne.s32.totalorder %s35, %s36
      %p47 = scmp.eq.s32.totalorder %s13, 0
      %p48 = por %p46, %p47
      %p49 = scmp.ne.s32.totalorder %s35, %s36
      %p50 = scmp.eq.s32.totalorder %s14, 3
      %p51 = por %p49, %p50
      %p53 = scmp.ne.s32.totalorder %s36, %s52
      %p54 = scmp.eq.s32.totalorder %s14, 0
      %p55 = por %p53, %p54
      %s56 = ssub.s32 %s16, %s23
      %p57 = scmp.eq.s32.totalorder %s56, 0
      %s59 = sadd.s32 %s58, 1
      %s60 = scalar_select %p57, %s58, %s59
      %p63 = pneg %p57
      %p64 = scmp.eq.s32.totalorder %s8, 3
      %p65 = por %p63, %p64
      %p66 = scmp.ne.s32.totalorder %s58, %s61
      %p67 = scmp.eq.s32.totalorder %s8, 0
      %p68 = por %p66, %p67
      %p69 = scmp.ne.s32.totalorder %s58, %s61
      %p70 = scmp.eq.s32.totalorder %s13, 3
      %p71 = por %p69, %p70
      %p72 = scmp.ne.s32.totalorder %s61, %s62
      %p73 = scmp.eq.s32.totalorder %s13, 0
      %p74 = por %p72, %p73
      %p75 = scmp.ne.s32.totalorder %s61, %s62
      %p76 = scmp.eq.s32.totalorder %s14, 3
      %p77 = por %p75, %p76
      %p79 = scmp.ne.s32.totalorder %s62, %s78
      %p80 = scmp.eq.s32.totalorder %s14, 0
      %p81 = por %p79, %p80
      %s82 = ssub.s32 %s15, %s27
      %p83 = scmp.eq.s32.totalorder %s82, 0
      %s85 = sadd.s32 %s84, 1
      %s86 = scalar_select %p83, %s84, %s85
      %p89 = pneg %p83
      %p90 = scmp.eq.s32.totalorder %s8, 3
      %p91 = por %p89, %p90
      %p92 = scmp.ne.s32.totalorder %s84, %s87
      %p93 = scmp.eq.s32.totalorder %s8, 0
      %p94 = por %p92, %p93
      %p95 = scmp.ne.s32.totalorder %s84, %s87
      %p96 = scmp.eq.s32.totalorder %s13, 3
      %p97 = por %p95, %p96
      %p98 = scmp.ne.s32.totalorder %s87, %s88
      %p99 = scmp.eq.s32.totalorder %s13, 0
      %p100 = por %p98, %p99
      %p101 = scmp.ne.s32.totalorder %s87, %s88
      %p102 = scmp.eq.s32.totalorder %s14, 3
      %p103 = por %p101, %p102
      %p105 = scmp.ne.s32.totalorder %s88, %s104
      %p106 = scmp.eq.s32.totalorder %s14, 0
      %p107 = por %p105, %p106
      %p108 = scmp.le.s32.totalorder 1, %s8
      %p109 = scmp.lt.s32.totalorder %s8, 5
      %p110 = pnand %p108, %p109
      %p111 = pneg %p110
      // Predicated region
      $region9: #{gcn_dae_forward.13} parent=5 // pred_check
        _
      $region10: #{gcn_dae_forward.13} parent=5 // pred_check_branch
        %113 = sbr.rel (%p110) target = $region12
      $region11: #{gcn_dae_forward.13} parent=5 // pred_region
        %s114 = ssub.s32 %s8, 1
      $region12: #{gcn_dae_forward.13} parent=5 // pred_fallthru
        _
      %p115 = scmp.lt.s32.totalorder %s8, 4
      // Predicated region
      $region13: #{gcn_dae_forward.13} parent=5 // pred_check
        %p116 = pneg %p115
      $region14: #{gcn_dae_forward.13} parent=5 // pred_check_branch
        %118 = sbr.rel (%p116) target = $region16
      $region15: #{gcn_dae_forward.13} parent=5 // pred_region
        // Predicated region
        $region17: #{gcn_dae_forward.13} parent=15 // pred_check
          %p119 = pneg %p42
        $region18: #{gcn_dae_forward.13} parent=15 // pred_check_branch
          %121 = sbr.rel (%p119) target = $region20
        $region19: #{gcn_dae_forward.13} parent=15 // pred_region
          %s122 = sand.u32 %s32, 1
          %s123 = sand.u32 %s32, 1
          %s124 = smul.addr %s123, 128
          %s125 = scalar_lea.vmem [#allocation3], %s124
          %s126 = smul.u32 16, %s15
          %s127 = smul.addr %s126, 2
          %s128 = sadd.s32 %s16, %s127
          %s129 = smul.addr %s128, 8
          %s130 = scalar_lea.vmem %s0, %s129
          // Predicated region
          $region21: #{gcn_dae_forward.13} parent=19 // pred_check
            _
          $region22: #{gcn_dae_forward.13} parent=19 // pred_check_branch
            %132 = sbr.rel (0) target = $region24
          $region23: #{gcn_dae_forward.13} parent=19 // pred_region
            // Predicated region
            $region25: #{gcn_dae_forward.13} parent=23 // pred_check
              _
            $region26: #{gcn_dae_forward.13} parent=23 // pred_check_branch
              %134 = sbr.rel (0) target = $region28
            $region27: #{gcn_dae_forward.13} parent=23 // pred_region
              // Predicated region
              $region40: #{gcn_dae_forward.13} parent=27 // pred_check
                _
              $region41: #{gcn_dae_forward.13} parent=27 // pred_check_branch
                %180 = sbr.rel (0) target = $region43
              $region42: #{gcn_dae_forward.13} parent=27 // pred_region
                loop: start=0, step=1, limit=1
                $region44: #{gcn_dae_forward.13} parent=42 // loop_pre_header
                  _
                $region45: #{gcn_dae_forward.13} parent=42 // loop_header
                  %s182 = sphi 0, %s186
                  %p183 = scmp.ge.s32.totalorder %s182, 1
                  %s187 = sphi %s130, %s130
                  %s188 = sphi %s125, %s125
                $region46: #{gcn_dae_forward.13} parent=42 // loop_header_branch
                  %185 = sbr.rel (%p183) target = $region50
                $region47: #{gcn_dae_forward.13} parent=42 // loop_body
                  %v189 = vld [vmem:[%s187] sm:$0xff]
                  %190 = vst [vmem:[%s188] sm:$0xff] %v189
                  %v191 = vld [vmem:[%s187 + $0x10] sm:$0xff]
                  %192 = vst [vmem:[%s188 + $0x8] sm:$0xff] %v191
                  %v193 = vld [vmem:[%s187 + $0x20] sm:$0xff]
                  %194 = vst [vmem:[%s188 + $0x10] sm:$0xff] %v193
                  %v195 = vld [vmem:[%s187 + $0x30] sm:$0xff]
                  %196 = vst [vmem:[%s188 + $0x18] sm:$0xff] %v195
                  %v197 = vld [vmem:[%s187 + $0x40] sm:$0xff]
                  %198 = vst [vmem:[%s188 + $0x20] sm:$0xff] %v197
                  %v199 = vld [vmem:[%s187 + $0x50] sm:$0xff]
                  %200 = vst [vmem:[%s188 + $0x28] sm:$0xff] %v199
                  %v201 = vld [vmem:[%s187 + $0x60] sm:$0xff]
                  %202 = vst [vmem:[%s188 + $0x30] sm:$0xff] %v201
                  %v203 = vld [vmem:[%s187 + $0x70] sm:$0xff]
                  %204 = vst [vmem:[%s188 + $0x38] sm:$0xff] %v203
                  %v205 = vld [vmem:[%s187 + $0x80] sm:$0xff]
                  %206 = vst [vmem:[%s188 + $0x40] sm:$0xff] %v205
                  %v207 = vld [vmem:[%s187 + $0x90] sm:$0xff]
                  %208 = vst [vmem:[%s188 + $0x48] sm:$0xff] %v207
                  %v209 = vld [vmem:[%s187 + $0xa0] sm:$0xff]
                  %210 = vst [vmem:[%s188 + $0x50] sm:$0xff] %v209
                  %v211 = vld [vmem:[%s187 + $0xb0] sm:$0xff]
                  %212 = vst [vmem:[%s188 + $0x58] sm:$0xff] %v211
                  %v213 = vld [vmem:[%s187 + $0xc0] sm:$0xff]
                  %214 = vst [vmem:[%s188 + $0x60] sm:$0xff] %v213
                  %v215 = vld [vmem:[%s187 + $0xd0] sm:$0xff]
                  %216 = vst [vmem:[%s188 + $0x68] sm:$0xff] %v215
                  %v217 = vld [vmem:[%s187 + $0xe0] sm:$0xff]
                  %218 = vst [vmem:[%s188 + $0x70] sm:$0xff] %v217
                  %v219 = vld [vmem:[%s187 + $0xf0] sm:$0xff]
                  %220 = vst [vmem:[%s188 + $0x78] sm:$0xff] %v219
                $region48: #{gcn_dae_forward.13} parent=42 // loop_footer
                  %s186 = sadd.s32 1, %s182
                $region49: #{gcn_dae_forward.13} parent=42 // loop_footer_branch
                  %181 = sbr.rel target = $region45
                $region50: #{gcn_dae_forward.13} parent=42 // loop_exit
                  _
              $region43: #{gcn_dae_forward.13} parent=27 // pred_fallthru
                _
              // Predicated region
              $region51: #{gcn_dae_forward.13} parent=27 // pred_check
                _
              $region52: #{gcn_dae_forward.13} parent=27 // pred_check_branch
                %222 = sbr.rel target = $region54
              $region53: #{gcn_dae_forward.13} parent=27 // pred_region
                _
              $region54: #{gcn_dae_forward.13} parent=27 // pred_fallthru
                _
            $region28: #{gcn_dae_forward.13} parent=23 // pred_fallthru
              _
            // Predicated region
            $region29: #{gcn_dae_forward.13} parent=23 // pred_check
              _
            $region30: #{gcn_dae_forward.13} parent=23 // pred_check_branch
              %136 = sbr.rel target = $region32
            $region31: #{gcn_dae_forward.13} parent=23 // pred_region
              %s138 = ssub.s32 256, 1
              loop: start=0, step=1, limit=1
              $region33: #{gcn_dae_forward.13} parent=31 // loop_pre_header
                _
              $region34: #{gcn_dae_forward.13} parent=31 // loop_header
                %s140 = sphi 0, %s144
                %p141 = scmp.ge.s32.totalorder %s140, 1
                %s145 = sphi %s130, %s130
                %s146 = sphi %s125, %s125
              $region35: #{gcn_dae_forward.13} parent=31 // loop_header_branch
                %143 = sbr.rel (%p141) target = $region39
              $region36: #{gcn_dae_forward.13} parent=31 // loop_body
                %v147 = vld [vmem:[%s145] sm:%s138]
                %148 = vst [vmem:[%s146] sm:%s138] %v147
                %v149 = vld [vmem:[%s145 + $0x10] sm:%s138]
                %150 = vst [vmem:[%s146 + $0x8] sm:%s138] %v149
                %v151 = vld [vmem:[%s145 + $0x20] sm:%s138]
                %152 = vst [vmem:[%s146 + $0x10] sm:%s138] %v151
                %v153 = vld [vmem:[%s145 + $0x30] sm:%s138]
                %154 = vst [vmem:[%s146 + $0x18] sm:%s138] %v153
                %v155 = vld [vmem:[%s145 + $0x40] sm:%s138]
                %156 = vst [vmem:[%s146 + $0x20] sm:%s138] %v155
                %v157 = vld [vmem:[%s145 + $0x50] sm:%s138]
                %158 = vst [vmem:[%s146 + $0x28] sm:%s138] %v157
                %v159 = vld [vmem:[%s145 + $0x60] sm:%s138]
                %160 = vst [vmem:[%s146 + $0x30] sm:%s138] %v159
                %v161 = vld [vmem:[%s145 + $0x70] sm:%s138]
                %162 = vst [vmem:[%s146 + $0x38] sm:%s138] %v161
                %v163 = vld [vmem:[%s145 + $0x80] sm:%s138]
                %164 = vst [vmem:[%s146 + $0x40] sm:%s138] %v163
                %v165 = vld [vmem:[%s145 + $0x90] sm:%s138]
                %166 = vst [vmem:[%s146 + $0x48] sm:%s138] %v165
                %v167 = vld [vmem:[%s145 + $0xa0] sm:%s138]
                %168 = vst [vmem:[%s146 + $0x50] sm:%s138] %v167
                %v169 = vld [vmem:[%s145 + $0xb0] sm:%s138]
                %170 = vst [vmem:[%s146 + $0x58] sm:%s138] %v169
                %v171 = vld [vmem:[%s145 + $0xc0] sm:%s138]
                %172 = vst [vmem:[%s146 + $0x60] sm:%s138] %v171
                %v173 = vld [vmem:[%s145 + $0xd0] sm:%s138]
                %174 = vst [vmem:[%s146 + $0x68] sm:%s138] %v173
                %v175 = vld [vmem:[%s145 + $0xe0] sm:%s138]
                %176 = vst [vmem:[%s146 + $0x70] sm:%s138] %v175
                %v177 = vld [vmem:[%s145 + $0xf0] sm:%s138]
                %178 = vst [vmem:[%s146 + $0x78] sm:%s138] %v177
              $region37: #{gcn_dae_forward.13} parent=31 // loop_footer
                %s144 = sadd.s32 1, %s140
              $region38: #{gcn_dae_forward.13} parent=31 // loop_footer_branch
                %139 = sbr.rel target = $region34
              $region39: #{gcn_dae_forward.13} parent=31 // loop_exit
                _
            $region32: #{gcn_dae_forward.13} parent=23 // pred_fallthru
              _
          $region24: #{gcn_dae_forward.13} parent=19 // pred_fallthru
            _
          %223 = vnop
        $region20: #{gcn_dae_forward.13} parent=15 // pred_fallthru
          _
        // Predicated region
        $region55: #{gcn_dae_forward.13} parent=15 // pred_check
          %p224 = pneg %p68
        $region56: #{gcn_dae_forward.13} parent=15 // pred_check_branch
          %226 = sbr.rel (%p224) target = $region58
        $region57: #{gcn_dae_forward.13} parent=15 // pred_region
          %s227 = smul.u32 16, %s16
          %p228 = scmp.lt.s32.totalorder %s227, 31
          %s229 = scalar_select %p228, %s227, 31
          %s230 = smul.addr %s229, 4
          %s231 = scalar_lea.vmem %s1, %s230
          %s232 = smul.u32 16, %s16
        $region58: #{gcn_dae_forward.13} parent=15 // pred_fallthru
          _
      $region16: #{gcn_dae_forward.13} parent=5 // pred_fallthru
        _
      %p233 = scmp.le.s32.totalorder 1, %s8
      %p234 = scmp.lt.s32.totalorder %s8, 5
      %p235 = pnand %p233, %p234
      %p236 = pneg %p235
      // Predicated region
      $region59: #{gcn_dae_forward.13} parent=5 // pred_check
        _
      $region60: #{gcn_dae_forward.13} parent=5 // pred_check_branch
        %238 = sbr.rel (%p235) target = $region62
      $region61: #{gcn_dae_forward.13} parent=5 // pred_region
        %s239 = ssub.s32 %s8, 1
        %s240 = sand.u32 %s35, 1
        %s241 = sand.u32 %s35, 1
        %s242 = smul.addr %s241, 128
        %s243 = scalar_lea.vmem [#allocation3], %s242
        // Predicated region
        $region63: #{gcn_dae_forward.13} parent=61 // pred_check
          %p244 = pneg %p48
        $region64: #{gcn_dae_forward.13} parent=61 // pred_check_branch
          %246 = sbr.rel (%p244) target = $region66
        $region65: #{gcn_dae_forward.13} parent=61 // pred_region
          _
        $region66: #{gcn_dae_forward.13} parent=61 // pred_fallthru
          _
        %s247 = sand.u32 %s35, 1
        %s248 = sand.u32 %s35, 1
        %s249 = smul.addr %s248, 128
        %s250 = scalar_lea.vmem [#allocation3], %s249
        %p251 = pneg %p48
        %p252 = pneg %p45
        %s253 = smul.u32 16, %s18
        %p254 = scmp.lt.s32.totalorder %s253, 31
        %s255 = scalar_select %p254, %s253, 31
        %s256 = smul.addr %s255, 4
        %s257 = scalar_lea.vmem %s1, %s256
        %p258 = pneg %p74
        %p259 = pneg %p71
        %p260 = pneg %p100
        %p261 = pneg %p97
        %s262 = smul.u32 16, %s17
        %p263 = scmp.lt.s32.totalorder %s262, 31
        %s264 = scalar_select %p263, %s262, 31
        %s265 = smul.addr %s264, 8
        %s266 = scalar_lea.vmem %s2, %s265
        %s267 = smul.u32 16, %s17
        %s268 = smul.u32 16, %s18
        %p269 = scmp.lt.s32.totalorder %s268, 31
        %s270 = scalar_select %p269, %s268, 31
        %s271 = smul.addr %s270, 4
        %s272 = scalar_lea.vmem %s1, %s271
        %s273 = smul.u32 16, %s18
        %s274 = smul.u32 16, %s17
        %p275 = scmp.lt.s32.totalorder %s274, 31
        %s276 = scalar_select %p275, %s274, 31
        %s277 = smul.addr %s276, 8
        %s278 = scalar_lea.vmem %s2, %s277
        %s279 = smul.u32 16, %s17
        %p280 = scmp.eq.s32.totalorder %s18, 0
        // Predicated region
        $region67: #{gcn_dae_forward.13} parent=61 // pred_check
          %p281 = pneg %p280
        $region68: #{gcn_dae_forward.13} parent=61 // pred_check_branch
          %283 = sbr.rel (%p281) target = $region70
        $region69: #{gcn_dae_forward.13} parent=61 // pred_region
          %284 = vst [vmem:[#allocation2] sm:$0xff] 0.0
          %285 = vst [vmem:[#allocation2 + $0x8] sm:$0xff] 0.0
          %286 = vst [vmem:[#allocation2 + $0x10] sm:$0xff] 0.0
          %287 = vst [vmem:[#allocation2 + $0x18] sm:$0xff] 0.0
          %288 = vst [vmem:[#allocation2 + $0x20] sm:$0xff] 0.0
          %289 = vst [vmem:[#allocation2 + $0x28] sm:$0xff] 0.0
          %290 = vst [vmem:[#allocation2 + $0x30] sm:$0xff] 0.0
          %291 = vst [vmem:[#allocation2 + $0x38] sm:$0xff] 0.0
          %292 = vst [vmem:[#allocation2 + $0x40] sm:$0xff] 0.0
          %293 = vst [vmem:[#allocation2 + $0x48] sm:$0xff] 0.0
          %294 = vst [vmem:[#allocation2 + $0x50] sm:$0xff] 0.0
          %295 = vst [vmem:[#allocation2 + $0x58] sm:$0xff] 0.0
          %296 = vst [vmem:[#allocation2 + $0x60] sm:$0xff] 0.0
          %297 = vst [vmem:[#allocation2 + $0x68] sm:$0xff] 0.0
          %298 = vst [vmem:[#allocation2 + $0x70] sm:$0xff] 0.0
          %299 = vst [vmem:[#allocation2 + $0x78] sm:$0xff] 0.0
        $region70: #{gcn_dae_forward.13} parent=61 // pred_fallthru
          _
        %v300 = vld [vmem:[#allocation2] sm:$0xff]
        %v301 = vld [vmem:[#allocation2 + $0x8] sm:$0xff]
        %v302 = vld [vmem:[#allocation2 + $0x10] sm:$0xff]
        %v303 = vld [vmem:[#allocation2 + $0x18] sm:$0xff]
        %v304 = vld [vmem:[#allocation2 + $0x20] sm:$0xff]
        %v305 = vld [vmem:[#allocation2 + $0x28] sm:$0xff]
        %v306 = vld [vmem:[#allocation2 + $0x30] sm:$0xff]
        %v307 = vld [vmem:[#allocation2 + $0x38] sm:$0xff]
        %v308 = vld [vmem:[#allocation2 + $0x40] sm:$0xff]
        %v309 = vld [vmem:[#allocation2 + $0x48] sm:$0xff]
        %v310 = vld [vmem:[#allocation2 + $0x50] sm:$0xff]
        %v311 = vld [vmem:[#allocation2 + $0x58] sm:$0xff]
        %v312 = vld [vmem:[#allocation2 + $0x60] sm:$0xff]
        %v313 = vld [vmem:[#allocation2 + $0x68] sm:$0xff]
        %v314 = vld [vmem:[#allocation2 + $0x70] sm:$0xff]
        %v315 = vld [vmem:[#allocation2 + $0x78] sm:$0xff]
        %v316 = vld [vmem:[%s243] sm:$0xff]
        %v317 = vld [vmem:[%s243 + $0x8] sm:$0xff]
        %v318 = vld [vmem:[%s243 + $0x10] sm:$0xff]
        %v319 = vld [vmem:[%s243 + $0x18] sm:$0xff]
        %v320 = vld [vmem:[%s243 + $0x20] sm:$0xff]
        %v321 = vld [vmem:[%s243 + $0x28] sm:$0xff]
        %v322 = vld [vmem:[%s243 + $0x30] sm:$0xff]
        %v323 = vld [vmem:[%s243 + $0x38] sm:$0xff]
        %v324 = vld [vmem:[%s243 + $0x40] sm:$0xff]
        %v325 = vld [vmem:[%s243 + $0x48] sm:$0xff]
        %v326 = vld [vmem:[%s243 + $0x50] sm:$0xff]
        %v327 = vld [vmem:[%s243 + $0x58] sm:$0xff]
        %v328 = vld [vmem:[%s243 + $0x60] sm:$0xff]
        %v329 = vld [vmem:[%s243 + $0x68] sm:$0xff]
        %v330 = vld [vmem:[%s243 + $0x70] sm:$0xff]
        %v331 = vld [vmem:[%s243 + $0x78] sm:$0xff]
        %v332 = vpack.c.bf16 %v317, %v316
        %v333 = vpack.c.bf16 %v319, %v318
        %v334 = vpack.c.bf16 %v321, %v320
        %v335 = vpack.c.bf16 %v323, %v322
        %v336 = vpack.c.bf16 %v325, %v324
        %v337 = vpack.c.bf16 %v327, %v326
        %v338 = vpack.c.bf16 %v329, %v328
        %v339 = vpack.c.bf16 %v331, %v330
        %v340 = vld [vmem:[%s272] sm:$0xf]
        %v341 = vld [vmem:[%s272 + $0x4] sm:$0xf]
        %v342 = vld [vmem:[%s272 + $0x8] sm:$0xf]
        %v343 = vld [vmem:[%s272 + $0xc] sm:$0xf]
        %v344 = vld [vmem:[%s272 + $0x10] sm:$0xf]
        %v345 = vld [vmem:[%s272 + $0x14] sm:$0xf]
        %v346 = vld [vmem:[%s272 + $0x18] sm:$0xf]
        %v347 = vld [vmem:[%s272 + $0x1c] sm:$0xf]
        %v348 = vld [vmem:[%s272 + $0x20] sm:$0xf]
        %v349 = vld [vmem:[%s272 + $0x24] sm:$0xf]
        %v350 = vld [vmem:[%s272 + $0x28] sm:$0xf]
        %v351 = vld [vmem:[%s272 + $0x2c] sm:$0xf]
        %v352 = vld [vmem:[%s272 + $0x30] sm:$0xf]
        %v353 = vld [vmem:[%s272 + $0x34] sm:$0xf]
        %v354 = vld [vmem:[%s272 + $0x38] sm:$0xf]
        %v355 = vld [vmem:[%s272 + $0x3c] sm:$0xf]
        %v372 = vunpack.c.l.b16 %v340
        %v373 = vunpack.c.l.b16 %v341
        %v374 = vunpack.c.l.b16 %v342
        %v375 = vunpack.c.l.b16 %v343
        %v376 = vunpack.c.l.b16 %v344
        %v377 = vunpack.c.l.b16 %v345
        %v378 = vunpack.c.l.b16 %v346
        %v379 = vunpack.c.l.b16 %v347
        %v380 = vunpack.c.l.b16 %v348
        %v381 = vunpack.c.l.b16 %v349
        %v382 = vunpack.c.l.b16 %v350
        %v383 = vunpack.c.l.b16 %v351
        %v384 = vunpack.c.l.b16 %v352
        %v385 = vunpack.c.l.b16 %v353
        %v386 = vunpack.c.l.b16 %v354
        %v387 = vunpack.c.l.b16 %v355
        %v388 = vpack.c.b16 %v373, %v372
        %v389 = vpack.c.b16 %v375, %v374
        %v390 = vpack.c.b16 %v377, %v376
        %v391 = vpack.c.b16 %v379, %v378
        %v392 = vpack.c.b16 %v381, %v380
        %v393 = vpack.c.b16 %v383, %v382
        %v394 = vpack.c.b16 %v385, %v384
        %v395 = vpack.c.b16 %v387, %v386
        %404 = vmatpush.bf16.msra.mxu0 %v395
        %405 = vmatpush.bf16.msra.mxu0 %v394
        %406 = vmatpush.bf16.msra.mxu0 %v393
        %407 = vmatpush.bf16.msra.mxu0 %v392
        %408 = vmatpush.bf16.msra.mxu0 %v391
        %409 = vmatpush.bf16.msra.mxu0 %v390
        %410 = vmatpush.bf16.msra.mxu0 %v389
        %411 = vmatpush.bf16.msra.mxu0 %v388
        %412 = vmatmul.bf16.gmra.mxu0 %v332
        %v413 = vpop.f32.mrf.mxu0
        %v414 = vadd.f32 0.0, %v413
        %v415 = vpop.f32.mrf.mxu0
        %v416 = vadd.f32 0.0, %v415
        %417 = vmatmul.bf16.gmra.mxu0 %v333
        %v418 = vpop.f32.mrf.mxu0
        %v419 = vadd.f32 0.0, %v418
        %v420 = vpop.f32.mrf.mxu0
        %v421 = vadd.f32 0.0, %v420
        %422 = vmatmul.bf16.gmra.mxu0 %v334
        %v423 = vpop.f32.mrf.mxu0
        %v424 = vadd.f32 0.0, %v423
        %v425 = vpop.f32.mrf.mxu0
        %v426 = vadd.f32 0.0, %v425
        %427 = vmatmul.bf16.gmra.mxu0 %v335
        %v428 = vpop.f32.mrf.mxu0
        %v429 = vadd.f32 0.0, %v428
        %v430 = vpop.f32.mrf.mxu0
        %v431 = vadd.f32 0.0, %v430
        %432 = vmatmul.bf16.gmra.mxu0 %v336
        %v433 = vpop.f32.mrf.mxu0
        %v434 = vadd.f32 0.0, %v433
        %v435 = vpop.f32.mrf.mxu0
        %v436 = vadd.f32 0.0, %v435
        %437 = vmatmul.bf16.gmra.mxu0 %v337
        %v438 = vpop.f32.mrf.mxu0
        %v439 = vadd.f32 0.0, %v438
        %v440 = vpop.f32.mrf.mxu0
        %v441 = vadd.f32 0.0, %v440
        %442 = vmatmul.bf16.gmra.mxu0 %v338
        %v443 = vpop.f32.mrf.mxu0
        %v444 = vadd.f32 0.0, %v443
        %v445 = vpop.f32.mrf.mxu0
        %v446 = vadd.f32 0.0, %v445
        %447 = vmatmul.bf16.gmra.mxu0 %v339
        %v448 = vpop.f32.mrf.mxu0
        %v449 = vadd.f32 0.0, %v448
        %v450 = vpop.f32.mrf.mxu0
        %v451 = vadd.f32 0.0, %v450
        %452 = vdwg.mxu0
        %v453 = vadd.f32 %v300, %v414
        %v454 = vadd.f32 %v301, %v416
        %v455 = vadd.f32 %v302, %v419
        %v456 = vadd.f32 %v303, %v421
        %v457 = vadd.f32 %v304, %v424
        %v458 = vadd.f32 %v305, %v426
        %v459 = vadd.f32 %v306, %v429
        %v460 = vadd.f32 %v307, %v431
        %v461 = vadd.f32 %v308, %v434
        %v462 = vadd.f32 %v309, %v436
        %v463 = vadd.f32 %v310, %v439
        %v464 = vadd.f32 %v311, %v441
        %v465 = vadd.f32 %v312, %v444
        %v466 = vadd.f32 %v313, %v446
        %v467 = vadd.f32 %v314, %v449
        %v468 = vadd.f32 %v315, %v451
        %469 = vst [vmem:[#allocation2] sm:$0xff] %v453
        %470 = vst [vmem:[#allocation2 + $0x8] sm:$0xff] %v454
        %471 = vst [vmem:[#allocation2 + $0x10] sm:$0xff] %v455
        %472 = vst [vmem:[#allocation2 + $0x18] sm:$0xff] %v456
        %473 = vst [vmem:[#allocation2 + $0x20] sm:$0xff] %v457
        %474 = vst [vmem:[#allocation2 + $0x28] sm:$0xff] %v458
        %475 = vst [vmem:[#allocation2 + $0x30] sm:$0xff] %v459
        %476 = vst [vmem:[#allocation2 + $0x38] sm:$0xff] %v460
        %477 = vst [vmem:[#allocation2 + $0x40] sm:$0xff] %v461
        %478 = vst [vmem:[#allocation2 + $0x48] sm:$0xff] %v462
        %479 = vst [vmem:[#allocation2 + $0x50] sm:$0xff] %v463
        %480 = vst [vmem:[#allocation2 + $0x58] sm:$0xff] %v464
        %481 = vst [vmem:[#allocation2 + $0x60] sm:$0xff] %v465
        %482 = vst [vmem:[#allocation2 + $0x68] sm:$0xff] %v466
        %483 = vst [vmem:[#allocation2 + $0x70] sm:$0xff] %v467
        %484 = vst [vmem:[#allocation2 + $0x78] sm:$0xff] %v468
        %p485 = scmp.eq.s32.totalorder %s18, 1
        // Predicated region
        $region71: #{gcn_dae_forward.13} parent=61 // pred_check
          %p486 = pneg %p485
        $region72: #{gcn_dae_forward.13} parent=61 // pred_check_branch
          %488 = sbr.rel (%p486) target = $region74
        $region73: #{gcn_dae_forward.13} parent=61 // pred_region
          %v489 = vld [vmem:[#allocation2] sm:$0xff]
          %v490 = vld [vmem:[#allocation2 + $0x8] sm:$0xff]
          %v491 = vld [vmem:[#allocation2 + $0x10] sm:$0xff]
          %v492 = vld [vmem:[#allocation2 + $0x18] sm:$0xff]
          %v493 = vld [vmem:[#allocation2 + $0x20] sm:$0xff]
          %v494 = vld [vmem:[#allocation2 + $0x28] sm:$0xff]
          %v495 = vld [vmem:[#allocation2 + $0x30] sm:$0xff]
          %v496 = vld [vmem:[#allocation2 + $0x38] sm:$0xff]
          %v497 = vld [vmem:[#allocation2 + $0x40] sm:$0xff]
          %v498 = vld [vmem:[#allocation2 + $0x48] sm:$0xff]
          %v499 = vld [vmem:[#allocation2 + $0x50] sm:$0xff]
          %v500 = vld [vmem:[#allocation2 + $0x58] sm:$0xff]
          %v501 = vld [vmem:[#allocation2 + $0x60] sm:$0xff]
          %v502 = vld [vmem:[#allocation2 + $0x68] sm:$0xff]
          %v503 = vld [vmem:[#allocation2 + $0x70] sm:$0xff]
          %v504 = vld [vmem:[#allocation2 + $0x78] sm:$0xff]
          %505 = vst [vmem:[%s278] sm:$0xff] %v489
          %506 = vst [vmem:[%s278 + $0x8] sm:$0xff] %v490
          %507 = vst [vmem:[%s278 + $0x10] sm:$0xff] %v491
          %508 = vst [vmem:[%s278 + $0x18] sm:$0xff] %v492
          %509 = vst [vmem:[%s278 + $0x20] sm:$0xff] %v493
          %510 = vst [vmem:[%s278 + $0x28] sm:$0xff] %v494
          %511 = vst [vmem:[%s278 + $0x30] sm:$0xff] %v495
          %512 = vst [vmem:[%s278 + $0x38] sm:$0xff] %v496
          %513 = vst [vmem:[%s278 + $0x40] sm:$0xff] %v497
          %514 = vst [vmem:[%s278 + $0x48] sm:$0xff] %v498
          %515 = vst [vmem:[%s278 + $0x50] sm:$0xff] %v499
          %516 = vst [vmem:[%s278 + $0x58] sm:$0xff] %v500
          %517 = vst [vmem:[%s278 + $0x60] sm:$0xff] %v501
          %518 = vst [vmem:[%s278 + $0x68] sm:$0xff] %v502
          %519 = vst [vmem:[%s278 + $0x70] sm:$0xff] %v503
          %520 = vst [vmem:[%s278 + $0x78] sm:$0xff] %v504
        $region74: #{gcn_dae_forward.13} parent=61 // pred_fallthru
          _
        %s521 = smul.u32 16, %s17
        %p522 = scmp.lt.s32.totalorder %s521, 31
        %s523 = scalar_select %p522, %s521, 31
        %s524 = smul.addr %s523, 8
        %s525 = scalar_lea.vmem %s2, %s524
        // Predicated region
        $region75: #{gcn_dae_forward.13} parent=61 // pred_check
          %p526 = pneg %p97
        $region76: #{gcn_dae_forward.13} parent=61 // pred_check_branch
          %528 = sbr.rel (%p526) target = $region78
        $region77: #{gcn_dae_forward.13} parent=61 // pred_region
          %s529 = smul.u32 16, %s17
        $region78: #{gcn_dae_forward.13} parent=61 // pred_fallthru
          _
      $region62: #{gcn_dae_forward.13} parent=5 // pred_fallthru
        _
      %p530 = scmp.le.s32.totalorder 2, %s8
      // Predicated region
      $region79: #{gcn_dae_forward.13} parent=5 // pred_check
        %p531 = pneg %p530
      $region80: #{gcn_dae_forward.13} parent=5 // pred_check_branch
        %533 = sbr.rel (%p531) target = $region82
      $region81: #{gcn_dae_forward.13} parent=5 // pred_region
        %s534 = ssub.s32 %s8, 2
        // Predicated region
        $region83: #{gcn_dae_forward.13} parent=81 // pred_check
          %p535 = pneg %p103
        $region84: #{gcn_dae_forward.13} parent=81 // pred_check_branch
          %537 = sbr.rel (%p535) target = $region86
        $region85: #{gcn_dae_forward.13} parent=81 // pred_region
          %s538 = smul.u32 16, %s19
          %p539 = scmp.lt.s32.totalorder %s538, 31
          %s540 = scalar_select %p539, %s538, 31
          %s541 = smul.addr %s540, 8
          %s542 = scalar_lea.vmem %s2, %s541
        $region86: #{gcn_dae_forward.13} parent=81 // pred_fallthru
          _
      $region82: #{gcn_dae_forward.13} parent=5 // pred_fallthru
        _
    $region6: #{gcn_dae_forward.13} parent=1 // loop_footer
      %s12 = sadd.s32 1, %s8
    $region7: #{gcn_dae_forward.13} parent=1 // loop_footer_branch
      %7 = sbr.rel target = $region3
    $region8: #{gcn_dae_forward.13} parent=1 // loop_exit
      _

// kernel: gcn_dae_forward.12
$region0: #{gcn_dae_forward.12}
  #allocation0 [shape = 'u32[]', space=smem, size = 0x4, offset = 0x4, fixed_abs, tag = 'smem constant byte address 0x4 - core index']
  #allocation1 [shape = 'u32[72,128]{1,0:T(1,128)}', space=vmem, size = 0x9000, scoped, tag = 'internal scratch']
  #allocation2 [shape = 'f32[128,128]{1,0:T(8,128)}', space=vmem, size = 0x10000, scoped, tag = 'scratch operand']
  %s0 = inlined_call_operand.vmem [shape: f32[256,256], index: 0, kind: input, shape index: {}]
  %s1 = inlined_call_operand.vmem [shape: bf16[256,128], index: 1, kind: input, shape index: {}]
  %s2 = inlined_call_operand.vmem [shape: bf16[128,128], index: 2, kind: input, shape index: {}]
  %s3 = inlined_call_operand.vmem [shape: f32[1,128], index: 3, kind: input, shape index: {}]
  %s4 = inlined_call_operand.vmem [shape: bf16[256,128], index: 4, kind: output, shape index: {}]
  %s5 = sld [smem:[#allocation0]]
  $region95: #{gcn_dae_forward.12} parent=0
    _
  %s7 = ssub.s32 1, %s5
  %s8 = scalar_select 0, %s7, %s5
  $region1: #{gcn_dae_forward.12} parent=0
    #allocation3 [shape = 'u8[131072]{0}', space=vmem, size = 0x20000, scoped, tag = 'input window, operand 0']
    loop: start=0, step=1, limit=6
    $region2: #{gcn_dae_forward.12} parent=1 // loop_pre_header
      _
    $region3: #{gcn_dae_forward.12} parent=1 // loop_header
      %s10 = sphi 0, %s14
      %p11 = scmp.ge.s32.totalorder %s10, 6
      %s17 = sphi 0, %s29
      %s18 = sphi 0, %s25
      %s19 = sphi 0, %s17
      %s20 = sphi 0, %s18
      %s21 = sphi 0, %s19
      %s22 = sphi 0, %s20
      %s34 = sphi 0, %s36
      %s37 = sphi 0, %s34
      %s38 = sphi 0, %s37
      %s54 = sphi 0, %s38
      %s60 = sphi 0, %s62
      %s63 = sphi 0, %s60
      %s64 = sphi 0, %s63
      %s80 = sphi 0, %s64
      %s84 = sphi 0, %s84
      %s86 = sphi 0, %s84
      %s87 = sphi 0, %s86
      %s101 = sphi 0, %s87
      %s105 = sphi 0, %s105
      %s107 = sphi 0, %s105
      %s108 = sphi 0, %s107
      %s122 = sphi 0, %s108
      %s128 = sphi 0, %s130
      %s131 = sphi 0, %s128
      %s132 = sphi 0, %s131
      %s148 = sphi 0, %s132
    $region4: #{gcn_dae_forward.12} parent=1 // loop_header_branch
      %13 = sbr.rel (%p11) target = $region8
    $region5: #{gcn_dae_forward.12} parent=1 // loop_body
      %s15 = ssub.s32 %s10, 1
      %s16 = ssub.s32 %s10, 2
      %s23 = sadd.s32 1, %s18
      %p24 = scmp.ge.s32.totalorder %s23, 2
      %s25 = scalar_select %p24, 0, %s23
      %s26 = sadd.s32 1, %s17
      %s27 = scalar_select %p24, %s26, %s17
      %p28 = scmp.ge.s32.totalorder %s27, 2
      %s29 = scalar_select %p28, 0, %s27
      %s30 = ssub.s32 %s17, %s29
      %s31 = ssub.s32 %s18, %s25
      %s32 = sor.u32 %s30, %s31
      %p33 = scmp.eq.s32.totalorder %s32, 0
      %s35 = sadd.s32 %s34, 1
      %s36 = scalar_select %p33, %s34, %s35
      %p39 = pneg %p33
      %p40 = scmp.eq.s32.totalorder %s10, 3
      %p41 = por %p39, %p40
      %p42 = scmp.ne.s32.totalorder %s34, %s37
      %p43 = scmp.eq.s32.totalorder %s10, 0
      %p44 = por %p42, %p43
      %p45 = scmp.ne.s32.totalorder %s34, %s37
      %p46 = scmp.eq.s32.totalorder %s15, 3
      %p47 = por %p45, %p46
      %p48 = scmp.ne.s32.totalorder %s37, %s38
      %p49 = scmp.eq.s32.totalorder %s15, 0
      %p50 = por %p48, %p49
      %p51 = scmp.ne.s32.totalorder %s37, %s38
      %p52 = scmp.eq.s32.totalorder %s16, 3
      %p53 = por %p51, %p52
      %p55 = scmp.ne.s32.totalorder %s38, %s54
      %p56 = scmp.eq.s32.totalorder %s16, 0
      %p57 = por %p55, %p56
      %s58 = ssub.s32 %s18, %s25
      %p59 = scmp.eq.s32.totalorder %s58, 0
      %s61 = sadd.s32 %s60, 1
      %s62 = scalar_select %p59, %s60, %s61
      %p65 = pneg %p59
      %p66 = scmp.eq.s32.totalorder %s10, 3
      %p67 = por %p65, %p66
      %p68 = scmp.ne.s32.totalorder %s60, %s63
      %p69 = scmp.eq.s32.totalorder %s10, 0
      %p70 = por %p68, %p69
      %p71 = scmp.ne.s32.totalorder %s60, %s63
      %p72 = scmp.eq.s32.totalorder %s15, 3
      %p73 = por %p71, %p72
      %p74 = scmp.ne.s32.totalorder %s63, %s64
      %p75 = scmp.eq.s32.totalorder %s15, 0
      %p76 = por %p74, %p75
      %p77 = scmp.ne.s32.totalorder %s63, %s64
      %p78 = scmp.eq.s32.totalorder %s16, 3
      %p79 = por %p77, %p78
      %p81 = scmp.ne.s32.totalorder %s64, %s80
      %p82 = scmp.eq.s32.totalorder %s16, 0
      %p83 = por %p81, %p82
      %s85 = sadd.s32 %s84, 1
      %p88 = scmp.eq.s32.totalorder %s10, 3
      %p89 = scmp.ne.s32.totalorder %s84, %s86
      %p90 = scmp.eq.s32.totalorder %s10, 0
      %p91 = por %p89, %p90
      %p92 = scmp.ne.s32.totalorder %s84, %s86
      %p93 = scmp.eq.s32.totalorder %s15, 3
      %p94 = por %p92, %p93
      %p95 = scmp.ne.s32.totalorder %s86, %s87
      %p96 = scmp.eq.s32.totalorder %s15, 0
      %p97 = por %p95, %p96
      %p98 = scmp.ne.s32.totalorder %s86, %s87
      %p99 = scmp.eq.s32.totalorder %s16, 3
      %p100 = por %p98, %p99
      %p102 = scmp.ne.s32.totalorder %s87, %s101
      %p103 = scmp.eq.s32.totalorder %s16, 0
      %p104 = por %p102, %p103
      %s106 = sadd.s32 %s105, 1
      %p109 = scmp.eq.s32.totalorder %s10, 3
      %p110 = scmp.ne.s32.totalorder %s105, %s107
      %p111 = scmp.eq.s32.totalorder %s10, 0
      %p112 = por %p110, %p111
      %p113 = scmp.ne.s32.totalorder %s105, %s107
      %p114 = scmp.eq.s32.totalorder %s15, 3
      %p115 = por %p113, %p114
      %p116 = scmp.ne.s32.totalorder %s107, %s108
      %p117 = scmp.eq.s32.totalorder %s15, 0
      %p118 = por %p116, %p117
      %p119 = scmp.ne.s32.totalorder %s107, %s108
      %p120 = scmp.eq.s32.totalorder %s16, 3
      %p121 = por %p119, %p120
      %p123 = scmp.ne.s32.totalorder %s108, %s122
      %p124 = scmp.eq.s32.totalorder %s16, 0
      %p125 = por %p123, %p124
      %s126 = ssub.s32 %s17, %s29
      %p127 = scmp.eq.s32.totalorder %s126, 0
      %s129 = sadd.s32 %s128, 1
      %s130 = scalar_select %p127, %s128, %s129
      %p133 = pneg %p127
      %p134 = scmp.eq.s32.totalorder %s10, 3
      %p135 = por %p133, %p134
      %p136 = scmp.ne.s32.totalorder %s128, %s131
      %p137 = scmp.eq.s32.totalorder %s10, 0
      %p138 = por %p136, %p137
      %p139 = scmp.ne.s32.totalorder %s128, %s131
      %p140 = scmp.eq.s32.totalorder %s15, 3
      %p141 = por %p139, %p140
      %p142 = scmp.ne.s32.totalorder %s131, %s132
      %p143 = scmp.eq.s32.totalorder %s15, 0
      %p144 = por %p142, %p143
      %p145 = scmp.ne.s32.totalorder %s131, %s132
      %p146 = scmp.eq.s32.totalorder %s16, 3
      %p147 = por %p145, %p146
      %p149 = scmp.ne.s32.totalorder %s132, %s148
      %p150 = scmp.eq.s32.totalorder %s16, 0
      %p151 = por %p149, %p150
      %p152 = scmp.le.s32.totalorder 1, %s10
      %p153 = scmp.lt.s32.totalorder %s10, 5
      %p154 = pnand %p152, %p153
      %p155 = pneg %p154
      // Predicated region
      $region9: #{gcn_dae_forward.12} parent=5 // pred_check
        _
      $region10: #{gcn_dae_forward.12} parent=5 // pred_check_branch
        %157 = sbr.rel (%p154) target = $region12
      $region11: #{gcn_dae_forward.12} parent=5 // pred_region
        %s158 = ssub.s32 %s10, 1
        // Predicated region
        $region13: #{gcn_dae_forward.12} parent=11 // pred_check
          %p159 = pneg %p97
        $region14: #{gcn_dae_forward.12} parent=11 // pred_check_branch
          %161 = sbr.rel (%p159) target = $region16
        $region15: #{gcn_dae_forward.12} parent=11 // pred_region
          _
        $region16: #{gcn_dae_forward.12} parent=11 // pred_fallthru
          _
        // Predicated region
        $region17: #{gcn_dae_forward.12} parent=11 // pred_check
          %p162 = pneg %p118
        $region18: #{gcn_dae_forward.12} parent=11 // pred_check_branch
          %164 = sbr.rel (%p162) target = $region20
        $region19: #{gcn_dae_forward.12} parent=11 // pred_region
          _
        $region20: #{gcn_dae_forward.12} parent=11 // pred_fallthru
          _
      $region12: #{gcn_dae_forward.12} parent=5 // pred_fallthru
        _
      %p165 = scmp.lt.s32.totalorder %s10, 4
      // Predicated region
      $region21: #{gcn_dae_forward.12} parent=5 // pred_check
        %p166 = pneg %p165
      $region22: #{gcn_dae_forward.12} parent=5 // pred_check_branch
        %168 = sbr.rel (%p166) target = $region24
      $region23: #{gcn_dae_forward.12} parent=5 // pred_region
        // Predicated region
        $region25: #{gcn_dae_forward.12} parent=23 // pred_check
          %p169 = pneg %p44
        $region26: #{gcn_dae_forward.12} parent=23 // pred_check_branch
          %171 = sbr.rel (%p169) target = $region28
        $region27: #{gcn_dae_forward.12} parent=23 // pred_region
          %s172 = sand.u32 %s34, 1
          %s173 = sand.u32 %s34, 1
          %s174 = smul.addr %s173, 128
          %s175 = scalar_lea.vmem [#allocation3], %s174
          %s176 = smul.u32 16, %s17
          %s177 = smul.addr %s176, 2
          %s178 = sadd.s32 %s18, %s177
          %s179 = smul.addr %s178, 8
          %s180 = scalar_lea.vmem %s0, %s179
          // Predicated region
          $region29: #{gcn_dae_forward.12} parent=27 // pred_check
            _
          $region30: #{gcn_dae_forward.12} parent=27 // pred_check_branch
            %182 = sbr.rel (0) target = $region32
          $region31: #{gcn_dae_forward.12} parent=27 // pred_region
            // Predicated region
            $region33: #{gcn_dae_forward.12} parent=31 // pred_check
              _
            $region34: #{gcn_dae_forward.12} parent=31 // pred_check_branch
              %184 = sbr.rel (0) target = $region36
            $region35: #{gcn_dae_forward.12} parent=31 // pred_region
              // Predicated region
              $region48: #{gcn_dae_forward.12} parent=35 // pred_check
                _
              $region49: #{gcn_dae_forward.12} parent=35 // pred_check_branch
                %230 = sbr.rel (0) target = $region51
              $region50: #{gcn_dae_forward.12} parent=35 // pred_region
                loop: start=0, step=1, limit=1
                $region52: #{gcn_dae_forward.12} parent=50 // loop_pre_header
                  _
                $region53: #{gcn_dae_forward.12} parent=50 // loop_header
                  %s232 = sphi 0, %s236
                  %p233 = scmp.ge.s32.totalorder %s232, 1
                  %s237 = sphi %s180, %s180
                  %s238 = sphi %s175, %s175
                $region54: #{gcn_dae_forward.12} parent=50 // loop_header_branch
                  %235 = sbr.rel (%p233) target = $region58
                $region55: #{gcn_dae_forward.12} parent=50 // loop_body
                  %v239 = vld [vmem:[%s237] sm:$0xff]
                  %240 = vst [vmem:[%s238] sm:$0xff] %v239
                  %v241 = vld [vmem:[%s237 + $0x10] sm:$0xff]
                  %242 = vst [vmem:[%s238 + $0x8] sm:$0xff] %v241
                  %v243 = vld [vmem:[%s237 + $0x20] sm:$0xff]
                  %244 = vst [vmem:[%s238 + $0x10] sm:$0xff] %v243
                  %v245 = vld [vmem:[%s237 + $0x30] sm:$0xff]
                  %246 = vst [vmem:[%s238 + $0x18] sm:$0xff] %v245
                  %v247 = vld [vmem:[%s237 + $0x40] sm:$0xff]
                  %248 = vst [vmem:[%s238 + $0x20] sm:$0xff] %v247
                  %v249 = vld [vmem:[%s237 + $0x50] sm:$0xff]
                  %250 = vst [vmem:[%s238 + $0x28] sm:$0xff] %v249
                  %v251 = vld [vmem:[%s237 + $0x60] sm:$0xff]
                  %252 = vst [vmem:[%s238 + $0x30] sm:$0xff] %v251
                  %v253 = vld [vmem:[%s237 + $0x70] sm:$0xff]
                  %254 = vst [vmem:[%s238 + $0x38] sm:$0xff] %v253
                  %v255 = vld [vmem:[%s237 + $0x80] sm:$0xff]
                  %256 = vst [vmem:[%s238 + $0x40] sm:$0xff] %v255
                  %v257 = vld [vmem:[%s237 + $0x90] sm:$0xff]
                  %258 = vst [vmem:[%s238 + $0x48] sm:$0xff] %v257
                  %v259 = vld [vmem:[%s237 + $0xa0] sm:$0xff]
                  %260 = vst [vmem:[%s238 + $0x50] sm:$0xff] %v259
                  %v261 = vld [vmem:[%s237 + $0xb0] sm:$0xff]
                  %262 = vst [vmem:[%s238 + $0x58] sm:$0xff] %v261
                  %v263 = vld [vmem:[%s237 + $0xc0] sm:$0xff]
                  %264 = vst [vmem:[%s238 + $0x60] sm:$0xff] %v263
                  %v265 = vld [vmem:[%s237 + $0xd0] sm:$0xff]
                  %266 = vst [vmem:[%s238 + $0x68] sm:$0xff] %v265
                  %v267 = vld [vmem:[%s237 + $0xe0] sm:$0xff]
                  %268 = vst [vmem:[%s238 + $0x70] sm:$0xff] %v267
                  %v269 = vld [vmem:[%s237 + $0xf0] sm:$0xff]
                  %270 = vst [vmem:[%s238 + $0x78] sm:$0xff] %v269
                $region56: #{gcn_dae_forward.12} parent=50 // loop_footer
                  %s236 = sadd.s32 1, %s232
                $region57: #{gcn_dae_forward.12} parent=50 // loop_footer_branch
                  %231 = sbr.rel target = $region53
                $region58: #{gcn_dae_forward.12} parent=50 // loop_exit
                  _
              $region51: #{gcn_dae_forward.12} parent=35 // pred_fallthru
                _
              // Predicated region
              $region59: #{gcn_dae_forward.12} parent=35 // pred_check
                _
              $region60: #{gcn_dae_forward.12} parent=35 // pred_check_branch
                %272 = sbr.rel target = $region62
              $region61: #{gcn_dae_forward.12} parent=35 // pred_region
                _
              $region62: #{gcn_dae_forward.12} parent=35 // pred_fallthru
                _
            $region36: #{gcn_dae_forward.12} parent=31 // pred_fallthru
              _
            // Predicated region
            $region37: #{gcn_dae_forward.12} parent=31 // pred_check
              _
            $region38: #{gcn_dae_forward.12} parent=31 // pred_check_branch
              %186 = sbr.rel target = $region40
            $region39: #{gcn_dae_forward.12} parent=31 // pred_region
              %s188 = ssub.s32 256, 1
              loop: start=0, step=1, limit=1
              $region41: #{gcn_dae_forward.12} parent=39 // loop_pre_header
                _
              $region42: #{gcn_dae_forward.12} parent=39 // loop_header
                %s190 = sphi 0, %s194
                %p191 = scmp.ge.s32.totalorder %s190, 1
                %s195 = sphi %s180, %s180
                %s196 = sphi %s175, %s175
              $region43: #{gcn_dae_forward.12} parent=39 // loop_header_branch
                %193 = sbr.rel (%p191) target = $region47
              $region44: #{gcn_dae_forward.12} parent=39 // loop_body
                %v197 = vld [vmem:[%s195] sm:%s188]
                %198 = vst [vmem:[%s196] sm:%s188] %v197
                %v199 = vld [vmem:[%s195 + $0x10] sm:%s188]
                %200 = vst [vmem:[%s196 + $0x8] sm:%s188] %v199
                %v201 = vld [vmem:[%s195 + $0x20] sm:%s188]
                %202 = vst [vmem:[%s196 + $0x10] sm:%s188] %v201
                %v203 = vld [vmem:[%s195 + $0x30] sm:%s188]
                %204 = vst [vmem:[%s196 + $0x18] sm:%s188] %v203
                %v205 = vld [vmem:[%s195 + $0x40] sm:%s188]
                %206 = vst [vmem:[%s196 + $0x20] sm:%s188] %v205
                %v207 = vld [vmem:[%s195 + $0x50] sm:%s188]
                %208 = vst [vmem:[%s196 + $0x28] sm:%s188] %v207
                %v209 = vld [vmem:[%s195 + $0x60] sm:%s188]
                %210 = vst [vmem:[%s196 + $0x30] sm:%s188] %v209
                %v211 = vld [vmem:[%s195 + $0x70] sm:%s188]
                %212 = vst [vmem:[%s196 + $0x38] sm:%s188] %v211
                %v213 = vld [vmem:[%s195 + $0x80] sm:%s188]
                %214 = vst [vmem:[%s196 + $0x40] sm:%s188] %v213
                %v215 = vld [vmem:[%s195 + $0x90] sm:%s188]
                %216 = vst [vmem:[%s196 + $0x48] sm:%s188] %v215
                %v217 = vld [vmem:[%s195 + $0xa0] sm:%s188]
                %218 = vst [vmem:[%s196 + $0x50] sm:%s188] %v217
                %v219 = vld [vmem:[%s195 + $0xb0] sm:%s188]
                %220 = vst [vmem:[%s196 + $0x58] sm:%s188] %v219
                %v221 = vld [vmem:[%s195 + $0xc0] sm:%s188]
                %222 = vst [vmem:[%s196 + $0x60] sm:%s188] %v221
                %v223 = vld [vmem:[%s195 + $0xd0] sm:%s188]
                %224 = vst [vmem:[%s196 + $0x68] sm:%s188] %v223
                %v225 = vld [vmem:[%s195 + $0xe0] sm:%s188]
                %226 = vst [vmem:[%s196 + $0x70] sm:%s188] %v225
                %v227 = vld [vmem:[%s195 + $0xf0] sm:%s188]
                %228 = vst [vmem:[%s196 + $0x78] sm:%s188] %v227
              $region45: #{gcn_dae_forward.12} parent=39 // loop_footer
                %s194 = sadd.s32 1, %s190
              $region46: #{gcn_dae_forward.12} parent=39 // loop_footer_branch
                %189 = sbr.rel target = $region42
              $region47: #{gcn_dae_forward.12} parent=39 // loop_exit
                _
            $region40: #{gcn_dae_forward.12} parent=31 // pred_fallthru
              _
          $region32: #{gcn_dae_forward.12} parent=27 // pred_fallthru
            _
          %273 = vnop
        $region28: #{gcn_dae_forward.12} parent=23 // pred_fallthru
          _
        // Predicated region
        $region63: #{gcn_dae_forward.12} parent=23 // pred_check
          %p274 = pneg %p70
        $region64: #{gcn_dae_forward.12} parent=23 // pred_check_branch
          %276 = sbr.rel (%p274) target = $region66
        $region65: #{gcn_dae_forward.12} parent=23 // pred_region
          %s277 = smul.u32 16, %s18
          %p278 = scmp.lt.s32.totalorder %s277, 31
          %s279 = scalar_select %p278, %s277, 31
          %s280 = smul.addr %s279, 4
          %s281 = scalar_lea.vmem %s1, %s280
          %s282 = smul.u32 16, %s18
        $region66: #{gcn_dae_forward.12} parent=23 // pred_fallthru
          _
      $region24: #{gcn_dae_forward.12} parent=5 // pred_fallthru
        _
      %p283 = scmp.le.s32.totalorder 1, %s10
      %p284 = scmp.lt.s32.totalorder %s10, 5
      %p285 = pnand %p283, %p284
      %p286 = pneg %p285
      // Predicated region
      $region67: #{gcn_dae_forward.12} parent=5 // pred_check
        _
      $region68: #{gcn_dae_forward.12} parent=5 // pred_check_branch
        %288 = sbr.rel (%p285) target = $region70
      $region69: #{gcn_dae_forward.12} parent=5 // pred_region
        %s289 = ssub.s32 %s10, 1
        %s290 = sand.u32 %s37, 1
        %s291 = sand.u32 %s37, 1
        %s292 = smul.addr %s291, 128
        %s293 = scalar_lea.vmem [#allocation3], %s292
        // Predicated region
        $region71: #{gcn_dae_forward.12} parent=69 // pred_check
          %p294 = pneg %p50
        $region72: #{gcn_dae_forward.12} parent=69 // pred_check_branch
          %296 = sbr.rel (%p294) target = $region74
        $region73: #{gcn_dae_forward.12} parent=69 // pred_region
          _
        $region74: #{gcn_dae_forward.12} parent=69 // pred_fallthru
          _
        %s297 = sand.u32 %s37, 1
        %s298 = sand.u32 %s37, 1
        %s299 = smul.addr %s298, 128
        %s300 = scalar_lea.vmem [#allocation3], %s299
        %p301 = pneg %p50
        %p302 = pneg %p47
        %s303 = smul.u32 16, %s20
        %p304 = scmp.lt.s32.totalorder %s303, 31
        %s305 = scalar_select %p304, %s303, 31
        %s306 = smul.addr %s305, 4
        %s307 = scalar_lea.vmem %s1, %s306
        %p308 = pneg %p76
        %p309 = pneg %p73
        %p310 = pneg %p97
        %p311 = pneg %p94
        %p312 = pneg %p118
        %p313 = pneg %p115
        %p314 = pneg %p144
        %p315 = pneg %p141
        %s316 = smul.u32 16, %s19
        %p317 = scmp.lt.s32.totalorder %s316, 31
        %s318 = scalar_select %p317, %s316, 31
        %s319 = smul.addr %s318, 4
        %s320 = scalar_lea.vmem %s4, %s319
        %s321 = smul.u32 16, %s19
        %s322 = smul.u32 16, %s20
        %p323 = scmp.lt.s32.totalorder %s322, 31
        %s324 = scalar_select %p323, %s322, 31
        %s325 = smul.addr %s324, 4
        %s326 = scalar_lea.vmem %s1, %s325
        %s327 = smul.u32 16, %s20
        %s328 = smul.u32 16, %s19
        %p329 = scmp.lt.s32.totalorder %s328, 31
        %s330 = scalar_select %p329, %s328, 31
        %s331 = smul.addr %s330, 4
        %s332 = scalar_lea.vmem %s4, %s331
        %s333 = smul.u32 16, %s19
        %p334 = scmp.eq.s32.totalorder %s20, 0
        // Predicated region
        $region75: #{gcn_dae_forward.12} parent=69 // pred_check
          %p335 = pneg %p334
        $region76: #{gcn_dae_forward.12} parent=69 // pred_check_branch
          %337 = sbr.rel (%p335) target = $region78
        $region77: #{gcn_dae_forward.12} parent=69 // pred_region
          %338 = vst [vmem:[#allocation2] sm:$0xff] 0.0
          %339 = vst [vmem:[#allocation2 + $0x8] sm:$0xff] 0.0
          %340 = vst [vmem:[#allocation2 + $0x10] sm:$0xff] 0.0
          %341 = vst [vmem:[#allocation2 + $0x18] sm:$0xff] 0.0
          %342 = vst [vmem:[#allocation2 + $0x20] sm:$0xff] 0.0
          %343 = vst [vmem:[#allocation2 + $0x28] sm:$0xff] 0.0
          %344 = vst [vmem:[#allocation2 + $0x30] sm:$0xff] 0.0
          %345 = vst [vmem:[#allocation2 + $0x38] sm:$0xff] 0.0
          %346 = vst [vmem:[#allocation2 + $0x40] sm:$0xff] 0.0
          %347 = vst [vmem:[#allocation2 + $0x48] sm:$0xff] 0.0
          %348 = vst [vmem:[#allocation2 + $0x50] sm:$0xff] 0.0
          %349 = vst [vmem:[#allocation2 + $0x58] sm:$0xff] 0.0
          %350 = vst [vmem:[#allocation2 + $0x60] sm:$0xff] 0.0
          %351 = vst [vmem:[#allocation2 + $0x68] sm:$0xff] 0.0
          %352 = vst [vmem:[#allocation2 + $0x70] sm:$0xff] 0.0
          %353 = vst [vmem:[#allocation2 + $0x78] sm:$0xff] 0.0
        $region78: #{gcn_dae_forward.12} parent=69 // pred_fallthru
          _
        %v354 = vld [vmem:[#allocation2] sm:$0xff]
        %v355 = vld [vmem:[#allocation2 + $0x8] sm:$0xff]
        %v356 = vld [vmem:[#allocation2 + $0x10] sm:$0xff]
        %v357 = vld [vmem:[#allocation2 + $0x18] sm:$0xff]
        %v358 = vld [vmem:[#allocation2 + $0x20] sm:$0xff]
        %v359 = vld [vmem:[#allocation2 + $0x28] sm:$0xff]
        %v360 = vld [vmem:[#allocation2 + $0x30] sm:$0xff]
        %v361 = vld [vmem:[#allocation2 + $0x38] sm:$0xff]
        %v362 = vld [vmem:[#allocation2 + $0x40] sm:$0xff]
        %v363 = vld [vmem:[#allocation2 + $0x48] sm:$0xff]
        %v364 = vld [vmem:[#allocation2 + $0x50] sm:$0xff]
        %v365 = vld [vmem:[#allocation2 + $0x58] sm:$0xff]
        %v366 = vld [vmem:[#allocation2 + $0x60] sm:$0xff]
        %v367 = vld [vmem:[#allocation2 + $0x68] sm:$0xff]
        %v368 = vld [vmem:[#allocation2 + $0x70] sm:$0xff]
        %v369 = vld [vmem:[#allocation2 + $0x78] sm:$0xff]
        %v370 = vld [vmem:[%s293] sm:$0xff]
        %v371 = vld [vmem:[%s293 + $0x8] sm:$0xff]
        %v372 = vld [vmem:[%s293 + $0x10] sm:$0xff]
        %v373 = vld [vmem:[%s293 + $0x18] sm:$0xff]
        %v374 = vld [vmem:[%s293 + $0x20] sm:$0xff]
        %v375 = vld [vmem:[%s293 + $0x28] sm:$0xff]
        %v376 = vld [vmem:[%s293 + $0x30] sm:$0xff]
        %v377 = vld [vmem:[%s293 + $0x38] sm:$0xff]
        %v378 = vld [vmem:[%s293 + $0x40] sm:$0xff]
        %v379 = vld [vmem:[%s293 + $0x48] sm:$0xff]
        %v380 = vld [vmem:[%s293 + $0x50] sm:$0xff]
        %v381 = vld [vmem:[%s293 + $0x58] sm:$0xff]
        %v382 = vld [vmem:[%s293 + $0x60] sm:$0xff]
        %v383 = vld [vmem:[%s293 + $0x68] sm:$0xff]
        %v384 = vld [vmem:[%s293 + $0x70] sm:$0xff]
        %v385 = vld [vmem:[%s293 + $0x78] sm:$0xff]
        %v386 = vpack.c.bf16 %v371, %v370
        %v387 = vpack.c.bf16 %v373, %v372
        %v388 = vpack.c.bf16 %v375, %v374
        %v389 = vpack.c.bf16 %v377, %v376
        %v390 = vpack.c.bf16 %v379, %v378
        %v391 = vpack.c.bf16 %v381, %v380
        %v392 = vpack.c.bf16 %v383, %v382
        %v393 = vpack.c.bf16 %v385, %v384
        %v394 = vld [vmem:[%s326] sm:$0xf]
        %v395 = vld [vmem:[%s326 + $0x4] sm:$0xf]
        %v396 = vld [vmem:[%s326 + $0x8] sm:$0xf]
        %v397 = vld [vmem:[%s326 + $0xc] sm:$0xf]
        %v398 = vld [vmem:[%s326 + $0x10] sm:$0xf]
        %v399 = vld [vmem:[%s326 + $0x14] sm:$0xf]
        %v400 = vld [vmem:[%s326 + $0x18] sm:$0xf]
        %v401 = vld [vmem:[%s326 + $0x1c] sm:$0xf]
        %v402 = vld [vmem:[%s326 + $0x20] sm:$0xf]
        %v403 = vld [vmem:[%s326 + $0x24] sm:$0xf]
        %v404 = vld [vmem:[%s326 + $0x28] sm:$0xf]
        %v405 = vld [vmem:[%s326 + $0x2c] sm:$0xf]
        %v406 = vld [vmem:[%s326 + $0x30] sm:$0xf]
        %v407 = vld [vmem:[%s326 + $0x34] sm:$0xf]
        %v408 = vld [vmem:[%s326 + $0x38] sm:$0xf]
        %v409 = vld [vmem:[%s326 + $0x3c] sm:$0xf]
        %v426 = vunpack.c.l.b16 %v394
        %v427 = vunpack.c.l.b16 %v395
        %v428 = vunpack.c.l.b16 %v396
        %v429 = vunpack.c.l.b16 %v397
        %v430 = vunpack.c.l.b16 %v398
        %v431 = vunpack.c.l.b16 %v399
        %v432 = vunpack.c.l.b16 %v400
        %v433 = vunpack.c.l.b16 %v401
        %v434 = vunpack.c.l.b16 %v402
        %v435 = vunpack.c.l.b16 %v403
        %v436 = vunpack.c.l.b16 %v404
        %v437 = vunpack.c.l.b16 %v405
        %v438 = vunpack.c.l.b16 %v406
        %v439 = vunpack.c.l.b16 %v407
        %v440 = vunpack.c.l.b16 %v408
        %v441 = vunpack.c.l.b16 %v409
        %v442 = vpack.c.b16 %v427, %v426
        %v443 = vpack.c.b16 %v429, %v428
        %v444 = vpack.c.b16 %v431, %v430
        %v445 = vpack.c.b16 %v433, %v432
        %v446 = vpack.c.b16 %v435, %v434
        %v447 = vpack.c.b16 %v437, %v436
        %v448 = vpack.c.b16 %v439, %v438
        %v449 = vpack.c.b16 %v441, %v440
        %458 = vmatpush.bf16.msra.mxu0 %v449
        %459 = vmatpush.bf16.msra.mxu0 %v448
        %460 = vmatpush.bf16.msra.mxu0 %v447
        %461 = vmatpush.bf16.msra.mxu0 %v446
        %462 = vmatpush.bf16.msra.mxu0 %v445
        %463 = vmatpush.bf16.msra.mxu0 %v444
        %464 = vmatpush.bf16.msra.mxu0 %v443
        %465 = vmatpush.bf16.msra.mxu0 %v442
        %466 = vmatmul.bf16.gmra.mxu0 %v386
        %v467 = vpop.f32.mrf.mxu0
        %v468 = vadd.f32 0.0, %v467
        %v469 = vpop.f32.mrf.mxu0
        %v470 = vadd.f32 0.0, %v469
        %471 = vmatmul.bf16.gmra.mxu0 %v387
        %v472 = vpop.f32.mrf.mxu0
        %v473 = vadd.f32 0.0, %v472
        %v474 = vpop.f32.mrf.mxu0
        %v475 = vadd.f32 0.0, %v474
        %476 = vmatmul.bf16.gmra.mxu0 %v388
        %v477 = vpop.f32.mrf.mxu0
        %v478 = vadd.f32 0.0, %v477
        %v479 = vpop.f32.mrf.mxu0
        %v480 = vadd.f32 0.0, %v479
        %481 = vmatmul.bf16.gmra.mxu0 %v389
        %v482 = vpop.f32.mrf.mxu0
        %v483 = vadd.f32 0.0, %v482
        %v484 = vpop.f32.mrf.mxu0
        %v485 = vadd.f32 0.0, %v484
        %486 = vmatmul.bf16.gmra.mxu0 %v390
        %v487 = vpop.f32.mrf.mxu0
        %v488 = vadd.f32 0.0, %v487
        %v489 = vpop.f32.mrf.mxu0
        %v490 = vadd.f32 0.0, %v489
        %491 = vmatmul.bf16.gmra.mxu0 %v391
        %v492 = vpop.f32.mrf.mxu0
        %v493 = vadd.f32 0.0, %v492
        %v494 = vpop.f32.mrf.mxu0
        %v495 = vadd.f32 0.0, %v494
        %496 = vmatmul.bf16.gmra.mxu0 %v392
        %v497 = vpop.f32.mrf.mxu0
        %v498 = vadd.f32 0.0, %v497
        %v499 = vpop.f32.mrf.mxu0
        %v500 = vadd.f32 0.0, %v499
        %501 = vmatmul.bf16.gmra.mxu0 %v393
        %v502 = vpop.f32.mrf.mxu0
        %v503 = vadd.f32 0.0, %v502
        %v504 = vpop.f32.mrf.mxu0
        %v505 = vadd.f32 0.0, %v504
        %506 = vdwg.mxu0
        %v507 = vadd.f32 %v354, %v468
        %v508 = vadd.f32 %v355, %v470
        %v509 = vadd.f32 %v356, %v473
        %v510 = vadd.f32 %v357, %v475
        %v511 = vadd.f32 %v358, %v478
        %v512 = vadd.f32 %v359, %v480
        %v513 = vadd.f32 %v360, %v483
        %v514 = vadd.f32 %v361, %v485
        %v515 = vadd.f32 %v362, %v488
        %v516 = vadd.f32 %v363, %v490
        %v517 = vadd.f32 %v364, %v493
        %v518 = vadd.f32 %v365, %v495
        %v519 = vadd.f32 %v366, %v498
        %v520 = vadd.f32 %v367, %v500
        %v521 = vadd.f32 %v368, %v503
        %v522 = vadd.f32 %v369, %v505
        %523 = vst [vmem:[#allocation2] sm:$0xff] %v507
        %524 = vst [vmem:[#allocation2 + $0x8] sm:$0xff] %v508
        %525 = vst [vmem:[#allocation2 + $0x10] sm:$0xff] %v509
        %526 = vst [vmem:[#allocation2 + $0x18] sm:$0xff] %v510
        %527 = vst [vmem:[#allocation2 + $0x20] sm:$0xff] %v511
        %528 = vst [vmem:[#allocation2 + $0x28] sm:$0xff] %v512
        %529 = vst [vmem:[#allocation2 + $0x30] sm:$0xff] %v513
        %530 = vst [vmem:[#allocation2 + $0x38] sm:$0xff] %v514
        %531 = vst [vmem:[#allocation2 + $0x40] sm:$0xff] %v515
        %532 = vst [vmem:[#allocation2 + $0x48] sm:$0xff] %v516
        %533 = vst [vmem:[#allocation2 + $0x50] sm:$0xff] %v517
        %534 = vst [vmem:[#allocation2 + $0x58] sm:$0xff] %v518
        %535 = vst [vmem:[#allocation2 + $0x60] sm:$0xff] %v519
        %536 = vst [vmem:[#allocation2 + $0x68] sm:$0xff] %v520
        %537 = vst [vmem:[#allocation2 + $0x70] sm:$0xff] %v521
        %538 = vst [vmem:[#allocation2 + $0x78] sm:$0xff] %v522
        %p539 = scmp.eq.s32.totalorder %s20, 1
        // Predicated region
        $region79: #{gcn_dae_forward.12} parent=69 // pred_check
          %p540 = pneg %p539
        $region80: #{gcn_dae_forward.12} parent=69 // pred_check_branch
          %542 = sbr.rel (%p540) target = $region82
        $region81: #{gcn_dae_forward.12} parent=69 // pred_region
          %v543 = vld [vmem:[#allocation2] sm:$0xff]
          %v544 = vld [vmem:[#allocation2 + $0x8] sm:$0xff]
          %v545 = vld [vmem:[#allocation2 + $0x10] sm:$0xff]
          %v546 = vld [vmem:[#allocation2 + $0x18] sm:$0xff]
          %v547 = vld [vmem:[#allocation2 + $0x20] sm:$0xff]
          %v548 = vld [vmem:[#allocation2 + $0x28] sm:$0xff]
          %v549 = vld [vmem:[#allocation2 + $0x30] sm:$0xff]
          %v550 = vld [vmem:[#allocation2 + $0x38] sm:$0xff]
          %v551 = vld [vmem:[#allocation2 + $0x40] sm:$0xff]
          %v552 = vld [vmem:[#allocation2 + $0x48] sm:$0xff]
          %v553 = vld [vmem:[#allocation2 + $0x50] sm:$0xff]
          %v554 = vld [vmem:[#allocation2 + $0x58] sm:$0xff]
          %v555 = vld [vmem:[#allocation2 + $0x60] sm:$0xff]
          %v556 = vld [vmem:[#allocation2 + $0x68] sm:$0xff]
          %v557 = vld [vmem:[#allocation2 + $0x70] sm:$0xff]
          %v558 = vld [vmem:[#allocation2 + $0x78] sm:$0xff]
          %v559 = vmax.f32 %v543, 0.0
          %v560 = vmax.f32 %v544, 0.0
          %v561 = vmax.f32 %v545, 0.0
          %v562 = vmax.f32 %v546, 0.0
          %v563 = vmax.f32 %v547, 0.0
          %v564 = vmax.f32 %v548, 0.0
          %v565 = vmax.f32 %v549, 0.0
          %v566 = vmax.f32 %v550, 0.0
          %v567 = vmax.f32 %v551, 0.0
          %v568 = vmax.f32 %v552, 0.0
          %v569 = vmax.f32 %v553, 0.0
          %v570 = vmax.f32 %v554, 0.0
          %v571 = vmax.f32 %v555, 0.0
          %v572 = vmax.f32 %v556, 0.0
          %v573 = vmax.f32 %v557, 0.0
          %v574 = vmax.f32 %v558, 0.0
          %v575 = vpack.c.bf16 %v560, %v559
          %v576 = vpack.c.bf16 %v562, %v561
          %v577 = vpack.c.bf16 %v564, %v563
          %v578 = vpack.c.bf16 %v566, %v565
          %v579 = vpack.c.bf16 %v568, %v567
          %v580 = vpack.c.bf16 %v570, %v569
          %v581 = vpack.c.bf16 %v572, %v571
          %v582 = vpack.c.bf16 %v574, %v573
          %v583 = vld [vmem:[%s2] sm:$0xf]
          %v584 = vld [vmem:[%s2 + $0x4] sm:$0xf]
          %v585 = vld [vmem:[%s2 + $0x8] sm:$0xf]
          %v586 = vld [vmem:[%s2 + $0xc] sm:$0xf]
          %v587 = vld [vmem:[%s2 + $0x10] sm:$0xf]
          %v588 = vld [vmem:[%s2 + $0x14] sm:$0xf]
          %v589 = vld [vmem:[%s2 + $0x18] sm:$0xf]
          %v590 = vld [vmem:[%s2 + $0x1c] sm:$0xf]
          %v591 = vld [vmem:[%s2 + $0x20] sm:$0xf]
          %v592 = vld [vmem:[%s2 + $0x24] sm:$0xf]
          %v593 = vld [vmem:[%s2 + $0x28] sm:$0xf]
          %v594 = vld [vmem:[%s2 + $0x2c] sm:$0xf]
          %v595 = vld [vmem:[%s2 + $0x30] sm:$0xf]
          %v596 = vld [vmem:[%s2 + $0x34] sm:$0xf]
          %v597 = vld [vmem:[%s2 + $0x38] sm:$0xf]
          %v598 = vld [vmem:[%s2 + $0x3c] sm:$0xf]
          %v599 = vld [vmem:[%s3] sm:$0x1]
          %v601 = vperm.slane %v599, 0
          %v619 = vunpack.c.l.b16 %v583
          %v620 = vunpack.c.l.b16 %v584
          %v621 = vunpack.c.l.b16 %v585
          %v622 = vunpack.c.l.b16 %v586
          %v623 = vunpack.c.l.b16 %v587
          %v624 = vunpack.c.l.b16 %v588
          %v625 = vunpack.c.l.b16 %v589
          %v626 = vunpack.c.l.b16 %v590
          %v627 = vunpack.c.l.b16 %v591
          %v628 = vunpack.c.l.b16 %v592
          %v629 = vunpack.c.l.b16 %v593
          %v630 = vunpack.c.l.b16 %v594
          %v631 = vunpack.c.l.b16 %v595
          %v632 = vunpack.c.l.b16 %v596
          %v633 = vunpack.c.l.b16 %v597
          %v634 = vunpack.c.l.b16 %v598
          %v635 = vpack.c.b16 %v620, %v619
          %v636 = vpack.c.b16 %v622, %v621
          %v637 = vpack.c.b16 %v624, %v623
          %v638 = vpack.c.b16 %v626, %v625
          %v639 = vpack.c.b16 %v628, %v627
          %v640 = vpack.c.b16 %v630, %v629
          %v641 = vpack.c.b16 %v632, %v631
          %v642 = vpack.c.b16 %v634, %v633
          %651 = vmatpush.bf16.msra.mxu0 %v642
          %652 = vmatpush.bf16.msra.mxu0 %v641
          %653 = vmatpush.bf16.msra.mxu0 %v640
          %654 = vmatpush.bf16.msra.mxu0 %v639
          %655 = vmatpush.bf16.msra.mxu0 %v638
          %656 = vmatpush.bf16.msra.mxu0 %v637
          %657 = vmatpush.bf16.msra.mxu0 %v636
          %658 = vmatpush.bf16.msra.mxu0 %v635
          %659 = vmatmul.bf16.gmra.mxu0 %v575
          %v660 = vpop.f32.mrf.mxu0
          %v661 = vadd.f32 %v601, %v660
          %v662 = vpop.f32.mrf.mxu0
          %v663 = vadd.f32 %v601, %v662
          %664 = vmatmul.bf16.gmra.mxu0 %v576
          %v665 = vpop.f32.mrf.mxu0
          %v666 = vadd.f32 %v601, %v665
          %v667 = vpop.f32.mrf.mxu0
          %v668 = vadd.f32 %v601, %v667
          %669 = vmatmul.bf16.gmra.mxu0 %v577
          %v670 = vpop.f32.mrf.mxu0
          %v671 = vadd.f32 %v601, %v670
          %v672 = vpop.f32.mrf.mxu0
          %v673 = vadd.f32 %v601, %v672
          %674 = vmatmul.bf16.gmra.mxu0 %v578
          %v675 = vpop.f32.mrf.mxu0
          %v676 = vadd.f32 %v601, %v675
          %v677 = vpop.f32.mrf.mxu0
          %v678 = vadd.f32 %v601, %v677
          %679 = vmatmul.bf16.gmra.mxu0 %v579
          %v680 = vpop.f32.mrf.mxu0
          %v681 = vadd.f32 %v601, %v680
          %v682 = vpop.f32.mrf.mxu0
          %v683 = vadd.f32 %v601, %v682
          %684 = vmatmul.bf16.gmra.mxu0 %v580
          %v685 = vpop.f32.mrf.mxu0
          %v686 = vadd.f32 %v601, %v685
          %v687 = vpop.f32.mrf.mxu0
          %v688 = vadd.f32 %v601, %v687
          %689 = vmatmul.bf16.gmra.mxu0 %v581
          %v690 = vpop.f32.mrf.mxu0
          %v691 = vadd.f32 %v601, %v690
          %v692 = vpop.f32.mrf.mxu0
          %v693 = vadd.f32 %v601, %v692
          %694 = vmatmul.bf16.gmra.mxu0 %v582
          %v695 = vpop.f32.mrf.mxu0
          %v696 = vadd.f32 %v601, %v695
          %v697 = vpop.f32.mrf.mxu0
          %v698 = vadd.f32 %v601, %v697
          %699 = vdwg.mxu0
          %v700 = vpack.c.bf16 %v661, %v661
          %v701 = vpack.c.bf16 %v663, %v663
          %v702 = vpack.c.bf16 %v666, %v666
          %v703 = vpack.c.bf16 %v668, %v668
          %v704 = vpack.c.bf16 %v671, %v671
          %v705 = vpack.c.bf16 %v673, %v673
          %v706 = vpack.c.bf16 %v676, %v676
          %v707 = vpack.c.bf16 %v678, %v678
          %v708 = vpack.c.bf16 %v681, %v681
          %v709 = vpack.c.bf16 %v683, %v683
          %v710 = vpack.c.bf16 %v686, %v686
          %v711 = vpack.c.bf16 %v688, %v688
          %v712 = vpack.c.bf16 %v691, %v691
          %v713 = vpack.c.bf16 %v693, %v693
          %v714 = vpack.c.bf16 %v696, %v696
          %v715 = vpack.c.bf16 %v698, %v698
          %716 = vst [vmem:[%s332] sm:$0xf] %v700
          %717 = vst [vmem:[%s332 + $0x4] sm:$0xf] %v701
          %718 = vst [vmem:[%s332 + $0x8] sm:$0xf] %v702
          %719 = vst [vmem:[%s332 + $0xc] sm:$0xf] %v703
          %720 = vst [vmem:[%s332 + $0x10] sm:$0xf] %v704
          %721 = vst [vmem:[%s332 + $0x14] sm:$0xf] %v705
          %722 = vst [vmem:[%s332 + $0x18] sm:$0xf] %v706
          %723 = vst [vmem:[%s332 + $0x1c] sm:$0xf] %v707
          %724 = vst [vmem:[%s332 + $0x20] sm:$0xf] %v708
          %725 = vst [vmem:[%s332 + $0x24] sm:$0xf] %v709
          %726 = vst [vmem:[%s332 + $0x28] sm:$0xf] %v710
          %727 = vst [vmem:[%s332 + $0x2c] sm:$0xf] %v711
          %728 = vst [vmem:[%s332 + $0x30] sm:$0xf] %v712
          %729 = vst [vmem:[%s332 + $0x34] sm:$0xf] %v713
          %730 = vst [vmem:[%s332 + $0x38] sm:$0xf] %v714
          %731 = vst [vmem:[%s332 + $0x3c] sm:$0xf] %v715
        $region82: #{gcn_dae_forward.12} parent=69 // pred_fallthru
          _
        %s732 = smul.u32 16, %s19
        %p733 = scmp.lt.s32.totalorder %s732, 31
        %s734 = scalar_select %p733, %s732, 31
        %s735 = smul.addr %s734, 4
        %s736 = scalar_lea.vmem %s4, %s735
        // Predicated region
        $region83: #{gcn_dae_forward.12} parent=69 // pred_check
          %p737 = pneg %p141
        $region84: #{gcn_dae_forward.12} parent=69 // pred_check_branch
          %739 = sbr.rel (%p737) target = $region86
        $region85: #{gcn_dae_forward.12} parent=69 // pred_region
          %s740 = smul.u32 16, %s19
        $region86: #{gcn_dae_forward.12} parent=69 // pred_fallthru
          _
      $region70: #{gcn_dae_forward.12} parent=5 // pred_fallthru
        _
      %p741 = scmp.le.s32.totalorder 2, %s10
      // Predicated region
      $region87: #{gcn_dae_forward.12} parent=5 // pred_check
        %p742 = pneg %p741
      $region88: #{gcn_dae_forward.12} parent=5 // pred_check_branch
        %744 = sbr.rel (%p742) target = $region90
      $region89: #{gcn_dae_forward.12} parent=5 // pred_region
        %s745 = ssub.s32 %s10, 2
        // Predicated region
        $region91: #{gcn_dae_forward.12} parent=89 // pred_check
          %p746 = pneg %p147
        $region92: #{gcn_dae_forward.12} parent=89 // pred_check_branch
          %748 = sbr.rel (%p746) target = $region94
        $region93: #{gcn_dae_forward.12} parent=89 // pred_region
          %s749 = smul.u32 16, %s21
          %p750 = scmp.lt.s32.totalorder %s749, 31
          %s751 = scalar_select %p750, %s749, 31
          %s752 = smul.addr %s751, 4
          %s753 = scalar_lea.vmem %s4, %s752
        $region94: #{gcn_dae_forward.12} parent=89 // pred_fallthru
          _
      $region90: #{gcn_dae_forward.12} parent=5 // pred_fallthru
        _
    $region6: #{gcn_dae_forward.12} parent=1 // loop_footer
      %s14 = sadd.s32 1, %s10
    $region7: #{gcn_dae_forward.12} parent=1 // loop_footer_branch
      %9 = sbr.rel target = $region3
    $region8: #{gcn_dae_forward.12} parent=1 // loop_exit
      _

</llo_original>
